<compile_context>
chip_gen: v7x
topology: tpu7x:2x2x1
jax: 0.10.0
libtpu: 0.0.40
codegen_flags: <defaults>
</compile_context>

<pallas_src>
import functools

import jax
import jax.numpy as jnp
from jax.experimental import pallas as pl
from jax.experimental.pallas import tpu as pltpu


def _round_up(x, m):
    return ((x + m - 1) // m) * m


def _vmem_limit_bytes():
    """Per-generation VMEM budget: v7x has 64 MiB/TC (leave headroom); v5e/v6e have 128 MiB."""
    try:
        kind = jax.devices()[0].device_kind.lower()
    except Exception:
        kind = ""
    if "v7" in kind:
        return 48 * 1024 * 1024
    # Conservative default that also works on older parts; raise toward ~100 MiB on v5e/v6e
    # when using large (H, V) tiles.
    return 64 * 1024 * 1024


def prepare_params(params, *, num_layers, hidden_size, weight_dtype=jnp.bfloat16):
    """Cast matmul weights to `weight_dtype` and fold GRU biases.

    PyTorch GRU cell:
        r = sigmoid(W_ir x + b_ir + W_hr h + b_hr)
        z = sigmoid(W_iz x + b_iz + W_hz h + b_hz)
        n = tanh  (W_in x + b_in + r * (W_hn h + b_hn))
    b_i* and b_h* only appear summed for the r/z gates, so they are folded into a single
    input-side bias b_gi = [b_ir+b_hr, b_iz+b_hz, b_in]; only b_hn stays on the hidden side.
    """
    H = hidden_size
    wihT, whhT, b_gi, b_hn = [], [], [], []
    for l in range(num_layers):
        w_ih_T, w_hh_T, bih, bhh = params["gru"][l]
        wihT.append(w_ih_T.astype(weight_dtype))
        whhT.append(w_hh_T.astype(weight_dtype))
        fused = jnp.concatenate([bih[: 2 * H] + bhh[: 2 * H], bih[2 * H:]])
        b_gi.append(fused.reshape(1, 3 * H).astype(jnp.float32))
        b_hn.append(bhh[2 * H:].reshape(1, H).astype(jnp.float32))
    return {
        "wihT": wihT, "whhT": whhT, "b_gi": b_gi, "b_hn": b_hn,
        "fc_wT": params["fc_wT"].astype(weight_dtype),
        "fc_b": params["fc_b"].reshape(1, -1).astype(jnp.float32),
    }


def layer0_input_projection(emb, prep):
    """Hoisted layer-0 input projection: one big (S*B, E) x (E, 3H) matmul, stored in bf16.

    The (f32) layer-0 bias is added inside the kernel, so the HBM-resident pre-activation is
    half the size of the old f32 version.
    """
    S, B, E = emb.shape
    wd = prep["wihT"][0].dtype
    gi0 = jnp.dot(emb.astype(wd).reshape(S * B, E), prep["wihT"][0],
                  preferred_element_type=jnp.float32)
    return gi0.reshape(S, B, -1).astype(wd)


def make_gru_recurrence_kernel(num_layers, hidden_size, time_chunk, seq_len, seq_pad):
    """Kernel for one (batch-tile, time-chunk): Tc GRU timesteps, emitting bf16 top-layer h.

    The layer-0 input-side pre-activation arrives precomputed in bf16 (gi0_ref); only the
    recurrent projections (and layer>=1 input projections) stay on the serial per-step path.
    fc + log_softmax live in a separate kernel.
    """
    L, H, Tc = num_layers, hidden_size, time_chunk
    nparams = 4 * L - 1          # whhT(L) + wihT(L-1) + b_gi(L) + b_hn(L)
    need_mask = seq_pad != seq_len

    def kernel(gi0_ref, *refs):
        p = refs[:nparams]
        y_ref = refs[nparams]        # (Tc, tb, H) bf16 top-layer outputs for this chunk
        hN_ref = refs[nparams + 1]   # (L, tb, H) f32 resident output; doubles as recurrent carry

        whh = p[0:L]
        wih = p[L: 2 * L - 1]                 # layers 1..L-1 (layer 0 hoisted)
        b_gi = p[2 * L - 1: 3 * L - 1]        # all L layers (layer 0 bias added here, in f32)
        b_hn = p[3 * L - 1: 4 * L - 1]

        # Zero the recurrent state at the start of each batch tile's time loop.
        @pl.when(pl.program_id(1) == 0)
        def _():
            hN_ref[...] = jnp.zeros_like(hN_ref)

        cdt = whh[0].dtype               # matmul operand dtype (bf16 by default)
        whh_v = [w[...] for w in whh]    # weights loaded once per chunk (VMEM resident)
        wih_v = [w[...] for w in wih]
        b_gi_v = [b[...] for b in b_gi]
        b_hn_v = [b[...] for b in b_hn]

        t0 = pl.program_id(1) * Tc       # global timestep offset (for tail masking)

        def step(s, h):
            gi0 = gi0_ref[s].astype(jnp.float32) + b_gi_v[0]   # (tb, 3H) f32
            x = None
            new_h = []
            for l in range(L):
                h_prev = h[l]            # (tb, H) f32
                gh = jnp.dot(h_prev.astype(cdt), whh_v[l],
                             preferred_element_type=jnp.float32)
                if l == 0:
                    gi = gi0
                else:
                    gi = jnp.dot(x, wih_v[l - 1],
                                 preferred_element_type=jnp.float32) + b_gi_v[l]
                # r/z share one (tb, 2H) add + sigmoid (biases pre-folded into gi).
                rz = jax.nn.sigmoid(gi[:, : 2 * H] + gh[:, : 2 * H])
                r, z = rz[:, :H], rz[:, H:]
                n = jnp.tanh(gi[:, 2 * H:] + r * (gh[:, 2 * H:] + b_hn_v[l]))
                h_l = n + z * (h_prev - n)           # == (1-z)*n + z*h_prev, one fewer VPU op
                if need_mask:
                    # Padded tail timesteps must not advance the state (final hidden is exact).
                    h_l = jnp.where((t0 + s) < seq_len, h_l, h_prev)
                new_h.append(h_l)
                x = h_l.astype(cdt)
            y_ref[s] = x                  # bf16 top-layer output for this timestep
            return tuple(new_h)

        h0 = tuple(hN_ref[l] for l in range(L))
        hT = jax.lax.fori_loop(0, Tc, step, h0, unroll=True)
        for l in range(L):
            hN_ref[l] = hT[l]            # written once per chunk, not once per timestep

    return kernel


def make_fc_logsoftmax_kernel(num_vocab_tiles):
    """fc + LogSoftmax over the flattened (rows = S*B) hidden stream, tiled over vocab.

    Grid axis 1 has length 2*nv: phase 1 (v < nv) accumulates the running max / sum(exp) over
    vocab tiles; phase 2 (v >= nv) recomputes each tile's logits and writes logp = logits - lse.
    The output index map 'parks' on block (r, 0) during phase 1, so nothing is flushed to HBM
    until the correct phase-2 values are written.
    """
    nv = num_vocab_tiles

    def kernel(y_ref, w_ref, b_ref, logp_ref, m_sc, l_sc):
        v = pl.program_id(1)

        @pl.when(v == 0)
        def _():
            m_sc[...] = jnp.full(m_sc.shape, -jnp.inf, dtype=m_sc.dtype)
            l_sc[...] = jnp.zeros(l_sc.shape, dtype=l_sc.dtype)

        logits = (jnp.dot(y_ref[...], w_ref[...], preferred_element_type=jnp.float32)
                  + b_ref[...])                                   # (Rt, Vt) f32

        @pl.when(v < nv)                 # phase 1: online max / LSE accumulation
        def _():
            m_new = jnp.maximum(m_sc[...], jnp.max(logits, axis=-1, keepdims=True))
            l_sc[...] = (l_sc[...] * jnp.exp(m_sc[...] - m_new)
                         + jnp.sum(jnp.exp(logits - m_new), axis=-1, keepdims=True))
            m_sc[...] = m_new

        @pl.when(v >= nv)                # phase 2: normalize and store (bf16 on store only)
        def _():
            lse = m_sc[...] + jnp.log(l_sc[...])
            logp_ref[...] = (logits - lse).astype(logp_ref.dtype)

    return kernel


def language_model_forward(x_ids, params, *, num_layers, hidden_size,
                           time_chunk=16, batch_tile=128, row_tile=256, vocab_tile=2048,
                           weight_dtype=jnp.bfloat16, logp_dtype=jnp.bfloat16):
    """x_ids: int32 [seq_len, batch]. Returns (log_probs [S,B,V], hidden [L,B,H])."""
    seq_len, batch = x_ids.shape
    emb_table = params["embedding"]            # (vocab, emb_dim); row 0 zero (padding_idx=0)
    vocab = emb_table.shape[0]
    H, L = hidden_size, num_layers

    # ---- tiling: MXU-sized batch tiles, seq padded UP to a multiple of the time chunk ----
    Bp8 = _round_up(batch, 8)
    tb = max(8, min(_round_up(int(batch_tile), 8), Bp8))
    Bp = _round_up(batch, tb)
    Tc = max(1, min(int(time_chunk), seq_len))
    S_pad = _round_up(seq_len, Tc)

    x_pad = x_ids
    if (S_pad, Bp) != (seq_len, batch):
        x_pad = jnp.pad(x_ids, ((0, S_pad - seq_len), (0, Bp - batch)))  # pad token id 0

    prep = prepare_params(params, num_layers=L, hidden_size=H, weight_dtype=weight_dtype)

    # Embedding gather + hoisted layer-0 input projection stay in plain JAX/XLA glue.
    emb = jnp.take(emb_table, x_pad, axis=0)                 # (S_pad, Bp, E)
    gi0 = layer0_input_projection(emb, prep)                 # (S_pad, Bp, 3H) bf16

    flat = (list(prep["whhT"]) + list(prep["wihT"][1:])
            + list(prep["b_gi"]) + list(prep["b_hn"]))

    rec_kernel = make_gru_recurrence_kernel(L, H, Tc, seq_len, S_pad)
    vmem_limit = _vmem_limit_bytes()

    def const_spec(arr):
        # Time/batch-invariant weights: constant index_map, fetched once and kept VMEM-resident.
        # (pl.Buffered(1) single-buffering would halve their footprint; left off for safety.)
        return pl.BlockSpec(arr.shape, lambda b, t: (0,) * arr.ndim)

    y, hidden = pl.pallas_call(
        rec_kernel,
        out_shape=(jax.ShapeDtypeStruct((S_pad, Bp, H), weight_dtype),   # bf16 hidden stream
                   jax.ShapeDtypeStruct((L, Bp, H), jnp.float32)),
        grid_spec=pltpu.PrefetchScalarGridSpec(
            num_scalar_prefetch=0,
            grid=(Bp // tb, S_pad // Tc),           # (batch tiles, time chunks)
            in_specs=[pl.BlockSpec((Tc, tb, 3 * H), lambda b, t: (t, b, 0))]
                     + [const_spec(a) for a in flat],
            out_specs=[pl.BlockSpec((Tc, tb, H), lambda b, t: (t, b, 0)),
                       pl.BlockSpec((L, tb, H), lambda b, t: (0, b, 0))],  # resident over time
        ),
        compiler_params=pltpu.CompilerParams(
            dimension_semantics=("parallel", "arbitrary"),  # batch parallel, time sequential
            vmem_limit_bytes=vmem_limit,
        ),
    )(gi0, *flat)

    # ---- fc + log_softmax: row-tiled over the (S*B, H) stream, vocab-tiled weights ----
    N = S_pad * Bp
    Rt = max(8, min(_round_up(int(row_tile), 8), N))
    Np = _round_up(N, Rt)
    V128 = _round_up(vocab, 128)
    Vt = max(128, min(_round_up(int(vocab_tile), 128), V128))
    Vpad = _round_up(vocab, Vt)
    nv = Vpad // Vt

    y_flat = y.reshape(N, H)
    if Np != N:
        y_flat = jnp.pad(y_flat, ((0, Np - N), (0, 0)))      # zero rows -> finite logp, sliced

    fc_wT = prep["fc_wT"]
    fc_b = prep["fc_b"]
    if Vpad != vocab:
        fc_wT = jnp.pad(fc_wT, ((0, 0), (0, Vpad - vocab)))
        fc_b = jnp.pad(fc_b, ((0, 0), (0, Vpad - vocab)), constant_values=-1e9)  # no softmax mass

    fc_kernel = make_fc_logsoftmax_kernel(nv)

    logp_flat = pl.pallas_call(
        fc_kernel,
        out_shape=jax.ShapeDtypeStruct((Np, Vpad), logp_dtype),
        grid_spec=pltpu.PrefetchScalarGridSpec(
            num_scalar_prefetch=0,
            grid=(Np // Rt, 2 * nv),                 # (row tiles, 2 passes over vocab tiles)
            in_specs=[
                pl.BlockSpec((Rt, H), lambda r, v: (r, 0)),          # resident per row tile
                pl.BlockSpec((H, Vt), lambda r, v: (0, v % nv)),     # vocab-tiled weights
                pl.BlockSpec((1, Vt), lambda r, v: (0, v % nv)),
            ],
            out_specs=pl.BlockSpec((Rt, Vt),
                                   lambda r, v: (r, jnp.maximum(v - nv, 0))),
            scratch_shapes=[pltpu.VMEM((Rt, 1), jnp.float32),        # running max
                            pltpu.VMEM((Rt, 1), jnp.float32)],       # running sum(exp)
        ),
        compiler_params=pltpu.CompilerParams(
            dimension_semantics=("parallel", "arbitrary"),
            vmem_limit_bytes=vmem_limit,
        ),
    )(y_flat, fc_wT, fc_b)

    logp = logp_flat[:N].reshape(S_pad, Bp, Vpad)[:seq_len, :batch, :vocab]
    return logp, hidden[:, :batch]


def init_params(key, vocab_size, embedding_dim, hidden_size, num_layers):
    keys = jax.random.split(key, 3 + 4 * num_layers)
    scale = 1.0 / jnp.sqrt(hidden_size)

    emb = jax.random.normal(keys[0], (vocab_size, embedding_dim), jnp.float32)
    emb = emb.at[0].set(0.0)  # padding_idx=0 -> zero embedding row

    gru = []
    for l in range(num_layers):
        in_dim = embedding_dim if l == 0 else hidden_size
        k = keys[3 + 4 * l: 3 + 4 * (l + 1)]
        wihT = jax.random.uniform(k[0], (in_dim, 3 * hidden_size), jnp.float32, -scale, scale)
        whhT = jax.random.uniform(k[1], (hidden_size, 3 * hidden_size), jnp.float32, -scale, scale)
        bih = jax.random.uniform(k[2], (3 * hidden_size,), jnp.float32, -scale, scale)
        bhh = jax.random.uniform(k[3], (3 * hidden_size,), jnp.float32, -scale, scale)
        gru.append((wihT, whhT, bih, bhh))

    fc_wT = jax.random.uniform(keys[1], (hidden_size, vocab_size), jnp.float32, -scale, scale)
    fc_b = jax.random.uniform(keys[2], (vocab_size,), jnp.float32, -scale, scale)
    return {"embedding": emb, "gru": gru, "fc_wT": fc_wT, "fc_b": fc_b}


def reference_forward(x_ids, params, *, num_layers, hidden_size, weight_dtype=jnp.bfloat16):
    """Pure-JAX mirror of the PyTorch forward (hidden=None, lengths=None).

    Uses the same bf16 weight / gi0 rounding and f32 accumulation as the kernels so the
    comparison isolates kernel bugs.
    """
    H, L = hidden_size, num_layers
    prep = prepare_params(params, num_layers=L, hidden_size=H, weight_dtype=weight_dtype)
    cdt = weight_dtype
    S, B = x_ids.shape
    emb = jnp.take(params["embedding"], x_ids, axis=0)
    gi0_all = layer0_input_projection(emb, prep)          # (S, B, 3H) bf16, bias not folded
    h0 = jnp.zeros((L, B, H), jnp.float32)

    def step(h, gi0):
        x = None
        new_h = []
        for l in range(L):
            h_prev = h[l]
            gh = jnp.dot(h_prev.astype(cdt), prep["whhT"][l],
                         preferred_element_type=jnp.float32)
            if l == 0:
                gi = gi0.astype(jnp.float32) + prep["b_gi"][0]
            else:
                gi = jnp.dot(x, prep["wihT"][l],
                             preferred_element_type=jnp.float32) + prep["b_gi"][l]
            rz = jax.nn.sigmoid(gi[:, : 2 * H] + gh[:, : 2 * H])
            r, z = rz[:, :H], rz[:, H:]
            n = jnp.tanh(gi[:, 2 * H:] + r * (gh[:, 2 * H:] + prep["b_hn"][l]))
            h_l = n + z * (h_prev - n)
            new_h.append(h_l)
            x = h_l.astype(cdt)
        return jnp.stack(new_h), x

    h_final, ys = jax.lax.scan(step, h0, gi0_all)          # ys: (S, B, H) bf16
    logits = (jnp.dot(ys.reshape(S * B, H), prep["fc_wT"],
                      preferred_element_type=jnp.float32).reshape(S, B, -1)
              + prep["fc_b"])
    logp = jax.nn.log_softmax(logits, axis=2)
    return logp, h_final


if __name__ == "__main__":
    # Small but representative shapes; seq_len/batch deliberately NOT multiples of the tiles
    # so the time-tail masking, batch padding, row padding and vocab tiling paths all run.
    vocab_size, embedding_dim, hidden_size, num_layers = 256, 64, 128, 2
    seq_len, batch = 18, 12

    key = jax.random.PRNGKey(0)
    k_param, k_data = jax.random.split(key)
    params = init_params(k_param, vocab_size, embedding_dim, hidden_size, num_layers)
    x = jax.random.randint(k_data, (seq_len, batch), 0, vocab_size, dtype=jnp.int32)

    fwd = functools.partial(language_model_forward, num_layers=num_layers,
                            hidden_size=hidden_size, time_chunk=8, batch_tile=128,
                            row_tile=256, vocab_tile=128, logp_dtype=jnp.bfloat16)
    logp, hidden = jax.jit(fwd)(x, params)
    jax.block_until_ready((logp, hidden))

    ref_fn = functools.partial(reference_forward, num_layers=num_layers, hidden_size=hidden_size)
    ref_logp, ref_hidden = jax.jit(ref_fn)(x, params)
    jax.block_until_ready((ref_logp, ref_hidden))

    assert logp.shape == (seq_len, batch, vocab_size)
    assert hidden.shape == (num_layers, batch, hidden_size)
    # logp is stored in bf16 (halves the dominant HBM write); compare against the f32 reference
    # with a bf16-rounding tolerance.  The hidden state stays f32 and must match tightly.
    logp_err = float(jnp.max(jnp.abs(logp.astype(jnp.float32) - ref_logp)))
    hid_err = float(jnp.max(jnp.abs(hidden - ref_hidden)))
    assert logp_err < 8e-2, f"log-prob mismatch vs reference: {logp_err}"
    assert hid_err < 2e-3, f"hidden-state mismatch vs reference: {hid_err}"

    # TODO(synk): pack_padded_sequence / variable `lengths` masking path not implemented
    # (lengths=None case only, matching the default PyTorch forward path).
    print("KERNEL_OK")
</pallas_src>

<mosaic_0001>
module attributes {stable_mosaic.version = 11 : i64} {
  func.func @kernel(%arg0: i32, %arg1: i32, %arg2: memref<8x16x384xbf16, #tpu.memory_space<vmem>>, %arg3: memref<128x384xbf16, #tpu.memory_space<vmem>>, %arg4: memref<128x384xbf16, #tpu.memory_space<vmem>>, %arg5: memref<128x384xbf16, #tpu.memory_space<vmem>>, %arg6: memref<1x384xf32, #tpu.memory_space<vmem>>, %arg7: memref<1x384xf32, #tpu.memory_space<vmem>>, %arg8: memref<1x128xf32, #tpu.memory_space<vmem>>, %arg9: memref<1x128xf32, #tpu.memory_space<vmem>>, %arg10: memref<8x16x128xbf16, #tpu.memory_space<vmem>>, %arg11: memref<2x16x128xf32, #tpu.memory_space<vmem>>) attributes {dimension_semantics = [#tpu.dimension_semantics<parallel>, #tpu.dimension_semantics<arbitrary>], iteration_bounds = array<i64: 1, 3>, scalar_prefetch = 0 : i64, scratch_operands = 0 : i64, tpu.core_type = #tpu.core_type<tc>, window_params = [{transform_indices = @transform_0, window_bounds = array<i64: 8, 16, 384>}, {pipeline_mode = #tpu.pipeline_mode<synchronous>, transform_indices = @transform_1, window_bounds = array<i64: 128, 384>}, {pipeline_mode = #tpu.pipeline_mode<synchronous>, transform_indices = @transform_2, window_bounds = array<i64: 128, 384>}, {pipeline_mode = #tpu.pipeline_mode<synchronous>, transform_indices = @transform_3, window_bounds = array<i64: 128, 384>}, {pipeline_mode = #tpu.pipeline_mode<synchronous>, transform_indices = @transform_4, window_bounds = array<i64: 1, 384>}, {pipeline_mode = #tpu.pipeline_mode<synchronous>, transform_indices = @transform_5, window_bounds = array<i64: 1, 384>}, {pipeline_mode = #tpu.pipeline_mode<synchronous>, transform_indices = @transform_6, window_bounds = array<i64: 1, 128>}, {pipeline_mode = #tpu.pipeline_mode<synchronous>, transform_indices = @transform_7, window_bounds = array<i64: 1, 128>}, {transform_indices = @transform_8, window_bounds = array<i64: 8, 16, 128>}, {transform_indices = @transform_9, window_bounds = array<i64: 2, 16, 128>}]} {
    %c0_i32 = arith.constant 0 : i32
    %0 = arith.cmpi eq, %arg1, %c0_i32 : i32
    %1 = arith.extui %0 : i1 to i32
    %c0_i32_0 = arith.constant 0 : i32
    %2 = arith.cmpi ne, %1, %c0_i32_0 : i32
    scf.if %2 {
      %cst_113 = arith.constant 0.000000e+00 : f32
      %541 = vector.broadcast %cst_113 : f32 to vector<2x16x128xf32>
      %c0_114 = arith.constant 0 : index
      %c0_115 = arith.constant 0 : index
      %c0_116 = arith.constant 0 : index
      %542 = vector.load %arg11[%c0_114, %c0_115, %c0_116] : memref<2x16x128xf32, #tpu.memory_space<vmem>>, vector<2x16x128xf32>
      tpu.vector_store %arg11[%c0_114, %c0_115, %c0_116], %541 {strides = array<i32>} : memref<2x16x128xf32, #tpu.memory_space<vmem>>, vector<2x16x128xf32>,
    } else {
    }
    %c0 = arith.constant 0 : index
    %c0_1 = arith.constant 0 : index
    %3 = vector.load %arg3[%c0, %c0_1] : memref<128x384xbf16, #tpu.memory_space<vmem>>, vector<128x384xbf16>
    %c0_2 = arith.constant 0 : index
    %c0_3 = arith.constant 0 : index
    %4 = vector.load %arg4[%c0_2, %c0_3] : memref<128x384xbf16, #tpu.memory_space<vmem>>, vector<128x384xbf16>
    %c0_4 = arith.constant 0 : index
    %c0_5 = arith.constant 0 : index
    %5 = vector.load %arg5[%c0_4, %c0_5] : memref<128x384xbf16, #tpu.memory_space<vmem>>, vector<128x384xbf16>
    %c0_6 = arith.constant 0 : index
    %c0_7 = arith.constant 0 : index
    %6 = vector.load %arg6[%c0_6, %c0_7] : memref<1x384xf32, #tpu.memory_space<vmem>>, vector<1x384xf32>
    %c0_8 = arith.constant 0 : index
    %c0_9 = arith.constant 0 : index
    %7 = vector.load %arg7[%c0_8, %c0_9] : memref<1x384xf32, #tpu.memory_space<vmem>>, vector<1x384xf32>
    %c0_10 = arith.constant 0 : index
    %c0_11 = arith.constant 0 : index
    %8 = vector.load %arg8[%c0_10, %c0_11] : memref<1x128xf32, #tpu.memory_space<vmem>>, vector<1x128xf32>
    %c0_12 = arith.constant 0 : index
    %c0_13 = arith.constant 0 : index
    %9 = vector.load %arg9[%c0_12, %c0_13] : memref<1x128xf32, #tpu.memory_space<vmem>>, vector<1x128xf32>
    %c8_i32 = arith.constant 8 : i32
    %10 = arith.muli %arg1, %c8_i32 : i32
    %c0_14 = arith.constant 0 : index
    %c0_15 = arith.constant 0 : index
    %c0_16 = arith.constant 0 : index
    %11 = vector.load %arg11[%c0_14, %c0_15, %c0_16] : memref<2x16x128xf32, #tpu.memory_space<vmem>>, vector<1x16x128xf32>
    %12 = vector.shape_cast %11 : vector<1x16x128xf32> to vector<16x128xf32>
    %c1 = arith.constant 1 : index
    %c0_17 = arith.constant 0 : index
    %c0_18 = arith.constant 0 : index
    %13 = vector.load %arg11[%c1, %c0_17, %c0_18] : memref<2x16x128xf32, #tpu.memory_space<vmem>>, vector<1x16x128xf32>
    %14 = vector.shape_cast %13 : vector<1x16x128xf32> to vector<16x128xf32>
    %c0_i32_19 = arith.constant 0 : i32
    %15 = arith.index_cast %c0_i32_19 : i32 to index
    %c0_20 = arith.constant 0 : index
    %c0_21 = arith.constant 0 : index
    %16 = vector.load %arg2[%15, %c0_20, %c0_21] : memref<8x16x384xbf16, #tpu.memory_space<vmem>>, vector<1x16x384xbf16>
    %17 = vector.shape_cast %16 : vector<1x16x384xbf16> to vector<16x384xbf16>
    %18 = arith.extf %17 : vector<16x384xbf16> to vector<16x384xf32>
    %19 = vector.broadcast %6 : vector<1x384xf32> to vector<16x384xf32>
    %20 = arith.addf %18, %19 : vector<16x384xf32>
    %21 = arith.truncf %12 : vector<16x128xf32> to vector<16x128xbf16>
    %cst = arith.constant dense<0.000000e+00> : vector<16x384xf32>
    %22 = tpu.matmul %21, %3, %cst {dimension_numbers = #tpu.dot_dimension_numbers<[1], [0], [0], [1], [0, 0, 1, 1], [], []>} : vector<16x128xbf16>, vector<128x384xbf16>, vector<16x384xf32> -> vector<16x384xf32>
    %23 = vector.extract_strided_slice %20 {offsets = [0, 0], sizes = [16, 256], strides = [1, 1]} : vector<16x384xf32> to vector<16x256xf32>
    %24 = vector.extract_strided_slice %22 {offsets = [0, 0], sizes = [16, 256], strides = [1, 1]} : vector<16x384xf32> to vector<16x256xf32>
    %25 = arith.addf %23, %24 : vector<16x256xf32>
    %26 = arith.negf %25 : vector<16x256xf32>
    %27 = math.exp %26 : vector<16x256xf32>
    %cst_22 = arith.constant 1.000000e+00 : f32
    %28 = vector.broadcast %cst_22 : f32 to vector<16x256xf32>
    %29 = arith.addf %28, %27 : vector<16x256xf32>
    %30 = arith.divf %28, %29 : vector<16x256xf32>
    %31 = vector.extract_strided_slice %30 {offsets = [0, 0], sizes = [16, 128], strides = [1, 1]} : vector<16x256xf32> to vector<16x128xf32>
    %32 = vector.extract_strided_slice %30 {offsets = [0, 128], sizes = [16, 128], strides = [1, 1]} : vector<16x256xf32> to vector<16x128xf32>
    %33 = vector.extract_strided_slice %20 {offsets = [0, 256], sizes = [16, 128], strides = [1, 1]} : vector<16x384xf32> to vector<16x128xf32>
    %34 = vector.extract_strided_slice %22 {offsets = [0, 256], sizes = [16, 128], strides = [1, 1]} : vector<16x384xf32> to vector<16x128xf32>
    %35 = vector.broadcast %8 : vector<1x128xf32> to vector<16x128xf32>
    %36 = arith.addf %34, %35 : vector<16x128xf32>
    %37 = arith.mulf %31, %36 : vector<16x128xf32>
    %38 = arith.addf %33, %37 : vector<16x128xf32>
    %39 = math.tanh %38 : vector<16x128xf32>
    %40 = arith.subf %12, %39 : vector<16x128xf32>
    %41 = arith.mulf %32, %40 : vector<16x128xf32>
    %42 = arith.addf %39, %41 : vector<16x128xf32>
    %43 = arith.addi %10, %c0_i32_19 : i32
    %c18_i32 = arith.constant 18 : i32
    %44 = arith.cmpi slt, %43, %c18_i32 : i32
    %45 = arith.select %44, %42, %12 : vector<16x128xf32>
    %46 = arith.truncf %45 : vector<16x128xf32> to vector<16x128xbf16>
    %47 = arith.truncf %14 : vector<16x128xf32> to vector<16x128xbf16>
    %cst_23 = arith.constant dense<0.000000e+00> : vector<16x384xf32>
    %48 = tpu.matmul %47, %4, %cst_23 {dimension_numbers = #tpu.dot_dimension_numbers<[1], [0], [0], [1], [0, 0, 1, 1], [], []>} : vector<16x128xbf16>, vector<128x384xbf16>, vector<16x384xf32> -> vector<16x384xf32>
    %cst_24 = arith.constant dense<0.000000e+00> : vector<16x384xf32>
    %49 = tpu.matmul %46, %5, %cst_24 {dimension_numbers = #tpu.dot_dimension_numbers<[1], [0], [0], [1], [0, 0, 1, 1], [], []>} : vector<16x128xbf16>, vector<128x384xbf16>, vector<16x384xf32> -> vector<16x384xf32>
    %50 = vector.broadcast %7 : vector<1x384xf32> to vector<16x384xf32>
    %51 = arith.addf %49, %50 : vector<16x384xf32>
    %52 = vector.extract_strided_slice %51 {offsets = [0, 0], sizes = [16, 256], strides = [1, 1]} : vector<16x384xf32> to vector<16x256xf32>
    %53 = vector.extract_strided_slice %48 {offsets = [0, 0], sizes = [16, 256], strides = [1, 1]} : vector<16x384xf32> to vector<16x256xf32>
    %54 = arith.addf %52, %53 : vector<16x256xf32>
    %55 = arith.negf %54 : vector<16x256xf32>
    %56 = math.exp %55 : vector<16x256xf32>
    %cst_25 = arith.constant 1.000000e+00 : f32
    %57 = vector.broadcast %cst_25 : f32 to vector<16x256xf32>
    %58 = arith.addf %57, %56 : vector<16x256xf32>
    %59 = arith.divf %57, %58 : vector<16x256xf32>
    %60 = vector.extract_strided_slice %59 {offsets = [0, 0], sizes = [16, 128], strides = [1, 1]} : vector<16x256xf32> to vector<16x128xf32>
    %61 = vector.extract_strided_slice %59 {offsets = [0, 128], sizes = [16, 128], strides = [1, 1]} : vector<16x256xf32> to vector<16x128xf32>
    %62 = vector.extract_strided_slice %51 {offsets = [0, 256], sizes = [16, 128], strides = [1, 1]} : vector<16x384xf32> to vector<16x128xf32>
    %63 = vector.extract_strided_slice %48 {offsets = [0, 256], sizes = [16, 128], strides = [1, 1]} : vector<16x384xf32> to vector<16x128xf32>
    %64 = vector.broadcast %9 : vector<1x128xf32> to vector<16x128xf32>
    %65 = arith.addf %63, %64 : vector<16x128xf32>
    %66 = arith.mulf %60, %65 : vector<16x128xf32>
    %67 = arith.addf %62, %66 : vector<16x128xf32>
    %68 = math.tanh %67 : vector<16x128xf32>
    %69 = arith.subf %14, %68 : vector<16x128xf32>
    %70 = arith.mulf %61, %69 : vector<16x128xf32>
    %71 = arith.addf %68, %70 : vector<16x128xf32>
    %72 = arith.addi %10, %c0_i32_19 : i32
    %c18_i32_26 = arith.constant 18 : i32
    %73 = arith.cmpi slt, %72, %c18_i32_26 : i32
    %74 = arith.select %73, %71, %14 : vector<16x128xf32>
    %75 = arith.truncf %74 : vector<16x128xf32> to vector<16x128xbf16>
    %76 = arith.index_cast %c0_i32_19 : i32 to index
    %c0_27 = arith.constant 0 : index
    %c0_28 = arith.constant 0 : index
    %77 = vector.load %arg10[%76, %c0_27, %c0_28] : memref<8x16x128xbf16, #tpu.memory_space<vmem>>, vector<1x16x128xbf16>
    %78 = vector.shape_cast %77 : vector<1x16x128xbf16> to vector<16x128xbf16>
    %79 = vector.shape_cast %75 : vector<16x128xbf16> to vector<1x16x128xbf16>
    tpu.vector_store %arg10[%76, %c0_27, %c0_28], %79 {strides = array<i32>} : memref<8x16x128xbf16, #tpu.memory_space<vmem>>, vector<1x16x128xbf16>,
    %c1_i32 = arith.constant 1 : i32
    %80 = arith.index_cast %c1_i32 : i32 to index
    %c0_29 = arith.constant 0 : index
    %c0_30 = arith.constant 0 : index
    %81 = vector.load %arg2[%80, %c0_29, %c0_30] : memref<8x16x384xbf16, #tpu.memory_space<vmem>>, vector<1x16x384xbf16>
    %82 = vector.shape_cast %81 : vector<1x16x384xbf16> to vector<16x384xbf16>
    %83 = arith.extf %82 : vector<16x384xbf16> to vector<16x384xf32>
    %84 = vector.broadcast %6 : vector<1x384xf32> to vector<16x384xf32>
    %85 = arith.addf %83, %84 : vector<16x384xf32>
    %86 = arith.truncf %45 : vector<16x128xf32> to vector<16x128xbf16>
    %cst_31 = arith.constant dense<0.000000e+00> : vector<16x384xf32>
    %87 = tpu.matmul %86, %3, %cst_31 {dimension_numbers = #tpu.dot_dimension_numbers<[1], [0], [0], [1], [0, 0, 1, 1], [], []>} : vector<16x128xbf16>, vector<128x384xbf16>, vector<16x384xf32> -> vector<16x384xf32>
    %88 = vector.extract_strided_slice %85 {offsets = [0, 0], sizes = [16, 256], strides = [1, 1]} : vector<16x384xf32> to vector<16x256xf32>
    %89 = vector.extract_strided_slice %87 {offsets = [0, 0], sizes = [16, 256], strides = [1, 1]} : vector<16x384xf32> to vector<16x256xf32>
    %90 = arith.addf %88, %89 : vector<16x256xf32>
    %91 = arith.negf %90 : vector<16x256xf32>
    %92 = math.exp %91 : vector<16x256xf32>
    %cst_32 = arith.constant 1.000000e+00 : f32
    %93 = vector.broadcast %cst_32 : f32 to vector<16x256xf32>
    %94 = arith.addf %93, %92 : vector<16x256xf32>
    %95 = arith.divf %93, %94 : vector<16x256xf32>
    %96 = vector.extract_strided_slice %95 {offsets = [0, 0], sizes = [16, 128], strides = [1, 1]} : vector<16x256xf32> to vector<16x128xf32>
    %97 = vector.extract_strided_slice %95 {offsets = [0, 128], sizes = [16, 128], strides = [1, 1]} : vector<16x256xf32> to vector<16x128xf32>
    %98 = vector.extract_strided_slice %85 {offsets = [0, 256], sizes = [16, 128], strides = [1, 1]} : vector<16x384xf32> to vector<16x128xf32>
    %99 = vector.extract_strided_slice %87 {offsets = [0, 256], sizes = [16, 128], strides = [1, 1]} : vector<16x384xf32> to vector<16x128xf32>
    %100 = vector.broadcast %8 : vector<1x128xf32> to vector<16x128xf32>
    %101 = arith.addf %99, %100 : vector<16x128xf32>
    %102 = arith.mulf %96, %101 : vector<16x128xf32>
    %103 = arith.addf %98, %102 : vector<16x128xf32>
    %104 = math.tanh %103 : vector<16x128xf32>
    %105 = arith.subf %45, %104 : vector<16x128xf32>
    %106 = arith.mulf %97, %105 : vector<16x128xf32>
    %107 = arith.addf %104, %106 : vector<16x128xf32>
    %108 = arith.addi %10, %c1_i32 : i32
    %c18_i32_33 = arith.constant 18 : i32
    %109 = arith.cmpi slt, %108, %c18_i32_33 : i32
    %110 = arith.select %109, %107, %45 : vector<16x128xf32>
    %111 = arith.truncf %110 : vector<16x128xf32> to vector<16x128xbf16>
    %112 = arith.truncf %74 : vector<16x128xf32> to vector<16x128xbf16>
    %cst_34 = arith.constant dense<0.000000e+00> : vector<16x384xf32>
    %113 = tpu.matmul %112, %4, %cst_34 {dimension_numbers = #tpu.dot_dimension_numbers<[1], [0], [0], [1], [0, 0, 1, 1], [], []>} : vector<16x128xbf16>, vector<128x384xbf16>, vector<16x384xf32> -> vector<16x384xf32>
    %cst_35 = arith.constant dense<0.000000e+00> : vector<16x384xf32>
    %114 = tpu.matmul %111, %5, %cst_35 {dimension_numbers = #tpu.dot_dimension_numbers<[1], [0], [0], [1], [0, 0, 1, 1], [], []>} : vector<16x128xbf16>, vector<128x384xbf16>, vector<16x384xf32> -> vector<16x384xf32>
    %115 = vector.broadcast %7 : vector<1x384xf32> to vector<16x384xf32>
    %116 = arith.addf %114, %115 : vector<16x384xf32>
    %117 = vector.extract_strided_slice %116 {offsets = [0, 0], sizes = [16, 256], strides = [1, 1]} : vector<16x384xf32> to vector<16x256xf32>
    %118 = vector.extract_strided_slice %113 {offsets = [0, 0], sizes = [16, 256], strides = [1, 1]} : vector<16x384xf32> to vector<16x256xf32>
    %119 = arith.addf %117, %118 : vector<16x256xf32>
    %120 = arith.negf %119 : vector<16x256xf32>
    %121 = math.exp %120 : vector<16x256xf32>
    %cst_36 = arith.constant 1.000000e+00 : f32
    %122 = vector.broadcast %cst_36 : f32 to vector<16x256xf32>
    %123 = arith.addf %122, %121 : vector<16x256xf32>
    %124 = arith.divf %122, %123 : vector<16x256xf32>
    %125 = vector.extract_strided_slice %124 {offsets = [0, 0], sizes = [16, 128], strides = [1, 1]} : vector<16x256xf32> to vector<16x128xf32>
    %126 = vector.extract_strided_slice %124 {offsets = [0, 128], sizes = [16, 128], strides = [1, 1]} : vector<16x256xf32> to vector<16x128xf32>
    %127 = vector.extract_strided_slice %116 {offsets = [0, 256], sizes = [16, 128], strides = [1, 1]} : vector<16x384xf32> to vector<16x128xf32>
    %128 = vector.extract_strided_slice %113 {offsets = [0, 256], sizes = [16, 128], strides = [1, 1]} : vector<16x384xf32> to vector<16x128xf32>
    %129 = vector.broadcast %9 : vector<1x128xf32> to vector<16x128xf32>
    %130 = arith.addf %128, %129 : vector<16x128xf32>
    %131 = arith.mulf %125, %130 : vector<16x128xf32>
    %132 = arith.addf %127, %131 : vector<16x128xf32>
    %133 = math.tanh %132 : vector<16x128xf32>
    %134 = arith.subf %74, %133 : vector<16x128xf32>
    %135 = arith.mulf %126, %134 : vector<16x128xf32>
    %136 = arith.addf %133, %135 : vector<16x128xf32>
    %137 = arith.addi %10, %c1_i32 : i32
    %c18_i32_37 = arith.constant 18 : i32
    %138 = arith.cmpi slt, %137, %c18_i32_37 : i32
    %139 = arith.select %138, %136, %74 : vector<16x128xf32>
    %140 = arith.truncf %139 : vector<16x128xf32> to vector<16x128xbf16>
    %141 = arith.index_cast %c1_i32 : i32 to index
    %c0_38 = arith.constant 0 : index
    %c0_39 = arith.constant 0 : index
    %142 = vector.load %arg10[%141, %c0_38, %c0_39] : memref<8x16x128xbf16, #tpu.memory_space<vmem>>, vector<1x16x128xbf16>
    %143 = vector.shape_cast %142 : vector<1x16x128xbf16> to vector<16x128xbf16>
    %144 = vector.shape_cast %140 : vector<16x128xbf16> to vector<1x16x128xbf16>
    tpu.vector_store %arg10[%141, %c0_38, %c0_39], %144 {strides = array<i32>} : memref<8x16x128xbf16, #tpu.memory_space<vmem>>, vector<1x16x128xbf16>,
    %c2_i32 = arith.constant 2 : i32
    %145 = arith.index_cast %c2_i32 : i32 to index
    %c0_40 = arith.constant 0 : index
    %c0_41 = arith.constant 0 : index
    %146 = vector.load %arg2[%145, %c0_40, %c0_41] : memref<8x16x384xbf16, #tpu.memory_space<vmem>>, vector<1x16x384xbf16>
    %147 = vector.shape_cast %146 : vector<1x16x384xbf16> to vector<16x384xbf16>
    %148 = arith.extf %147 : vector<16x384xbf16> to vector<16x384xf32>
    %149 = vector.broadcast %6 : vector<1x384xf32> to vector<16x384xf32>
    %150 = arith.addf %148, %149 : vector<16x384xf32>
    %151 = arith.truncf %110 : vector<16x128xf32> to vector<16x128xbf16>
    %cst_42 = arith.constant dense<0.000000e+00> : vector<16x384xf32>
    %152 = tpu.matmul %151, %3, %cst_42 {dimension_numbers = #tpu.dot_dimension_numbers<[1], [0], [0], [1], [0, 0, 1, 1], [], []>} : vector<16x128xbf16>, vector<128x384xbf16>, vector<16x384xf32> -> vector<16x384xf32>
    %153 = vector.extract_strided_slice %150 {offsets = [0, 0], sizes = [16, 256], strides = [1, 1]} : vector<16x384xf32> to vector<16x256xf32>
    %154 = vector.extract_strided_slice %152 {offsets = [0, 0], sizes = [16, 256], strides = [1, 1]} : vector<16x384xf32> to vector<16x256xf32>
    %155 = arith.addf %153, %154 : vector<16x256xf32>
    %156 = arith.negf %155 : vector<16x256xf32>
    %157 = math.exp %156 : vector<16x256xf32>
    %cst_43 = arith.constant 1.000000e+00 : f32
    %158 = vector.broadcast %cst_43 : f32 to vector<16x256xf32>
    %159 = arith.addf %158, %157 : vector<16x256xf32>
    %160 = arith.divf %158, %159 : vector<16x256xf32>
    %161 = vector.extract_strided_slice %160 {offsets = [0, 0], sizes = [16, 128], strides = [1, 1]} : vector<16x256xf32> to vector<16x128xf32>
    %162 = vector.extract_strided_slice %160 {offsets = [0, 128], sizes = [16, 128], strides = [1, 1]} : vector<16x256xf32> to vector<16x128xf32>
    %163 = vector.extract_strided_slice %150 {offsets = [0, 256], sizes = [16, 128], strides = [1, 1]} : vector<16x384xf32> to vector<16x128xf32>
    %164 = vector.extract_strided_slice %152 {offsets = [0, 256], sizes = [16, 128], strides = [1, 1]} : vector<16x384xf32> to vector<16x128xf32>
    %165 = vector.broadcast %8 : vector<1x128xf32> to vector<16x128xf32>
    %166 = arith.addf %164, %165 : vector<16x128xf32>
    %167 = arith.mulf %161, %166 : vector<16x128xf32>
    %168 = arith.addf %163, %167 : vector<16x128xf32>
    %169 = math.tanh %168 : vector<16x128xf32>
    %170 = arith.subf %110, %169 : vector<16x128xf32>
    %171 = arith.mulf %162, %170 : vector<16x128xf32>
    %172 = arith.addf %169, %171 : vector<16x128xf32>
    %173 = arith.addi %10, %c2_i32 : i32
    %c18_i32_44 = arith.constant 18 : i32
    %174 = arith.cmpi slt, %173, %c18_i32_44 : i32
    %175 = arith.select %174, %172, %110 : vector<16x128xf32>
    %176 = arith.truncf %175 : vector<16x128xf32> to vector<16x128xbf16>
    %177 = arith.truncf %139 : vector<16x128xf32> to vector<16x128xbf16>
    %cst_45 = arith.constant dense<0.000000e+00> : vector<16x384xf32>
    %178 = tpu.matmul %177, %4, %cst_45 {dimension_numbers = #tpu.dot_dimension_numbers<[1], [0], [0], [1], [0, 0, 1, 1], [], []>} : vector<16x128xbf16>, vector<128x384xbf16>, vector<16x384xf32> -> vector<16x384xf32>
    %cst_46 = arith.constant dense<0.000000e+00> : vector<16x384xf32>
    %179 = tpu.matmul %176, %5, %cst_46 {dimension_numbers = #tpu.dot_dimension_numbers<[1], [0], [0], [1], [0, 0, 1, 1], [], []>} : vector<16x128xbf16>, vector<128x384xbf16>, vector<16x384xf32> -> vector<16x384xf32>
    %180 = vector.broadcast %7 : vector<1x384xf32> to vector<16x384xf32>
    %181 = arith.addf %179, %180 : vector<16x384xf32>
    %182 = vector.extract_strided_slice %181 {offsets = [0, 0], sizes = [16, 256], strides = [1, 1]} : vector<16x384xf32> to vector<16x256xf32>
    %183 = vector.extract_strided_slice %178 {offsets = [0, 0], sizes = [16, 256], strides = [1, 1]} : vector<16x384xf32> to vector<16x256xf32>
    %184 = arith.addf %182, %183 : vector<16x256xf32>
    %185 = arith.negf %184 : vector<16x256xf32>
    %186 = math.exp %185 : vector<16x256xf32>
    %cst_47 = arith.constant 1.000000e+00 : f32
    %187 = vector.broadcast %cst_47 : f32 to vector<16x256xf32>
    %188 = arith.addf %187, %186 : vector<16x256xf32>
    %189 = arith.divf %187, %188 : vector<16x256xf32>
    %190 = vector.extract_strided_slice %189 {offsets = [0, 0], sizes = [16, 128], strides = [1, 1]} : vector<16x256xf32> to vector<16x128xf32>
    %191 = vector.extract_strided_slice %189 {offsets = [0, 128], sizes = [16, 128], strides = [1, 1]} : vector<16x256xf32> to vector<16x128xf32>
    %192 = vector.extract_strided_slice %181 {offsets = [0, 256], sizes = [16, 128], strides = [1, 1]} : vector<16x384xf32> to vector<16x128xf32>
    %193 = vector.extract_strided_slice %178 {offsets = [0, 256], sizes = [16, 128], strides = [1, 1]} : vector<16x384xf32> to vector<16x128xf32>
    %194 = vector.broadcast %9 : vector<1x128xf32> to vector<16x128xf32>
    %195 = arith.addf %193, %194 : vector<16x128xf32>
    %196 = arith.mulf %190, %195 : vector<16x128xf32>
    %197 = arith.addf %192, %196 : vector<16x128xf32>
    %198 = math.tanh %197 : vector<16x128xf32>
    %199 = arith.subf %139, %198 : vector<16x128xf32>
    %200 = arith.mulf %191, %199 : vector<16x128xf32>
    %201 = arith.addf %198, %200 : vector<16x128xf32>
    %202 = arith.addi %10, %c2_i32 : i32
    %c18_i32_48 = arith.constant 18 : i32
    %203 = arith.cmpi slt, %202, %c18_i32_48 : i32
    %204 = arith.select %203, %201, %139 : vector<16x128xf32>
    %205 = arith.truncf %204 : vector<16x128xf32> to vector<16x128xbf16>
    %206 = arith.index_cast %c2_i32 : i32 to index
    %c0_49 = arith.constant 0 : index
    %c0_50 = arith.constant 0 : index
    %207 = vector.load %arg10[%206, %c0_49, %c0_50] : memref<8x16x128xbf16, #tpu.memory_space<vmem>>, vector<1x16x128xbf16>
    %208 = vector.shape_cast %207 : vector<1x16x128xbf16> to vector<16x128xbf16>
    %209 = vector.shape_cast %205 : vector<16x128xbf16> to vector<1x16x128xbf16>
    tpu.vector_store %arg10[%206, %c0_49, %c0_50], %209 {strides = array<i32>} : memref<8x16x128xbf16, #tpu.memory_space<vmem>>, vector<1x16x128xbf16>,
    %c3_i32 = arith.constant 3 : i32
    %210 = arith.index_cast %c3_i32 : i32 to index
    %c0_51 = arith.constant 0 : index
    %c0_52 = arith.constant 0 : index
    %211 = vector.load %arg2[%210, %c0_51, %c0_52] : memref<8x16x384xbf16, #tpu.memory_space<vmem>>, vector<1x16x384xbf16>
    %212 = vector.shape_cast %211 : vector<1x16x384xbf16> to vector<16x384xbf16>
    %213 = arith.extf %212 : vector<16x384xbf16> to vector<16x384xf32>
    %214 = vector.broadcast %6 : vector<1x384xf32> to vector<16x384xf32>
    %215 = arith.addf %213, %214 : vector<16x384xf32>
    %216 = arith.truncf %175 : vector<16x128xf32> to vector<16x128xbf16>
    %cst_53 = arith.constant dense<0.000000e+00> : vector<16x384xf32>
    %217 = tpu.matmul %216, %3, %cst_53 {dimension_numbers = #tpu.dot_dimension_numbers<[1], [0], [0], [1], [0, 0, 1, 1], [], []>} : vector<16x128xbf16>, vector<128x384xbf16>, vector<16x384xf32> -> vector<16x384xf32>
    %218 = vector.extract_strided_slice %215 {offsets = [0, 0], sizes = [16, 256], strides = [1, 1]} : vector<16x384xf32> to vector<16x256xf32>
    %219 = vector.extract_strided_slice %217 {offsets = [0, 0], sizes = [16, 256], strides = [1, 1]} : vector<16x384xf32> to vector<16x256xf32>
    %220 = arith.addf %218, %219 : vector<16x256xf32>
    %221 = arith.negf %220 : vector<16x256xf32>
    %222 = math.exp %221 : vector<16x256xf32>
    %cst_54 = arith.constant 1.000000e+00 : f32
    %223 = vector.broadcast %cst_54 : f32 to vector<16x256xf32>
    %224 = arith.addf %223, %222 : vector<16x256xf32>
    %225 = arith.divf %223, %224 : vector<16x256xf32>
    %226 = vector.extract_strided_slice %225 {offsets = [0, 0], sizes = [16, 128], strides = [1, 1]} : vector<16x256xf32> to vector<16x128xf32>
    %227 = vector.extract_strided_slice %225 {offsets = [0, 128], sizes = [16, 128], strides = [1, 1]} : vector<16x256xf32> to vector<16x128xf32>
    %228 = vector.extract_strided_slice %215 {offsets = [0, 256], sizes = [16, 128], strides = [1, 1]} : vector<16x384xf32> to vector<16x128xf32>
    %229 = vector.extract_strided_slice %217 {offsets = [0, 256], sizes = [16, 128], strides = [1, 1]} : vector<16x384xf32> to vector<16x128xf32>
    %230 = vector.broadcast %8 : vector<1x128xf32> to vector<16x128xf32>
    %231 = arith.addf %229, %230 : vector<16x128xf32>
    %232 = arith.mulf %226, %231 : vector<16x128xf32>
    %233 = arith.addf %228, %232 : vector<16x128xf32>
    %234 = math.tanh %233 : vector<16x128xf32>
    %235 = arith.subf %175, %234 : vector<16x128xf32>
    %236 = arith.mulf %227, %235 : vector<16x128xf32>
    %237 = arith.addf %234, %236 : vector<16x128xf32>
    %238 = arith.addi %10, %c3_i32 : i32
    %c18_i32_55 = arith.constant 18 : i32
    %239 = arith.cmpi slt, %238, %c18_i32_55 : i32
    %240 = arith.select %239, %237, %175 : vector<16x128xf32>
    %241 = arith.truncf %240 : vector<16x128xf32> to vector<16x128xbf16>
    %242 = arith.truncf %204 : vector<16x128xf32> to vector<16x128xbf16>
    %cst_56 = arith.constant dense<0.000000e+00> : vector<16x384xf32>
    %243 = tpu.matmul %242, %4, %cst_56 {dimension_numbers = #tpu.dot_dimension_numbers<[1], [0], [0], [1], [0, 0, 1, 1], [], []>} : vector<16x128xbf16>, vector<128x384xbf16>, vector<16x384xf32> -> vector<16x384xf32>
    %cst_57 = arith.constant dense<0.000000e+00> : vector<16x384xf32>
    %244 = tpu.matmul %241, %5, %cst_57 {dimension_numbers = #tpu.dot_dimension_numbers<[1], [0], [0], [1], [0, 0, 1, 1], [], []>} : vector<16x128xbf16>, vector<128x384xbf16>, vector<16x384xf32> -> vector<16x384xf32>
    %245 = vector.broadcast %7 : vector<1x384xf32> to vector<16x384xf32>
    %246 = arith.addf %244, %245 : vector<16x384xf32>
    %247 = vector.extract_strided_slice %246 {offsets = [0, 0], sizes = [16, 256], strides = [1, 1]} : vector<16x384xf32> to vector<16x256xf32>
    %248 = vector.extract_strided_slice %243 {offsets = [0, 0], sizes = [16, 256], strides = [1, 1]} : vector<16x384xf32> to vector<16x256xf32>
    %249 = arith.addf %247, %248 : vector<16x256xf32>
    %250 = arith.negf %249 : vector<16x256xf32>
    %251 = math.exp %250 : vector<16x256xf32>
    %cst_58 = arith.constant 1.000000e+00 : f32
    %252 = vector.broadcast %cst_58 : f32 to vector<16x256xf32>
    %253 = arith.addf %252, %251 : vector<16x256xf32>
    %254 = arith.divf %252, %253 : vector<16x256xf32>
    %255 = vector.extract_strided_slice %254 {offsets = [0, 0], sizes = [16, 128], strides = [1, 1]} : vector<16x256xf32> to vector<16x128xf32>
    %256 = vector.extract_strided_slice %254 {offsets = [0, 128], sizes = [16, 128], strides = [1, 1]} : vector<16x256xf32> to vector<16x128xf32>
    %257 = vector.extract_strided_slice %246 {offsets = [0, 256], sizes = [16, 128], strides = [1, 1]} : vector<16x384xf32> to vector<16x128xf32>
    %258 = vector.extract_strided_slice %243 {offsets = [0, 256], sizes = [16, 128], strides = [1, 1]} : vector<16x384xf32> to vector<16x128xf32>
    %259 = vector.broadcast %9 : vector<1x128xf32> to vector<16x128xf32>
    %260 = arith.addf %258, %259 : vector<16x128xf32>
    %261 = arith.mulf %255, %260 : vector<16x128xf32>
    %262 = arith.addf %257, %261 : vector<16x128xf32>
    %263 = math.tanh %262 : vector<16x128xf32>
    %264 = arith.subf %204, %263 : vector<16x128xf32>
    %265 = arith.mulf %256, %264 : vector<16x128xf32>
    %266 = arith.addf %263, %265 : vector<16x128xf32>
    %267 = arith.addi %10, %c3_i32 : i32
    %c18_i32_59 = arith.constant 18 : i32
    %268 = arith.cmpi slt, %267, %c18_i32_59 : i32
    %269 = arith.select %268, %266, %204 : vector<16x128xf32>
    %270 = arith.truncf %269 : vector<16x128xf32> to vector<16x128xbf16>
    %271 = arith.index_cast %c3_i32 : i32 to index
    %c0_60 = arith.constant 0 : index
    %c0_61 = arith.constant 0 : index
    %272 = vector.load %arg10[%271, %c0_60, %c0_61] : memref<8x16x128xbf16, #tpu.memory_space<vmem>>, vector<1x16x128xbf16>
    %273 = vector.shape_cast %272 : vector<1x16x128xbf16> to vector<16x128xbf16>
    %274 = vector.shape_cast %270 : vector<16x128xbf16> to vector<1x16x128xbf16>
    tpu.vector_store %arg10[%271, %c0_60, %c0_61], %274 {strides = array<i32>} : memref<8x16x128xbf16, #tpu.memory_space<vmem>>, vector<1x16x128xbf16>,
    %c4_i32 = arith.constant 4 : i32
    %275 = arith.index_cast %c4_i32 : i32 to index
    %c0_62 = arith.constant 0 : index
    %c0_63 = arith.constant 0 : index
    %276 = vector.load %arg2[%275, %c0_62, %c0_63] : memref<8x16x384xbf16, #tpu.memory_space<vmem>>, vector<1x16x384xbf16>
    %277 = vector.shape_cast %276 : vector<1x16x384xbf16> to vector<16x384xbf16>
    %278 = arith.extf %277 : vector<16x384xbf16> to vector<16x384xf32>
    %279 = vector.broadcast %6 : vector<1x384xf32> to vector<16x384xf32>
    %280 = arith.addf %278, %279 : vector<16x384xf32>
    %281 = arith.truncf %240 : vector<16x128xf32> to vector<16x128xbf16>
    %cst_64 = arith.constant dense<0.000000e+00> : vector<16x384xf32>
    %282 = tpu.matmul %281, %3, %cst_64 {dimension_numbers = #tpu.dot_dimension_numbers<[1], [0], [0], [1], [0, 0, 1, 1], [], []>} : vector<16x128xbf16>, vector<128x384xbf16>, vector<16x384xf32> -> vector<16x384xf32>
    %283 = vector.extract_strided_slice %280 {offsets = [0, 0], sizes = [16, 256], strides = [1, 1]} : vector<16x384xf32> to vector<16x256xf32>
    %284 = vector.extract_strided_slice %282 {offsets = [0, 0], sizes = [16, 256], strides = [1, 1]} : vector<16x384xf32> to vector<16x256xf32>
    %285 = arith.addf %283, %284 : vector<16x256xf32>
    %286 = arith.negf %285 : vector<16x256xf32>
    %287 = math.exp %286 : vector<16x256xf32>
    %cst_65 = arith.constant 1.000000e+00 : f32
    %288 = vector.broadcast %cst_65 : f32 to vector<16x256xf32>
    %289 = arith.addf %288, %287 : vector<16x256xf32>
    %290 = arith.divf %288, %289 : vector<16x256xf32>
    %291 = vector.extract_strided_slice %290 {offsets = [0, 0], sizes = [16, 128], strides = [1, 1]} : vector<16x256xf32> to vector<16x128xf32>
    %292 = vector.extract_strided_slice %290 {offsets = [0, 128], sizes = [16, 128], strides = [1, 1]} : vector<16x256xf32> to vector<16x128xf32>
    %293 = vector.extract_strided_slice %280 {offsets = [0, 256], sizes = [16, 128], strides = [1, 1]} : vector<16x384xf32> to vector<16x128xf32>
    %294 = vector.extract_strided_slice %282 {offsets = [0, 256], sizes = [16, 128], strides = [1, 1]} : vector<16x384xf32> to vector<16x128xf32>
    %295 = vector.broadcast %8 : vector<1x128xf32> to vector<16x128xf32>
    %296 = arith.addf %294, %295 : vector<16x128xf32>
    %297 = arith.mulf %291, %296 : vector<16x128xf32>
    %298 = arith.addf %293, %297 : vector<16x128xf32>
    %299 = math.tanh %298 : vector<16x128xf32>
    %300 = arith.subf %240, %299 : vector<16x128xf32>
    %301 = arith.mulf %292, %300 : vector<16x128xf32>
    %302 = arith.addf %299, %301 : vector<16x128xf32>
    %303 = arith.addi %10, %c4_i32 : i32
    %c18_i32_66 = arith.constant 18 : i32
    %304 = arith.cmpi slt, %303, %c18_i32_66 : i32
    %305 = arith.select %304, %302, %240 : vector<16x128xf32>
    %306 = arith.truncf %305 : vector<16x128xf32> to vector<16x128xbf16>
    %307 = arith.truncf %269 : vector<16x128xf32> to vector<16x128xbf16>
    %cst_67 = arith.constant dense<0.000000e+00> : vector<16x384xf32>
    %308 = tpu.matmul %307, %4, %cst_67 {dimension_numbers = #tpu.dot_dimension_numbers<[1], [0], [0], [1], [0, 0, 1, 1], [], []>} : vector<16x128xbf16>, vector<128x384xbf16>, vector<16x384xf32> -> vector<16x384xf32>
    %cst_68 = arith.constant dense<0.000000e+00> : vector<16x384xf32>
    %309 = tpu.matmul %306, %5, %cst_68 {dimension_numbers = #tpu.dot_dimension_numbers<[1], [0], [0], [1], [0, 0, 1, 1], [], []>} : vector<16x128xbf16>, vector<128x384xbf16>, vector<16x384xf32> -> vector<16x384xf32>
    %310 = vector.broadcast %7 : vector<1x384xf32> to vector<16x384xf32>
    %311 = arith.addf %309, %310 : vector<16x384xf32>
    %312 = vector.extract_strided_slice %311 {offsets = [0, 0], sizes = [16, 256], strides = [1, 1]} : vector<16x384xf32> to vector<16x256xf32>
    %313 = vector.extract_strided_slice %308 {offsets = [0, 0], sizes = [16, 256], strides = [1, 1]} : vector<16x384xf32> to vector<16x256xf32>
    %314 = arith.addf %312, %313 : vector<16x256xf32>
    %315 = arith.negf %314 : vector<16x256xf32>
    %316 = math.exp %315 : vector<16x256xf32>
    %cst_69 = arith.constant 1.000000e+00 : f32
    %317 = vector.broadcast %cst_69 : f32 to vector<16x256xf32>
    %318 = arith.addf %317, %316 : vector<16x256xf32>
    %319 = arith.divf %317, %318 : vector<16x256xf32>
    %320 = vector.extract_strided_slice %319 {offsets = [0, 0], sizes = [16, 128], strides = [1, 1]} : vector<16x256xf32> to vector<16x128xf32>
    %321 = vector.extract_strided_slice %319 {offsets = [0, 128], sizes = [16, 128], strides = [1, 1]} : vector<16x256xf32> to vector<16x128xf32>
    %322 = vector.extract_strided_slice %311 {offsets = [0, 256], sizes = [16, 128], strides = [1, 1]} : vector<16x384xf32> to vector<16x128xf32>
    %323 = vector.extract_strided_slice %308 {offsets = [0, 256], sizes = [16, 128], strides = [1, 1]} : vector<16x384xf32> to vector<16x128xf32>
    %324 = vector.broadcast %9 : vector<1x128xf32> to vector<16x128xf32>
    %325 = arith.addf %323, %324 : vector<16x128xf32>
    %326 = arith.mulf %320, %325 : vector<16x128xf32>
    %327 = arith.addf %322, %326 : vector<16x128xf32>
    %328 = math.tanh %327 : vector<16x128xf32>
    %329 = arith.subf %269, %328 : vector<16x128xf32>
    %330 = arith.mulf %321, %329 : vector<16x128xf32>
    %331 = arith.addf %328, %330 : vector<16x128xf32>
    %332 = arith.addi %10, %c4_i32 : i32
    %c18_i32_70 = arith.constant 18 : i32
    %333 = arith.cmpi slt, %332, %c18_i32_70 : i32
    %334 = arith.select %333, %331, %269 : vector<16x128xf32>
    %335 = arith.truncf %334 : vector<16x128xf32> to vector<16x128xbf16>
    %336 = arith.index_cast %c4_i32 : i32 to index
    %c0_71 = arith.constant 0 : index
    %c0_72 = arith.constant 0 : index
    %337 = vector.load %arg10[%336, %c0_71, %c0_72] : memref<8x16x128xbf16, #tpu.memory_space<vmem>>, vector<1x16x128xbf16>
    %338 = vector.shape_cast %337 : vector<1x16x128xbf16> to vector<16x128xbf16>
    %339 = vector.shape_cast %335 : vector<16x128xbf16> to vector<1x16x128xbf16>
    tpu.vector_store %arg10[%336, %c0_71, %c0_72], %339 {strides = array<i32>} : memref<8x16x128xbf16, #tpu.memory_space<vmem>>, vector<1x16x128xbf16>,
    %c5_i32 = arith.constant 5 : i32
    %340 = arith.index_cast %c5_i32 : i32 to index
    %c0_73 = arith.constant 0 : index
    %c0_74 = arith.constant 0 : index
    %341 = vector.load %arg2[%340, %c0_73, %c0_74] : memref<8x16x384xbf16, #tpu.memory_space<vmem>>, vector<1x16x384xbf16>
    %342 = vector.shape_cast %341 : vector<1x16x384xbf16> to vector<16x384xbf16>
    %343 = arith.extf %342 : vector<16x384xbf16> to vector<16x384xf32>
    %344 = vector.broadcast %6 : vector<1x384xf32> to vector<16x384xf32>
    %345 = arith.addf %343, %344 : vector<16x384xf32>
    %346 = arith.truncf %305 : vector<16x128xf32> to vector<16x128xbf16>
    %cst_75 = arith.constant dense<0.000000e+00> : vector<16x384xf32>
    %347 = tpu.matmul %346, %3, %cst_75 {dimension_numbers = #tpu.dot_dimension_numbers<[1], [0], [0], [1], [0, 0, 1, 1], [], []>} : vector<16x128xbf16>, vector<128x384xbf16>, vector<16x384xf32> -> vector<16x384xf32>
    %348 = vector.extract_strided_slice %345 {offsets = [0, 0], sizes = [16, 256], strides = [1, 1]} : vector<16x384xf32> to vector<16x256xf32>
    %349 = vector.extract_strided_slice %347 {offsets = [0, 0], sizes = [16, 256], strides = [1, 1]} : vector<16x384xf32> to vector<16x256xf32>
    %350 = arith.addf %348, %349 : vector<16x256xf32>
    %351 = arith.negf %350 : vector<16x256xf32>
    %352 = math.exp %351 : vector<16x256xf32>
    %cst_76 = arith.constant 1.000000e+00 : f32
    %353 = vector.broadcast %cst_76 : f32 to vector<16x256xf32>
    %354 = arith.addf %353, %352 : vector<16x256xf32>
    %355 = arith.divf %353, %354 : vector<16x256xf32>
    %356 = vector.extract_strided_slice %355 {offsets = [0, 0], sizes = [16, 128], strides = [1, 1]} : vector<16x256xf32> to vector<16x128xf32>
    %357 = vector.extract_strided_slice %355 {offsets = [0, 128], sizes = [16, 128], strides = [1, 1]} : vector<16x256xf32> to vector<16x128xf32>
    %358 = vector.extract_strided_slice %345 {offsets = [0, 256], sizes = [16, 128], strides = [1, 1]} : vector<16x384xf32> to vector<16x128xf32>
    %359 = vector.extract_strided_slice %347 {offsets = [0, 256], sizes = [16, 128], strides = [1, 1]} : vector<16x384xf32> to vector<16x128xf32>
    %360 = vector.broadcast %8 : vector<1x128xf32> to vector<16x128xf32>
    %361 = arith.addf %359, %360 : vector<16x128xf32>
    %362 = arith.mulf %356, %361 : vector<16x128xf32>
    %363 = arith.addf %358, %362 : vector<16x128xf32>
    %364 = math.tanh %363 : vector<16x128xf32>
    %365 = arith.subf %305, %364 : vector<16x128xf32>
    %366 = arith.mulf %357, %365 : vector<16x128xf32>
    %367 = arith.addf %364, %366 : vector<16x128xf32>
    %368 = arith.addi %10, %c5_i32 : i32
    %c18_i32_77 = arith.constant 18 : i32
    %369 = arith.cmpi slt, %368, %c18_i32_77 : i32
    %370 = arith.select %369, %367, %305 : vector<16x128xf32>
    %371 = arith.truncf %370 : vector<16x128xf32> to vector<16x128xbf16>
    %372 = arith.truncf %334 : vector<16x128xf32> to vector<16x128xbf16>
    %cst_78 = arith.constant dense<0.000000e+00> : vector<16x384xf32>
    %373 = tpu.matmul %372, %4, %cst_78 {dimension_numbers = #tpu.dot_dimension_numbers<[1], [0], [0], [1], [0, 0, 1, 1], [], []>} : vector<16x128xbf16>, vector<128x384xbf16>, vector<16x384xf32> -> vector<16x384xf32>
    %cst_79 = arith.constant dense<0.000000e+00> : vector<16x384xf32>
    %374 = tpu.matmul %371, %5, %cst_79 {dimension_numbers = #tpu.dot_dimension_numbers<[1], [0], [0], [1], [0, 0, 1, 1], [], []>} : vector<16x128xbf16>, vector<128x384xbf16>, vector<16x384xf32> -> vector<16x384xf32>
    %375 = vector.broadcast %7 : vector<1x384xf32> to vector<16x384xf32>
    %376 = arith.addf %374, %375 : vector<16x384xf32>
    %377 = vector.extract_strided_slice %376 {offsets = [0, 0], sizes = [16, 256], strides = [1, 1]} : vector<16x384xf32> to vector<16x256xf32>
    %378 = vector.extract_strided_slice %373 {offsets = [0, 0], sizes = [16, 256], strides = [1, 1]} : vector<16x384xf32> to vector<16x256xf32>
    %379 = arith.addf %377, %378 : vector<16x256xf32>
    %380 = arith.negf %379 : vector<16x256xf32>
    %381 = math.exp %380 : vector<16x256xf32>
    %cst_80 = arith.constant 1.000000e+00 : f32
    %382 = vector.broadcast %cst_80 : f32 to vector<16x256xf32>
    %383 = arith.addf %382, %381 : vector<16x256xf32>
    %384 = arith.divf %382, %383 : vector<16x256xf32>
    %385 = vector.extract_strided_slice %384 {offsets = [0, 0], sizes = [16, 128], strides = [1, 1]} : vector<16x256xf32> to vector<16x128xf32>
    %386 = vector.extract_strided_slice %384 {offsets = [0, 128], sizes = [16, 128], strides = [1, 1]} : vector<16x256xf32> to vector<16x128xf32>
    %387 = vector.extract_strided_slice %376 {offsets = [0, 256], sizes = [16, 128], strides = [1, 1]} : vector<16x384xf32> to vector<16x128xf32>
    %388 = vector.extract_strided_slice %373 {offsets = [0, 256], sizes = [16, 128], strides = [1, 1]} : vector<16x384xf32> to vector<16x128xf32>
    %389 = vector.broadcast %9 : vector<1x128xf32> to vector<16x128xf32>
    %390 = arith.addf %388, %389 : vector<16x128xf32>
    %391 = arith.mulf %385, %390 : vector<16x128xf32>
    %392 = arith.addf %387, %391 : vector<16x128xf32>
    %393 = math.tanh %392 : vector<16x128xf32>
    %394 = arith.subf %334, %393 : vector<16x128xf32>
    %395 = arith.mulf %386, %394 : vector<16x128xf32>
    %396 = arith.addf %393, %395 : vector<16x128xf32>
    %397 = arith.addi %10, %c5_i32 : i32
    %c18_i32_81 = arith.constant 18 : i32
    %398 = arith.cmpi slt, %397, %c18_i32_81 : i32
    %399 = arith.select %398, %396, %334 : vector<16x128xf32>
    %400 = arith.truncf %399 : vector<16x128xf32> to vector<16x128xbf16>
    %401 = arith.index_cast %c5_i32 : i32 to index
    %c0_82 = arith.constant 0 : index
    %c0_83 = arith.constant 0 : index
    %402 = vector.load %arg10[%401, %c0_82, %c0_83] : memref<8x16x128xbf16, #tpu.memory_space<vmem>>, vector<1x16x128xbf16>
    %403 = vector.shape_cast %402 : vector<1x16x128xbf16> to vector<16x128xbf16>
    %404 = vector.shape_cast %400 : vector<16x128xbf16> to vector<1x16x128xbf16>
    tpu.vector_store %arg10[%401, %c0_82, %c0_83], %404 {strides = array<i32>} : memref<8x16x128xbf16, #tpu.memory_space<vmem>>, vector<1x16x128xbf16>,
    %c6_i32 = arith.constant 6 : i32
    %405 = arith.index_cast %c6_i32 : i32 to index
    %c0_84 = arith.constant 0 : index
    %c0_85 = arith.constant 0 : index
    %406 = vector.load %arg2[%405, %c0_84, %c0_85] : memref<8x16x384xbf16, #tpu.memory_space<vmem>>, vector<1x16x384xbf16>
    %407 = vector.shape_cast %406 : vector<1x16x384xbf16> to vector<16x384xbf16>
    %408 = arith.extf %407 : vector<16x384xbf16> to vector<16x384xf32>
    %409 = vector.broadcast %6 : vector<1x384xf32> to vector<16x384xf32>
    %410 = arith.addf %408, %409 : vector<16x384xf32>
    %411 = arith.truncf %370 : vector<16x128xf32> to vector<16x128xbf16>
    %cst_86 = arith.constant dense<0.000000e+00> : vector<16x384xf32>
    %412 = tpu.matmul %411, %3, %cst_86 {dimension_numbers = #tpu.dot_dimension_numbers<[1], [0], [0], [1], [0, 0, 1, 1], [], []>} : vector<16x128xbf16>, vector<128x384xbf16>, vector<16x384xf32> -> vector<16x384xf32>
    %413 = vector.extract_strided_slice %410 {offsets = [0, 0], sizes = [16, 256], strides = [1, 1]} : vector<16x384xf32> to vector<16x256xf32>
    %414 = vector.extract_strided_slice %412 {offsets = [0, 0], sizes = [16, 256], strides = [1, 1]} : vector<16x384xf32> to vector<16x256xf32>
    %415 = arith.addf %413, %414 : vector<16x256xf32>
    %416 = arith.negf %415 : vector<16x256xf32>
    %417 = math.exp %416 : vector<16x256xf32>
    %cst_87 = arith.constant 1.000000e+00 : f32
    %418 = vector.broadcast %cst_87 : f32 to vector<16x256xf32>
    %419 = arith.addf %418, %417 : vector<16x256xf32>
    %420 = arith.divf %418, %419 : vector<16x256xf32>
    %421 = vector.extract_strided_slice %420 {offsets = [0, 0], sizes = [16, 128], strides = [1, 1]} : vector<16x256xf32> to vector<16x128xf32>
    %422 = vector.extract_strided_slice %420 {offsets = [0, 128], sizes = [16, 128], strides = [1, 1]} : vector<16x256xf32> to vector<16x128xf32>
    %423 = vector.extract_strided_slice %410 {offsets = [0, 256], sizes = [16, 128], strides = [1, 1]} : vector<16x384xf32> to vector<16x128xf32>
    %424 = vector.extract_strided_slice %412 {offsets = [0, 256], sizes = [16, 128], strides = [1, 1]} : vector<16x384xf32> to vector<16x128xf32>
    %425 = vector.broadcast %8 : vector<1x128xf32> to vector<16x128xf32>
    %426 = arith.addf %424, %425 : vector<16x128xf32>
    %427 = arith.mulf %421, %426 : vector<16x128xf32>
    %428 = arith.addf %423, %427 : vector<16x128xf32>
    %429 = math.tanh %428 : vector<16x128xf32>
    %430 = arith.subf %370, %429 : vector<16x128xf32>
    %431 = arith.mulf %422, %430 : vector<16x128xf32>
    %432 = arith.addf %429, %431 : vector<16x128xf32>
    %433 = arith.addi %10, %c6_i32 : i32
    %c18_i32_88 = arith.constant 18 : i32
    %434 = arith.cmpi slt, %433, %c18_i32_88 : i32
    %435 = arith.select %434, %432, %370 : vector<16x128xf32>
    %436 = arith.truncf %435 : vector<16x128xf32> to vector<16x128xbf16>
    %437 = arith.truncf %399 : vector<16x128xf32> to vector<16x128xbf16>
    %cst_89 = arith.constant dense<0.000000e+00> : vector<16x384xf32>
    %438 = tpu.matmul %437, %4, %cst_89 {dimension_numbers = #tpu.dot_dimension_numbers<[1], [0], [0], [1], [0, 0, 1, 1], [], []>} : vector<16x128xbf16>, vector<128x384xbf16>, vector<16x384xf32> -> vector<16x384xf32>
    %cst_90 = arith.constant dense<0.000000e+00> : vector<16x384xf32>
    %439 = tpu.matmul %436, %5, %cst_90 {dimension_numbers = #tpu.dot_dimension_numbers<[1], [0], [0], [1], [0, 0, 1, 1], [], []>} : vector<16x128xbf16>, vector<128x384xbf16>, vector<16x384xf32> -> vector<16x384xf32>
    %440 = vector.broadcast %7 : vector<1x384xf32> to vector<16x384xf32>
    %441 = arith.addf %439, %440 : vector<16x384xf32>
    %442 = vector.extract_strided_slice %441 {offsets = [0, 0], sizes = [16, 256], strides = [1, 1]} : vector<16x384xf32> to vector<16x256xf32>
    %443 = vector.extract_strided_slice %438 {offsets = [0, 0], sizes = [16, 256], strides = [1, 1]} : vector<16x384xf32> to vector<16x256xf32>
    %444 = arith.addf %442, %443 : vector<16x256xf32>
    %445 = arith.negf %444 : vector<16x256xf32>
    %446 = math.exp %445 : vector<16x256xf32>
    %cst_91 = arith.constant 1.000000e+00 : f32
    %447 = vector.broadcast %cst_91 : f32 to vector<16x256xf32>
    %448 = arith.addf %447, %446 : vector<16x256xf32>
    %449 = arith.divf %447, %448 : vector<16x256xf32>
    %450 = vector.extract_strided_slice %449 {offsets = [0, 0], sizes = [16, 128], strides = [1, 1]} : vector<16x256xf32> to vector<16x128xf32>
    %451 = vector.extract_strided_slice %449 {offsets = [0, 128], sizes = [16, 128], strides = [1, 1]} : vector<16x256xf32> to vector<16x128xf32>
    %452 = vector.extract_strided_slice %441 {offsets = [0, 256], sizes = [16, 128], strides = [1, 1]} : vector<16x384xf32> to vector<16x128xf32>
    %453 = vector.extract_strided_slice %438 {offsets = [0, 256], sizes = [16, 128], strides = [1, 1]} : vector<16x384xf32> to vector<16x128xf32>
    %454 = vector.broadcast %9 : vector<1x128xf32> to vector<16x128xf32>
    %455 = arith.addf %453, %454 : vector<16x128xf32>
    %456 = arith.mulf %450, %455 : vector<16x128xf32>
    %457 = arith.addf %452, %456 : vector<16x128xf32>
    %458 = math.tanh %457 : vector<16x128xf32>
    %459 = arith.subf %399, %458 : vector<16x128xf32>
    %460 = arith.mulf %451, %459 : vector<16x128xf32>
    %461 = arith.addf %458, %460 : vector<16x128xf32>
    %462 = arith.addi %10, %c6_i32 : i32
    %c18_i32_92 = arith.constant 18 : i32
    %463 = arith.cmpi slt, %462, %c18_i32_92 : i32
    %464 = arith.select %463, %461, %399 : vector<16x128xf32>
    %465 = arith.truncf %464 : vector<16x128xf32> to vector<16x128xbf16>
    %466 = arith.index_cast %c6_i32 : i32 to index
    %c0_93 = arith.constant 0 : index
    %c0_94 = arith.constant 0 : index
    %467 = vector.load %arg10[%466, %c0_93, %c0_94] : memref<8x16x128xbf16, #tpu.memory_space<vmem>>, vector<1x16x128xbf16>
    %468 = vector.shape_cast %467 : vector<1x16x128xbf16> to vector<16x128xbf16>
    %469 = vector.shape_cast %465 : vector<16x128xbf16> to vector<1x16x128xbf16>
    tpu.vector_store %arg10[%466, %c0_93, %c0_94], %469 {strides = array<i32>} : memref<8x16x128xbf16, #tpu.memory_space<vmem>>, vector<1x16x128xbf16>,
    %c7_i32 = arith.constant 7 : i32
    %470 = arith.index_cast %c7_i32 : i32 to index
    %c0_95 = arith.constant 0 : index
    %c0_96 = arith.constant 0 : index
    %471 = vector.load %arg2[%470, %c0_95, %c0_96] : memref<8x16x384xbf16, #tpu.memory_space<vmem>>, vector<1x16x384xbf16>
    %472 = vector.shape_cast %471 : vector<1x16x384xbf16> to vector<16x384xbf16>
    %473 = arith.extf %472 : vector<16x384xbf16> to vector<16x384xf32>
    %474 = vector.broadcast %6 : vector<1x384xf32> to vector<16x384xf32>
    %475 = arith.addf %473, %474 : vector<16x384xf32>
    %476 = arith.truncf %435 : vector<16x128xf32> to vector<16x128xbf16>
    %cst_97 = arith.constant dense<0.000000e+00> : vector<16x384xf32>
    %477 = tpu.matmul %476, %3, %cst_97 {dimension_numbers = #tpu.dot_dimension_numbers<[1], [0], [0], [1], [0, 0, 1, 1], [], []>} : vector<16x128xbf16>, vector<128x384xbf16>, vector<16x384xf32> -> vector<16x384xf32>
    %478 = vector.extract_strided_slice %475 {offsets = [0, 0], sizes = [16, 256], strides = [1, 1]} : vector<16x384xf32> to vector<16x256xf32>
    %479 = vector.extract_strided_slice %477 {offsets = [0, 0], sizes = [16, 256], strides = [1, 1]} : vector<16x384xf32> to vector<16x256xf32>
    %480 = arith.addf %478, %479 : vector<16x256xf32>
    %481 = arith.negf %480 : vector<16x256xf32>
    %482 = math.exp %481 : vector<16x256xf32>
    %cst_98 = arith.constant 1.000000e+00 : f32
    %483 = vector.broadcast %cst_98 : f32 to vector<16x256xf32>
    %484 = arith.addf %483, %482 : vector<16x256xf32>
    %485 = arith.divf %483, %484 : vector<16x256xf32>
    %486 = vector.extract_strided_slice %485 {offsets = [0, 0], sizes = [16, 128], strides = [1, 1]} : vector<16x256xf32> to vector<16x128xf32>
    %487 = vector.extract_strided_slice %485 {offsets = [0, 128], sizes = [16, 128], strides = [1, 1]} : vector<16x256xf32> to vector<16x128xf32>
    %488 = vector.extract_strided_slice %475 {offsets = [0, 256], sizes = [16, 128], strides = [1, 1]} : vector<16x384xf32> to vector<16x128xf32>
    %489 = vector.extract_strided_slice %477 {offsets = [0, 256], sizes = [16, 128], strides = [1, 1]} : vector<16x384xf32> to vector<16x128xf32>
    %490 = vector.broadcast %8 : vector<1x128xf32> to vector<16x128xf32>
    %491 = arith.addf %489, %490 : vector<16x128xf32>
    %492 = arith.mulf %486, %491 : vector<16x128xf32>
    %493 = arith.addf %488, %492 : vector<16x128xf32>
    %494 = math.tanh %493 : vector<16x128xf32>
    %495 = arith.subf %435, %494 : vector<16x128xf32>
    %496 = arith.mulf %487, %495 : vector<16x128xf32>
    %497 = arith.addf %494, %496 : vector<16x128xf32>
    %498 = arith.addi %10, %c7_i32 : i32
    %c18_i32_99 = arith.constant 18 : i32
    %499 = arith.cmpi slt, %498, %c18_i32_99 : i32
    %500 = arith.select %499, %497, %435 : vector<16x128xf32>
    %501 = arith.truncf %500 : vector<16x128xf32> to vector<16x128xbf16>
    %502 = arith.truncf %464 : vector<16x128xf32> to vector<16x128xbf16>
    %cst_100 = arith.constant dense<0.000000e+00> : vector<16x384xf32>
    %503 = tpu.matmul %502, %4, %cst_100 {dimension_numbers = #tpu.dot_dimension_numbers<[1], [0], [0], [1], [0, 0, 1, 1], [], []>} : vector<16x128xbf16>, vector<128x384xbf16>, vector<16x384xf32> -> vector<16x384xf32>
    %cst_101 = arith.constant dense<0.000000e+00> : vector<16x384xf32>
    %504 = tpu.matmul %501, %5, %cst_101 {dimension_numbers = #tpu.dot_dimension_numbers<[1], [0], [0], [1], [0, 0, 1, 1], [], []>} : vector<16x128xbf16>, vector<128x384xbf16>, vector<16x384xf32> -> vector<16x384xf32>
    %505 = vector.broadcast %7 : vector<1x384xf32> to vector<16x384xf32>
    %506 = arith.addf %504, %505 : vector<16x384xf32>
    %507 = vector.extract_strided_slice %506 {offsets = [0, 0], sizes = [16, 256], strides = [1, 1]} : vector<16x384xf32> to vector<16x256xf32>
    %508 = vector.extract_strided_slice %503 {offsets = [0, 0], sizes = [16, 256], strides = [1, 1]} : vector<16x384xf32> to vector<16x256xf32>
    %509 = arith.addf %507, %508 : vector<16x256xf32>
    %510 = arith.negf %509 : vector<16x256xf32>
    %511 = math.exp %510 : vector<16x256xf32>
    %cst_102 = arith.constant 1.000000e+00 : f32
    %512 = vector.broadcast %cst_102 : f32 to vector<16x256xf32>
    %513 = arith.addf %512, %511 : vector<16x256xf32>
    %514 = arith.divf %512, %513 : vector<16x256xf32>
    %515 = vector.extract_strided_slice %514 {offsets = [0, 0], sizes = [16, 128], strides = [1, 1]} : vector<16x256xf32> to vector<16x128xf32>
    %516 = vector.extract_strided_slice %514 {offsets = [0, 128], sizes = [16, 128], strides = [1, 1]} : vector<16x256xf32> to vector<16x128xf32>
    %517 = vector.extract_strided_slice %506 {offsets = [0, 256], sizes = [16, 128], strides = [1, 1]} : vector<16x384xf32> to vector<16x128xf32>
    %518 = vector.extract_strided_slice %503 {offsets = [0, 256], sizes = [16, 128], strides = [1, 1]} : vector<16x384xf32> to vector<16x128xf32>
    %519 = vector.broadcast %9 : vector<1x128xf32> to vector<16x128xf32>
    %520 = arith.addf %518, %519 : vector<16x128xf32>
    %521 = arith.mulf %515, %520 : vector<16x128xf32>
    %522 = arith.addf %517, %521 : vector<16x128xf32>
    %523 = math.tanh %522 : vector<16x128xf32>
    %524 = arith.subf %464, %523 : vector<16x128xf32>
    %525 = arith.mulf %516, %524 : vector<16x128xf32>
    %526 = arith.addf %523, %525 : vector<16x128xf32>
    %527 = arith.addi %10, %c7_i32 : i32
    %c18_i32_103 = arith.constant 18 : i32
    %528 = arith.cmpi slt, %527, %c18_i32_103 : i32
    %529 = arith.select %528, %526, %464 : vector<16x128xf32>
    %530 = arith.truncf %529 : vector<16x128xf32> to vector<16x128xbf16>
    %531 = arith.index_cast %c7_i32 : i32 to index
    %c0_104 = arith.constant 0 : index
    %c0_105 = arith.constant 0 : index
    %532 = vector.load %arg10[%531, %c0_104, %c0_105] : memref<8x16x128xbf16, #tpu.memory_space<vmem>>, vector<1x16x128xbf16>
    %533 = vector.shape_cast %532 : vector<1x16x128xbf16> to vector<16x128xbf16>
    %534 = vector.shape_cast %530 : vector<16x128xbf16> to vector<1x16x128xbf16>
    tpu.vector_store %arg10[%531, %c0_104, %c0_105], %534 {strides = array<i32>} : memref<8x16x128xbf16, #tpu.memory_space<vmem>>, vector<1x16x128xbf16>,
    %c8_i32_106 = arith.constant 8 : i32
    %c0_107 = arith.constant 0 : index
    %c0_108 = arith.constant 0 : index
    %c0_109 = arith.constant 0 : index
    %535 = vector.load %arg11[%c0_107, %c0_108, %c0_109] : memref<2x16x128xf32, #tpu.memory_space<vmem>>, vector<1x16x128xf32>
    %536 = vector.shape_cast %535 : vector<1x16x128xf32> to vector<16x128xf32>
    %537 = vector.shape_cast %500 : vector<16x128xf32> to vector<1x16x128xf32>
    tpu.vector_store %arg11[%c0_107, %c0_108, %c0_109], %537 {strides = array<i32>} : memref<2x16x128xf32, #tpu.memory_space<vmem>>, vector<1x16x128xf32>,
    %c1_110 = arith.constant 1 : index
    %c0_111 = arith.constant 0 : index
    %c0_112 = arith.constant 0 : index
    %538 = vector.load %arg11[%c1_110, %c0_111, %c0_112] : memref<2x16x128xf32, #tpu.memory_space<vmem>>, vector<1x16x128xf32>
    %539 = vector.shape_cast %538 : vector<1x16x128xf32> to vector<16x128xf32>
    %540 = vector.shape_cast %529 : vector<16x128xf32> to vector<1x16x128xf32>
    tpu.vector_store %arg11[%c1_110, %c0_111, %c0_112], %540 {strides = array<i32>} : memref<2x16x128xf32, #tpu.memory_space<vmem>>, vector<1x16x128xf32>,
    return
  }
  func.func @transform_0(%arg0: i32, %arg1: i32) -> (i32, i32, i32) {
    %c0_i32 = arith.constant 0 : i32
    %c0_i32_0 = arith.constant 0 : i32
    return %arg1, %arg0, %c0_i32 : i32, i32, i32
  }
  func.func @transform_1(%arg0: i32, %arg1: i32) -> (i32, i32) {
    %c0_i32 = arith.constant 0 : i32
    %c0_i32_0 = arith.constant 0 : i32
    %c0_i32_1 = arith.constant 0 : i32
    return %c0_i32, %c0_i32_0 : i32, i32
  }
  func.func @transform_2(%arg0: i32, %arg1: i32) -> (i32, i32) {
    %c0_i32 = arith.constant 0 : i32
    %c0_i32_0 = arith.constant 0 : i32
    %c0_i32_1 = arith.constant 0 : i32
    return %c0_i32, %c0_i32_0 : i32, i32
  }
  func.func @transform_3(%arg0: i32, %arg1: i32) -> (i32, i32) {
    %c0_i32 = arith.constant 0 : i32
    %c0_i32_0 = arith.constant 0 : i32
    %c0_i32_1 = arith.constant 0 : i32
    return %c0_i32, %c0_i32_0 : i32, i32
  }
  func.func @transform_4(%arg0: i32, %arg1: i32) -> (i32, i32) {
    %c0_i32 = arith.constant 0 : i32
    %c0_i32_0 = arith.constant 0 : i32
    %c0_i32_1 = arith.constant 0 : i32
    return %c0_i32, %c0_i32_0 : i32, i32
  }
  func.func @transform_5(%arg0: i32, %arg1: i32) -> (i32, i32) {
    %c0_i32 = arith.constant 0 : i32
    %c0_i32_0 = arith.constant 0 : i32
    %c0_i32_1 = arith.constant 0 : i32
    return %c0_i32, %c0_i32_0 : i32, i32
  }
  func.func @transform_6(%arg0: i32, %arg1: i32) -> (i32, i32) {
    %c0_i32 = arith.constant 0 : i32
    %c0_i32_0 = arith.constant 0 : i32
    %c0_i32_1 = arith.constant 0 : i32
    return %c0_i32, %c0_i32_0 : i32, i32
  }
  func.func @transform_7(%arg0: i32, %arg1: i32) -> (i32, i32) {
    %c0_i32 = arith.constant 0 : i32
    %c0_i32_0 = arith.constant 0 : i32
    %c0_i32_1 = arith.constant 0 : i32
    return %c0_i32, %c0_i32_0 : i32, i32
  }
  func.func @transform_8(%arg0: i32, %arg1: i32) -> (i32, i32, i32) {
    %c0_i32 = arith.constant 0 : i32
    %c0_i32_0 = arith.constant 0 : i32
    return %arg1, %arg0, %c0_i32 : i32, i32, i32
  }
  func.func @transform_9(%arg0: i32, %arg1: i32) -> (i32, i32, i32) {
    %c0_i32 = arith.constant 0 : i32
    %c0_i32_0 = arith.constant 0 : i32
    %c0_i32_1 = arith.constant 0 : i32
    return %c0_i32, %arg0, %c0_i32_0 : i32, i32, i32
  }
}

module attributes {stable_mosaic.version = 11 : i64} {
  func.func @kernel(%arg0: i32, %arg1: i32, %arg2: memref<256x128xbf16, #tpu.memory_space<vmem>>, %arg3: memref<128x128xbf16, #tpu.memory_space<vmem>>, %arg4: memref<1x128xf32, #tpu.memory_space<vmem>>, %arg5: memref<256x128xbf16, #tpu.memory_space<vmem>>, %arg6: memref<256x1xf32, #tpu.memory_space<vmem>>, %arg7: memref<256x1xf32, #tpu.memory_space<vmem>>) attributes {dimension_semantics = [#tpu.dimension_semantics<parallel>, #tpu.dimension_semantics<arbitrary>], iteration_bounds = array<i64: 2, 4>, scalar_prefetch = 0 : i64, scratch_operands = 2 : i64, tpu.core_type = #tpu.core_type<tc>, window_params = [{transform_indices = @transform_0, window_bounds = array<i64: 256, 128>}, {transform_indices = @transform_1, window_bounds = array<i64: 128, 128>}, {transform_indices = @transform_2, window_bounds = array<i64: 1, 128>}, {transform_indices = @transform_3, window_bounds = array<i64: 256, 128>}]} {
    %c0_i32 = arith.constant 0 : i32
    %0 = arith.cmpi eq, %arg1, %c0_i32 : i32
    %1 = arith.extui %0 : i1 to i32
    %c0_i32_0 = arith.constant 0 : i32
    %2 = arith.cmpi ne, %1, %c0_i32_0 : i32
    scf.if %2 {
      %cst_9 = arith.constant 0xFF800000 : f32
      %15 = vector.broadcast %cst_9 : f32 to vector<256x1xf32>
      %c0_10 = arith.constant 0 : index
      %c0_11 = arith.constant 0 : index
      %16 = vector.load %arg6[%c0_10, %c0_11] : memref<256x1xf32, #tpu.memory_space<vmem>>, vector<256x1xf32>
      tpu.vector_store %arg6[%c0_10, %c0_11], %15 {strides = array<i32>} : memref<256x1xf32, #tpu.memory_space<vmem>>, vector<256x1xf32>,
      %cst_12 = arith.constant 0.000000e+00 : f32
      %17 = vector.broadcast %cst_12 : f32 to vector<256x1xf32>
      %c0_13 = arith.constant 0 : index
      %c0_14 = arith.constant 0 : index
      %18 = vector.load %arg7[%c0_13, %c0_14] : memref<256x1xf32, #tpu.memory_space<vmem>>, vector<256x1xf32>
      tpu.vector_store %arg7[%c0_13, %c0_14], %17 {strides = array<i32>} : memref<256x1xf32, #tpu.memory_space<vmem>>, vector<256x1xf32>,
    } else {
    }
    %c0 = arith.constant 0 : index
    %c0_1 = arith.constant 0 : index
    %3 = vector.load %arg2[%c0, %c0_1] : memref<256x128xbf16, #tpu.memory_space<vmem>>, vector<256x128xbf16>
    %c0_2 = arith.constant 0 : index
    %c0_3 = arith.constant 0 : index
    %4 = vector.load %arg3[%c0_2, %c0_3] : memref<128x128xbf16, #tpu.memory_space<vmem>>, vector<128x128xbf16>
    %cst = arith.constant dense<0.000000e+00> : vector<256x128xf32>
    %5 = tpu.matmul %3, %4, %cst {dimension_numbers = #tpu.dot_dimension_numbers<[1], [0], [0], [1], [0, 0, 1, 1], [], []>} : vector<256x128xbf16>, vector<128x128xbf16>, vector<256x128xf32> -> vector<256x128xf32>
    %c0_4 = arith.constant 0 : index
    %c0_5 = arith.constant 0 : index
    %6 = vector.load %arg4[%c0_4, %c0_5] : memref<1x128xf32, #tpu.memory_space<vmem>>, vector<1x128xf32>
    %7 = vector.broadcast %6 : vector<1x128xf32> to vector<256x128xf32>
    %8 = arith.addf %5, %7 : vector<256x128xf32>
    %c2_i32 = arith.constant 2 : i32
    %9 = arith.cmpi slt, %arg1, %c2_i32 : i32
    %10 = arith.extui %9 : i1 to i32
    %c0_i32_6 = arith.constant 0 : i32
    %11 = arith.cmpi ne, %10, %c0_i32_6 : i32
    scf.if %11 {
      %c0_9 = arith.constant 0 : index
      %c0_10 = arith.constant 0 : index
      %15 = vector.load %arg6[%c0_9, %c0_10] : memref<256x1xf32, #tpu.memory_space<vmem>>, vector<256x1xf32>
      %cst_11 = arith.constant dense<0xFF800000> : vector<256xf32>
      %16 = vector.multi_reduction <maximumf>, %8, %cst_11 [1] : vector<256x128xf32> to vector<256xf32>
      %17 = vector.shape_cast %16 : vector<256xf32> to vector<256x1xf32>
      %18 = arith.maximumf %15, %17 : vector<256x1xf32>
      %c0_12 = arith.constant 0 : index
      %c0_13 = arith.constant 0 : index
      %19 = vector.load %arg7[%c0_12, %c0_13] : memref<256x1xf32, #tpu.memory_space<vmem>>, vector<256x1xf32>
      %c0_14 = arith.constant 0 : index
      %c0_15 = arith.constant 0 : index
      %20 = vector.load %arg6[%c0_14, %c0_15] : memref<256x1xf32, #tpu.memory_space<vmem>>, vector<256x1xf32>
      %21 = arith.subf %20, %18 : vector<256x1xf32>
      %22 = math.exp %21 : vector<256x1xf32>
      %23 = arith.mulf %19, %22 : vector<256x1xf32>
      %24 = vector.broadcast %18 : vector<256x1xf32> to vector<256x128xf32>
      %25 = arith.subf %8, %24 : vector<256x128xf32>
      %26 = math.exp %25 : vector<256x128xf32>
      %cst_16 = arith.constant dense<0.000000e+00> : vector<256xf32>
      %27 = vector.multi_reduction <add>, %26, %cst_16 [1] : vector<256x128xf32> to vector<256xf32>
      %28 = vector.shape_cast %27 : vector<256xf32> to vector<256x1xf32>
      %29 = arith.addf %23, %28 : vector<256x1xf32>
      %c0_17 = arith.constant 0 : index
      %c0_18 = arith.constant 0 : index
      %30 = vector.load %arg7[%c0_17, %c0_18] : memref<256x1xf32, #tpu.memory_space<vmem>>, vector<256x1xf32>
      tpu.vector_store %arg7[%c0_17, %c0_18], %29 {strides = array<i32>} : memref<256x1xf32, #tpu.memory_space<vmem>>, vector<256x1xf32>,
      %c0_19 = arith.constant 0 : index
      %c0_20 = arith.constant 0 : index
      %31 = vector.load %arg6[%c0_19, %c0_20] : memref<256x1xf32, #tpu.memory_space<vmem>>, vector<256x1xf32>
      tpu.vector_store %arg6[%c0_19, %c0_20], %18 {strides = array<i32>} : memref<256x1xf32, #tpu.memory_space<vmem>>, vector<256x1xf32>,
    } else {
    }
    %c2_i32_7 = arith.constant 2 : i32
    %12 = arith.cmpi sge, %arg1, %c2_i32_7 : i32
    %13 = arith.extui %12 : i1 to i32
    %c0_i32_8 = arith.constant 0 : i32
    %14 = arith.cmpi ne, %13, %c0_i32_8 : i32
    scf.if %14 {
      %c0_9 = arith.constant 0 : index
      %c0_10 = arith.constant 0 : index
      %15 = vector.load %arg6[%c0_9, %c0_10] : memref<256x1xf32, #tpu.memory_space<vmem>>, vector<256x1xf32>
      %c0_11 = arith.constant 0 : index
      %c0_12 = arith.constant 0 : index
      %16 = vector.load %arg7[%c0_11, %c0_12] : memref<256x1xf32, #tpu.memory_space<vmem>>, vector<256x1xf32>
      %17 = math.log %16 : vector<256x1xf32>
      %18 = arith.addf %15, %17 : vector<256x1xf32>
      %19 = vector.broadcast %18 : vector<256x1xf32> to vector<256x128xf32>
      %20 = arith.subf %8, %19 : vector<256x128xf32>
      %21 = arith.truncf %20 : vector<256x128xf32> to vector<256x128xbf16>
      %c0_13 = arith.constant 0 : index
      %c0_14 = arith.constant 0 : index
      %22 = vector.load %arg5[%c0_13, %c0_14] : memref<256x128xbf16, #tpu.memory_space<vmem>>, vector<256x128xbf16>
      tpu.vector_store %arg5[%c0_13, %c0_14], %21 {strides = array<i32>} : memref<256x128xbf16, #tpu.memory_space<vmem>>, vector<256x128xbf16>,
    } else {
    }
    return
  }
  func.func @transform_0(%arg0: i32, %arg1: i32) -> (i32, i32) {
    %c0_i32 = arith.constant 0 : i32
    %c0_i32_0 = arith.constant 0 : i32
    return %arg0, %c0_i32 : i32, i32
  }
  func.func @transform_1(%arg0: i32, %arg1: i32) -> (i32, i32) {
    %c2_i32 = arith.constant 2 : i32
    %c0_i32 = arith.constant 0 : i32
    %0 = arith.cmpi eq, %c2_i32, %c0_i32 : i32
    %c1_i32 = arith.constant 1 : i32
    %1 = arith.select %0, %c1_i32, %c2_i32 : i32
    %2 = arith.remsi %arg1, %1 : i32
    %c0_i32_0 = arith.constant 0 : i32
    %3 = arith.cmpi ne, %2, %c0_i32_0 : i32
    %c0_i32_1 = arith.constant 0 : i32
    %4 = arith.cmpi slt, %2, %c0_i32_1 : i32
    %c0_i32_2 = arith.constant 0 : i32
    %5 = arith.cmpi slt, %1, %c0_i32_2 : i32
    %6 = arith.xori %4, %5 : i1
    %7 = arith.andi %6, %3 : i1
    %8 = arith.addi %2, %1 : i32
    %9 = arith.select %7, %8, %2 : i32
    %c0_i32_3 = arith.constant 0 : i32
    %c0_i32_4 = arith.constant 0 : i32
    return %c0_i32_3, %9 : i32, i32
  }
  func.func @transform_2(%arg0: i32, %arg1: i32) -> (i32, i32) {
    %c2_i32 = arith.constant 2 : i32
    %c0_i32 = arith.constant 0 : i32
    %0 = arith.cmpi eq, %c2_i32, %c0_i32 : i32
    %c1_i32 = arith.constant 1 : i32
    %1 = arith.select %0, %c1_i32, %c2_i32 : i32
    %2 = arith.remsi %arg1, %1 : i32
    %c0_i32_0 = arith.constant 0 : i32
    %3 = arith.cmpi ne, %2, %c0_i32_0 : i32
    %c0_i32_1 = arith.constant 0 : i32
    %4 = arith.cmpi slt, %2, %c0_i32_1 : i32
    %c0_i32_2 = arith.constant 0 : i32
    %5 = arith.cmpi slt, %1, %c0_i32_2 : i32
    %6 = arith.xori %4, %5 : i1
    %7 = arith.andi %6, %3 : i1
    %8 = arith.addi %2, %1 : i32
    %9 = arith.select %7, %8, %2 : i32
    %c0_i32_3 = arith.constant 0 : i32
    %c0_i32_4 = arith.constant 0 : i32
    return %c0_i32_3, %9 : i32, i32
  }
  func.func @transform_3(%arg0: i32, %arg1: i32) -> (i32, i32) {
    %c2_i32 = arith.constant 2 : i32
    %0 = arith.subi %arg1, %c2_i32 : i32
    %c0_i32 = arith.constant 0 : i32
    %1 = arith.maxsi %0, %c0_i32 : i32
    %c0_i32_0 = arith.constant 0 : i32
    return %arg0, %1 : i32, i32
  }
}

</mosaic_0001>

<llo_original>
// kernel: language_model_forward.3
$region0: #{language_model_forward.3}
  #allocation0 [shape = 'u32[]', space=smem, size = 0x4, offset = 0x4, fixed_abs, tag = 'smem constant byte address 0x4 - core index']
  #allocation1 [shape = 'u32[144,128]{1,0:T(1,128)}', space=vmem, size = 0x12000, scoped, tag = 'internal scratch']
  #allocation2 [shape = 'f32[256,1]{1,0:T(8,128)}', space=vmem, size = 0x20000, scoped, tag = 'scratch operand']
  #allocation3 [shape = 'f32[256,1]{1,0:T(8,128)}', space=vmem, size = 0x20000, scoped, tag = 'scratch operand']
  %s0 = inlined_call_operand.hbm [shape: bf16[512,128], index: 0, kind: input, shape index: {}]
  %s1 = inlined_call_operand.hbm [shape: bf16[128,256], index: 1, kind: input, shape index: {}]
  %s2 = inlined_call_operand.hbm [shape: f32[1,256], index: 2, kind: input, shape index: {}]
  %s3 = inlined_call_operand.hbm [shape: bf16[512,256], index: 3, kind: output, shape index: {}]
  %s4 = sld [smem:[#allocation0]]
  $region69: #{language_model_forward.3} parent=0
    _
  %s6 = ssub.s32 1, %s4
  %s7 = scalar_select 0, %s6, %s4
  $region1: #{language_model_forward.3} parent=0
    #allocation4 [shape = 'u8[131072]{0}', space=vmem, size = 0x20000, scoped, tag = 'input window, operand 0']
    #allocation5 [shape = 's32[2]{0}', space=sflag, size = 0x8, scoped, tag = 'scoped memory for language_model_forward.3']
    #allocation6 [shape = 's32[2]{0}', space=sflag, size = 0x8, scoped, tag = 'scoped memory for language_model_forward.3']
    #allocation7 [shape = 'u8[65536]{0}', space=vmem, size = 0x10000, scoped, tag = 'input window, operand 1']
    #allocation8 [shape = 's32[2]{0}', space=sflag, size = 0x8, scoped, tag = 'scoped memory for language_model_forward.3']
    #allocation9 [shape = 'u8[1024]{0}', space=vmem, size = 0x400, scoped, tag = 'input window, operand 2']
    #allocation10 [shape = 'u8[131072]{0}', space=vmem, size = 0x20000, scoped, tag = 'output window, operand 0']
    %8 = vsyncpa [#allocation5], 0
    %s9 = scalar_lea.sflag [#allocation5], 1
    %10 = vsyncpa %s9, 0
    %11 = vsyncpa [#allocation8], 0
    %s12 = scalar_lea.sflag [#allocation8], 1
    %13 = vsyncpa %s12, 0
    %14 = vsyncpa [#allocation6], 0
    %s15 = scalar_lea.sflag [#allocation6], 1
    %16 = vsyncpa %s15, 0
    loop: start=0, step=1, limit=10
    $region2: #{language_model_forward.3} parent=1 // loop_pre_header
      _
    $region3: #{language_model_forward.3} parent=1 // loop_header
      %s18 = sphi 0, %s22
      %p19 = scmp.ge.s32.totalorder %s18, 10
      %s25 = sphi 0, %s37
      %s26 = sphi 0, %s33
      %s27 = sphi 0, %s25
      %s28 = sphi 0, %s26
      %s29 = sphi 0, %s27
      %s30 = sphi 0, %s28
      %s40 = sphi 0, %s42
      %s43 = sphi 0, %s40
      %s44 = sphi 0, %s43
      %s60 = sphi 0, %s44
      %s90 = sphi 0, %s92
      %s93 = sphi 0, %s90
      %s94 = sphi 0, %s93
      %s110 = sphi 0, %s94
      %s140 = sphi 0, %s142
      %s143 = sphi 0, %s140
      %s144 = sphi 0, %s143
      %s160 = sphi 0, %s144
      %s174 = sphi 0, %s176
      %s177 = sphi 0, %s174
      %s178 = sphi 0, %s177
      %s194 = sphi 0, %s178
    $region4: #{language_model_forward.3} parent=1 // loop_header_branch
      %21 = sbr.rel (%p19) target = $region8
    $region5: #{language_model_forward.3} parent=1 // loop_body
      %s23 = ssub.s32 %s18, 1
      %s24 = ssub.s32 %s18, 2
      %s31 = sadd.s32 1, %s26
      %p32 = scmp.ge.s32.totalorder %s31, 4
      %s33 = scalar_select %p32, 0, %s31
      %s34 = sadd.s32 1, %s25
      %s35 = scalar_select %p32, %s34, %s25
      %p36 = scmp.ge.s32.totalorder %s35, 2
      %s37 = scalar_select %p36, 0, %s35
      %s38 = ssub.s32 %s25, %s37
      %p39 = scmp.eq.s32.totalorder %s38, 0
      %s41 = sadd.s32 %s40, 1
      %s42 = scalar_select %p39, %s40, %s41
      %p45 = pneg %p39
      %p46 = scmp.eq.s32.totalorder %s18, 7
      %p47 = por %p45, %p46
      %p48 = scmp.ne.s32.totalorder %s40, %s43
      %p49 = scmp.eq.s32.totalorder %s18, 0
      %p50 = por %p48, %p49
      %p51 = scmp.ne.s32.totalorder %s40, %s43
      %p52 = scmp.eq.s32.totalorder %s23, 7
      %p53 = por %p51, %p52
      %p54 = scmp.ne.s32.totalorder %s43, %s44
      %p55 = scmp.eq.s32.totalorder %s23, 0
      %p56 = por %p54, %p55
      %p57 = scmp.ne.s32.totalorder %s43, %s44
      %p58 = scmp.eq.s32.totalorder %s24, 7
      %p59 = por %p57, %p58
      %p61 = scmp.ne.s32.totalorder %s44, %s60
      %p62 = scmp.eq.s32.totalorder %s24, 0
      %p63 = por %p61, %p62
      %p64 = scmp.lt.s32.totalorder %s26, 0
      %s65 = ssub.s32 0, %s26
      %s66 = scalar_select %p64, %s65, %s26
      %s67 = sand.u32 %s66, 1
      %s68 = ssub.s32 0, %s67
      %s69 = scalar_select %p64, %s68, %s67
      %p70 = scmp.ne.s32.totalorder %s69, 0
      %p71 = scmp.lt.s32.totalorder %s69, 0
      %p72 = pnand %p71, %p70
      %p73 = pneg %p72
      %s74 = sadd.s32 %s69, 2
      %s75 = scalar_select %p73, %s74, %s69
      %p76 = scmp.lt.s32.totalorder %s33, 0
      %s77 = ssub.s32 0, %s33
      %s78 = scalar_select %p76, %s77, %s33
      %s79 = sand.u32 %s78, 1
      %s80 = ssub.s32 0, %s79
      %s81 = scalar_select %p76, %s80, %s79
      %p82 = scmp.ne.s32.totalorder %s81, 0
      %p83 = scmp.lt.s32.totalorder %s81, 0
      %p84 = pnand %p83, %p82
      %p85 = pneg %p84
      %s86 = sadd.s32 %s81, 2
      %s87 = scalar_select %p85, %s86, %s81
      %s88 = ssub.s32 %s75, %s87
      %p89 = scmp.eq.s32.totalorder %s88, 0
      %s91 = sadd.s32 %s90, 1
      %s92 = scalar_select %p89, %s90, %s91
      %p95 = pneg %p89
      %p96 = scmp.eq.s32.totalorder %s18, 7
      %p97 = por %p95, %p96
      %p98 = scmp.ne.s32.totalorder %s90, %s93
      %p99 = scmp.eq.s32.totalorder %s18, 0
      %p100 = por %p98, %p99
      %p101 = scmp.ne.s32.totalorder %s90, %s93
      %p102 = scmp.eq.s32.totalorder %s23, 7
      %p103 = por %p101, %p102
      %p104 = scmp.ne.s32.totalorder %s93, %s94
      %p105 = scmp.eq.s32.totalorder %s23, 0
      %p106 = por %p104, %p105
      %p107 = scmp.ne.s32.totalorder %s93, %s94
      %p108 = scmp.eq.s32.totalorder %s24, 7
      %p109 = por %p107, %p108
      %p111 = scmp.ne.s32.totalorder %s94, %s110
      %p112 = scmp.eq.s32.totalorder %s24, 0
      %p113 = por %p111, %p112
      %p114 = scmp.lt.s32.totalorder %s26, 0
      %s115 = ssub.s32 0, %s26
      %s116 = scalar_select %p114, %s115, %s26
      %s117 = sand.u32 %s116, 1
      %s118 = ssub.s32 0, %s117
      %s119 = scalar_select %p114, %s118, %s117
      %p120 = scmp.ne.s32.totalorder %s119, 0
      %p121 = scmp.lt.s32.totalorder %s119, 0
      %p122 = pnand %p121, %p120
      %p123 = pneg %p122
      %s124 = sadd.s32 %s119, 2
      %s125 = scalar_select %p123, %s124, %s119
      %p126 = scmp.lt.s32.totalorder %s33, 0
      %s127 = ssub.s32 0, %s33
      %s128 = scalar_select %p126, %s127, %s33
      %s129 = sand.u32 %s128, 1
      %s130 = ssub.s32 0, %s129
      %s131 = scalar_select %p126, %s130, %s129
      %p132 = scmp.ne.s32.totalorder %s131, 0
      %p133 = scmp.lt.s32.totalorder %s131, 0
      %p134 = pnand %p133, %p132
      %p135 = pneg %p134
      %s136 = sadd.s32 %s131, 2
      %s137 = scalar_select %p135, %s136, %s131
      %s138 = ssub.s32 %s125, %s137
      %p139 = scmp.eq.s32.totalorder %s138, 0
      %s141 = sadd.s32 %s140, 1
      %s142 = scalar_select %p139, %s140, %s141
      %p145 = pneg %p139
      %p146 = scmp.eq.s32.totalorder %s18, 7
      %p147 = por %p145, %p146
      %p148 = scmp.ne.s32.totalorder %s140, %s143
      %p149 = scmp.eq.s32.totalorder %s18, 0
      %p150 = por %p148, %p149
      %p151 = scmp.ne.s32.totalorder %s140, %s143
      %p152 = scmp.eq.s32.totalorder %s23, 7
      %p153 = por %p151, %p152
      %p154 = scmp.ne.s32.totalorder %s143, %s144
      %p155 = scmp.eq.s32.totalorder %s23, 0
      %p156 = por %p154, %p155
      %p157 = scmp.ne.s32.totalorder %s143, %s144
      %p158 = scmp.eq.s32.totalorder %s24, 7
      %p159 = por %p157, %p158
      %p161 = scmp.ne.s32.totalorder %s144, %s160
      %p162 = scmp.eq.s32.totalorder %s24, 0
      %p163 = por %p161, %p162
      %s164 = ssub.s32 %s26, 2
      %p165 = scmp.gt.s32.totalorder %s164, 0
      %s166 = scalar_select %p165, %s164, 0
      %s167 = ssub.s32 %s33, 2
      %p168 = scmp.gt.s32.totalorder %s167, 0
      %s169 = scalar_select %p168, %s167, 0
      %s170 = ssub.s32 %s25, %s37
      %s171 = ssub.s32 %s166, %s169
      %s172 = sor.u32 %s170, %s171
      %p173 = scmp.eq.s32.totalorder %s172, 0
      %s175 = sadd.s32 %s174, 1
      %s176 = scalar_select %p173, %s174, %s175
      %p179 = pneg %p173
      %p180 = scmp.eq.s32.totalorder %s18, 7
      %p181 = por %p179, %p180
      %p182 = scmp.ne.s32.totalorder %s174, %s177
      %p183 = scmp.eq.s32.totalorder %s18, 0
      %p184 = por %p182, %p183
      %p185 = scmp.ne.s32.totalorder %s174, %s177
      %p186 = scmp.eq.s32.totalorder %s23, 7
      %p187 = por %p185, %p186
      %p188 = scmp.ne.s32.totalorder %s177, %s178
      %p189 = scmp.eq.s32.totalorder %s23, 0
      %p190 = por %p188, %p189
      %p191 = scmp.ne.s32.totalorder %s177, %s178
      %p192 = scmp.eq.s32.totalorder %s24, 7
      %p193 = por %p191, %p192
      %p195 = scmp.ne.s32.totalorder %s178, %s194
      %p196 = scmp.eq.s32.totalorder %s24, 0
      %p197 = por %p195, %p196
      %p198 = scmp.le.s32.totalorder 1, %s18
      %p199 = scmp.lt.s32.totalorder %s18, 9
      %p200 = pnand %p198, %p199
      %p201 = pneg %p200
      // Predicated region
      $region9: #{language_model_forward.3} parent=5 // pred_check
        _
      $region10: #{language_model_forward.3} parent=5 // pred_check_branch
        %203 = sbr.rel (%p200) target = $region12
      $region11: #{language_model_forward.3} parent=5 // pred_region
        %s204 = ssub.s32 %s18, 1
      $region12: #{language_model_forward.3} parent=5 // pred_fallthru
        _
      %p205 = scmp.lt.s32.totalorder %s18, 8
      // Predicated region
      $region13: #{language_model_forward.3} parent=5 // pred_check
        %p206 = pneg %p205
      $region14: #{language_model_forward.3} parent=5 // pred_check_branch
        %208 = sbr.rel (%p206) target = $region16
      $region15: #{language_model_forward.3} parent=5 // pred_region
        // Predicated region
        $region17: #{language_model_forward.3} parent=15 // pred_check
          %p209 = pneg %p50
        $region18: #{language_model_forward.3} parent=15 // pred_check_branch
          %211 = sbr.rel (%p209) target = $region20
        $region19: #{language_model_forward.3} parent=15 // pred_region
          %s212 = sand.u32 %s40, 1
          %s213 = scalar_lea.sflag [#allocation5], %s212
          %s214 = sand.u32 %s40, 1
          %s215 = smul.addr %s214, 128
          %s216 = scalar_lea.vmem [#allocation4], %s215
          %s217 = smul.u32 32, %s25
          %s219 = ssub.s32 2048, 2048
          %220 = vsyncadd %s213, %s219
          %s221 = smul.addr %s217, 64
          %s222 = scalar_lea.hbm %s0, %s221
          %s223 = sshll.u32 %s216, 4
          %s224 = int_to_ptr.vmem [resolvable:$true] %s223
          %229 = dma.hbm_to_vmem [thread:$0]  %s222, 2048, %s224, %s213, 64, 64, 4
        $region20: #{language_model_forward.3} parent=15 // pred_fallthru
          _
        // Predicated region
        $region21: #{language_model_forward.3} parent=15 // pred_check
          %p230 = pneg %p100
        $region22: #{language_model_forward.3} parent=15 // pred_check_branch
          %232 = sbr.rel (%p230) target = $region24
        $region23: #{language_model_forward.3} parent=15 // pred_region
          %s233 = sand.u32 %s18, 1
          %s234 = scalar_lea.sflag [#allocation8], %s233
          %s235 = sand.u32 %s90, 1
          %s236 = smul.addr %s235, 64
          %s237 = scalar_lea.vmem [#allocation7], %s236
          %p238 = scmp.lt.s32.totalorder %s26, 0
          %s239 = ssub.s32 0, %s26
          %s240 = scalar_select %p238, %s239, %s26
          %s241 = sand.u32 %s240, 1
          %s242 = ssub.s32 0, %s241
          %s243 = scalar_select %p238, %s242, %s241
          %p244 = scmp.ne.s32.totalorder %s243, 0
          %p245 = scmp.lt.s32.totalorder %s243, 0
          %p246 = pnand %p245, %p244
          %p247 = pneg %p246
          %s248 = sadd.s32 %s243, 2
          %s249 = scalar_select %p247, %s248, %s243
          %s251 = ssub.s32 1024, 1024
          %252 = vsyncadd %s234, %s251
          %s253 = smul.addr %s249, 64
          %s254 = scalar_lea.hbm %s1, %s253
          %s255 = sshll.u32 %s237, 4
          %s256 = int_to_ptr.vmem [resolvable:$true] %s255
          %261 = dma.hbm_to_vmem [thread:$0]  %s254, 1024, %s256, %s234, 128, 64, 4
        $region24: #{language_model_forward.3} parent=15 // pred_fallthru
          _
        // Predicated region
        $region25: #{language_model_forward.3} parent=15 // pred_check
          %p262 = pneg %p150
        $region26: #{language_model_forward.3} parent=15 // pred_check_branch
          %264 = sbr.rel (%p262) target = $region28
        $region27: #{language_model_forward.3} parent=15 // pred_region
          %s265 = sand.u32 %s18, 1
          %s266 = scalar_lea.sflag [#allocation8], %s265
          %s267 = sand.u32 %s140, 1
          %s268 = scalar_lea.vmem [#allocation9], %s267
          %p269 = scmp.lt.s32.totalorder %s26, 0
          %s270 = ssub.s32 0, %s26
          %s271 = scalar_select %p269, %s270, %s26
          %s272 = sand.u32 %s271, 1
          %s273 = ssub.s32 0, %s272
          %s274 = scalar_select %p269, %s273, %s272
          %p275 = scmp.ne.s32.totalorder %s274, 0
          %p276 = scmp.lt.s32.totalorder %s274, 0
          %p277 = pnand %p276, %p275
          %p278 = pneg %p277
          %s279 = sadd.s32 %s274, 2
          %s280 = scalar_select %p278, %s279, %s274
          %s282 = ssub.s32 16, 16
          %283 = vsyncadd %s266, %s282
          %s284 = smul.addr %s280, 16
          %s285 = scalar_lea.hbm %s2, %s284
          %s287 = sshll.u32 %s268, 4
          %s288 = int_to_ptr.vmem [resolvable:$true] %s287
          %290 = dma.hbm_to_vmem [thread:$0]  %s285, 16, %s288, %s266
        $region28: #{language_model_forward.3} parent=15 // pred_fallthru
          _
      $region16: #{language_model_forward.3} parent=5 // pred_fallthru
        _
      %p291 = scmp.le.s32.totalorder 1, %s18
      %p292 = scmp.lt.s32.totalorder %s18, 9
      %p293 = pnand %p291, %p292
      %p294 = pneg %p293
      // Predicated region
      $region29: #{language_model_forward.3} parent=5 // pred_check
        _
      $region30: #{language_model_forward.3} parent=5 // pred_check_branch
        %296 = sbr.rel (%p293) target = $region32
      $region31: #{language_model_forward.3} parent=5 // pred_region
        %s297 = ssub.s32 %s18, 1
        %s298 = sand.u32 %s43, 1
        %s299 = scalar_lea.sflag [#allocation5], %s298
        %s300 = sand.u32 %s43, 1
        %s301 = smul.addr %s300, 128
        %s302 = scalar_lea.vmem [#allocation4], %s301
        // Predicated region
        $region33: #{language_model_forward.3} parent=31 // pred_check
          %p303 = pneg %p56
        $region34: #{language_model_forward.3} parent=31 // pred_check_branch
          %305 = sbr.rel (%p303) target = $region36
        $region35: #{language_model_forward.3} parent=31 // pred_region
          %306 = dma.done %s299, 2048
        $region36: #{language_model_forward.3} parent=31 // pred_fallthru
          _
        %s307 = sand.u32 %s23, 1
        %s308 = scalar_lea.sflag [#allocation8], %s307
        %s309 = sand.u32 %s93, 1
        %s310 = smul.addr %s309, 64
        %s311 = scalar_lea.vmem [#allocation7], %s310
        // Predicated region
        $region37: #{language_model_forward.3} parent=31 // pred_check
          %p312 = pneg %p106
        $region38: #{language_model_forward.3} parent=31 // pred_check_branch
          %314 = sbr.rel (%p312) target = $region40
        $region39: #{language_model_forward.3} parent=31 // pred_region
          %315 = dma.done %s308, 1024
        $region40: #{language_model_forward.3} parent=31 // pred_fallthru
          _
        %s316 = sand.u32 %s23, 1
        %s317 = scalar_lea.sflag [#allocation8], %s316
        %s318 = sand.u32 %s143, 1
        %s319 = scalar_lea.vmem [#allocation9], %s318
        // Predicated region
        $region41: #{language_model_forward.3} parent=31 // pred_check
          %p320 = pneg %p156
        $region42: #{language_model_forward.3} parent=31 // pred_check_branch
          %322 = sbr.rel (%p320) target = $region44
        $region43: #{language_model_forward.3} parent=31 // pred_region
          %323 = dma.done %s317, 16
        $region44: #{language_model_forward.3} parent=31 // pred_fallthru
          _
        %s324 = sand.u32 %s43, 1
        %s325 = scalar_lea.sflag [#allocation5], %s324
        %s326 = sand.u32 %s43, 1
        %s327 = smul.addr %s326, 128
        %s328 = scalar_lea.vmem [#allocation4], %s327
        %p329 = pneg %p56
        %p330 = pneg %p53
        %s331 = sand.u32 %s23, 1
        %s332 = scalar_lea.sflag [#allocation8], %s331
        %s333 = sand.u32 %s93, 1
        %s334 = smul.addr %s333, 64
        %s335 = scalar_lea.vmem [#allocation7], %s334
        %p336 = pneg %p106
        %p337 = pneg %p103
        %s338 = sand.u32 %s23, 1
        %s339 = scalar_lea.sflag [#allocation8], %s338
        %s340 = sand.u32 %s143, 1
        %s341 = scalar_lea.vmem [#allocation9], %s340
        %p342 = pneg %p156
        %p343 = pneg %p153
        %p344 = pneg %p190
        %p345 = pneg %p187
        %s346 = sand.u32 %s177, 1
        %s347 = scalar_lea.sflag [#allocation6], %s346
        %s348 = sand.u32 %s177, 1
        %s349 = smul.addr %s348, 128
        %s350 = scalar_lea.vmem [#allocation10], %s349
        %s351 = smul.u32 32, %s27
        %p352 = scmp.lt.s32.totalorder %s28, 0
        %s353 = ssub.s32 0, %s28
        %s354 = scalar_select %p352, %s353, %s28
        %s355 = sand.u32 %s354, 1
        %s356 = ssub.s32 0, %s355
        %s357 = scalar_select %p352, %s356, %s355
        %p358 = scmp.ne.s32.totalorder %s357, 0
        %p359 = scmp.lt.s32.totalorder %s357, 0
        %p360 = pnand %p359, %p358
        %p361 = pneg %p360
        %s362 = sadd.s32 %s357, 2
        %s363 = scalar_select %p361, %s362, %s357
        %p364 = scmp.lt.s32.totalorder %s28, 0
        %s365 = ssub.s32 0, %s28
        %s366 = scalar_select %p364, %s365, %s28
        %s367 = sand.u32 %s366, 1
        %s368 = ssub.s32 0, %s367
        %s369 = scalar_select %p364, %s368, %s367
        %p370 = scmp.ne.s32.totalorder %s369, 0
        %p371 = scmp.lt.s32.totalorder %s369, 0
        %p372 = pnand %p371, %p370
        %p373 = pneg %p372
        %s374 = sadd.s32 %s369, 2
        %s375 = scalar_select %p373, %s374, %s369
        %s376 = ssub.s32 %s28, 2
        %p377 = scmp.gt.s32.totalorder %s376, 0
        %s378 = scalar_select %p377, %s376, 0
        %s379 = smul.u32 32, %s27
        %p381 = scmp.eq.s32.totalorder %s28, 0
        // Predicated region
        $region45: #{language_model_forward.3} parent=31 // pred_check
          %p382 = pneg %p381
        $region46: #{language_model_forward.3} parent=31 // pred_check_branch
          %384 = sbr.rel (%p382) target = $region48
        $region47: #{language_model_forward.3} parent=31 // pred_region
          %vm385 = vcmask 7168
          %386 = vst.msk [vmem:[#allocation2] sm:$0xff] %vm385, -inf
          %387 = vst.msk [vmem:[#allocation2 + $0x8] sm:$0xff] %vm385, -inf
          %388 = vst.msk [vmem:[#allocation2 + $0x10] sm:$0xff] %vm385, -inf
          %389 = vst.msk [vmem:[#allocation2 + $0x18] sm:$0xff] %vm385, -inf
          %390 = vst.msk [vmem:[#allocation2 + $0x20] sm:$0xff] %vm385, -inf
          %391 = vst.msk [vmem:[#allocation2 + $0x28] sm:$0xff] %vm385, -inf
          %392 = vst.msk [vmem:[#allocation2 + $0x30] sm:$0xff] %vm385, -inf
          %393 = vst.msk [vmem:[#allocation2 + $0x38] sm:$0xff] %vm385, -inf
          %394 = vst.msk [vmem:[#allocation2 + $0x40] sm:$0xff] %vm385, -inf
          %395 = vst.msk [vmem:[#allocation2 + $0x48] sm:$0xff] %vm385, -inf
          %396 = vst.msk [vmem:[#allocation2 + $0x50] sm:$0xff] %vm385, -inf
          %397 = vst.msk [vmem:[#allocation2 + $0x58] sm:$0xff] %vm385, -inf
          %398 = vst.msk [vmem:[#allocation2 + $0x60] sm:$0xff] %vm385, -inf
          %399 = vst.msk [vmem:[#allocation2 + $0x68] sm:$0xff] %vm385, -inf
          %400 = vst.msk [vmem:[#allocation2 + $0x70] sm:$0xff] %vm385, -inf
          %401 = vst.msk [vmem:[#allocation2 + $0x78] sm:$0xff] %vm385, -inf
          %402 = vst.msk [vmem:[#allocation2 + $0x80] sm:$0xff] %vm385, -inf
          %403 = vst.msk [vmem:[#allocation2 + $0x88] sm:$0xff] %vm385, -inf
          %404 = vst.msk [vmem:[#allocation2 + $0x90] sm:$0xff] %vm385, -inf
          %405 = vst.msk [vmem:[#allocation2 + $0x98] sm:$0xff] %vm385, -inf
          %406 = vst.msk [vmem:[#allocation2 + $0xa0] sm:$0xff] %vm385, -inf
          %407 = vst.msk [vmem:[#allocation2 + $0xa8] sm:$0xff] %vm385, -inf
          %408 = vst.msk [vmem:[#allocation2 + $0xb0] sm:$0xff] %vm385, -inf
          %409 = vst.msk [vmem:[#allocation2 + $0xb8] sm:$0xff] %vm385, -inf
          %410 = vst.msk [vmem:[#allocation2 + $0xc0] sm:$0xff] %vm385, -inf
          %411 = vst.msk [vmem:[#allocation2 + $0xc8] sm:$0xff] %vm385, -inf
          %412 = vst.msk [vmem:[#allocation2 + $0xd0] sm:$0xff] %vm385, -inf
          %413 = vst.msk [vmem:[#allocation2 + $0xd8] sm:$0xff] %vm385, -inf
          %414 = vst.msk [vmem:[#allocation2 + $0xe0] sm:$0xff] %vm385, -inf
          %415 = vst.msk [vmem:[#allocation2 + $0xe8] sm:$0xff] %vm385, -inf
          %416 = vst.msk [vmem:[#allocation2 + $0xf0] sm:$0xff] %vm385, -inf
          %417 = vst.msk [vmem:[#allocation2 + $0xf8] sm:$0xff] %vm385, -inf
          %418 = vst.msk [vmem:[#allocation3] sm:$0xff] %vm385, 0.0
          %419 = vst.msk [vmem:[#allocation3 + $0x8] sm:$0xff] %vm385, 0.0
          %420 = vst.msk [vmem:[#allocation3 + $0x10] sm:$0xff] %vm385, 0.0
          %421 = vst.msk [vmem:[#allocation3 + $0x18] sm:$0xff] %vm385, 0.0
          %422 = vst.msk [vmem:[#allocation3 + $0x20] sm:$0xff] %vm385, 0.0
          %423 = vst.msk [vmem:[#allocation3 + $0x28] sm:$0xff] %vm385, 0.0
          %424 = vst.msk [vmem:[#allocation3 + $0x30] sm:$0xff] %vm385, 0.0
          %425 = vst.msk [vmem:[#allocation3 + $0x38] sm:$0xff] %vm385, 0.0
          %426 = vst.msk [vmem:[#allocation3 + $0x40] sm:$0xff] %vm385, 0.0
          %427 = vst.msk [vmem:[#allocation3 + $0x48] sm:$0xff] %vm385, 0.0
          %428 = vst.msk [vmem:[#allocation3 + $0x50] sm:$0xff] %vm385, 0.0
          %429 = vst.msk [vmem:[#allocation3 + $0x58] sm:$0xff] %vm385, 0.0
          %430 = vst.msk [vmem:[#allocation3 + $0x60] sm:$0xff] %vm385, 0.0
          %431 = vst.msk [vmem:[#allocation3 + $0x68] sm:$0xff] %vm385, 0.0
          %432 = vst.msk [vmem:[#allocation3 + $0x70] sm:$0xff] %vm385, 0.0
          %433 = vst.msk [vmem:[#allocation3 + $0x78] sm:$0xff] %vm385, 0.0
          %434 = vst.msk [vmem:[#allocation3 + $0x80] sm:$0xff] %vm385, 0.0
          %435 = vst.msk [vmem:[#allocation3 + $0x88] sm:$0xff] %vm385, 0.0
          %436 = vst.msk [vmem:[#allocation3 + $0x90] sm:$0xff] %vm385, 0.0
          %437 = vst.msk [vmem:[#allocation3 + $0x98] sm:$0xff] %vm385, 0.0
          %438 = vst.msk [vmem:[#allocation3 + $0xa0] sm:$0xff] %vm385, 0.0
          %439 = vst.msk [vmem:[#allocation3 + $0xa8] sm:$0xff] %vm385, 0.0
          %440 = vst.msk [vmem:[#allocation3 + $0xb0] sm:$0xff] %vm385, 0.0
          %441 = vst.msk [vmem:[#allocation3 + $0xb8] sm:$0xff] %vm385, 0.0
          %442 = vst.msk [vmem:[#allocation3 + $0xc0] sm:$0xff] %vm385, 0.0
          %443 = vst.msk [vmem:[#allocation3 + $0xc8] sm:$0xff] %vm385, 0.0
          %444 = vst.msk [vmem:[#allocation3 + $0xd0] sm:$0xff] %vm385, 0.0
          %445 = vst.msk [vmem:[#allocation3 + $0xd8] sm:$0xff] %vm385, 0.0
          %446 = vst.msk [vmem:[#allocation3 + $0xe0] sm:$0xff] %vm385, 0.0
          %447 = vst.msk [vmem:[#allocation3 + $0xe8] sm:$0xff] %vm385, 0.0
          %448 = vst.msk [vmem:[#allocation3 + $0xf0] sm:$0xff] %vm385, 0.0
          %449 = vst.msk [vmem:[#allocation3 + $0xf8] sm:$0xff] %vm385, 0.0
        $region48: #{language_model_forward.3} parent=31 // pred_fallthru
          _
        %v450 = vld [vmem:[%s302] sm:$0xf]
        %v451 = vld [vmem:[%s302 + $0x4] sm:$0xf]
        %v452 = vld [vmem:[%s302 + $0x8] sm:$0xf]
        %v453 = vld [vmem:[%s302 + $0xc] sm:$0xf]
        %v454 = vld [vmem:[%s302 + $0x10] sm:$0xf]
        %v455 = vld [vmem:[%s302 + $0x14] sm:$0xf]
        %v456 = vld [vmem:[%s302 + $0x18] sm:$0xf]
        %v457 = vld [vmem:[%s302 + $0x1c] sm:$0xf]
        %v458 = vld [vmem:[%s302 + $0x20] sm:$0xf]
        %v459 = vld [vmem:[%s302 + $0x24] sm:$0xf]
        %v460 = vld [vmem:[%s302 + $0x28] sm:$0xf]
        %v461 = vld [vmem:[%s302 + $0x2c] sm:$0xf]
        %v462 = vld [vmem:[%s302 + $0x30] sm:$0xf]
        %v463 = vld [vmem:[%s302 + $0x34] sm:$0xf]
        %v464 = vld [vmem:[%s302 + $0x38] sm:$0xf]
        %v465 = vld [vmem:[%s302 + $0x3c] sm:$0xf]
        %v466 = vld [vmem:[%s302 + $0x40] sm:$0xf]
        %v467 = vld [vmem:[%s302 + $0x44] sm:$0xf]
        %v468 = vld [vmem:[%s302 + $0x48] sm:$0xf]
        %v469 = vld [vmem:[%s302 + $0x4c] sm:$0xf]
        %v470 = vld [vmem:[%s302 + $0x50] sm:$0xf]
        %v471 = vld [vmem:[%s302 + $0x54] sm:$0xf]
        %v472 = vld [vmem:[%s302 + $0x58] sm:$0xf]
        %v473 = vld [vmem:[%s302 + $0x5c] sm:$0xf]
        %v474 = vld [vmem:[%s302 + $0x60] sm:$0xf]
        %v475 = vld [vmem:[%s302 + $0x64] sm:$0xf]
        %v476 = vld [vmem:[%s302 + $0x68] sm:$0xf]
        %v477 = vld [vmem:[%s302 + $0x6c] sm:$0xf]
        %v478 = vld [vmem:[%s302 + $0x70] sm:$0xf]
        %v479 = vld [vmem:[%s302 + $0x74] sm:$0xf]
        %v480 = vld [vmem:[%s302 + $0x78] sm:$0xf]
        %v481 = vld [vmem:[%s302 + $0x7c] sm:$0xf]
        %v482 = vld [vmem:[%s311] sm:$0xf]
        %v483 = vld [vmem:[%s311 + $0x4] sm:$0xf]
        %v484 = vld [vmem:[%s311 + $0x8] sm:$0xf]
        %v485 = vld [vmem:[%s311 + $0xc] sm:$0xf]
        %v486 = vld [vmem:[%s311 + $0x10] sm:$0xf]
        %v487 = vld [vmem:[%s311 + $0x14] sm:$0xf]
        %v488 = vld [vmem:[%s311 + $0x18] sm:$0xf]
        %v489 = vld [vmem:[%s311 + $0x1c] sm:$0xf]
        %v490 = vld [vmem:[%s311 + $0x20] sm:$0xf]
        %v491 = vld [vmem:[%s311 + $0x24] sm:$0xf]
        %v492 = vld [vmem:[%s311 + $0x28] sm:$0xf]
        %v493 = vld [vmem:[%s311 + $0x2c] sm:$0xf]
        %v494 = vld [vmem:[%s311 + $0x30] sm:$0xf]
        %v495 = vld [vmem:[%s311 + $0x34] sm:$0xf]
        %v496 = vld [vmem:[%s311 + $0x38] sm:$0xf]
        %v497 = vld [vmem:[%s311 + $0x3c] sm:$0xf]
        %v498 = vld [vmem:[%s319] sm:$0x1]
        %v500 = vlaneseq
        %v501 = vshrl.u32 %v500, 7
        %v502 = vsub.s32 0, %v501
        %v503 = vrot.slane %v498, %v502
        %v537 = vunpack.c.l.b16 %v450
        %v538 = vunpack.c.l.b16 %v451
        %v539 = vunpack.c.l.b16 %v452
        %v540 = vunpack.c.l.b16 %v453
        %v541 = vunpack.c.l.b16 %v454
        %v542 = vunpack.c.l.b16 %v455
        %v543 = vunpack.c.l.b16 %v456
        %v544 = vunpack.c.l.b16 %v457
        %v545 = vunpack.c.l.b16 %v458
        %v546 = vunpack.c.l.b16 %v459
        %v547 = vunpack.c.l.b16 %v460
        %v548 = vunpack.c.l.b16 %v461
        %v549 = vunpack.c.l.b16 %v462
        %v550 = vunpack.c.l.b16 %v463
        %v551 = vunpack.c.l.b16 %v464
        %v552 = vunpack.c.l.b16 %v465
        %v553 = vunpack.c.l.b16 %v466
        %v554 = vunpack.c.l.b16 %v467
        %v555 = vunpack.c.l.b16 %v468
        %v556 = vunpack.c.l.b16 %v469
        %v557 = vunpack.c.l.b16 %v470
        %v558 = vunpack.c.l.b16 %v471
        %v559 = vunpack.c.l.b16 %v472
        %v560 = vunpack.c.l.b16 %v473
        %v561 = vunpack.c.l.b16 %v474
        %v562 = vunpack.c.l.b16 %v475
        %v563 = vunpack.c.l.b16 %v476
        %v564 = vunpack.c.l.b16 %v477
        %v565 = vunpack.c.l.b16 %v478
        %v566 = vunpack.c.l.b16 %v479
        %v567 = vunpack.c.l.b16 %v480
        %v568 = vunpack.c.l.b16 %v481
        %v569 = vpack.c.b16 %v538, %v537
        %v570 = vpack.c.b16 %v540, %v539
        %v571 = vpack.c.b16 %v542, %v541
        %v572 = vpack.c.b16 %v544, %v543
        %v573 = vpack.c.b16 %v546, %v545
        %v574 = vpack.c.b16 %v548, %v547
        %v575 = vpack.c.b16 %v550, %v549
        %v576 = vpack.c.b16 %v552, %v551
        %v577 = vpack.c.b16 %v554, %v553
        %v578 = vpack.c.b16 %v556, %v555
        %v579 = vpack.c.b16 %v558, %v557
        %v580 = vpack.c.b16 %v560, %v559
        %v581 = vpack.c.b16 %v562, %v561
        %v582 = vpack.c.b16 %v564, %v563
        %v583 = vpack.c.b16 %v566, %v565
        %v584 = vpack.c.b16 %v568, %v567
        %v617 = vunpack.c.l.b16 %v482
        %v618 = vunpack.c.l.b16 %v483
        %v619 = vunpack.c.l.b16 %v484
        %v620 = vunpack.c.l.b16 %v485
        %v621 = vunpack.c.l.b16 %v486
        %v622 = vunpack.c.l.b16 %v487
        %v623 = vunpack.c.l.b16 %v488
        %v624 = vunpack.c.l.b16 %v489
        %v625 = vunpack.c.l.b16 %v490
        %v626 = vunpack.c.l.b16 %v491
        %v627 = vunpack.c.l.b16 %v492
        %v628 = vunpack.c.l.b16 %v493
        %v629 = vunpack.c.l.b16 %v494
        %v630 = vunpack.c.l.b16 %v495
        %v631 = vunpack.c.l.b16 %v496
        %v632 = vunpack.c.l.b16 %v497
        %v633 = vpack.c.b16 %v618, %v617
        %v634 = vpack.c.b16 %v620, %v619
        %v635 = vpack.c.b16 %v622, %v621
        %v636 = vpack.c.b16 %v624, %v623
        %v637 = vpack.c.b16 %v626, %v625
        %v638 = vpack.c.b16 %v628, %v627
        %v639 = vpack.c.b16 %v630, %v629
        %v640 = vpack.c.b16 %v632, %v631
        %649 = vmatprep.subr.bf16.mxu0 0
        %650 = vmatpush1.bf16.msra.mxu0 %v633
        %651 = vmatprep.subr.bf16.mxu0 0
        %652 = vmatpush1.bf16.msra.mxu0 %v634
        %653 = vmatprep.subr.bf16.mxu0 0
        %654 = vmatpush1.bf16.msra.mxu0 %v635
        %655 = vmatprep.subr.bf16.mxu0 0
        %656 = vmatpush1.bf16.msra.mxu0 %v636
        %657 = vmatprep.subr.bf16.mxu0 0
        %658 = vmatpush1.bf16.msra.mxu0 %v637
        %659 = vmatprep.subr.bf16.mxu0 0
        %660 = vmatpush1.bf16.msra.mxu0 %v638
        %661 = vmatprep.subr.bf16.mxu0 0
        %662 = vmatpush1.bf16.msra.mxu0 %v639
        %663 = vmatprep.subr.bf16.mxu0 0
        %664 = vmatpush1.bf16.msra.mxu0 %v640
        %665 = vmatprep.subr.bf16.mxu0 0
        %666 = vmatpush1.bf16.msra.mxu0 0
        %667 = vmatprep.subr.bf16.mxu0 0
        %668 = vmatpush1.bf16.msra.mxu0 0
        %669 = vmatprep.subr.bf16.mxu0 0
        %670 = vmatpush1.bf16.msra.mxu0 0
        %671 = vmatprep.subr.bf16.mxu0 0
        %672 = vmatpush1.bf16.msra.mxu0 0
        %673 = vmatprep.subr.bf16.mxu0 0
        %674 = vmatpush1.bf16.msra.mxu0 0
        %675 = vmatprep.subr.bf16.mxu0 0
        %676 = vmatpush1.bf16.msra.mxu0 0
        %677 = vmatprep.subr.bf16.mxu0 0
        %678 = vmatpush1.bf16.msra.mxu0 0
        %679 = vmatprep.subr.bf16.mxu0 0
        %680 = vmatpush1.bf16.msra.mxu0 0
        %681 = vmatprep.mubr.bf16.mxu0 0
        %682 = vmatmul.mubr.bf16.gmra.mrb[0].mxu0 %v569
        %v683 = vpop.f32.mrb[0].mxu0
        %v684 = vadd.f32 %v503, %v683
        %v685 = vpop.f32.mrb[0].mxu0
        %v686 = vpop.f32.mrb[0].mxu0
        %v687 = vadd.f32 %v503, %v686
        %v688 = vpop.f32.mrb[0].mxu0
        %689 = vmatprep.mubr.bf16.mxu0 0
        %690 = vmatmul.mubr.bf16.gmra.mrb[0].mxu0 %v570
        %v691 = vpop.f32.mrb[0].mxu0
        %v692 = vadd.f32 %v503, %v691
        %v693 = vpop.f32.mrb[0].mxu0
        %v694 = vpop.f32.mrb[0].mxu0
        %v695 = vadd.f32 %v503, %v694
        %v696 = vpop.f32.mrb[0].mxu0
        %697 = vmatprep.mubr.bf16.mxu0 0
        %698 = vmatmul.mubr.bf16.gmra.mrb[0].mxu0 %v571
        %v699 = vpop.f32.mrb[0].mxu0
        %v700 = vadd.f32 %v503, %v699
        %v701 = vpop.f32.mrb[0].mxu0
        %v702 = vpop.f32.mrb[0].mxu0
        %v703 = vadd.f32 %v503, %v702
        %v704 = vpop.f32.mrb[0].mxu0
        %705 = vmatprep.mubr.bf16.mxu0 0
        %706 = vmatmul.mubr.bf16.gmra.mrb[0].mxu0 %v572
        %v707 = vpop.f32.mrb[0].mxu0
        %v708 = vadd.f32 %v503, %v707
        %v709 = vpop.f32.mrb[0].mxu0
        %v710 = vpop.f32.mrb[0].mxu0
        %v711 = vadd.f32 %v503, %v710
        %v712 = vpop.f32.mrb[0].mxu0
        %713 = vmatprep.mubr.bf16.mxu0 0
        %714 = vmatmul.mubr.bf16.gmra.mrb[0].mxu0 %v573
        %v715 = vpop.f32.mrb[0].mxu0
        %v716 = vadd.f32 %v503, %v715
        %v717 = vpop.f32.mrb[0].mxu0
        %v718 = vpop.f32.mrb[0].mxu0
        %v719 = vadd.f32 %v503, %v718
        %v720 = vpop.f32.mrb[0].mxu0
        %721 = vmatprep.mubr.bf16.mxu0 0
        %722 = vmatmul.mubr.bf16.gmra.mrb[0].mxu0 %v574
        %v723 = vpop.f32.mrb[0].mxu0
        %v724 = vadd.f32 %v503, %v723
        %v725 = vpop.f32.mrb[0].mxu0
        %v726 = vpop.f32.mrb[0].mxu0
        %v727 = vadd.f32 %v503, %v726
        %v728 = vpop.f32.mrb[0].mxu0
        %729 = vmatprep.mubr.bf16.mxu0 0
        %730 = vmatmul.mubr.bf16.gmra.mrb[0].mxu0 %v575
        %v731 = vpop.f32.mrb[0].mxu0
        %v732 = vadd.f32 %v503, %v731
        %v733 = vpop.f32.mrb[0].mxu0
        %v734 = vpop.f32.mrb[0].mxu0
        %v735 = vadd.f32 %v503, %v734
        %v736 = vpop.f32.mrb[0].mxu0
        %737 = vmatprep.mubr.bf16.mxu0 0
        %738 = vmatmul.mubr.bf16.gmra.mrb[0].mxu0 %v576
        %v739 = vpop.f32.mrb[0].mxu0
        %v740 = vadd.f32 %v503, %v739
        %v741 = vpop.f32.mrb[0].mxu0
        %v742 = vpop.f32.mrb[0].mxu0
        %v743 = vadd.f32 %v503, %v742
        %v744 = vpop.f32.mrb[0].mxu0
        %745 = vmatprep.mubr.bf16.mxu0 0
        %746 = vmatmul.mubr.bf16.gmra.mrb[0].mxu0 %v577
        %v747 = vpop.f32.mrb[0].mxu0
        %v748 = vadd.f32 %v503, %v747
        %v749 = vpop.f32.mrb[0].mxu0
        %v750 = vpop.f32.mrb[0].mxu0
        %v751 = vadd.f32 %v503, %v750
        %v752 = vpop.f32.mrb[0].mxu0
        %753 = vmatprep.mubr.bf16.mxu0 0
        %754 = vmatmul.mubr.bf16.gmra.mrb[0].mxu0 %v578
        %v755 = vpop.f32.mrb[0].mxu0
        %v756 = vadd.f32 %v503, %v755
        %v757 = vpop.f32.mrb[0].mxu0
        %v758 = vpop.f32.mrb[0].mxu0
        %v759 = vadd.f32 %v503, %v758
        %v760 = vpop.f32.mrb[0].mxu0
        %761 = vmatprep.mubr.bf16.mxu0 0
        %762 = vmatmul.mubr.bf16.gmra.mrb[0].mxu0 %v579
        %v763 = vpop.f32.mrb[0].mxu0
        %v764 = vadd.f32 %v503, %v763
        %v765 = vpop.f32.mrb[0].mxu0
        %v766 = vpop.f32.mrb[0].mxu0
        %v767 = vadd.f32 %v503, %v766
        %v768 = vpop.f32.mrb[0].mxu0
        %769 = vmatprep.mubr.bf16.mxu0 0
        %770 = vmatmul.mubr.bf16.gmra.mrb[0].mxu0 %v580
        %v771 = vpop.f32.mrb[0].mxu0
        %v772 = vadd.f32 %v503, %v771
        %v773 = vpop.f32.mrb[0].mxu0
        %v774 = vpop.f32.mrb[0].mxu0
        %v775 = vadd.f32 %v503, %v774
        %v776 = vpop.f32.mrb[0].mxu0
        %777 = vmatprep.mubr.bf16.mxu0 0
        %778 = vmatmul.mubr.bf16.gmra.mrb[0].mxu0 %v581
        %v779 = vpop.f32.mrb[0].mxu0
        %v780 = vadd.f32 %v503, %v779
        %v781 = vpop.f32.mrb[0].mxu0
        %v782 = vpop.f32.mrb[0].mxu0
        %v783 = vadd.f32 %v503, %v782
        %v784 = vpop.f32.mrb[0].mxu0
        %785 = vmatprep.mubr.bf16.mxu0 0
        %786 = vmatmul.mubr.bf16.gmra.mrb[0].mxu0 %v582
        %v787 = vpop.f32.mrb[0].mxu0
        %v788 = vadd.f32 %v503, %v787
        %v789 = vpop.f32.mrb[0].mxu0
        %v790 = vpop.f32.mrb[0].mxu0
        %v791 = vadd.f32 %v503, %v790
        %v792 = vpop.f32.mrb[0].mxu0
        %793 = vmatprep.mubr.bf16.mxu0 0
        %794 = vmatmul.mubr.bf16.gmra.mrb[0].mxu0 %v583
        %v795 = vpop.f32.mrb[0].mxu0
        %v796 = vadd.f32 %v503, %v795
        %v797 = vpop.f32.mrb[0].mxu0
        %v798 = vpop.f32.mrb[0].mxu0
        %v799 = vadd.f32 %v503, %v798
        %v800 = vpop.f32.mrb[0].mxu0
        %801 = vmatprep.mubr.bf16.mxu0 0
        %802 = vmatmul.mubr.bf16.gmra.mrb[0].mxu0 %v584
        %v803 = vpop.f32.mrb[0].mxu0
        %v804 = vadd.f32 %v503, %v803
        %v805 = vpop.f32.mrb[0].mxu0
        %v806 = vpop.f32.mrb[0].mxu0
        %v807 = vadd.f32 %v503, %v806
        %v808 = vpop.f32.mrb[0].mxu0
        %809 = vdwg.mxu0
        %p810 = scmp.lt.s32.totalorder %s28, 2
        // Predicated region
        $region49: #{language_model_forward.3} parent=31 // pred_check
          %p811 = pneg %p810
        $region50: #{language_model_forward.3} parent=31 // pred_check_branch
          %813 = sbr.rel (%p811) target = $region52
        $region51: #{language_model_forward.3} parent=31 // pred_region
          %v814 = vld [vmem:[#allocation2] sm:$0xff]
          %v815 = vld [vmem:[#allocation2 + $0x8] sm:$0xff]
          %v816 = vld [vmem:[#allocation2 + $0x10] sm:$0xff]
          %v817 = vld [vmem:[#allocation2 + $0x18] sm:$0xff]
          %v818 = vld [vmem:[#allocation2 + $0x20] sm:$0xff]
          %v819 = vld [vmem:[#allocation2 + $0x28] sm:$0xff]
          %v820 = vld [vmem:[#allocation2 + $0x30] sm:$0xff]
          %v821 = vld [vmem:[#allocation2 + $0x38] sm:$0xff]
          %v822 = vld [vmem:[#allocation2 + $0x40] sm:$0xff]
          %v823 = vld [vmem:[#allocation2 + $0x48] sm:$0xff]
          %v824 = vld [vmem:[#allocation2 + $0x50] sm:$0xff]
          %v825 = vld [vmem:[#allocation2 + $0x58] sm:$0xff]
          %v826 = vld [vmem:[#allocation2 + $0x60] sm:$0xff]
          %v827 = vld [vmem:[#allocation2 + $0x68] sm:$0xff]
          %v828 = vld [vmem:[#allocation2 + $0x70] sm:$0xff]
          %v829 = vld [vmem:[#allocation2 + $0x78] sm:$0xff]
          %v830 = vld [vmem:[#allocation2 + $0x80] sm:$0xff]
          %v831 = vld [vmem:[#allocation2 + $0x88] sm:$0xff]
          %v832 = vld [vmem:[#allocation2 + $0x90] sm:$0xff]
          %v833 = vld [vmem:[#allocation2 + $0x98] sm:$0xff]
          %v834 = vld [vmem:[#allocation2 + $0xa0] sm:$0xff]
          %v835 = vld [vmem:[#allocation2 + $0xa8] sm:$0xff]
          %v836 = vld [vmem:[#allocation2 + $0xb0] sm:$0xff]
          %v837 = vld [vmem:[#allocation2 + $0xb8] sm:$0xff]
          %v838 = vld [vmem:[#allocation2 + $0xc0] sm:$0xff]
          %v839 = vld [vmem:[#allocation2 + $0xc8] sm:$0xff]
          %v840 = vld [vmem:[#allocation2 + $0xd0] sm:$0xff]
          %v841 = vld [vmem:[#allocation2 + $0xd8] sm:$0xff]
          %v842 = vld [vmem:[#allocation2 + $0xe0] sm:$0xff]
          %v843 = vld [vmem:[#allocation2 + $0xe8] sm:$0xff]
          %v844 = vld [vmem:[#allocation2 + $0xf0] sm:$0xff]
          %v845 = vld [vmem:[#allocation2 + $0xf8] sm:$0xff]
          %846 = vmax.xlane.f32.xlu0 %v684
          %v847 = vpop.xlane.xlu0 %846
          %848 = vmax.xlane.f32.xlu0 %v687
          %v849 = vpop.xlane.xlu0 %848
          %850 = vmax.xlane.f32.xlu0 %v692
          %v851 = vpop.xlane.xlu0 %850
          %852 = vmax.xlane.f32.xlu0 %v695
          %v853 = vpop.xlane.xlu0 %852
          %854 = vmax.xlane.f32.xlu0 %v700
          %v855 = vpop.xlane.xlu0 %854
          %856 = vmax.xlane.f32.xlu0 %v703
          %v857 = vpop.xlane.xlu0 %856
          %858 = vmax.xlane.f32.xlu0 %v708
          %v859 = vpop.xlane.xlu0 %858
          %860 = vmax.xlane.f32.xlu0 %v711
          %v861 = vpop.xlane.xlu0 %860
          %862 = vmax.xlane.f32.xlu0 %v716
          %v863 = vpop.xlane.xlu0 %862
          %864 = vmax.xlane.f32.xlu0 %v719
          %v865 = vpop.xlane.xlu0 %864
          %866 = vmax.xlane.f32.xlu0 %v724
          %v867 = vpop.xlane.xlu0 %866
          %868 = vmax.xlane.f32.xlu0 %v727
          %v869 = vpop.xlane.xlu0 %868
          %870 = vmax.xlane.f32.xlu0 %v732
          %v871 = vpop.xlane.xlu0 %870
          %872 = vmax.xlane.f32.xlu0 %v735
          %v873 = vpop.xlane.xlu0 %872
          %874 = vmax.xlane.f32.xlu0 %v740
          %v875 = vpop.xlane.xlu0 %874
          %876 = vmax.xlane.f32.xlu0 %v743
          %v877 = vpop.xlane.xlu0 %876
          %878 = vmax.xlane.f32.xlu0 %v748
          %v879 = vpop.xlane.xlu0 %878
          %880 = vmax.xlane.f32.xlu0 %v751
          %v881 = vpop.xlane.xlu0 %880
          %882 = vmax.xlane.f32.xlu0 %v756
          %v883 = vpop.xlane.xlu0 %882
          %884 = vmax.xlane.f32.xlu0 %v759
          %v885 = vpop.xlane.xlu0 %884
          %886 = vmax.xlane.f32.xlu0 %v764
          %v887 = vpop.xlane.xlu0 %886
          %888 = vmax.xlane.f32.xlu0 %v767
          %v889 = vpop.xlane.xlu0 %888
          %890 = vmax.xlane.f32.xlu0 %v772
          %v891 = vpop.xlane.xlu0 %890
          %892 = vmax.xlane.f32.xlu0 %v775
          %v893 = vpop.xlane.xlu0 %892
          %894 = vmax.xlane.f32.xlu0 %v780
          %v895 = vpop.xlane.xlu0 %894
          %896 = vmax.xlane.f32.xlu0 %v783
          %v897 = vpop.xlane.xlu0 %896
          %898 = vmax.xlane.f32.xlu0 %v788
          %v899 = vpop.xlane.xlu0 %898
          %900 = vmax.xlane.f32.xlu0 %v791
          %v901 = vpop.xlane.xlu0 %900
          %902 = vmax.xlane.f32.xlu0 %v796
          %v903 = vpop.xlane.xlu0 %902
          %904 = vmax.xlane.f32.xlu0 %v799
          %v905 = vpop.xlane.xlu0 %904
          %906 = vmax.xlane.f32.xlu0 %v804
          %v907 = vpop.xlane.xlu0 %906
          %908 = vmax.xlane.f32.xlu0 %v807
          %v909 = vpop.xlane.xlu0 %908
          %v910 = vmax.f32 %v814, %v847
          %v911 = vmax.f32 %v815, %v849
          %v912 = vmax.f32 %v816, %v851
          %v913 = vmax.f32 %v817, %v853
          %v914 = vmax.f32 %v818, %v855
          %v915 = vmax.f32 %v819, %v857
          %v916 = vmax.f32 %v820, %v859
          %v917 = vmax.f32 %v821, %v861
          %v918 = vmax.f32 %v822, %v863
          %v919 = vmax.f32 %v823, %v865
          %v920 = vmax.f32 %v824, %v867
          %v921 = vmax.f32 %v825, %v869
          %v922 = vmax.f32 %v826, %v871
          %v923 = vmax.f32 %v827, %v873
          %v924 = vmax.f32 %v828, %v875
          %v925 = vmax.f32 %v829, %v877
          %v926 = vmax.f32 %v830, %v879
          %v927 = vmax.f32 %v831, %v881
          %v928 = vmax.f32 %v832, %v883
          %v929 = vmax.f32 %v833, %v885
          %v930 = vmax.f32 %v834, %v887
          %v931 = vmax.f32 %v835, %v889
          %v932 = vmax.f32 %v836, %v891
          %v933 = vmax.f32 %v837, %v893
          %v934 = vmax.f32 %v838, %v895
          %v935 = vmax.f32 %v839, %v897
          %v936 = vmax.f32 %v840, %v899
          %v937 = vmax.f32 %v841, %v901
          %v938 = vmax.f32 %v842, %v903
          %v939 = vmax.f32 %v843, %v905
          %v940 = vmax.f32 %v844, %v907
          %v941 = vmax.f32 %v845, %v909
          %v942 = vld [vmem:[#allocation3] sm:$0xff]
          %v943 = vld [vmem:[#allocation3 + $0x8] sm:$0xff]
          %v944 = vld [vmem:[#allocation3 + $0x10] sm:$0xff]
          %v945 = vld [vmem:[#allocation3 + $0x18] sm:$0xff]
          %v946 = vld [vmem:[#allocation3 + $0x20] sm:$0xff]
          %v947 = vld [vmem:[#allocation3 + $0x28] sm:$0xff]
          %v948 = vld [vmem:[#allocation3 + $0x30] sm:$0xff]
          %v949 = vld [vmem:[#allocation3 + $0x38] sm:$0xff]
          %v950 = vld [vmem:[#allocation3 + $0x40] sm:$0xff]
          %v951 = vld [vmem:[#allocation3 + $0x48] sm:$0xff]
          %v952 = vld [vmem:[#allocation3 + $0x50] sm:$0xff]
          %v953 = vld [vmem:[#allocation3 + $0x58] sm:$0xff]
          %v954 = vld [vmem:[#allocation3 + $0x60] sm:$0xff]
          %v955 = vld [vmem:[#allocation3 + $0x68] sm:$0xff]
          %v956 = vld [vmem:[#allocation3 + $0x70] sm:$0xff]
          %v957 = vld [vmem:[#allocation3 + $0x78] sm:$0xff]
          %v958 = vld [vmem:[#allocation3 + $0x80] sm:$0xff]
          %v959 = vld [vmem:[#allocation3 + $0x88] sm:$0xff]
          %v960 = vld [vmem:[#allocation3 + $0x90] sm:$0xff]
          %v961 = vld [vmem:[#allocation3 + $0x98] sm:$0xff]
          %v962 = vld [vmem:[#allocation3 + $0xa0] sm:$0xff]
          %v963 = vld [vmem:[#allocation3 + $0xa8] sm:$0xff]
          %v964 = vld [vmem:[#allocation3 + $0xb0] sm:$0xff]
          %v965 = vld [vmem:[#allocation3 + $0xb8] sm:$0xff]
          %v966 = vld [vmem:[#allocation3 + $0xc0] sm:$0xff]
          %v967 = vld [vmem:[#allocation3 + $0xc8] sm:$0xff]
          %v968 = vld [vmem:[#allocation3 + $0xd0] sm:$0xff]
          %v969 = vld [vmem:[#allocation3 + $0xd8] sm:$0xff]
          %v970 = vld [vmem:[#allocation3 + $0xe0] sm:$0xff]
          %v971 = vld [vmem:[#allocation3 + $0xe8] sm:$0xff]
          %v972 = vld [vmem:[#allocation3 + $0xf0] sm:$0xff]
          %v973 = vld [vmem:[#allocation3 + $0xf8] sm:$0xff]
          %v974 = vsub.f32 %v814, %v910
          %v975 = vsub.f32 %v815, %v911
          %v976 = vsub.f32 %v816, %v912
          %v977 = vsub.f32 %v817, %v913
          %v978 = vsub.f32 %v818, %v914
          %v979 = vsub.f32 %v819, %v915
          %v980 = vsub.f32 %v820, %v916
          %v981 = vsub.f32 %v821, %v917
          %v982 = vsub.f32 %v822, %v918
          %v983 = vsub.f32 %v823, %v919
          %v984 = vsub.f32 %v824, %v920
          %v985 = vsub.f32 %v825, %v921
          %v986 = vsub.f32 %v826, %v922
          %v987 = vsub.f32 %v827, %v923
          %v988 = vsub.f32 %v828, %v924
          %v989 = vsub.f32 %v829, %v925
          %v990 = vsub.f32 %v830, %v926
          %v991 = vsub.f32 %v831, %v927
          %v992 = vsub.f32 %v832, %v928
          %v993 = vsub.f32 %v833, %v929
          %v994 = vsub.f32 %v834, %v930
          %v995 = vsub.f32 %v835, %v931
          %v996 = vsub.f32 %v836, %v932
          %v997 = vsub.f32 %v837, %v933
          %v998 = vsub.f32 %v838, %v934
          %v999 = vsub.f32 %v839, %v935
          %v1000 = vsub.f32 %v840, %v936
          %v1001 = vsub.f32 %v841, %v937
          %v1002 = vsub.f32 %v842, %v938
          %v1003 = vsub.f32 %v843, %v939
          %v1004 = vsub.f32 %v844, %v940
          %v1005 = vsub.f32 %v845, %v941
          %v1006 = vmul.f32 %v974, 1.442695
          %v1007 = vpow.pop %v1006
          %v1008 = vmul.f32 %v975, 1.442695
          %v1009 = vpow.pop %v1008
          %v1010 = vmul.f32 %v976, 1.442695
          %v1011 = vpow.pop %v1010
          %v1012 = vmul.f32 %v977, 1.442695
          %v1013 = vpow.pop %v1012
          %v1014 = vmul.f32 %v978, 1.442695
          %v1015 = vpow.pop %v1014
          %v1016 = vmul.f32 %v979, 1.442695
          %v1017 = vpow.pop %v1016
          %v1018 = vmul.f32 %v980, 1.442695
          %v1019 = vpow.pop %v1018
          %v1020 = vmul.f32 %v981, 1.442695
          %v1021 = vpow.pop %v1020
          %v1022 = vmul.f32 %v982, 1.442695
          %v1023 = vpow.pop %v1022
          %v1024 = vmul.f32 %v983, 1.442695
          %v1025 = vpow.pop %v1024
          %v1026 = vmul.f32 %v984, 1.442695
          %v1027 = vpow.pop %v1026
          %v1028 = vmul.f32 %v985, 1.442695
          %v1029 = vpow.pop %v1028
          %v1030 = vmul.f32 %v986, 1.442695
          %v1031 = vpow.pop %v1030
          %v1032 = vmul.f32 %v987, 1.442695
          %v1033 = vpow.pop %v1032
          %v1034 = vmul.f32 %v988, 1.442695
          %v1035 = vpow.pop %v1034
          %v1036 = vmul.f32 %v989, 1.442695
          %v1037 = vpow.pop %v1036
          %v1038 = vmul.f32 %v990, 1.442695
          %v1039 = vpow.pop %v1038
          %v1040 = vmul.f32 %v991, 1.442695
          %v1041 = vpow.pop %v1040
          %v1042 = vmul.f32 %v992, 1.442695
          %v1043 = vpow.pop %v1042
          %v1044 = vmul.f32 %v993, 1.442695
          %v1045 = vpow.pop %v1044
          %v1046 = vmul.f32 %v994, 1.442695
          %v1047 = vpow.pop %v1046
          %v1048 = vmul.f32 %v995, 1.442695
          %v1049 = vpow.pop %v1048
          %v1050 = vmul.f32 %v996, 1.442695
          %v1051 = vpow.pop %v1050
          %v1052 = vmul.f32 %v997, 1.442695
          %v1053 = vpow.pop %v1052
          %v1054 = vmul.f32 %v998, 1.442695
          %v1055 = vpow.pop %v1054
          %v1056 = vmul.f32 %v999, 1.442695
          %v1057 = vpow.pop %v1056
          %v1058 = vmul.f32 %v1000, 1.442695
          %v1059 = vpow.pop %v1058
          %v1060 = vmul.f32 %v1001, 1.442695
          %v1061 = vpow.pop %v1060
          %v1062 = vmul.f32 %v1002, 1.442695
          %v1063 = vpow.pop %v1062
          %v1064 = vmul.f32 %v1003, 1.442695
          %v1065 = vpow.pop %v1064
          %v1066 = vmul.f32 %v1004, 1.442695
          %v1067 = vpow.pop %v1066
          %v1068 = vmul.f32 %v1005, 1.442695
          %v1069 = vpow.pop %v1068
          %v1070 = vmul.f32 %v942, %v1007
          %v1071 = vmul.f32 %v943, %v1009
          %v1072 = vmul.f32 %v944, %v1011
          %v1073 = vmul.f32 %v945, %v1013
          %v1074 = vmul.f32 %v946, %v1015
          %v1075 = vmul.f32 %v947, %v1017
          %v1076 = vmul.f32 %v948, %v1019
          %v1077 = vmul.f32 %v949, %v1021
          %v1078 = vmul.f32 %v950, %v1023
          %v1079 = vmul.f32 %v951, %v1025
          %v1080 = vmul.f32 %v952, %v1027
          %v1081 = vmul.f32 %v953, %v1029
          %v1082 = vmul.f32 %v954, %v1031
          %v1083 = vmul.f32 %v955, %v1033
          %v1084 = vmul.f32 %v956, %v1035
          %v1085 = vmul.f32 %v957, %v1037
          %v1086 = vmul.f32 %v958, %v1039
          %v1087 = vmul.f32 %v959, %v1041
          %v1088 = vmul.f32 %v960, %v1043
          %v1089 = vmul.f32 %v961, %v1045
          %v1090 = vmul.f32 %v962, %v1047
          %v1091 = vmul.f32 %v963, %v1049
          %v1092 = vmul.f32 %v964, %v1051
          %v1093 = vmul.f32 %v965, %v1053
          %v1094 = vmul.f32 %v966, %v1055
          %v1095 = vmul.f32 %v967, %v1057
          %v1096 = vmul.f32 %v968, %v1059
          %v1097 = vmul.f32 %v969, %v1061
          %v1098 = vmul.f32 %v970, %v1063
          %v1099 = vmul.f32 %v971, %v1065
          %v1100 = vmul.f32 %v972, %v1067
          %v1101 = vmul.f32 %v973, %v1069
          %1103 = vset.pattern.permute.xlu0 0
          %1104 = vperm.xlu0 %1103, %v910
          %v1105 = vpop.permute.xlu0 %1104
          %1108 = vset.pattern.permute.xlu0 0
          %1109 = vperm.xlu0 %1108, %v911
          %v1110 = vpop.permute.xlu0 %1109
          %1113 = vset.pattern.permute.xlu0 0
          %1114 = vperm.xlu0 %1113, %v912
          %v1115 = vpop.permute.xlu0 %1114
          %1118 = vset.pattern.permute.xlu0 0
          %1119 = vperm.xlu0 %1118, %v913
          %v1120 = vpop.permute.xlu0 %1119
          %1123 = vset.pattern.permute.xlu0 0
          %1124 = vperm.xlu0 %1123, %v914
          %v1125 = vpop.permute.xlu0 %1124
          %1128 = vset.pattern.permute.xlu0 0
          %1129 = vperm.xlu0 %1128, %v915
          %v1130 = vpop.permute.xlu0 %1129
          %1133 = vset.pattern.permute.xlu0 0
          %1134 = vperm.xlu0 %1133, %v916
          %v1135 = vpop.permute.xlu0 %1134
          %1138 = vset.pattern.permute.xlu0 0
          %1139 = vperm.xlu0 %1138, %v917
          %v1140 = vpop.permute.xlu0 %1139
          %1143 = vset.pattern.permute.xlu0 0
          %1144 = vperm.xlu0 %1143, %v918
          %v1145 = vpop.permute.xlu0 %1144
          %1148 = vset.pattern.permute.xlu0 0
          %1149 = vperm.xlu0 %1148, %v919
          %v1150 = vpop.permute.xlu0 %1149
          %1153 = vset.pattern.permute.xlu0 0
          %1154 = vperm.xlu0 %1153, %v920
          %v1155 = vpop.permute.xlu0 %1154
          %1158 = vset.pattern.permute.xlu0 0
          %1159 = vperm.xlu0 %1158, %v921
          %v1160 = vpop.permute.xlu0 %1159
          %1163 = vset.pattern.permute.xlu0 0
          %1164 = vperm.xlu0 %1163, %v922
          %v1165 = vpop.permute.xlu0 %1164
          %1168 = vset.pattern.permute.xlu0 0
          %1169 = vperm.xlu0 %1168, %v923
          %v1170 = vpop.permute.xlu0 %1169
          %1173 = vset.pattern.permute.xlu0 0
          %1174 = vperm.xlu0 %1173, %v924
          %v1175 = vpop.permute.xlu0 %1174
          %1178 = vset.pattern.permute.xlu0 0
          %1179 = vperm.xlu0 %1178, %v925
          %v1180 = vpop.permute.xlu0 %1179
          %1183 = vset.pattern.permute.xlu0 0
          %1184 = vperm.xlu0 %1183, %v926
          %v1185 = vpop.permute.xlu0 %1184
          %1188 = vset.pattern.permute.xlu0 0
          %1189 = vperm.xlu0 %1188, %v927
          %v1190 = vpop.permute.xlu0 %1189
          %1193 = vset.pattern.permute.xlu0 0
          %1194 = vperm.xlu0 %1193, %v928
          %v1195 = vpop.permute.xlu0 %1194
          %1198 = vset.pattern.permute.xlu0 0
          %1199 = vperm.xlu0 %1198, %v929
          %v1200 = vpop.permute.xlu0 %1199
          %1203 = vset.pattern.permute.xlu0 0
          %1204 = vperm.xlu0 %1203, %v930
          %v1205 = vpop.permute.xlu0 %1204
          %1208 = vset.pattern.permute.xlu0 0
          %1209 = vperm.xlu0 %1208, %v931
          %v1210 = vpop.permute.xlu0 %1209
          %1213 = vset.pattern.permute.xlu0 0
          %1214 = vperm.xlu0 %1213, %v932
          %v1215 = vpop.permute.xlu0 %1214
          %1218 = vset.pattern.permute.xlu0 0
          %1219 = vperm.xlu0 %1218, %v933
          %v1220 = vpop.permute.xlu0 %1219
          %1223 = vset.pattern.permute.xlu0 0
          %1224 = vperm.xlu0 %1223, %v934
          %v1225 = vpop.permute.xlu0 %1224
          %1228 = vset.pattern.permute.xlu0 0
          %1229 = vperm.xlu0 %1228, %v935
          %v1230 = vpop.permute.xlu0 %1229
          %1233 = vset.pattern.permute.xlu0 0
          %1234 = vperm.xlu0 %1233, %v936
          %v1235 = vpop.permute.xlu0 %1234
          %1238 = vset.pattern.permute.xlu0 0
          %1239 = vperm.xlu0 %1238, %v937
          %v1240 = vpop.permute.xlu0 %1239
          %1243 = vset.pattern.permute.xlu0 0
          %1244 = vperm.xlu0 %1243, %v938
          %v1245 = vpop.permute.xlu0 %1244
          %1248 = vset.pattern.permute.xlu0 0
          %1249 = vperm.xlu0 %1248, %v939
          %v1250 = vpop.permute.xlu0 %1249
          %1253 = vset.pattern.permute.xlu0 0
          %1254 = vperm.xlu0 %1253, %v940
          %v1255 = vpop.permute.xlu0 %1254
          %1258 = vset.pattern.permute.xlu0 0
          %1259 = vperm.xlu0 %1258, %v941
          %v1260 = vpop.permute.xlu0 %1259
          %v1262 = vsub.f32 %v684, %v1105
          %v1263 = vsub.f32 %v687, %v1110
          %v1264 = vsub.f32 %v692, %v1115
          %v1265 = vsub.f32 %v695, %v1120
          %v1266 = vsub.f32 %v700, %v1125
          %v1267 = vsub.f32 %v703, %v1130
          %v1268 = vsub.f32 %v708, %v1135
          %v1269 = vsub.f32 %v711, %v1140
          %v1270 = vsub.f32 %v716, %v1145
          %v1271 = vsub.f32 %v719, %v1150
          %v1272 = vsub.f32 %v724, %v1155
          %v1273 = vsub.f32 %v727, %v1160
          %v1274 = vsub.f32 %v732, %v1165
          %v1275 = vsub.f32 %v735, %v1170
          %v1276 = vsub.f32 %v740, %v1175
          %v1277 = vsub.f32 %v743, %v1180
          %v1278 = vsub.f32 %v748, %v1185
          %v1279 = vsub.f32 %v751, %v1190
          %v1280 = vsub.f32 %v756, %v1195
          %v1281 = vsub.f32 %v759, %v1200
          %v1282 = vsub.f32 %v764, %v1205
          %v1283 = vsub.f32 %v767, %v1210
          %v1284 = vsub.f32 %v772, %v1215
          %v1285 = vsub.f32 %v775, %v1220
          %v1286 = vsub.f32 %v780, %v1225
          %v1287 = vsub.f32 %v783, %v1230
          %v1288 = vsub.f32 %v788, %v1235
          %v1289 = vsub.f32 %v791, %v1240
          %v1290 = vsub.f32 %v796, %v1245
          %v1291 = vsub.f32 %v799, %v1250
          %v1292 = vsub.f32 %v804, %v1255
          %v1293 = vsub.f32 %v807, %v1260
          %v1294 = vmul.f32 %v1262, 1.442695
          %v1295 = vpow.pop %v1294
          %v1296 = vmul.f32 %v1263, 1.442695
          %v1297 = vpow.pop %v1296
          %v1298 = vmul.f32 %v1264, 1.442695
          %v1299 = vpow.pop %v1298
          %v1300 = vmul.f32 %v1265, 1.442695
          %v1301 = vpow.pop %v1300
          %v1302 = vmul.f32 %v1266, 1.442695
          %v1303 = vpow.pop %v1302
          %v1304 = vmul.f32 %v1267, 1.442695
          %v1305 = vpow.pop %v1304
          %v1306 = vmul.f32 %v1268, 1.442695
          %v1307 = vpow.pop %v1306
          %v1308 = vmul.f32 %v1269, 1.442695
          %v1309 = vpow.pop %v1308
          %v1310 = vmul.f32 %v1270, 1.442695
          %v1311 = vpow.pop %v1310
          %v1312 = vmul.f32 %v1271, 1.442695
          %v1313 = vpow.pop %v1312
          %v1314 = vmul.f32 %v1272, 1.442695
          %v1315 = vpow.pop %v1314
          %v1316 = vmul.f32 %v1273, 1.442695
          %v1317 = vpow.pop %v1316
          %v1318 = vmul.f32 %v1274, 1.442695
          %v1319 = vpow.pop %v1318
          %v1320 = vmul.f32 %v1275, 1.442695
          %v1321 = vpow.pop %v1320
          %v1322 = vmul.f32 %v1276, 1.442695
          %v1323 = vpow.pop %v1322
          %v1324 = vmul.f32 %v1277, 1.442695
          %v1325 = vpow.pop %v1324
          %v1326 = vmul.f32 %v1278, 1.442695
          %v1327 = vpow.pop %v1326
          %v1328 = vmul.f32 %v1279, 1.442695
          %v1329 = vpow.pop %v1328
          %v1330 = vmul.f32 %v1280, 1.442695
          %v1331 = vpow.pop %v1330
          %v1332 = vmul.f32 %v1281, 1.442695
          %v1333 = vpow.pop %v1332
          %v1334 = vmul.f32 %v1282, 1.442695
          %v1335 = vpow.pop %v1334
          %v1336 = vmul.f32 %v1283, 1.442695
          %v1337 = vpow.pop %v1336
          %v1338 = vmul.f32 %v1284, 1.442695
          %v1339 = vpow.pop %v1338
          %v1340 = vmul.f32 %v1285, 1.442695
          %v1341 = vpow.pop %v1340
          %v1342 = vmul.f32 %v1286, 1.442695
          %v1343 = vpow.pop %v1342
          %v1344 = vmul.f32 %v1287, 1.442695
          %v1345 = vpow.pop %v1344
          %v1346 = vmul.f32 %v1288, 1.442695
          %v1347 = vpow.pop %v1346
          %v1348 = vmul.f32 %v1289, 1.442695
          %v1349 = vpow.pop %v1348
          %v1350 = vmul.f32 %v1290, 1.442695
          %v1351 = vpow.pop %v1350
          %v1352 = vmul.f32 %v1291, 1.442695
          %v1353 = vpow.pop %v1352
          %v1354 = vmul.f32 %v1292, 1.442695
          %v1355 = vpow.pop %v1354
          %v1356 = vmul.f32 %v1293, 1.442695
          %v1357 = vpow.pop %v1356
          %1358 = vadd.xlane.f32.xlu0 %v1295
          %v1359 = vpop.xlane.xlu0 %1358
          %1360 = vadd.xlane.f32.xlu0 %v1297
          %v1361 = vpop.xlane.xlu0 %1360
          %1362 = vadd.xlane.f32.xlu0 %v1299
          %v1363 = vpop.xlane.xlu0 %1362
          %1364 = vadd.xlane.f32.xlu0 %v1301
          %v1365 = vpop.xlane.xlu0 %1364
          %1366 = vadd.xlane.f32.xlu0 %v1303
          %v1367 = vpop.xlane.xlu0 %1366
          %1368 = vadd.xlane.f32.xlu0 %v1305
          %v1369 = vpop.xlane.xlu0 %1368
          %1370 = vadd.xlane.f32.xlu0 %v1307
          %v1371 = vpop.xlane.xlu0 %1370
          %1372 = vadd.xlane.f32.xlu0 %v1309
          %v1373 = vpop.xlane.xlu0 %1372
          %1374 = vadd.xlane.f32.xlu0 %v1311
          %v1375 = vpop.xlane.xlu0 %1374
          %1376 = vadd.xlane.f32.xlu0 %v1313
          %v1377 = vpop.xlane.xlu0 %1376
          %1378 = vadd.xlane.f32.xlu0 %v1315
          %v1379 = vpop.xlane.xlu0 %1378
          %1380 = vadd.xlane.f32.xlu0 %v1317
          %v1381 = vpop.xlane.xlu0 %1380
          %1382 = vadd.xlane.f32.xlu0 %v1319
          %v1383 = vpop.xlane.xlu0 %1382
          %1384 = vadd.xlane.f32.xlu0 %v1321
          %v1385 = vpop.xlane.xlu0 %1384
          %1386 = vadd.xlane.f32.xlu0 %v1323
          %v1387 = vpop.xlane.xlu0 %1386
          %1388 = vadd.xlane.f32.xlu0 %v1325
          %v1389 = vpop.xlane.xlu0 %1388
          %1390 = vadd.xlane.f32.xlu0 %v1327
          %v1391 = vpop.xlane.xlu0 %1390
          %1392 = vadd.xlane.f32.xlu0 %v1329
          %v1393 = vpop.xlane.xlu0 %1392
          %1394 = vadd.xlane.f32.xlu0 %v1331
          %v1395 = vpop.xlane.xlu0 %1394
          %1396 = vadd.xlane.f32.xlu0 %v1333
          %v1397 = vpop.xlane.xlu0 %1396
          %1398 = vadd.xlane.f32.xlu0 %v1335
          %v1399 = vpop.xlane.xlu0 %1398
          %1400 = vadd.xlane.f32.xlu0 %v1337
          %v1401 = vpop.xlane.xlu0 %1400
          %1402 = vadd.xlane.f32.xlu0 %v1339
          %v1403 = vpop.xlane.xlu0 %1402
          %1404 = vadd.xlane.f32.xlu0 %v1341
          %v1405 = vpop.xlane.xlu0 %1404
          %1406 = vadd.xlane.f32.xlu0 %v1343
          %v1407 = vpop.xlane.xlu0 %1406
          %1408 = vadd.xlane.f32.xlu0 %v1345
          %v1409 = vpop.xlane.xlu0 %1408
          %1410 = vadd.xlane.f32.xlu0 %v1347
          %v1411 = vpop.xlane.xlu0 %1410
          %1412 = vadd.xlane.f32.xlu0 %v1349
          %v1413 = vpop.xlane.xlu0 %1412
          %1414 = vadd.xlane.f32.xlu0 %v1351
          %v1415 = vpop.xlane.xlu0 %1414
          %1416 = vadd.xlane.f32.xlu0 %v1353
          %v1417 = vpop.xlane.xlu0 %1416
          %1418 = vadd.xlane.f32.xlu0 %v1355
          %v1419 = vpop.xlane.xlu0 %1418
          %1420 = vadd.xlane.f32.xlu0 %v1357
          %v1421 = vpop.xlane.xlu0 %1420
          %v1422 = vadd.f32 %v1070, %v1359
          %v1423 = vadd.f32 %v1071, %v1361
          %v1424 = vadd.f32 %v1072, %v1363
          %v1425 = vadd.f32 %v1073, %v1365
          %v1426 = vadd.f32 %v1074, %v1367
          %v1427 = vadd.f32 %v1075, %v1369
          %v1428 = vadd.f32 %v1076, %v1371
          %v1429 = vadd.f32 %v1077, %v1373
          %v1430 = vadd.f32 %v1078, %v1375
          %v1431 = vadd.f32 %v1079, %v1377
          %v1432 = vadd.f32 %v1080, %v1379
          %v1433 = vadd.f32 %v1081, %v1381
          %v1434 = vadd.f32 %v1082, %v1383
          %v1435 = vadd.f32 %v1083, %v1385
          %v1436 = vadd.f32 %v1084, %v1387
          %v1437 = vadd.f32 %v1085, %v1389
          %v1438 = vadd.f32 %v1086, %v1391
          %v1439 = vadd.f32 %v1087, %v1393
          %v1440 = vadd.f32 %v1088, %v1395
          %v1441 = vadd.f32 %v1089, %v1397
          %v1442 = vadd.f32 %v1090, %v1399
          %v1443 = vadd.f32 %v1091, %v1401
          %v1444 = vadd.f32 %v1092, %v1403
          %v1445 = vadd.f32 %v1093, %v1405
          %v1446 = vadd.f32 %v1094, %v1407
          %v1447 = vadd.f32 %v1095, %v1409
          %v1448 = vadd.f32 %v1096, %v1411
          %v1449 = vadd.f32 %v1097, %v1413
          %v1450 = vadd.f32 %v1098, %v1415
          %v1451 = vadd.f32 %v1099, %v1417
          %v1452 = vadd.f32 %v1100, %v1419
          %v1453 = vadd.f32 %v1101, %v1421
          %vm1454 = vcmask 7168
          %1455 = vst.msk [vmem:[#allocation3] sm:$0xff] %vm1454, %v1422
          %1456 = vst.msk [vmem:[#allocation3 + $0x8] sm:$0xff] %vm1454, %v1423
          %1457 = vst.msk [vmem:[#allocation3 + $0x10] sm:$0xff] %vm1454, %v1424
          %1458 = vst.msk [vmem:[#allocation3 + $0x18] sm:$0xff] %vm1454, %v1425
          %1459 = vst.msk [vmem:[#allocation3 + $0x20] sm:$0xff] %vm1454, %v1426
          %1460 = vst.msk [vmem:[#allocation3 + $0x28] sm:$0xff] %vm1454, %v1427
          %1461 = vst.msk [vmem:[#allocation3 + $0x30] sm:$0xff] %vm1454, %v1428
          %1462 = vst.msk [vmem:[#allocation3 + $0x38] sm:$0xff] %vm1454, %v1429
          %1463 = vst.msk [vmem:[#allocation3 + $0x40] sm:$0xff] %vm1454, %v1430
          %1464 = vst.msk [vmem:[#allocation3 + $0x48] sm:$0xff] %vm1454, %v1431
          %1465 = vst.msk [vmem:[#allocation3 + $0x50] sm:$0xff] %vm1454, %v1432
          %1466 = vst.msk [vmem:[#allocation3 + $0x58] sm:$0xff] %vm1454, %v1433
          %1467 = vst.msk [vmem:[#allocation3 + $0x60] sm:$0xff] %vm1454, %v1434
          %1468 = vst.msk [vmem:[#allocation3 + $0x68] sm:$0xff] %vm1454, %v1435
          %1469 = vst.msk [vmem:[#allocation3 + $0x70] sm:$0xff] %vm1454, %v1436
          %1470 = vst.msk [vmem:[#allocation3 + $0x78] sm:$0xff] %vm1454, %v1437
          %1471 = vst.msk [vmem:[#allocation3 + $0x80] sm:$0xff] %vm1454, %v1438
          %1472 = vst.msk [vmem:[#allocation3 + $0x88] sm:$0xff] %vm1454, %v1439
          %1473 = vst.msk [vmem:[#allocation3 + $0x90] sm:$0xff] %vm1454, %v1440
          %1474 = vst.msk [vmem:[#allocation3 + $0x98] sm:$0xff] %vm1454, %v1441
          %1475 = vst.msk [vmem:[#allocation3 + $0xa0] sm:$0xff] %vm1454, %v1442
          %1476 = vst.msk [vmem:[#allocation3 + $0xa8] sm:$0xff] %vm1454, %v1443
          %1477 = vst.msk [vmem:[#allocation3 + $0xb0] sm:$0xff] %vm1454, %v1444
          %1478 = vst.msk [vmem:[#allocation3 + $0xb8] sm:$0xff] %vm1454, %v1445
          %1479 = vst.msk [vmem:[#allocation3 + $0xc0] sm:$0xff] %vm1454, %v1446
          %1480 = vst.msk [vmem:[#allocation3 + $0xc8] sm:$0xff] %vm1454, %v1447
          %1481 = vst.msk [vmem:[#allocation3 + $0xd0] sm:$0xff] %vm1454, %v1448
          %1482 = vst.msk [vmem:[#allocation3 + $0xd8] sm:$0xff] %vm1454, %v1449
          %1483 = vst.msk [vmem:[#allocation3 + $0xe0] sm:$0xff] %vm1454, %v1450
          %1484 = vst.msk [vmem:[#allocation3 + $0xe8] sm:$0xff] %vm1454, %v1451
          %1485 = vst.msk [vmem:[#allocation3 + $0xf0] sm:$0xff] %vm1454, %v1452
          %1486 = vst.msk [vmem:[#allocation3 + $0xf8] sm:$0xff] %vm1454, %v1453
          %1487 = vst.msk [vmem:[#allocation2] sm:$0xff] %vm1454, %v910
          %1488 = vst.msk [vmem:[#allocation2 + $0x8] sm:$0xff] %vm1454, %v911
          %1489 = vst.msk [vmem:[#allocation2 + $0x10] sm:$0xff] %vm1454, %v912
          %1490 = vst.msk [vmem:[#allocation2 + $0x18] sm:$0xff] %vm1454, %v913
          %1491 = vst.msk [vmem:[#allocation2 + $0x20] sm:$0xff] %vm1454, %v914
          %1492 = vst.msk [vmem:[#allocation2 + $0x28] sm:$0xff] %vm1454, %v915
          %1493 = vst.msk [vmem:[#allocation2 + $0x30] sm:$0xff] %vm1454, %v916
          %1494 = vst.msk [vmem:[#allocation2 + $0x38] sm:$0xff] %vm1454, %v917
          %1495 = vst.msk [vmem:[#allocation2 + $0x40] sm:$0xff] %vm1454, %v918
          %1496 = vst.msk [vmem:[#allocation2 + $0x48] sm:$0xff] %vm1454, %v919
          %1497 = vst.msk [vmem:[#allocation2 + $0x50] sm:$0xff] %vm1454, %v920
          %1498 = vst.msk [vmem:[#allocation2 + $0x58] sm:$0xff] %vm1454, %v921
          %1499 = vst.msk [vmem:[#allocation2 + $0x60] sm:$0xff] %vm1454, %v922
          %1500 = vst.msk [vmem:[#allocation2 + $0x68] sm:$0xff] %vm1454, %v923
          %1501 = vst.msk [vmem:[#allocation2 + $0x70] sm:$0xff] %vm1454, %v924
          %1502 = vst.msk [vmem:[#allocation2 + $0x78] sm:$0xff] %vm1454, %v925
          %1503 = vst.msk [vmem:[#allocation2 + $0x80] sm:$0xff] %vm1454, %v926
          %1504 = vst.msk [vmem:[#allocation2 + $0x88] sm:$0xff] %vm1454, %v927
          %1505 = vst.msk [vmem:[#allocation2 + $0x90] sm:$0xff] %vm1454, %v928
          %1506 = vst.msk [vmem:[#allocation2 + $0x98] sm:$0xff] %vm1454, %v929
          %1507 = vst.msk [vmem:[#allocation2 + $0xa0] sm:$0xff] %vm1454, %v930
          %1508 = vst.msk [vmem:[#allocation2 + $0xa8] sm:$0xff] %vm1454, %v931
          %1509 = vst.msk [vmem:[#allocation2 + $0xb0] sm:$0xff] %vm1454, %v932
          %1510 = vst.msk [vmem:[#allocation2 + $0xb8] sm:$0xff] %vm1454, %v933
          %1511 = vst.msk [vmem:[#allocation2 + $0xc0] sm:$0xff] %vm1454, %v934
          %1512 = vst.msk [vmem:[#allocation2 + $0xc8] sm:$0xff] %vm1454, %v935
          %1513 = vst.msk [vmem:[#allocation2 + $0xd0] sm:$0xff] %vm1454, %v936
          %1514 = vst.msk [vmem:[#allocation2 + $0xd8] sm:$0xff] %vm1454, %v937
          %1515 = vst.msk [vmem:[#allocation2 + $0xe0] sm:$0xff] %vm1454, %v938
          %1516 = vst.msk [vmem:[#allocation2 + $0xe8] sm:$0xff] %vm1454, %v939
          %1517 = vst.msk [vmem:[#allocation2 + $0xf0] sm:$0xff] %vm1454, %v940
          %1518 = vst.msk [vmem:[#allocation2 + $0xf8] sm:$0xff] %vm1454, %v941
        $region52: #{language_model_forward.3} parent=31 // pred_fallthru
          _
        %p1519 = scmp.ge.s32.totalorder %s28, 2
        // Predicated region
        $region53: #{language_model_forward.3} parent=31 // pred_check
          %p1520 = pneg %p1519
        $region54: #{language_model_forward.3} parent=31 // pred_check_branch
          %1522 = sbr.rel (%p1520) target = $region56
        $region55: #{language_model_forward.3} parent=31 // pred_region
          %v1523 = vld [vmem:[#allocation2] sm:$0xff]
          %v1524 = vld [vmem:[#allocation2 + $0x8] sm:$0xff]
          %v1525 = vld [vmem:[#allocation2 + $0x10] sm:$0xff]
          %v1526 = vld [vmem:[#allocation2 + $0x18] sm:$0xff]
          %v1527 = vld [vmem:[#allocation2 + $0x20] sm:$0xff]
          %v1528 = vld [vmem:[#allocation2 + $0x28] sm:$0xff]
          %v1529 = vld [vmem:[#allocation2 + $0x30] sm:$0xff]
          %v1530 = vld [vmem:[#allocation2 + $0x38] sm:$0xff]
          %v1531 = vld [vmem:[#allocation2 + $0x40] sm:$0xff]
          %v1532 = vld [vmem:[#allocation2 + $0x48] sm:$0xff]
          %v1533 = vld [vmem:[#allocation2 + $0x50] sm:$0xff]
          %v1534 = vld [vmem:[#allocation2 + $0x58] sm:$0xff]
          %v1535 = vld [vmem:[#allocation2 + $0x60] sm:$0xff]
          %v1536 = vld [vmem:[#allocation2 + $0x68] sm:$0xff]
          %v1537 = vld [vmem:[#allocation2 + $0x70] sm:$0xff]
          %v1538 = vld [vmem:[#allocation2 + $0x78] sm:$0xff]
          %v1539 = vld [vmem:[#allocation2 + $0x80] sm:$0xff]
          %v1540 = vld [vmem:[#allocation2 + $0x88] sm:$0xff]
          %v1541 = vld [vmem:[#allocation2 + $0x90] sm:$0xff]
          %v1542 = vld [vmem:[#allocation2 + $0x98] sm:$0xff]
          %v1543 = vld [vmem:[#allocation2 + $0xa0] sm:$0xff]
          %v1544 = vld [vmem:[#allocation2 + $0xa8] sm:$0xff]
          %v1545 = vld [vmem:[#allocation2 + $0xb0] sm:$0xff]
          %v1546 = vld [vmem:[#allocation2 + $0xb8] sm:$0xff]
          %v1547 = vld [vmem:[#allocation2 + $0xc0] sm:$0xff]
          %v1548 = vld [vmem:[#allocation2 + $0xc8] sm:$0xff]
          %v1549 = vld [vmem:[#allocation2 + $0xd0] sm:$0xff]
          %v1550 = vld [vmem:[#allocation2 + $0xd8] sm:$0xff]
          %v1551 = vld [vmem:[#allocation2 + $0xe0] sm:$0xff]
          %v1552 = vld [vmem:[#allocation2 + $0xe8] sm:$0xff]
          %v1553 = vld [vmem:[#allocation2 + $0xf0] sm:$0xff]
          %v1554 = vld [vmem:[#allocation2 + $0xf8] sm:$0xff]
          %v1555 = vld [vmem:[#allocation3] sm:$0xff]
          %v1556 = vld [vmem:[#allocation3 + $0x8] sm:$0xff]
          %v1557 = vld [vmem:[#allocation3 + $0x10] sm:$0xff]
          %v1558 = vld [vmem:[#allocation3 + $0x18] sm:$0xff]
          %v1559 = vld [vmem:[#allocation3 + $0x20] sm:$0xff]
          %v1560 = vld [vmem:[#allocation3 + $0x28] sm:$0xff]
          %v1561 = vld [vmem:[#allocation3 + $0x30] sm:$0xff]
          %v1562 = vld [vmem:[#allocation3 + $0x38] sm:$0xff]
          %v1563 = vld [vmem:[#allocation3 + $0x40] sm:$0xff]
          %v1564 = vld [vmem:[#allocation3 + $0x48] sm:$0xff]
          %v1565 = vld [vmem:[#allocation3 + $0x50] sm:$0xff]
          %v1566 = vld [vmem:[#allocation3 + $0x58] sm:$0xff]
          %v1567 = vld [vmem:[#allocation3 + $0x60] sm:$0xff]
          %v1568 = vld [vmem:[#allocation3 + $0x68] sm:$0xff]
          %v1569 = vld [vmem:[#allocation3 + $0x70] sm:$0xff]
          %v1570 = vld [vmem:[#allocation3 + $0x78] sm:$0xff]
          %v1571 = vld [vmem:[#allocation3 + $0x80] sm:$0xff]
          %v1572 = vld [vmem:[#allocation3 + $0x88] sm:$0xff]
          %v1573 = vld [vmem:[#allocation3 + $0x90] sm:$0xff]
          %v1574 = vld [vmem:[#allocation3 + $0x98] sm:$0xff]
          %v1575 = vld [vmem:[#allocation3 + $0xa0] sm:$0xff]
          %v1576 = vld [vmem:[#allocation3 + $0xa8] sm:$0xff]
          %v1577 = vld [vmem:[#allocation3 + $0xb0] sm:$0xff]
          %v1578 = vld [vmem:[#allocation3 + $0xb8] sm:$0xff]
          %v1579 = vld [vmem:[#allocation3 + $0xc0] sm:$0xff]
          %v1580 = vld [vmem:[#allocation3 + $0xc8] sm:$0xff]
          %v1581 = vld [vmem:[#allocation3 + $0xd0] sm:$0xff]
          %v1582 = vld [vmem:[#allocation3 + $0xd8] sm:$0xff]
          %v1583 = vld [vmem:[#allocation3 + $0xe0] sm:$0xff]
          %v1584 = vld [vmem:[#allocation3 + $0xe8] sm:$0xff]
          %v1585 = vld [vmem:[#allocation3 + $0xf0] sm:$0xff]
          %v1586 = vld [vmem:[#allocation3 + $0xf8] sm:$0xff]
          %v1587 = vlog2.pop %v1555
          %v1588 = vmul.f32 %v1587, 0.6931472
          %v1589 = vlog2.pop %v1556
          %v1590 = vmul.f32 %v1589, 0.6931472
          %v1591 = vlog2.pop %v1557
          %v1592 = vmul.f32 %v1591, 0.6931472
          %v1593 = vlog2.pop %v1558
          %v1594 = vmul.f32 %v1593, 0.6931472
          %v1595 = vlog2.pop %v1559
          %v1596 = vmul.f32 %v1595, 0.6931472
          %v1597 = vlog2.pop %v1560
          %v1598 = vmul.f32 %v1597, 0.6931472
          %v1599 = vlog2.pop %v1561
          %v1600 = vmul.f32 %v1599, 0.6931472
          %v1601 = vlog2.pop %v1562
          %v1602 = vmul.f32 %v1601, 0.6931472
          %v1603 = vlog2.pop %v1563
          %v1604 = vmul.f32 %v1603, 0.6931472
          %v1605 = vlog2.pop %v1564
          %v1606 = vmul.f32 %v1605, 0.6931472
          %v1607 = vlog2.pop %v1565
          %v1608 = vmul.f32 %v1607, 0.6931472
          %v1609 = vlog2.pop %v1566
          %v1610 = vmul.f32 %v1609, 0.6931472
          %v1611 = vlog2.pop %v1567
          %v1612 = vmul.f32 %v1611, 0.6931472
          %v1613 = vlog2.pop %v1568
          %v1614 = vmul.f32 %v1613, 0.6931472
          %v1615 = vlog2.pop %v1569
          %v1616 = vmul.f32 %v1615, 0.6931472
          %v1617 = vlog2.pop %v1570
          %v1618 = vmul.f32 %v1617, 0.6931472
          %v1619 = vlog2.pop %v1571
          %v1620 = vmul.f32 %v1619, 0.6931472
          %v1621 = vlog2.pop %v1572
          %v1622 = vmul.f32 %v1621, 0.6931472
          %v1623 = vlog2.pop %v1573
          %v1624 = vmul.f32 %v1623, 0.6931472
          %v1625 = vlog2.pop %v1574
          %v1626 = vmul.f32 %v1625, 0.6931472
          %v1627 = vlog2.pop %v1575
          %v1628 = vmul.f32 %v1627, 0.6931472
          %v1629 = vlog2.pop %v1576
          %v1630 = vmul.f32 %v1629, 0.6931472
          %v1631 = vlog2.pop %v1577
          %v1632 = vmul.f32 %v1631, 0.6931472
          %v1633 = vlog2.pop %v1578
          %v1634 = vmul.f32 %v1633, 0.6931472
          %v1635 = vlog2.pop %v1579
          %v1636 = vmul.f32 %v1635, 0.6931472
          %v1637 = vlog2.pop %v1580
          %v1638 = vmul.f32 %v1637, 0.6931472
          %v1639 = vlog2.pop %v1581
          %v1640 = vmul.f32 %v1639, 0.6931472
          %v1641 = vlog2.pop %v1582
          %v1642 = vmul.f32 %v1641, 0.6931472
          %v1643 = vlog2.pop %v1583
          %v1644 = vmul.f32 %v1643, 0.6931472
          %v1645 = vlog2.pop %v1584
          %v1646 = vmul.f32 %v1645, 0.6931472
          %v1647 = vlog2.pop %v1585
          %v1648 = vmul.f32 %v1647, 0.6931472
          %v1649 = vlog2.pop %v1586
          %v1650 = vmul.f32 %v1649, 0.6931472
          %v1651 = vadd.f32 %v1523, %v1588
          %v1652 = vadd.f32 %v1524, %v1590
          %v1653 = vadd.f32 %v1525, %v1592
          %v1654 = vadd.f32 %v1526, %v1594
          %v1655 = vadd.f32 %v1527, %v1596
          %v1656 = vadd.f32 %v1528, %v1598
          %v1657 = vadd.f32 %v1529, %v1600
          %v1658 = vadd.f32 %v1530, %v1602
          %v1659 = vadd.f32 %v1531, %v1604
          %v1660 = vadd.f32 %v1532, %v1606
          %v1661 = vadd.f32 %v1533, %v1608
          %v1662 = vadd.f32 %v1534, %v1610
          %v1663 = vadd.f32 %v1535, %v1612
          %v1664 = vadd.f32 %v1536, %v1614
          %v1665 = vadd.f32 %v1537, %v1616
          %v1666 = vadd.f32 %v1538, %v1618
          %v1667 = vadd.f32 %v1539, %v1620
          %v1668 = vadd.f32 %v1540, %v1622
          %v1669 = vadd.f32 %v1541, %v1624
          %v1670 = vadd.f32 %v1542, %v1626
          %v1671 = vadd.f32 %v1543, %v1628
          %v1672 = vadd.f32 %v1544, %v1630
          %v1673 = vadd.f32 %v1545, %v1632
          %v1674 = vadd.f32 %v1546, %v1634
          %v1675 = vadd.f32 %v1547, %v1636
          %v1676 = vadd.f32 %v1548, %v1638
          %v1677 = vadd.f32 %v1549, %v1640
          %v1678 = vadd.f32 %v1550, %v1642
          %v1679 = vadd.f32 %v1551, %v1644
          %v1680 = vadd.f32 %v1552, %v1646
          %v1681 = vadd.f32 %v1553, %v1648
          %v1682 = vadd.f32 %v1554, %v1650
          %1684 = vset.pattern.permute.xlu0 0
          %1685 = vperm.xlu0 %1684, %v1651
          %v1686 = vpop.permute.xlu0 %1685
          %1689 = vset.pattern.permute.xlu0 0
          %1690 = vperm.xlu0 %1689, %v1652
          %v1691 = vpop.permute.xlu0 %1690
          %1694 = vset.pattern.permute.xlu0 0
          %1695 = vperm.xlu0 %1694, %v1653
          %v1696 = vpop.permute.xlu0 %1695
          %1699 = vset.pattern.permute.xlu0 0
          %1700 = vperm.xlu0 %1699, %v1654
          %v1701 = vpop.permute.xlu0 %1700
          %1704 = vset.pattern.permute.xlu0 0
          %1705 = vperm.xlu0 %1704, %v1655
          %v1706 = vpop.permute.xlu0 %1705
          %1709 = vset.pattern.permute.xlu0 0
          %1710 = vperm.xlu0 %1709, %v1656
          %v1711 = vpop.permute.xlu0 %1710
          %1714 = vset.pattern.permute.xlu0 0
          %1715 = vperm.xlu0 %1714, %v1657
          %v1716 = vpop.permute.xlu0 %1715
          %1719 = vset.pattern.permute.xlu0 0
          %1720 = vperm.xlu0 %1719, %v1658
          %v1721 = vpop.permute.xlu0 %1720
          %1724 = vset.pattern.permute.xlu0 0
          %1725 = vperm.xlu0 %1724, %v1659
          %v1726 = vpop.permute.xlu0 %1725
          %1729 = vset.pattern.permute.xlu0 0
          %1730 = vperm.xlu0 %1729, %v1660
          %v1731 = vpop.permute.xlu0 %1730
          %1734 = vset.pattern.permute.xlu0 0
          %1735 = vperm.xlu0 %1734, %v1661
          %v1736 = vpop.permute.xlu0 %1735
          %1739 = vset.pattern.permute.xlu0 0
          %1740 = vperm.xlu0 %1739, %v1662
          %v1741 = vpop.permute.xlu0 %1740
          %1744 = vset.pattern.permute.xlu0 0
          %1745 = vperm.xlu0 %1744, %v1663
          %v1746 = vpop.permute.xlu0 %1745
          %1749 = vset.pattern.permute.xlu0 0
          %1750 = vperm.xlu0 %1749, %v1664
          %v1751 = vpop.permute.xlu0 %1750
          %1754 = vset.pattern.permute.xlu0 0
          %1755 = vperm.xlu0 %1754, %v1665
          %v1756 = vpop.permute.xlu0 %1755
          %1759 = vset.pattern.permute.xlu0 0
          %1760 = vperm.xlu0 %1759, %v1666
          %v1761 = vpop.permute.xlu0 %1760
          %1764 = vset.pattern.permute.xlu0 0
          %1765 = vperm.xlu0 %1764, %v1667
          %v1766 = vpop.permute.xlu0 %1765
          %1769 = vset.pattern.permute.xlu0 0
          %1770 = vperm.xlu0 %1769, %v1668
          %v1771 = vpop.permute.xlu0 %1770
          %1774 = vset.pattern.permute.xlu0 0
          %1775 = vperm.xlu0 %1774, %v1669
          %v1776 = vpop.permute.xlu0 %1775
          %1779 = vset.pattern.permute.xlu0 0
          %1780 = vperm.xlu0 %1779, %v1670
          %v1781 = vpop.permute.xlu0 %1780
          %1784 = vset.pattern.permute.xlu0 0
          %1785 = vperm.xlu0 %1784, %v1671
          %v1786 = vpop.permute.xlu0 %1785
          %1789 = vset.pattern.permute.xlu0 0
          %1790 = vperm.xlu0 %1789, %v1672
          %v1791 = vpop.permute.xlu0 %1790
          %1794 = vset.pattern.permute.xlu0 0
          %1795 = vperm.xlu0 %1794, %v1673
          %v1796 = vpop.permute.xlu0 %1795
          %1799 = vset.pattern.permute.xlu0 0
          %1800 = vperm.xlu0 %1799, %v1674
          %v1801 = vpop.permute.xlu0 %1800
          %1804 = vset.pattern.permute.xlu0 0
          %1805 = vperm.xlu0 %1804, %v1675
          %v1806 = vpop.permute.xlu0 %1805
          %1809 = vset.pattern.permute.xlu0 0
          %1810 = vperm.xlu0 %1809, %v1676
          %v1811 = vpop.permute.xlu0 %1810
          %1814 = vset.pattern.permute.xlu0 0
          %1815 = vperm.xlu0 %1814, %v1677
          %v1816 = vpop.permute.xlu0 %1815
          %1819 = vset.pattern.permute.xlu0 0
          %1820 = vperm.xlu0 %1819, %v1678
          %v1821 = vpop.permute.xlu0 %1820
          %1824 = vset.pattern.permute.xlu0 0
          %1825 = vperm.xlu0 %1824, %v1679
          %v1826 = vpop.permute.xlu0 %1825
          %1829 = vset.pattern.permute.xlu0 0
          %1830 = vperm.xlu0 %1829, %v1680
          %v1831 = vpop.permute.xlu0 %1830
          %1834 = vset.pattern.permute.xlu0 0
          %1835 = vperm.xlu0 %1834, %v1681
          %v1836 = vpop.permute.xlu0 %1835
          %1839 = vset.pattern.permute.xlu0 0
          %1840 = vperm.xlu0 %1839, %v1682
          %v1841 = vpop.permute.xlu0 %1840
          %v1843 = vsub.f32 %v684, %v1686
          %v1844 = vsub.f32 %v687, %v1691
          %v1845 = vsub.f32 %v692, %v1696
          %v1846 = vsub.f32 %v695, %v1701
          %v1847 = vsub.f32 %v700, %v1706
          %v1848 = vsub.f32 %v703, %v1711
          %v1849 = vsub.f32 %v708, %v1716
          %v1850 = vsub.f32 %v711, %v1721
          %v1851 = vsub.f32 %v716, %v1726
          %v1852 = vsub.f32 %v719, %v1731
          %v1853 = vsub.f32 %v724, %v1736
          %v1854 = vsub.f32 %v727, %v1741
          %v1855 = vsub.f32 %v732, %v1746
          %v1856 = vsub.f32 %v735, %v1751
          %v1857 = vsub.f32 %v740, %v1756
          %v1858 = vsub.f32 %v743, %v1761
          %v1859 = vsub.f32 %v748, %v1766
          %v1860 = vsub.f32 %v751, %v1771
          %v1861 = vsub.f32 %v756, %v1776
          %v1862 = vsub.f32 %v759, %v1781
          %v1863 = vsub.f32 %v764, %v1786
          %v1864 = vsub.f32 %v767, %v1791
          %v1865 = vsub.f32 %v772, %v1796
          %v1866 = vsub.f32 %v775, %v1801
          %v1867 = vsub.f32 %v780, %v1806
          %v1868 = vsub.f32 %v783, %v1811
          %v1869 = vsub.f32 %v788, %v1816
          %v1870 = vsub.f32 %v791, %v1821
          %v1871 = vsub.f32 %v796, %v1826
          %v1872 = vsub.f32 %v799, %v1831
          %v1873 = vsub.f32 %v804, %v1836
          %v1874 = vsub.f32 %v807, %v1841
          %v1875 = vpack.c.bf16 %v1844, %v1843
          %v1876 = vpack.c.bf16 %v1846, %v1845
          %v1877 = vpack.c.bf16 %v1848, %v1847
          %v1878 = vpack.c.bf16 %v1850, %v1849
          %v1879 = vpack.c.bf16 %v1852, %v1851
          %v1880 = vpack.c.bf16 %v1854, %v1853
          %v1881 = vpack.c.bf16 %v1856, %v1855
          %v1882 = vpack.c.bf16 %v1858, %v1857
          %v1883 = vpack.c.bf16 %v1860, %v1859
          %v1884 = vpack.c.bf16 %v1862, %v1861
          %v1885 = vpack.c.bf16 %v1864, %v1863
          %v1886 = vpack.c.bf16 %v1866, %v1865
          %v1887 = vpack.c.bf16 %v1868, %v1867
          %v1888 = vpack.c.bf16 %v1870, %v1869
          %v1889 = vpack.c.bf16 %v1872, %v1871
          %v1890 = vpack.c.bf16 %v1874, %v1873
          %v1907 = vunpack.c.l.b16 %v1875
          %v1908 = vunpack.c.h.b16 %v1875
          %v1909 = vunpack.c.l.b16 %v1876
          %v1910 = vunpack.c.h.b16 %v1876
          %v1911 = vunpack.c.l.b16 %v1877
          %v1912 = vunpack.c.h.b16 %v1877
          %v1913 = vunpack.c.l.b16 %v1878
          %v1914 = vunpack.c.h.b16 %v1878
          %v1915 = vunpack.c.l.b16 %v1879
          %v1916 = vunpack.c.h.b16 %v1879
          %v1917 = vunpack.c.l.b16 %v1880
          %v1918 = vunpack.c.h.b16 %v1880
          %v1919 = vunpack.c.l.b16 %v1881
          %v1920 = vunpack.c.h.b16 %v1881
          %v1921 = vunpack.c.l.b16 %v1882
          %v1922 = vunpack.c.h.b16 %v1882
          %v1923 = vunpack.c.l.b16 %v1883
          %v1924 = vunpack.c.h.b16 %v1883
          %v1925 = vunpack.c.l.b16 %v1884
          %v1926 = vunpack.c.h.b16 %v1884
          %v1927 = vunpack.c.l.b16 %v1885
          %v1928 = vunpack.c.h.b16 %v1885
          %v1929 = vunpack.c.l.b16 %v1886
          %v1930 = vunpack.c.h.b16 %v1886
          %v1931 = vunpack.c.l.b16 %v1887
          %v1932 = vunpack.c.h.b16 %v1887
          %v1933 = vunpack.c.l.b16 %v1888
          %v1934 = vunpack.c.h.b16 %v1888
          %v1935 = vunpack.c.l.b16 %v1889
          %v1936 = vunpack.c.h.b16 %v1889
          %v1937 = vunpack.c.l.b16 %v1890
          %v1938 = vunpack.c.h.b16 %v1890
          %v1939 = vpack.c.b16 %v1907, %v1907
          %v1940 = vpack.c.b16 %v1908, %v1908
          %v1941 = vpack.c.b16 %v1909, %v1909
          %v1942 = vpack.c.b16 %v1910, %v1910
          %v1943 = vpack.c.b16 %v1911, %v1911
          %v1944 = vpack.c.b16 %v1912, %v1912
          %v1945 = vpack.c.b16 %v1913, %v1913
          %v1946 = vpack.c.b16 %v1914, %v1914
          %v1947 = vpack.c.b16 %v1915, %v1915
          %v1948 = vpack.c.b16 %v1916, %v1916
          %v1949 = vpack.c.b16 %v1917, %v1917
          %v1950 = vpack.c.b16 %v1918, %v1918
          %v1951 = vpack.c.b16 %v1919, %v1919
          %v1952 = vpack.c.b16 %v1920, %v1920
          %v1953 = vpack.c.b16 %v1921, %v1921
          %v1954 = vpack.c.b16 %v1922, %v1922
          %v1955 = vpack.c.b16 %v1923, %v1923
          %v1956 = vpack.c.b16 %v1924, %v1924
          %v1957 = vpack.c.b16 %v1925, %v1925
          %v1958 = vpack.c.b16 %v1926, %v1926
          %v1959 = vpack.c.b16 %v1927, %v1927
          %v1960 = vpack.c.b16 %v1928, %v1928
          %v1961 = vpack.c.b16 %v1929, %v1929
          %v1962 = vpack.c.b16 %v1930, %v1930
          %v1963 = vpack.c.b16 %v1931, %v1931
          %v1964 = vpack.c.b16 %v1932, %v1932
          %v1965 = vpack.c.b16 %v1933, %v1933
          %v1966 = vpack.c.b16 %v1934, %v1934
          %v1967 = vpack.c.b16 %v1935, %v1935
          %v1968 = vpack.c.b16 %v1936, %v1936
          %v1969 = vpack.c.b16 %v1937, %v1937
          %v1970 = vpack.c.b16 %v1938, %v1938
          %2003 = vst [vmem:[%s350] sm:$0xf] %v1939
          %2004 = vst [vmem:[%s350 + $0x4] sm:$0xf] %v1940
          %2005 = vst [vmem:[%s350 + $0x8] sm:$0xf] %v1941
          %2006 = vst [vmem:[%s350 + $0xc] sm:$0xf] %v1942
          %2007 = vst [vmem:[%s350 + $0x10] sm:$0xf] %v1943
          %2008 = vst [vmem:[%s350 + $0x14] sm:$0xf] %v1944
          %2009 = vst [vmem:[%s350 + $0x18] sm:$0xf] %v1945
          %2010 = vst [vmem:[%s350 + $0x1c] sm:$0xf] %v1946
          %2011 = vst [vmem:[%s350 + $0x20] sm:$0xf] %v1947
          %2012 = vst [vmem:[%s350 + $0x24] sm:$0xf] %v1948
          %2013 = vst [vmem:[%s350 + $0x28] sm:$0xf] %v1949
          %2014 = vst [vmem:[%s350 + $0x2c] sm:$0xf] %v1950
          %2015 = vst [vmem:[%s350 + $0x30] sm:$0xf] %v1951
          %2016 = vst [vmem:[%s350 + $0x34] sm:$0xf] %v1952
          %2017 = vst [vmem:[%s350 + $0x38] sm:$0xf] %v1953
          %2018 = vst [vmem:[%s350 + $0x3c] sm:$0xf] %v1954
          %2019 = vst [vmem:[%s350 + $0x40] sm:$0xf] %v1955
          %2020 = vst [vmem:[%s350 + $0x44] sm:$0xf] %v1956
          %2021 = vst [vmem:[%s350 + $0x48] sm:$0xf] %v1957
          %2022 = vst [vmem:[%s350 + $0x4c] sm:$0xf] %v1958
          %2023 = vst [vmem:[%s350 + $0x50] sm:$0xf] %v1959
          %2024 = vst [vmem:[%s350 + $0x54] sm:$0xf] %v1960
          %2025 = vst [vmem:[%s350 + $0x58] sm:$0xf] %v1961
          %2026 = vst [vmem:[%s350 + $0x5c] sm:$0xf] %v1962
          %2027 = vst [vmem:[%s350 + $0x60] sm:$0xf] %v1963
          %2028 = vst [vmem:[%s350 + $0x64] sm:$0xf] %v1964
          %2029 = vst [vmem:[%s350 + $0x68] sm:$0xf] %v1965
          %2030 = vst [vmem:[%s350 + $0x6c] sm:$0xf] %v1966
          %2031 = vst [vmem:[%s350 + $0x70] sm:$0xf] %v1967
          %2032 = vst [vmem:[%s350 + $0x74] sm:$0xf] %v1968
          %2033 = vst [vmem:[%s350 + $0x78] sm:$0xf] %v1969
          %2034 = vst [vmem:[%s350 + $0x7c] sm:$0xf] %v1970
        $region56: #{language_model_forward.3} parent=31 // pred_fallthru
          _
        %s2035 = sand.u32 %s177, 1
        %s2036 = scalar_lea.sflag [#allocation6], %s2035
        %s2037 = sand.u32 %s177, 1
        %s2038 = smul.addr %s2037, 128
        %s2039 = scalar_lea.vmem [#allocation10], %s2038
        // Predicated region
        $region57: #{language_model_forward.3} parent=31 // pred_check
          %p2040 = pneg %p187
        $region58: #{language_model_forward.3} parent=31 // pred_check_branch
          %2042 = sbr.rel (%p2040) target = $region60
        $region59: #{language_model_forward.3} parent=31 // pred_region
          %s2043 = ssub.s32 %s28, 2
          %p2044 = scmp.gt.s32.totalorder %s2043, 0
          %s2045 = scalar_select %p2044, %s2043, 0
          %s2046 = smul.u32 32, %s27
          %s2048 = ssub.s32 2048, 2048
          %2049 = vsyncadd %s2036, %s2048
          %s2050 = smul.addr %s2046, 2
          %s2051 = sadd.s32 %s2045, %s2050
          %s2052 = smul.addr %s2051, 64
          %s2053 = scalar_lea.hbm %s3, %s2052
          %s2054 = sshll.u32 %s2039, 4
          %s2055 = int_to_ptr.vmem [resolvable:$true] %s2054
          %2060 = dma.vmem_to_hbm [thread:$0]  %s2055, 2048, %s2053, %s2036, 64, 128, 4
        $region60: #{language_model_forward.3} parent=31 // pred_fallthru
          _
      $region32: #{language_model_forward.3} parent=5 // pred_fallthru
        _
      %p2061 = scmp.le.s32.totalorder 2, %s18
      // Predicated region
      $region61: #{language_model_forward.3} parent=5 // pred_check
        %p2062 = pneg %p2061
      $region62: #{language_model_forward.3} parent=5 // pred_check_branch
        %2064 = sbr.rel (%p2062) target = $region64
      $region63: #{language_model_forward.3} parent=5 // pred_region
        %s2065 = ssub.s32 %s18, 2
        // Predicated region
        $region65: #{language_model_forward.3} parent=63 // pred_check
          %p2066 = pneg %p193
        $region66: #{language_model_forward.3} parent=63 // pred_check_branch
          %2068 = sbr.rel (%p2066) target = $region68
        $region67: #{language_model_forward.3} parent=63 // pred_region
          %s2069 = sand.u32 %s178, 1
          %s2070 = scalar_lea.sflag [#allocation6], %s2069
          %s2071 = sand.u32 %s178, 1
          %s2072 = smul.addr %s2071, 128
          %s2073 = scalar_lea.vmem [#allocation10], %s2072
          %2074 = dma.done %s2070, 2048
        $region68: #{language_model_forward.3} parent=63 // pred_fallthru
          _
      $region64: #{language_model_forward.3} parent=5 // pred_fallthru
        _
    $region6: #{language_model_forward.3} parent=1 // loop_footer
      %s22 = sadd.s32 1, %s18
    $region7: #{language_model_forward.3} parent=1 // loop_footer_branch
      %17 = sbr.rel target = $region3
    $region8: #{language_model_forward.3} parent=1 // loop_exit
      _
    %2075 = vsyncpa [#allocation5], 1
    %s2076 = scalar_lea.sflag [#allocation5], 1
    %2077 = vsyncpa %s2076, 1
    %2078 = vsyncpa [#allocation8], 1
    %s2079 = scalar_lea.sflag [#allocation8], 1
    %2080 = vsyncpa %s2079, 1
    %2081 = vsyncpa [#allocation6], 1
    %s2082 = scalar_lea.sflag [#allocation6], 1
    %2083 = vsyncpa %s2082, 1

// kernel: language_model_forward.2
$region0: #{language_model_forward.2}
  #allocation0 [shape = 'u32[]', space=smem, size = 0x4, offset = 0x4, fixed_abs, tag = 'smem constant byte address 0x4 - core index']
  #allocation1 [shape = 'u32[144,128]{1,0:T(1,128)}', space=vmem, size = 0x12000, scoped, tag = 'internal scratch']
  %s0 = inlined_call_operand.hbm [shape: bf16[24,16,384], index: 0, kind: input, shape index: {}]
  %s1 = inlined_call_operand.hbm [shape: bf16[128,384], index: 1, kind: input, shape index: {}]
  %s2 = inlined_call_operand.hbm [shape: bf16[128,384], index: 2, kind: input, shape index: {}]
  %s3 = inlined_call_operand.hbm [shape: bf16[128,384], index: 3, kind: input, shape index: {}]
  %s4 = inlined_call_operand.hbm [shape: f32[1,384], index: 4, kind: input, shape index: {}]
  %s5 = inlined_call_operand.hbm [shape: f32[1,384], index: 5, kind: input, shape index: {}]
  %s6 = inlined_call_operand.hbm [shape: f32[1,128], index: 6, kind: input, shape index: {}]
  %s7 = inlined_call_operand.hbm [shape: f32[1,128], index: 7, kind: input, shape index: {}]
  %s8 = inlined_call_operand.hbm [shape: bf16[24,16,128], index: 8, kind: output, shape index: {0}]
  %s9 = inlined_call_operand.hbm [shape: f32[2,16,128], index: 9, kind: output, shape index: {1}]
  %10 = xla_tuple %s8, %s9
  %s11 = sld [smem:[#allocation0]]
  $region109: #{language_model_forward.2} parent=0
    _
  %s13 = ssub.s32 1, %s11
  %s14 = scalar_select 0, %s13, %s11
  $region1: #{language_model_forward.2} parent=0
    #allocation2 [shape = 'u8[196608]{0}', space=vmem, size = 0x30000, scoped, tag = 'input window, operand 0']
    #allocation3 [shape = 's32[2]{0}', space=sflag, size = 0x8, scoped, tag = 'scoped memory for language_model_forward.2']
    #allocation4 [shape = 's32[2]{0}', space=sflag, size = 0x8, scoped, tag = 'scoped memory for language_model_forward.2']
    #allocation5 [shape = 'u8[98304]{0}', space=vmem, size = 0x18000, scoped, tag = 'input window, operand 1, single buffered']
    #allocation6 [shape = 's32[1]{0}', space=sflag, size = 0x4, scoped, tag = 'scoped memory for language_model_forward.2']
    #allocation7 [shape = 'u8[98304]{0}', space=vmem, size = 0x18000, scoped, tag = 'input window, operand 2, single buffered']
    #allocation8 [shape = 'u8[98304]{0}', space=vmem, size = 0x18000, scoped, tag = 'input window, operand 3, single buffered']
    #allocation9 [shape = 's32[1]{0}', space=sflag, size = 0x4, scoped, tag = 'scoped memory for language_model_forward.2']
    #allocation10 [shape = 'u8[1536]{0}', space=vmem, size = 0x800, scoped, tag = 'input window, operand 4, single buffered']
    #allocation11 [shape = 'u8[1536]{0}', space=vmem, size = 0x800, scoped, tag = 'input window, operand 5, single buffered']
    #allocation12 [shape = 's32[1]{0}', space=sflag, size = 0x4, scoped, tag = 'scoped memory for language_model_forward.2']
    #allocation13 [shape = 'u8[512]{0}', space=vmem, size = 0x400, scoped, tag = 'input window, operand 6, single buffered']
    #allocation14 [shape = 'u8[512]{0}', space=vmem, size = 0x400, scoped, tag = 'input window, operand 7, single buffered']
    #allocation15 [shape = 's32[1]{0}', space=sflag, size = 0x4, scoped, tag = 'scoped memory for language_model_forward.2']
    #allocation16 [shape = 'u8[65536]{0}', space=vmem, size = 0x10000, scoped, tag = 'output window, operand 0']
    #allocation17 [shape = 'u8[16384]{0}', space=vmem, size = 0x4000, scoped, tag = 'output window, operand 1, single buffered']
    #allocation18 [shape = 's32[1]{0}', space=sflag, size = 0x4, scoped, tag = 'scoped memory for language_model_forward.2']
    %15 = vsyncpa [#allocation3], 0
    %s16 = scalar_lea.sflag [#allocation3], 1
    %17 = vsyncpa %s16, 0
    %18 = vsyncpa [#allocation6], 0
    %19 = vsyncpa [#allocation9], 0
    %20 = vsyncpa [#allocation12], 0
    %21 = vsyncpa [#allocation15], 0
    %22 = vsyncpa [#allocation4], 0
    %s23 = scalar_lea.sflag [#allocation4], 1
    %24 = vsyncpa %s23, 0
    %25 = vsyncpa [#allocation18], 0
    loop: start=0, step=1, limit=5
    $region2: #{language_model_forward.2} parent=1 // loop_pre_header
      _
    $region3: #{language_model_forward.2} parent=1 // loop_header
      %s27 = sphi 0, %s31
      %p28 = scmp.ge.s32.totalorder %s27, 5
      %s34 = sphi 0, %s46
      %s35 = sphi 0, %s42
      %s36 = sphi 0, %s34
      %s37 = sphi 0, %s35
      %s38 = sphi 0, %s36
      %s39 = sphi 0, %s37
      %s51 = sphi 0, %s53
      %s54 = sphi 0, %s51
      %s55 = sphi 0, %s54
      %s71 = sphi 0, %s55
      %s75 = sphi 0, %s75
      %s77 = sphi 0, %s75
      %s78 = sphi 0, %s77
      %s92 = sphi 0, %s78
      %s96 = sphi 0, %s96
      %s98 = sphi 0, %s96
      %s99 = sphi 0, %s98
      %s113 = sphi 0, %s99
      %s117 = sphi 0, %s117
      %s119 = sphi 0, %s117
      %s120 = sphi 0, %s119
      %s134 = sphi 0, %s120
      %s138 = sphi 0, %s138
      %s140 = sphi 0, %s138
      %s141 = sphi 0, %s140
      %s155 = sphi 0, %s141
      %s159 = sphi 0, %s159
      %s161 = sphi 0, %s159
      %s162 = sphi 0, %s161
      %s176 = sphi 0, %s162
      %s180 = sphi 0, %s180
      %s182 = sphi 0, %s180
      %s183 = sphi 0, %s182
      %s197 = sphi 0, %s183
      %s201 = sphi 0, %s201
      %s203 = sphi 0, %s201
      %s204 = sphi 0, %s203
      %s218 = sphi 0, %s204
      %s226 = sphi 0, %s228
      %s229 = sphi 0, %s226
      %s230 = sphi 0, %s229
      %s246 = sphi 0, %s230
      %s252 = sphi 0, %s254
      %s255 = sphi 0, %s252
      %s256 = sphi 0, %s255
      %s272 = sphi 0, %s256
    $region4: #{language_model_forward.2} parent=1 // loop_header_branch
      %30 = sbr.rel (%p28) target = $region8
    $region5: #{language_model_forward.2} parent=1 // loop_body
      %s32 = ssub.s32 %s27, 1
      %s33 = ssub.s32 %s27, 2
      %s40 = sadd.s32 1, %s35
      %p41 = scmp.ge.s32.totalorder %s40, 3
      %s42 = scalar_select %p41, 0, %s40
      %s43 = sadd.s32 1, %s34
      %s44 = scalar_select %p41, %s43, %s34
      %p45 = scmp.ge.s32.totalorder %s44, 1
      %s46 = scalar_select %p45, 0, %s44
      %s47 = ssub.s32 %s35, %s42
      %s48 = ssub.s32 %s34, %s46
      %s49 = sor.u32 %s47, %s48
      %p50 = scmp.eq.s32.totalorder %s49, 0
      %s52 = sadd.s32 %s51, 1
      %s53 = scalar_select %p50, %s51, %s52
      %p56 = pneg %p50
      %p57 = scmp.eq.s32.totalorder %s27, 2
      %p58 = por %p56, %p57
      %p59 = scmp.ne.s32.totalorder %s51, %s54
      %p60 = scmp.eq.s32.totalorder %s27, 0
      %p61 = por %p59, %p60
      %p62 = scmp.ne.s32.totalorder %s51, %s54
      %p63 = scmp.eq.s32.totalorder %s32, 2
      %p64 = por %p62, %p63
      %p65 = scmp.ne.s32.totalorder %s54, %s55
      %p66 = scmp.eq.s32.totalorder %s32, 0
      %p67 = por %p65, %p66
      %p68 = scmp.ne.s32.totalorder %s54, %s55
      %p69 = scmp.eq.s32.totalorder %s33, 2
      %p70 = por %p68, %p69
      %p72 = scmp.ne.s32.totalorder %s55, %s71
      %p73 = scmp.eq.s32.totalorder %s33, 0
      %p74 = por %p72, %p73
      %s76 = sadd.s32 %s75, 1
      %p79 = scmp.eq.s32.totalorder %s27, 2
      %p80 = scmp.ne.s32.totalorder %s75, %s77
      %p81 = scmp.eq.s32.totalorder %s27, 0
      %p82 = por %p80, %p81
      %p83 = scmp.ne.s32.totalorder %s75, %s77
      %p84 = scmp.eq.s32.totalorder %s32, 2
      %p85 = por %p83, %p84
      %p86 = scmp.ne.s32.totalorder %s77, %s78
      %p87 = scmp.eq.s32.totalorder %s32, 0
      %p88 = por %p86, %p87
      %p89 = scmp.ne.s32.totalorder %s77, %s78
      %p90 = scmp.eq.s32.totalorder %s33, 2
      %p91 = por %p89, %p90
      %p93 = scmp.ne.s32.totalorder %s78, %s92
      %p94 = scmp.eq.s32.totalorder %s33, 0
      %p95 = por %p93, %p94
      %s97 = sadd.s32 %s96, 1
      %p100 = scmp.eq.s32.totalorder %s27, 2
      %p101 = scmp.ne.s32.totalorder %s96, %s98
      %p102 = scmp.eq.s32.totalorder %s27, 0
      %p103 = por %p101, %p102
      %p104 = scmp.ne.s32.totalorder %s96, %s98
      %p105 = scmp.eq.s32.totalorder %s32, 2
      %p106 = por %p104, %p105
      %p107 = scmp.ne.s32.totalorder %s98, %s99
      %p108 = scmp.eq.s32.totalorder %s32, 0
      %p109 = por %p107, %p108
      %p110 = scmp.ne.s32.totalorder %s98, %s99
      %p111 = scmp.eq.s32.totalorder %s33, 2
      %p112 = por %p110, %p111
      %p114 = scmp.ne.s32.totalorder %s99, %s113
      %p115 = scmp.eq.s32.totalorder %s33, 0
      %p116 = por %p114, %p115
      %s118 = sadd.s32 %s117, 1
      %p121 = scmp.eq.s32.totalorder %s27, 2
      %p122 = scmp.ne.s32.totalorder %s117, %s119
      %p123 = scmp.eq.s32.totalorder %s27, 0
      %p124 = por %p122, %p123
      %p125 = scmp.ne.s32.totalorder %s117, %s119
      %p126 = scmp.eq.s32.totalorder %s32, 2
      %p127 = por %p125, %p126
      %p128 = scmp.ne.s32.totalorder %s119, %s120
      %p129 = scmp.eq.s32.totalorder %s32, 0
      %p130 = por %p128, %p129
      %p131 = scmp.ne.s32.totalorder %s119, %s120
      %p132 = scmp.eq.s32.totalorder %s33, 2
      %p133 = por %p131, %p132
      %p135 = scmp.ne.s32.totalorder %s120, %s134
      %p136 = scmp.eq.s32.totalorder %s33, 0
      %p137 = por %p135, %p136
      %s139 = sadd.s32 %s138, 1
      %p142 = scmp.eq.s32.totalorder %s27, 2
      %p143 = scmp.ne.s32.totalorder %s138, %s140
      %p144 = scmp.eq.s32.totalorder %s27, 0
      %p145 = por %p143, %p144
      %p146 = scmp.ne.s32.totalorder %s138, %s140
      %p147 = scmp.eq.s32.totalorder %s32, 2
      %p148 = por %p146, %p147
      %p149 = scmp.ne.s32.totalorder %s140, %s141
      %p150 = scmp.eq.s32.totalorder %s32, 0
      %p151 = por %p149, %p150
      %p152 = scmp.ne.s32.totalorder %s140, %s141
      %p153 = scmp.eq.s32.totalorder %s33, 2
      %p154 = por %p152, %p153
      %p156 = scmp.ne.s32.totalorder %s141, %s155
      %p157 = scmp.eq.s32.totalorder %s33, 0
      %p158 = por %p156, %p157
      %s160 = sadd.s32 %s159, 1
      %p163 = scmp.eq.s32.totalorder %s27, 2
      %p164 = scmp.ne.s32.totalorder %s159, %s161
      %p165 = scmp.eq.s32.totalorder %s27, 0
      %p166 = por %p164, %p165
      %p167 = scmp.ne.s32.totalorder %s159, %s161
      %p168 = scmp.eq.s32.totalorder %s32, 2
      %p169 = por %p167, %p168
      %p170 = scmp.ne.s32.totalorder %s161, %s162
      %p171 = scmp.eq.s32.totalorder %s32, 0
      %p172 = por %p170, %p171
      %p173 = scmp.ne.s32.totalorder %s161, %s162
      %p174 = scmp.eq.s32.totalorder %s33, 2
      %p175 = por %p173, %p174
      %p177 = scmp.ne.s32.totalorder %s162, %s176
      %p178 = scmp.eq.s32.totalorder %s33, 0
      %p179 = por %p177, %p178
      %s181 = sadd.s32 %s180, 1
      %p184 = scmp.eq.s32.totalorder %s27, 2
      %p185 = scmp.ne.s32.totalorder %s180, %s182
      %p186 = scmp.eq.s32.totalorder %s27, 0
      %p187 = por %p185, %p186
      %p188 = scmp.ne.s32.totalorder %s180, %s182
      %p189 = scmp.eq.s32.totalorder %s32, 2
      %p190 = por %p188, %p189
      %p191 = scmp.ne.s32.totalorder %s182, %s183
      %p192 = scmp.eq.s32.totalorder %s32, 0
      %p193 = por %p191, %p192
      %p194 = scmp.ne.s32.totalorder %s182, %s183
      %p195 = scmp.eq.s32.totalorder %s33, 2
      %p196 = por %p194, %p195
      %p198 = scmp.ne.s32.totalorder %s183, %s197
      %p199 = scmp.eq.s32.totalorder %s33, 0
      %p200 = por %p198, %p199
      %s202 = sadd.s32 %s201, 1
      %p205 = scmp.eq.s32.totalorder %s27, 2
      %p206 = scmp.ne.s32.totalorder %s201, %s203
      %p207 = scmp.eq.s32.totalorder %s27, 0
      %p208 = por %p206, %p207
      %p209 = scmp.ne.s32.totalorder %s201, %s203
      %p210 = scmp.eq.s32.totalorder %s32, 2
      %p211 = por %p209, %p210
      %p212 = scmp.ne.s32.totalorder %s203, %s204
      %p213 = scmp.eq.s32.totalorder %s32, 0
      %p214 = por %p212, %p213
      %p215 = scmp.ne.s32.totalorder %s203, %s204
      %p216 = scmp.eq.s32.totalorder %s33, 2
      %p217 = por %p215, %p216
      %p219 = scmp.ne.s32.totalorder %s204, %s218
      %p220 = scmp.eq.s32.totalorder %s33, 0
      %p221 = por %p219, %p220
      %s222 = ssub.s32 %s35, %s42
      %s223 = ssub.s32 %s34, %s46
      %s224 = sor.u32 %s222, %s223
      %p225 = scmp.eq.s32.totalorder %s224, 0
      %s227 = sadd.s32 %s226, 1
      %s228 = scalar_select %p225, %s226, %s227
      %p231 = pneg %p225
      %p232 = scmp.eq.s32.totalorder %s27, 2
      %p233 = por %p231, %p232
      %p234 = scmp.ne.s32.totalorder %s226, %s229
      %p235 = scmp.eq.s32.totalorder %s27, 0
      %p236 = por %p234, %p235
      %p237 = scmp.ne.s32.totalorder %s226, %s229
      %p238 = scmp.eq.s32.totalorder %s32, 2
      %p239 = por %p237, %p238
      %p240 = scmp.ne.s32.totalorder %s229, %s230
      %p241 = scmp.eq.s32.totalorder %s32, 0
      %p242 = por %p240, %p241
      %p243 = scmp.ne.s32.totalorder %s229, %s230
      %p244 = scmp.eq.s32.totalorder %s33, 2
      %p245 = por %p243, %p244
      %p247 = scmp.ne.s32.totalorder %s230, %s246
      %p248 = scmp.eq.s32.totalorder %s33, 0
      %p249 = por %p247, %p248
      %s250 = ssub.s32 %s34, %s46
      %p251 = scmp.eq.s32.totalorder %s250, 0
      %s253 = sadd.s32 %s252, 1
      %s254 = scalar_select %p251, %s252, %s253
      %p257 = pneg %p251
      %p258 = scmp.eq.s32.totalorder %s27, 2
      %p259 = por %p257, %p258
      %p260 = scmp.ne.s32.totalorder %s252, %s255
      %p261 = scmp.eq.s32.totalorder %s27, 0
      %p262 = por %p260, %p261
      %p263 = scmp.ne.s32.totalorder %s252, %s255
      %p264 = scmp.eq.s32.totalorder %s32, 2
      %p265 = por %p263, %p264
      %p266 = scmp.ne.s32.totalorder %s255, %s256
      %p267 = scmp.eq.s32.totalorder %s32, 0
      %p268 = por %p266, %p267
      %p269 = scmp.ne.s32.totalorder %s255, %s256
      %p270 = scmp.eq.s32.totalorder %s33, 2
      %p271 = por %p269, %p270
      %p273 = scmp.ne.s32.totalorder %s256, %s272
      %p274 = scmp.eq.s32.totalorder %s33, 0
      %p275 = por %p273, %p274
      %p276 = scmp.le.s32.totalorder 1, %s27
      %p277 = scmp.lt.s32.totalorder %s27, 4
      %p278 = pnand %p276, %p277
      %p279 = pneg %p278
      // Predicated region
      $region9: #{language_model_forward.2} parent=5 // pred_check
        _
      $region10: #{language_model_forward.2} parent=5 // pred_check_branch
        %281 = sbr.rel (%p278) target = $region12
      $region11: #{language_model_forward.2} parent=5 // pred_region
        %s282 = ssub.s32 %s27, 1
        // Predicated region
        $region13: #{language_model_forward.2} parent=11 // pred_check
          %p283 = pneg %p88
        $region14: #{language_model_forward.2} parent=11 // pred_check_branch
          %285 = sbr.rel (%p283) target = $region16
        $region15: #{language_model_forward.2} parent=11 // pred_region
          %s287 = ssub.s32 3072, 3072
          %288 = vsyncadd [#allocation6], %s287
          %s289 = sshll.u32 [#allocation5], 4
          %s290 = int_to_ptr.vmem [resolvable:$true] %s289
          %295 = dma.hbm_to_vmem [thread:$0]  %s1, 3072, %s290, [#allocation6], 192, 192, 12
        $region16: #{language_model_forward.2} parent=11 // pred_fallthru
          _
        // Predicated region
        $region17: #{language_model_forward.2} parent=11 // pred_check
          %p296 = pneg %p109
        $region18: #{language_model_forward.2} parent=11 // pred_check_branch
          %298 = sbr.rel (%p296) target = $region20
        $region19: #{language_model_forward.2} parent=11 // pred_region
          %s300 = ssub.s32 3072, 3072
          %301 = vsyncadd [#allocation6], %s300
          %s302 = sshll.u32 [#allocation7], 4
          %s303 = int_to_ptr.vmem [resolvable:$true] %s302
          %308 = dma.hbm_to_vmem [thread:$0]  %s2, 3072, %s303, [#allocation6], 192, 192, 12
        $region20: #{language_model_forward.2} parent=11 // pred_fallthru
          _
        // Predicated region
        $region21: #{language_model_forward.2} parent=11 // pred_check
          %p309 = pneg %p130
        $region22: #{language_model_forward.2} parent=11 // pred_check_branch
          %311 = sbr.rel (%p309) target = $region24
        $region23: #{language_model_forward.2} parent=11 // pred_region
          %s313 = ssub.s32 3072, 3072
          %314 = vsyncadd [#allocation9], %s313
          %s315 = sshll.u32 [#allocation8], 4
          %s316 = int_to_ptr.vmem [resolvable:$true] %s315
          %321 = dma.hbm_to_vmem [thread:$0]  %s3, 3072, %s316, [#allocation9], 192, 192, 12
        $region24: #{language_model_forward.2} parent=11 // pred_fallthru
          _
        // Predicated region
        $region25: #{language_model_forward.2} parent=11 // pred_check
          %p322 = pneg %p151
        $region26: #{language_model_forward.2} parent=11 // pred_check_branch
          %324 = sbr.rel (%p322) target = $region28
        $region27: #{language_model_forward.2} parent=11 // pred_region
          %s326 = ssub.s32 48, 48
          %327 = vsyncadd [#allocation9], %s326
          %s329 = sshll.u32 [#allocation10], 4
          %s330 = int_to_ptr.vmem [resolvable:$true] %s329
          %332 = dma.hbm_to_vmem [thread:$0]  %s4, 48, %s330, [#allocation9]
        $region28: #{language_model_forward.2} parent=11 // pred_fallthru
          _
        // Predicated region
        $region29: #{language_model_forward.2} parent=11 // pred_check
          %p333 = pneg %p172
        $region30: #{language_model_forward.2} parent=11 // pred_check_branch
          %335 = sbr.rel (%p333) target = $region32
        $region31: #{language_model_forward.2} parent=11 // pred_region
          %s337 = ssub.s32 48, 48
          %338 = vsyncadd [#allocation12], %s337
          %s340 = sshll.u32 [#allocation11], 4
          %s341 = int_to_ptr.vmem [resolvable:$true] %s340
          %343 = dma.hbm_to_vmem [thread:$0]  %s5, 48, %s341, [#allocation12]
        $region32: #{language_model_forward.2} parent=11 // pred_fallthru
          _
        // Predicated region
        $region33: #{language_model_forward.2} parent=11 // pred_check
          %p344 = pneg %p193
        $region34: #{language_model_forward.2} parent=11 // pred_check_branch
          %346 = sbr.rel (%p344) target = $region36
        $region35: #{language_model_forward.2} parent=11 // pred_region
          %s348 = ssub.s32 16, 16
          %349 = vsyncadd [#allocation12], %s348
          %s351 = sshll.u32 [#allocation13], 4
          %s352 = int_to_ptr.vmem [resolvable:$true] %s351
          %354 = dma.hbm_to_vmem [thread:$0]  %s6, 16, %s352, [#allocation12]
        $region36: #{language_model_forward.2} parent=11 // pred_fallthru
          _
        // Predicated region
        $region37: #{language_model_forward.2} parent=11 // pred_check
          %p355 = pneg %p214
        $region38: #{language_model_forward.2} parent=11 // pred_check_branch
          %357 = sbr.rel (%p355) target = $region40
        $region39: #{language_model_forward.2} parent=11 // pred_region
          %s359 = ssub.s32 16, 16
          %360 = vsyncadd [#allocation15], %s359
          %s362 = sshll.u32 [#allocation14], 4
          %s363 = int_to_ptr.vmem [resolvable:$true] %s362
          %365 = dma.hbm_to_vmem [thread:$0]  %s7, 16, %s363, [#allocation15]
        $region40: #{language_model_forward.2} parent=11 // pred_fallthru
          _
      $region12: #{language_model_forward.2} parent=5 // pred_fallthru
        _
      %p366 = scmp.lt.s32.totalorder %s27, 3
      // Predicated region
      $region41: #{language_model_forward.2} parent=5 // pred_check
        %p367 = pneg %p366
      $region42: #{language_model_forward.2} parent=5 // pred_check_branch
        %369 = sbr.rel (%p367) target = $region44
      $region43: #{language_model_forward.2} parent=5 // pred_region
        // Predicated region
        $region45: #{language_model_forward.2} parent=43 // pred_check
          %p370 = pneg %p61
        $region46: #{language_model_forward.2} parent=43 // pred_check_branch
          %372 = sbr.rel (%p370) target = $region48
        $region47: #{language_model_forward.2} parent=43 // pred_region
          %s373 = sand.u32 %s51, 1
          %s374 = scalar_lea.sflag [#allocation3], %s373
          %s375 = sand.u32 %s51, 1
          %s376 = smul.addr %s375, 192
          %s377 = scalar_lea.vmem [#allocation2], %s376
          %s378 = smul.u32 8, %s35
          %s379 = smul.u32 2, %s34
          %s381 = ssub.s32 3072, 3072
          %382 = vsyncadd %s374, %s381
          %s383 = smul.addr %s379, 3
          %s384 = smul.addr %s378, 6
          %s385 = sadd.s32 %s383, %s384
          %s386 = smul.addr %s385, 64
          %s387 = scalar_lea.hbm %s0, %s386
          %s388 = sshll.u32 %s377, 4
          %s389 = int_to_ptr.vmem [resolvable:$true] %s388
          %394 = dma.hbm_to_vmem [thread:$0]  %s387, 3072, %s389, %s374, 192, 192, 12
        $region48: #{language_model_forward.2} parent=43 // pred_fallthru
          _
      $region44: #{language_model_forward.2} parent=5 // pred_fallthru
        _
      %p395 = scmp.le.s32.totalorder 1, %s27
      %p396 = scmp.lt.s32.totalorder %s27, 4
      %p397 = pnand %p395, %p396
      %p398 = pneg %p397
      // Predicated region
      $region49: #{language_model_forward.2} parent=5 // pred_check
        _
      $region50: #{language_model_forward.2} parent=5 // pred_check_branch
        %400 = sbr.rel (%p397) target = $region52
      $region51: #{language_model_forward.2} parent=5 // pred_region
        %s401 = ssub.s32 %s27, 1
        %s402 = sand.u32 %s54, 1
        %s403 = scalar_lea.sflag [#allocation3], %s402
        %s404 = sand.u32 %s54, 1
        %s405 = smul.addr %s404, 192
        %s406 = scalar_lea.vmem [#allocation2], %s405
        // Predicated region
        $region53: #{language_model_forward.2} parent=51 // pred_check
          %p407 = pneg %p67
        $region54: #{language_model_forward.2} parent=51 // pred_check_branch
          %409 = sbr.rel (%p407) target = $region56
        $region55: #{language_model_forward.2} parent=51 // pred_region
          %410 = dma.done %s403, 3072
        $region56: #{language_model_forward.2} parent=51 // pred_fallthru
          _
        // Predicated region
        $region57: #{language_model_forward.2} parent=51 // pred_check
          %p411 = pneg %p88
        $region58: #{language_model_forward.2} parent=51 // pred_check_branch
          %413 = sbr.rel (%p411) target = $region60
        $region59: #{language_model_forward.2} parent=51 // pred_region
          %414 = dma.done [#allocation6], 3072
        $region60: #{language_model_forward.2} parent=51 // pred_fallthru
          _
        // Predicated region
        $region61: #{language_model_forward.2} parent=51 // pred_check
          %p415 = pneg %p109
        $region62: #{language_model_forward.2} parent=51 // pred_check_branch
          %417 = sbr.rel (%p415) target = $region64
        $region63: #{language_model_forward.2} parent=51 // pred_region
          %418 = dma.done [#allocation6], 3072
        $region64: #{language_model_forward.2} parent=51 // pred_fallthru
          _
        // Predicated region
        $region65: #{language_model_forward.2} parent=51 // pred_check
          %p419 = pneg %p130
        $region66: #{language_model_forward.2} parent=51 // pred_check_branch
          %421 = sbr.rel (%p419) target = $region68
        $region67: #{language_model_forward.2} parent=51 // pred_region
          %422 = dma.done [#allocation9], 3072
        $region68: #{language_model_forward.2} parent=51 // pred_fallthru
          _
        // Predicated region
        $region69: #{language_model_forward.2} parent=51 // pred_check
          %p423 = pneg %p151
        $region70: #{language_model_forward.2} parent=51 // pred_check_branch
          %425 = sbr.rel (%p423) target = $region72
        $region71: #{language_model_forward.2} parent=51 // pred_region
          %426 = dma.done [#allocation9], 48
        $region72: #{language_model_forward.2} parent=51 // pred_fallthru
          _
        // Predicated region
        $region73: #{language_model_forward.2} parent=51 // pred_check
          %p427 = pneg %p172
        $region74: #{language_model_forward.2} parent=51 // pred_check_branch
          %429 = sbr.rel (%p427) target = $region76
        $region75: #{language_model_forward.2} parent=51 // pred_region
          %430 = dma.done [#allocation12], 48
        $region76: #{language_model_forward.2} parent=51 // pred_fallthru
          _
        // Predicated region
        $region77: #{language_model_forward.2} parent=51 // pred_check
          %p431 = pneg %p193
        $region78: #{language_model_forward.2} parent=51 // pred_check_branch
          %433 = sbr.rel (%p431) target = $region80
        $region79: #{language_model_forward.2} parent=51 // pred_region
          %434 = dma.done [#allocation12], 16
        $region80: #{language_model_forward.2} parent=51 // pred_fallthru
          _
        // Predicated region
        $region81: #{language_model_forward.2} parent=51 // pred_check
          %p435 = pneg %p214
        $region82: #{language_model_forward.2} parent=51 // pred_check_branch
          %437 = sbr.rel (%p435) target = $region84
        $region83: #{language_model_forward.2} parent=51 // pred_region
          %438 = dma.done [#allocation15], 16
        $region84: #{language_model_forward.2} parent=51 // pred_fallthru
          _
        %s439 = sand.u32 %s54, 1
        %s440 = scalar_lea.sflag [#allocation3], %s439
        %s441 = sand.u32 %s54, 1
        %s442 = smul.addr %s441, 192
        %s443 = scalar_lea.vmem [#allocation2], %s442
        %p444 = pneg %p67
        %p445 = pneg %p64
        %p446 = pneg %p88
        %p447 = pneg %p85
        %p448 = pneg %p109
        %p449 = pneg %p106
        %p450 = pneg %p130
        %p451 = pneg %p127
        %p452 = pneg %p151
        %p453 = pneg %p148
        %p454 = pneg %p172
        %p455 = pneg %p169
        %p456 = pneg %p193
        %p457 = pneg %p190
        %p458 = pneg %p214
        %p459 = pneg %p211
        %p460 = pneg %p242
        %p461 = pneg %p239
        %s462 = sand.u32 %s229, 1
        %s463 = scalar_lea.sflag [#allocation4], %s462
        %s464 = sand.u32 %s229, 1
        %s465 = smul.addr %s464, 64
        %s466 = scalar_lea.vmem [#allocation16], %s465
        %p467 = pneg %p268
        %p468 = pneg %p265
        %s469 = smul.u32 8, %s37
        %s470 = smul.u32 2, %s36
        %s471 = smul.u32 8, %s37
        %s472 = smul.u32 2, %s36
        %s473 = smul.u32 2, %s36
        %p475 = scmp.eq.s32.totalorder %s37, 0
        // Predicated region
        $region85: #{language_model_forward.2} parent=51 // pred_check
          %p476 = pneg %p475
        $region86: #{language_model_forward.2} parent=51 // pred_check_branch
          %478 = sbr.rel (%p476) target = $region88
        $region87: #{language_model_forward.2} parent=51 // pred_region
          %479 = vst [vmem:[#allocation17] sm:$0xff] 0.0
          %480 = vst [vmem:[#allocation17 + $0x8] sm:$0xff] 0.0
          %481 = vst [vmem:[#allocation17 + $0x10] sm:$0xff] 0.0
          %482 = vst [vmem:[#allocation17 + $0x18] sm:$0xff] 0.0
        $region88: #{language_model_forward.2} parent=51 // pred_fallthru
          _
        %v483 = vld [vmem:[#allocation5] sm:$0xff]
        %v484 = vld [vmem:[#allocation5 + $0x8] sm:$0xf]
        %v485 = vld [vmem:[#allocation5 + $0xc] sm:$0xff]
        %v486 = vld [vmem:[#allocation5 + $0x14] sm:$0xf]
        %v487 = vld [vmem:[#allocation5 + $0x18] sm:$0xff]
        %v488 = vld [vmem:[#allocation5 + $0x20] sm:$0xf]
        %v489 = vld [vmem:[#allocation5 + $0x24] sm:$0xff]
        %v490 = vld [vmem:[#allocation5 + $0x2c] sm:$0xf]
        %v491 = vld [vmem:[#allocation5 + $0x30] sm:$0xff]
        %v492 = vld [vmem:[#allocation5 + $0x38] sm:$0xf]
        %v493 = vld [vmem:[#allocation5 + $0x3c] sm:$0xff]
        %v494 = vld [vmem:[#allocation5 + $0x44] sm:$0xf]
        %v495 = vld [vmem:[#allocation5 + $0x48] sm:$0xff]
        %v496 = vld [vmem:[#allocation5 + $0x50] sm:$0xf]
        %v497 = vld [vmem:[#allocation5 + $0x54] sm:$0xff]
        %v498 = vld [vmem:[#allocation5 + $0x5c] sm:$0xf]
        %v499 = vld [vmem:[#allocation5 + $0x60] sm:$0xff]
        %v500 = vld [vmem:[#allocation5 + $0x68] sm:$0xf]
        %v501 = vld [vmem:[#allocation5 + $0x6c] sm:$0xff]
        %v502 = vld [vmem:[#allocation5 + $0x74] sm:$0xf]
        %v503 = vld [vmem:[#allocation5 + $0x78] sm:$0xff]
        %v504 = vld [vmem:[#allocation5 + $0x80] sm:$0xf]
        %v505 = vld [vmem:[#allocation5 + $0x84] sm:$0xff]
        %v506 = vld [vmem:[#allocation5 + $0x8c] sm:$0xf]
        %v507 = vld [vmem:[#allocation5 + $0x90] sm:$0xff]
        %v508 = vld [vmem:[#allocation5 + $0x98] sm:$0xf]
        %v509 = vld [vmem:[#allocation5 + $0x9c] sm:$0xff]
        %v510 = vld [vmem:[#allocation5 + $0xa4] sm:$0xf]
        %v511 = vld [vmem:[#allocation5 + $0xa8] sm:$0xff]
        %v512 = vld [vmem:[#allocation5 + $0xb0] sm:$0xf]
        %v513 = vld [vmem:[#allocation5 + $0xb4] sm:$0xff]
        %v514 = vld [vmem:[#allocation5 + $0xbc] sm:$0xf]
        %v515 = vld [vmem:[#allocation7] sm:$0xff]
        %v516 = vld [vmem:[#allocation7 + $0x8] sm:$0xf]
        %v517 = vld [vmem:[#allocation7 + $0xc] sm:$0xff]
        %v518 = vld [vmem:[#allocation7 + $0x14] sm:$0xf]
        %v519 = vld [vmem:[#allocation7 + $0x18] sm:$0xff]
        %v520 = vld [vmem:[#allocation7 + $0x20] sm:$0xf]
        %v521 = vld [vmem:[#allocation7 + $0x24] sm:$0xff]
        %v522 = vld [vmem:[#allocation7 + $0x2c] sm:$0xf]
        %v523 = vld [vmem:[#allocation7 + $0x30] sm:$0xff]
        %v524 = vld [vmem:[#allocation7 + $0x38] sm:$0xf]
        %v525 = vld [vmem:[#allocation7 + $0x3c] sm:$0xff]
        %v526 = vld [vmem:[#allocation7 + $0x44] sm:$0xf]
        %v527 = vld [vmem:[#allocation7 + $0x48] sm:$0xff]
        %v528 = vld [vmem:[#allocation7 + $0x50] sm:$0xf]
        %v529 = vld [vmem:[#allocation7 + $0x54] sm:$0xff]
        %v530 = vld [vmem:[#allocation7 + $0x5c] sm:$0xf]
        %v531 = vld [vmem:[#allocation7 + $0x60] sm:$0xff]
        %v532 = vld [vmem:[#allocation7 + $0x68] sm:$0xf]
        %v533 = vld [vmem:[#allocation7 + $0x6c] sm:$0xff]
        %v534 = vld [vmem:[#allocation7 + $0x74] sm:$0xf]
        %v535 = vld [vmem:[#allocation7 + $0x78] sm:$0xff]
        %v536 = vld [vmem:[#allocation7 + $0x80] sm:$0xf]
        %v537 = vld [vmem:[#allocation7 + $0x84] sm:$0xff]
        %v538 = vld [vmem:[#allocation7 + $0x8c] sm:$0xf]
        %v539 = vld [vmem:[#allocation7 + $0x90] sm:$0xff]
        %v540 = vld [vmem:[#allocation7 + $0x98] sm:$0xf]
        %v541 = vld [vmem:[#allocation7 + $0x9c] sm:$0xff]
        %v542 = vld [vmem:[#allocation7 + $0xa4] sm:$0xf]
        %v543 = vld [vmem:[#allocation7 + $0xa8] sm:$0xff]
        %v544 = vld [vmem:[#allocation7 + $0xb0] sm:$0xf]
        %v545 = vld [vmem:[#allocation7 + $0xb4] sm:$0xff]
        %v546 = vld [vmem:[#allocation7 + $0xbc] sm:$0xf]
        %v547 = vld [vmem:[#allocation8] sm:$0xff]
        %v548 = vld [vmem:[#allocation8 + $0x8] sm:$0xf]
        %v549 = vld [vmem:[#allocation8 + $0xc] sm:$0xff]
        %v550 = vld [vmem:[#allocation8 + $0x14] sm:$0xf]
        %v551 = vld [vmem:[#allocation8 + $0x18] sm:$0xff]
        %v552 = vld [vmem:[#allocation8 + $0x20] sm:$0xf]
        %v553 = vld [vmem:[#allocation8 + $0x24] sm:$0xff]
        %v554 = vld [vmem:[#allocation8 + $0x2c] sm:$0xf]
        %v555 = vld [vmem:[#allocation8 + $0x30] sm:$0xff]
        %v556 = vld [vmem:[#allocation8 + $0x38] sm:$0xf]
        %v557 = vld [vmem:[#allocation8 + $0x3c] sm:$0xff]
        %v558 = vld [vmem:[#allocation8 + $0x44] sm:$0xf]
        %v559 = vld [vmem:[#allocation8 + $0x48] sm:$0xff]
        %v560 = vld [vmem:[#allocation8 + $0x50] sm:$0xf]
        %v561 = vld [vmem:[#allocation8 + $0x54] sm:$0xff]
        %v562 = vld [vmem:[#allocation8 + $0x5c] sm:$0xf]
        %v563 = vld [vmem:[#allocation8 + $0x60] sm:$0xff]
        %v564 = vld [vmem:[#allocation8 + $0x68] sm:$0xf]
        %v565 = vld [vmem:[#allocation8 + $0x6c] sm:$0xff]
        %v566 = vld [vmem:[#allocation8 + $0x74] sm:$0xf]
        %v567 = vld [vmem:[#allocation8 + $0x78] sm:$0xff]
        %v568 = vld [vmem:[#allocation8 + $0x80] sm:$0xf]
        %v569 = vld [vmem:[#allocation8 + $0x84] sm:$0xff]
        %v570 = vld [vmem:[#allocation8 + $0x8c] sm:$0xf]
        %v571 = vld [vmem:[#allocation8 + $0x90] sm:$0xff]
        %v572 = vld [vmem:[#allocation8 + $0x98] sm:$0xf]
        %v573 = vld [vmem:[#allocation8 + $0x9c] sm:$0xff]
        %v574 = vld [vmem:[#allocation8 + $0xa4] sm:$0xf]
        %v575 = vld [vmem:[#allocation8 + $0xa8] sm:$0xff]
        %v576 = vld [vmem:[#allocation8 + $0xb0] sm:$0xf]
        %v577 = vld [vmem:[#allocation8 + $0xb4] sm:$0xff]
        %v578 = vld [vmem:[#allocation8 + $0xbc] sm:$0xf]
        %v579 = vld [vmem:[#allocation10] sm:$0x7]
        %v580 = vld [vmem:[#allocation11] sm:$0x7]
        %v581 = vld [vmem:[#allocation13] sm:$0x1]
        %v582 = vld [vmem:[#allocation14] sm:$0x1]
        %s583 = smul.u32 %s37, 8
        %v584 = vld [vmem:[#allocation17] sm:$0xff]
        %v585 = vld [vmem:[#allocation17 + $0x8] sm:$0xff]
        %s586 = scalar_lea.vmem [#allocation17], 16
        %v587 = vld [vmem:[%s586] sm:$0xff]
        %v588 = vld [vmem:[%s586 + $0x8] sm:$0xff]
        %v589 = vld [vmem:[%s406] sm:$0xff]
        %v590 = vld [vmem:[%s406 + $0x8] sm:$0xf]
        %v591 = vld [vmem:[%s406 + $0xc] sm:$0xff]
        %v592 = vld [vmem:[%s406 + $0x14] sm:$0xf]
        %v593 = vunpack.c.l.bf16 %v589
        %v594 = vunpack.c.h.bf16 %v589
        %v595 = vunpack.c.l.bf16 %v590
        %v596 = vunpack.c.l.bf16 %v591
        %v597 = vunpack.c.h.bf16 %v591
        %v598 = vunpack.c.l.bf16 %v592
        %v600 = vlaneseq
        %v601 = vshrl.u32 %v600, 7
        %v602 = vsub.s32 0, %v601
        %v603 = vrot.slane %v579, %v602
        %v604 = vlaneseq
        %v605 = vshrl.u32 %v604, 7
        %v606 = vsub.s32 1, %v605
        %v607 = vrot.slane %v579, %v606
        %v608 = vlaneseq
        %v609 = vshrl.u32 %v608, 7
        %v610 = vsub.s32 2, %v609
        %v611 = vrot.slane %v579, %v610
        %v615 = vadd.f32 %v593, %v603
        %v616 = vadd.f32 %v594, %v607
        %v617 = vadd.f32 %v595, %v611
        %v618 = vadd.f32 %v596, %v603
        %v619 = vadd.f32 %v597, %v607
        %v620 = vadd.f32 %v598, %v611
        %v621 = vpack.c.bf16 %v585, %v584
        %v654 = vunpack.c.l.b16 %v483
        %v655 = vunpack.c.h.b16 %v483
        %v656 = vunpack.c.l.b16 %v484
        %v657 = vunpack.c.l.b16 %v485
        %v658 = vunpack.c.h.b16 %v485
        %v659 = vunpack.c.l.b16 %v486
        %v660 = vunpack.c.l.b16 %v487
        %v661 = vunpack.c.h.b16 %v487
        %v662 = vunpack.c.l.b16 %v488
        %v663 = vunpack.c.l.b16 %v489
        %v664 = vunpack.c.h.b16 %v489
        %v665 = vunpack.c.l.b16 %v490
        %v666 = vunpack.c.l.b16 %v491
        %v667 = vunpack.c.h.b16 %v491
        %v668 = vunpack.c.l.b16 %v492
        %v669 = vunpack.c.l.b16 %v493
        %v670 = vunpack.c.h.b16 %v493
        %v671 = vunpack.c.l.b16 %v494
        %v672 = vunpack.c.l.b16 %v495
        %v673 = vunpack.c.h.b16 %v495
        %v674 = vunpack.c.l.b16 %v496
        %v675 = vunpack.c.l.b16 %v497
        %v676 = vunpack.c.h.b16 %v497
        %v677 = vunpack.c.l.b16 %v498
        %v678 = vunpack.c.l.b16 %v499
        %v679 = vunpack.c.h.b16 %v499
        %v680 = vunpack.c.l.b16 %v500
        %v681 = vunpack.c.l.b16 %v501
        %v682 = vunpack.c.h.b16 %v501
        %v683 = vunpack.c.l.b16 %v502
        %v684 = vunpack.c.l.b16 %v503
        %v685 = vunpack.c.h.b16 %v503
        %v686 = vunpack.c.l.b16 %v504
        %v687 = vunpack.c.l.b16 %v505
        %v688 = vunpack.c.h.b16 %v505
        %v689 = vunpack.c.l.b16 %v506
        %v690 = vunpack.c.l.b16 %v507
        %v691 = vunpack.c.h.b16 %v507
        %v692 = vunpack.c.l.b16 %v508
        %v693 = vunpack.c.l.b16 %v509
        %v694 = vunpack.c.h.b16 %v509
        %v695 = vunpack.c.l.b16 %v510
        %v696 = vunpack.c.l.b16 %v511
        %v697 = vunpack.c.h.b16 %v511
        %v698 = vunpack.c.l.b16 %v512
        %v699 = vunpack.c.l.b16 %v513
        %v700 = vunpack.c.h.b16 %v513
        %v701 = vunpack.c.l.b16 %v514
        %v702 = vpack.c.b16 %v657, %v654
        %v703 = vpack.c.b16 %v658, %v655
        %v704 = vpack.c.b16 %v659, %v656
        %v705 = vpack.c.b16 %v663, %v660
        %v706 = vpack.c.b16 %v664, %v661
        %v707 = vpack.c.b16 %v665, %v662
        %v708 = vpack.c.b16 %v669, %v666
        %v709 = vpack.c.b16 %v670, %v667
        %v710 = vpack.c.b16 %v671, %v668
        %v711 = vpack.c.b16 %v675, %v672
        %v712 = vpack.c.b16 %v676, %v673
        %v713 = vpack.c.b16 %v677, %v674
        %v714 = vpack.c.b16 %v681, %v678
        %v715 = vpack.c.b16 %v682, %v679
        %v716 = vpack.c.b16 %v683, %v680
        %v717 = vpack.c.b16 %v687, %v684
        %v718 = vpack.c.b16 %v688, %v685
        %v719 = vpack.c.b16 %v689, %v686
        %v720 = vpack.c.b16 %v693, %v690
        %v721 = vpack.c.b16 %v694, %v691
        %v722 = vpack.c.b16 %v695, %v692
        %v723 = vpack.c.b16 %v699, %v696
        %v724 = vpack.c.b16 %v700, %v697
        %v725 = vpack.c.b16 %v701, %v698
        %750 = vmatprep.subr.bf16.mxu0 %v703
        %751 = vmatpush1.bf16.msra.mxu0 %v702
        %752 = vmatprep.subr.bf16.mxu0 %v706
        %753 = vmatpush1.bf16.msra.mxu0 %v705
        %754 = vmatprep.subr.bf16.mxu0 %v709
        %755 = vmatpush1.bf16.msra.mxu0 %v708
        %756 = vmatprep.subr.bf16.mxu0 %v712
        %757 = vmatpush1.bf16.msra.mxu0 %v711
        %758 = vmatprep.subr.bf16.mxu0 %v715
        %759 = vmatpush1.bf16.msra.mxu0 %v714
        %760 = vmatprep.subr.bf16.mxu0 %v718
        %761 = vmatpush1.bf16.msra.mxu0 %v717
        %762 = vmatprep.subr.bf16.mxu0 %v721
        %763 = vmatpush1.bf16.msra.mxu0 %v720
        %764 = vmatprep.subr.bf16.mxu0 %v724
        %765 = vmatpush1.bf16.msra.mxu0 %v723
        %766 = vmatprep.subr.bf16.mxu0 0
        %767 = vmatpush1.bf16.msra.mxu0 0
        %768 = vmatprep.subr.bf16.mxu0 0
        %769 = vmatpush1.bf16.msra.mxu0 0
        %770 = vmatprep.subr.bf16.mxu0 0
        %771 = vmatpush1.bf16.msra.mxu0 0
        %772 = vmatprep.subr.bf16.mxu0 0
        %773 = vmatpush1.bf16.msra.mxu0 0
        %774 = vmatprep.subr.bf16.mxu0 0
        %775 = vmatpush1.bf16.msra.mxu0 0
        %776 = vmatprep.subr.bf16.mxu0 0
        %777 = vmatpush1.bf16.msra.mxu0 0
        %778 = vmatprep.subr.bf16.mxu0 0
        %779 = vmatpush1.bf16.msra.mxu0 0
        %780 = vmatprep.subr.bf16.mxu0 0
        %781 = vmatpush1.bf16.msra.mxu0 0
        %782 = vmatprep.mubr.bf16.mxu0 0
        %783 = vmatmul.mubr.bf16.gmra.mrb[0].mxu0 %v621
        %v784 = vpop.f32.mrb[0].mxu0
        %v785 = vadd.f32 0.0, %v784
        %v786 = vpop.f32.mrb[0].mxu0
        %v787 = vadd.f32 0.0, %v786
        %v788 = vpop.f32.mrb[0].mxu0
        %v789 = vadd.f32 0.0, %v788
        %v790 = vpop.f32.mrb[0].mxu0
        %v791 = vadd.f32 0.0, %v790
        %792 = vdwg.mxu0
        %793 = vmatprep.subr.bf16.mxu0 0
        %794 = vmatpush1.bf16.msra.mxu0 %v704
        %795 = vmatprep.subr.bf16.mxu0 0
        %796 = vmatpush1.bf16.msra.mxu0 %v707
        %797 = vmatprep.subr.bf16.mxu0 0
        %798 = vmatpush1.bf16.msra.mxu0 %v710
        %799 = vmatprep.subr.bf16.mxu0 0
        %800 = vmatpush1.bf16.msra.mxu0 %v713
        %801 = vmatprep.subr.bf16.mxu0 0
        %802 = vmatpush1.bf16.msra.mxu0 %v716
        %803 = vmatprep.subr.bf16.mxu0 0
        %804 = vmatpush1.bf16.msra.mxu0 %v719
        %805 = vmatprep.subr.bf16.mxu0 0
        %806 = vmatpush1.bf16.msra.mxu0 %v722
        %807 = vmatprep.subr.bf16.mxu0 0
        %808 = vmatpush1.bf16.msra.mxu0 %v725
        %809 = vmatprep.subr.bf16.mxu0 0
        %810 = vmatpush1.bf16.msra.mxu0 0
        %811 = vmatprep.subr.bf16.mxu0 0
        %812 = vmatpush1.bf16.msra.mxu0 0
        %813 = vmatprep.subr.bf16.mxu0 0
        %814 = vmatpush1.bf16.msra.mxu0 0
        %815 = vmatprep.subr.bf16.mxu0 0
        %816 = vmatpush1.bf16.msra.mxu0 0
        %817 = vmatprep.subr.bf16.mxu0 0
        %818 = vmatpush1.bf16.msra.mxu0 0
        %819 = vmatprep.subr.bf16.mxu0 0
        %820 = vmatpush1.bf16.msra.mxu0 0
        %821 = vmatprep.subr.bf16.mxu0 0
        %822 = vmatpush1.bf16.msra.mxu0 0
        %823 = vmatprep.subr.bf16.mxu0 0
        %824 = vmatpush1.bf16.msra.mxu0 0
        %825 = vmatprep.mubr.bf16.mxu0 0
        %826 = vmatmul.mubr.bf16.gmra.mrb[0].mxu0 %v621
        %v827 = vpop.f32.mrb[0].mxu0
        %v828 = vadd.f32 0.0, %v827
        %v829 = vpop.f32.mrb[0].mxu0
        %v830 = vpop.f32.mrb[0].mxu0
        %v831 = vadd.f32 0.0, %v830
        %v832 = vpop.f32.mrb[0].mxu0
        %833 = vdwg.mxu0
        %v834 = vadd.f32 %v615, %v785
        %v835 = vadd.f32 %v616, %v787
        %v836 = vadd.f32 %v618, %v789
        %v837 = vadd.f32 %v619, %v791
        %v838 = vxor.u32 %v834, 2147483648
        %v839 = vxor.u32 %v835, 2147483648
        %v840 = vxor.u32 %v836, 2147483648
        %v841 = vxor.u32 %v837, 2147483648
        %v842 = vmul.f32 %v838, 1.442695
        %v843 = vpow.pop %v842
        %v844 = vmul.f32 %v839, 1.442695
        %v845 = vpow.pop %v844
        %v846 = vmul.f32 %v840, 1.442695
        %v847 = vpow.pop %v846
        %v848 = vmul.f32 %v841, 1.442695
        %v849 = vpow.pop %v848
        %v850 = vadd.f32 %v843, 1.0
        %v851 = vadd.f32 %v845, 1.0
        %v852 = vadd.f32 %v847, 1.0
        %v853 = vadd.f32 %v849, 1.0
        %v854 = vrcp.pop %v850
        %v855 = vmul.f32 1.0, %v854
        %v856 = vrcp.pop %v851
        %v857 = vmul.f32 1.0, %v856
        %v858 = vrcp.pop %v852
        %v859 = vmul.f32 1.0, %v858
        %v860 = vrcp.pop %v853
        %v861 = vmul.f32 1.0, %v860
        %v863 = vlaneseq
        %v864 = vshrl.u32 %v863, 7
        %v865 = vsub.s32 0, %v864
        %v866 = vrot.slane %v581, %v865
        %v868 = vadd.f32 %v828, %v866
        %v869 = vadd.f32 %v831, %v866
        %v870 = vmul.f32 %v855, %v868
        %v871 = vmul.f32 %v859, %v869
        %v872 = vadd.f32 %v617, %v870
        %v873 = vadd.f32 %v620, %v871
        %v874 = vtanh.pop %v872
        %v875 = vtanh.pop %v873
        %v876 = vsub.f32 %v584, %v874
        %v877 = vsub.f32 %v585, %v875
        %v878 = vmul.f32 %v857, %v876
        %v879 = vmul.f32 %v861, %v877
        %v880 = vadd.f32 %v874, %v878
        %v881 = vadd.f32 %v875, %v879
        %p882 = scmp.lt.s32.totalorder %s583, 18
        %s883 = scalar_select %p882, 1, 0
        %v884 = vstv %s883
        %vm885 = vcmp.eq.s32.totalorder %v884, 1
        %v886 = vsel %vm885, %v880, %v584
        %v887 = vsel %vm885, %v881, %v585
        %v888 = vpack.c.bf16 %v887, %v886
        %v889 = vpack.c.bf16 %v588, %v587
        %v922 = vunpack.c.l.b16 %v515
        %v923 = vunpack.c.h.b16 %v515
        %v924 = vunpack.c.l.b16 %v516
        %v925 = vunpack.c.l.b16 %v517
        %v926 = vunpack.c.h.b16 %v517
        %v927 = vunpack.c.l.b16 %v518
        %v928 = vunpack.c.l.b16 %v519
        %v929 = vunpack.c.h.b16 %v519
        %v930 = vunpack.c.l.b16 %v520
        %v931 = vunpack.c.l.b16 %v521
        %v932 = vunpack.c.h.b16 %v521
        %v933 = vunpack.c.l.b16 %v522
        %v934 = vunpack.c.l.b16 %v523
        %v935 = vunpack.c.h.b16 %v523
        %v936 = vunpack.c.l.b16 %v524
        %v937 = vunpack.c.l.b16 %v525
        %v938 = vunpack.c.h.b16 %v525
        %v939 = vunpack.c.l.b16 %v526
        %v940 = vunpack.c.l.b16 %v527
        %v941 = vunpack.c.h.b16 %v527
        %v942 = vunpack.c.l.b16 %v528
        %v943 = vunpack.c.l.b16 %v529
        %v944 = vunpack.c.h.b16 %v529
        %v945 = vunpack.c.l.b16 %v530
        %v946 = vunpack.c.l.b16 %v531
        %v947 = vunpack.c.h.b16 %v531
        %v948 = vunpack.c.l.b16 %v532
        %v949 = vunpack.c.l.b16 %v533
        %v950 = vunpack.c.h.b16 %v533
        %v951 = vunpack.c.l.b16 %v534
        %v952 = vunpack.c.l.b16 %v535
        %v953 = vunpack.c.h.b16 %v535
        %v954 = vunpack.c.l.b16 %v536
        %v955 = vunpack.c.l.b16 %v537
        %v956 = vunpack.c.h.b16 %v537
        %v957 = vunpack.c.l.b16 %v538
        %v958 = vunpack.c.l.b16 %v539
        %v959 = vunpack.c.h.b16 %v539
        %v960 = vunpack.c.l.b16 %v540
        %v961 = vunpack.c.l.b16 %v541
        %v962 = vunpack.c.h.b16 %v541
        %v963 = vunpack.c.l.b16 %v542
        %v964 = vunpack.c.l.b16 %v543
        %v965 = vunpack.c.h.b16 %v543
        %v966 = vunpack.c.l.b16 %v544
        %v967 = vunpack.c.l.b16 %v545
        %v968 = vunpack.c.h.b16 %v545
        %v969 = vunpack.c.l.b16 %v546
        %v970 = vpack.c.b16 %v925, %v922
        %v971 = vpack.c.b16 %v926, %v923
        %v972 = vpack.c.b16 %v927, %v924
        %v973 = vpack.c.b16 %v931, %v928
        %v974 = vpack.c.b16 %v932, %v929
        %v975 = vpack.c.b16 %v933, %v930
        %v976 = vpack.c.b16 %v937, %v934
        %v977 = vpack.c.b16 %v938, %v935
        %v978 = vpack.c.b16 %v939, %v936
        %v979 = vpack.c.b16 %v943, %v940
        %v980 = vpack.c.b16 %v944, %v941
        %v981 = vpack.c.b16 %v945, %v942
        %v982 = vpack.c.b16 %v949, %v946
        %v983 = vpack.c.b16 %v950, %v947
        %v984 = vpack.c.b16 %v951, %v948
        %v985 = vpack.c.b16 %v955, %v952
        %v986 = vpack.c.b16 %v956, %v953
        %v987 = vpack.c.b16 %v957, %v954
        %v988 = vpack.c.b16 %v961, %v958
        %v989 = vpack.c.b16 %v962, %v959
        %v990 = vpack.c.b16 %v963, %v960
        %v991 = vpack.c.b16 %v967, %v964
        %v992 = vpack.c.b16 %v968, %v965
        %v993 = vpack.c.b16 %v969, %v966
        %1018 = vmatprep.subr.bf16.mxu0 %v971
        %1019 = vmatpush1.bf16.msra.mxu0 %v970
        %1020 = vmatprep.subr.bf16.mxu0 %v974
        %1021 = vmatpush1.bf16.msra.mxu0 %v973
        %1022 = vmatprep.subr.bf16.mxu0 %v977
        %1023 = vmatpush1.bf16.msra.mxu0 %v976
        %1024 = vmatprep.subr.bf16.mxu0 %v980
        %1025 = vmatpush1.bf16.msra.mxu0 %v979
        %1026 = vmatprep.subr.bf16.mxu0 %v983
        %1027 = vmatpush1.bf16.msra.mxu0 %v982
        %1028 = vmatprep.subr.bf16.mxu0 %v986
        %1029 = vmatpush1.bf16.msra.mxu0 %v985
        %1030 = vmatprep.subr.bf16.mxu0 %v989
        %1031 = vmatpush1.bf16.msra.mxu0 %v988
        %1032 = vmatprep.subr.bf16.mxu0 %v992
        %1033 = vmatpush1.bf16.msra.mxu0 %v991
        %1034 = vmatprep.subr.bf16.mxu0 0
        %1035 = vmatpush1.bf16.msra.mxu0 0
        %1036 = vmatprep.subr.bf16.mxu0 0
        %1037 = vmatpush1.bf16.msra.mxu0 0
        %1038 = vmatprep.subr.bf16.mxu0 0
        %1039 = vmatpush1.bf16.msra.mxu0 0
        %1040 = vmatprep.subr.bf16.mxu0 0
        %1041 = vmatpush1.bf16.msra.mxu0 0
        %1042 = vmatprep.subr.bf16.mxu0 0
        %1043 = vmatpush1.bf16.msra.mxu0 0
        %1044 = vmatprep.subr.bf16.mxu0 0
        %1045 = vmatpush1.bf16.msra.mxu0 0
        %1046 = vmatprep.subr.bf16.mxu0 0
        %1047 = vmatpush1.bf16.msra.mxu0 0
        %1048 = vmatprep.subr.bf16.mxu0 0
        %1049 = vmatpush1.bf16.msra.mxu0 0
        %1050 = vmatprep.mubr.bf16.mxu0 0
        %1051 = vmatmul.mubr.bf16.gmra.mrb[0].mxu0 %v889
        %v1052 = vpop.f32.mrb[0].mxu0
        %v1053 = vadd.f32 0.0, %v1052
        %v1054 = vpop.f32.mrb[0].mxu0
        %v1055 = vadd.f32 0.0, %v1054
        %v1056 = vpop.f32.mrb[0].mxu0
        %v1057 = vadd.f32 0.0, %v1056
        %v1058 = vpop.f32.mrb[0].mxu0
        %v1059 = vadd.f32 0.0, %v1058
        %1060 = vdwg.mxu0
        %1061 = vmatprep.subr.bf16.mxu0 0
        %1062 = vmatpush1.bf16.msra.mxu0 %v972
        %1063 = vmatprep.subr.bf16.mxu0 0
        %1064 = vmatpush1.bf16.msra.mxu0 %v975
        %1065 = vmatprep.subr.bf16.mxu0 0
        %1066 = vmatpush1.bf16.msra.mxu0 %v978
        %1067 = vmatprep.subr.bf16.mxu0 0
        %1068 = vmatpush1.bf16.msra.mxu0 %v981
        %1069 = vmatprep.subr.bf16.mxu0 0
        %1070 = vmatpush1.bf16.msra.mxu0 %v984
        %1071 = vmatprep.subr.bf16.mxu0 0
        %1072 = vmatpush1.bf16.msra.mxu0 %v987
        %1073 = vmatprep.subr.bf16.mxu0 0
        %1074 = vmatpush1.bf16.msra.mxu0 %v990
        %1075 = vmatprep.subr.bf16.mxu0 0
        %1076 = vmatpush1.bf16.msra.mxu0 %v993
        %1077 = vmatprep.subr.bf16.mxu0 0
        %1078 = vmatpush1.bf16.msra.mxu0 0
        %1079 = vmatprep.subr.bf16.mxu0 0
        %1080 = vmatpush1.bf16.msra.mxu0 0
        %1081 = vmatprep.subr.bf16.mxu0 0
        %1082 = vmatpush1.bf16.msra.mxu0 0
        %1083 = vmatprep.subr.bf16.mxu0 0
        %1084 = vmatpush1.bf16.msra.mxu0 0
        %1085 = vmatprep.subr.bf16.mxu0 0
        %1086 = vmatpush1.bf16.msra.mxu0 0
        %1087 = vmatprep.subr.bf16.mxu0 0
        %1088 = vmatpush1.bf16.msra.mxu0 0
        %1089 = vmatprep.subr.bf16.mxu0 0
        %1090 = vmatpush1.bf16.msra.mxu0 0
        %1091 = vmatprep.subr.bf16.mxu0 0
        %1092 = vmatpush1.bf16.msra.mxu0 0
        %1093 = vmatprep.mubr.bf16.mxu0 0
        %1094 = vmatmul.mubr.bf16.gmra.mrb[0].mxu0 %v889
        %v1095 = vpop.f32.mrb[0].mxu0
        %v1096 = vadd.f32 0.0, %v1095
        %v1097 = vpop.f32.mrb[0].mxu0
        %v1098 = vpop.f32.mrb[0].mxu0
        %v1099 = vadd.f32 0.0, %v1098
        %v1100 = vpop.f32.mrb[0].mxu0
        %1101 = vdwg.mxu0
        %v1103 = vlaneseq
        %v1104 = vshrl.u32 %v1103, 7
        %v1105 = vsub.s32 0, %v1104
        %v1106 = vrot.slane %v580, %v1105
        %v1107 = vlaneseq
        %v1108 = vshrl.u32 %v1107, 7
        %v1109 = vsub.s32 1, %v1108
        %v1110 = vrot.slane %v580, %v1109
        %v1111 = vlaneseq
        %v1112 = vshrl.u32 %v1111, 7
        %v1113 = vsub.s32 2, %v1112
        %v1114 = vrot.slane %v580, %v1113
        %v1150 = vunpack.c.l.b16 %v547
        %v1151 = vunpack.c.h.b16 %v547
        %v1152 = vunpack.c.l.b16 %v548
        %v1153 = vunpack.c.l.b16 %v549
        %v1154 = vunpack.c.h.b16 %v549
        %v1155 = vunpack.c.l.b16 %v550
        %v1156 = vunpack.c.l.b16 %v551
        %v1157 = vunpack.c.h.b16 %v551
        %v1158 = vunpack.c.l.b16 %v552
        %v1159 = vunpack.c.l.b16 %v553
        %v1160 = vunpack.c.h.b16 %v553
        %v1161 = vunpack.c.l.b16 %v554
        %v1162 = vunpack.c.l.b16 %v555
        %v1163 = vunpack.c.h.b16 %v555
        %v1164 = vunpack.c.l.b16 %v556
        %v1165 = vunpack.c.l.b16 %v557
        %v1166 = vunpack.c.h.b16 %v557
        %v1167 = vunpack.c.l.b16 %v558
        %v1168 = vunpack.c.l.b16 %v559
        %v1169 = vunpack.c.h.b16 %v559
        %v1170 = vunpack.c.l.b16 %v560
        %v1171 = vunpack.c.l.b16 %v561
        %v1172 = vunpack.c.h.b16 %v561
        %v1173 = vunpack.c.l.b16 %v562
        %v1174 = vunpack.c.l.b16 %v563
        %v1175 = vunpack.c.h.b16 %v563
        %v1176 = vunpack.c.l.b16 %v564
        %v1177 = vunpack.c.l.b16 %v565
        %v1178 = vunpack.c.h.b16 %v565
        %v1179 = vunpack.c.l.b16 %v566
        %v1180 = vunpack.c.l.b16 %v567
        %v1181 = vunpack.c.h.b16 %v567
        %v1182 = vunpack.c.l.b16 %v568
        %v1183 = vunpack.c.l.b16 %v569
        %v1184 = vunpack.c.h.b16 %v569
        %v1185 = vunpack.c.l.b16 %v570
        %v1186 = vunpack.c.l.b16 %v571
        %v1187 = vunpack.c.h.b16 %v571
        %v1188 = vunpack.c.l.b16 %v572
        %v1189 = vunpack.c.l.b16 %v573
        %v1190 = vunpack.c.h.b16 %v573
        %v1191 = vunpack.c.l.b16 %v574
        %v1192 = vunpack.c.l.b16 %v575
        %v1193 = vunpack.c.h.b16 %v575
        %v1194 = vunpack.c.l.b16 %v576
        %v1195 = vunpack.c.l.b16 %v577
        %v1196 = vunpack.c.h.b16 %v577
        %v1197 = vunpack.c.l.b16 %v578
        %v1198 = vpack.c.b16 %v1153, %v1150
        %v1199 = vpack.c.b16 %v1154, %v1151
        %v1200 = vpack.c.b16 %v1155, %v1152
        %v1201 = vpack.c.b16 %v1159, %v1156
        %v1202 = vpack.c.b16 %v1160, %v1157
        %v1203 = vpack.c.b16 %v1161, %v1158
        %v1204 = vpack.c.b16 %v1165, %v1162
        %v1205 = vpack.c.b16 %v1166, %v1163
        %v1206 = vpack.c.b16 %v1167, %v1164
        %v1207 = vpack.c.b16 %v1171, %v1168
        %v1208 = vpack.c.b16 %v1172, %v1169
        %v1209 = vpack.c.b16 %v1173, %v1170
        %v1210 = vpack.c.b16 %v1177, %v1174
        %v1211 = vpack.c.b16 %v1178, %v1175
        %v1212 = vpack.c.b16 %v1179, %v1176
        %v1213 = vpack.c.b16 %v1183, %v1180
        %v1214 = vpack.c.b16 %v1184, %v1181
        %v1215 = vpack.c.b16 %v1185, %v1182
        %v1216 = vpack.c.b16 %v1189, %v1186
        %v1217 = vpack.c.b16 %v1190, %v1187
        %v1218 = vpack.c.b16 %v1191, %v1188
        %v1219 = vpack.c.b16 %v1195, %v1192
        %v1220 = vpack.c.b16 %v1196, %v1193
        %v1221 = vpack.c.b16 %v1197, %v1194
        %1246 = vmatprep.subr.bf16.mxu0 %v1199
        %1247 = vmatpush1.bf16.msra.mxu0 %v1198
        %1248 = vmatprep.subr.bf16.mxu0 %v1202
        %1249 = vmatpush1.bf16.msra.mxu0 %v1201
        %1250 = vmatprep.subr.bf16.mxu0 %v1205
        %1251 = vmatpush1.bf16.msra.mxu0 %v1204
        %1252 = vmatprep.subr.bf16.mxu0 %v1208
        %1253 = vmatpush1.bf16.msra.mxu0 %v1207
        %1254 = vmatprep.subr.bf16.mxu0 %v1211
        %1255 = vmatpush1.bf16.msra.mxu0 %v1210
        %1256 = vmatprep.subr.bf16.mxu0 %v1214
        %1257 = vmatpush1.bf16.msra.mxu0 %v1213
        %1258 = vmatprep.subr.bf16.mxu0 %v1217
        %1259 = vmatpush1.bf16.msra.mxu0 %v1216
        %1260 = vmatprep.subr.bf16.mxu0 %v1220
        %1261 = vmatpush1.bf16.msra.mxu0 %v1219
        %1262 = vmatprep.subr.bf16.mxu0 0
        %1263 = vmatpush1.bf16.msra.mxu0 0
        %1264 = vmatprep.subr.bf16.mxu0 0
        %1265 = vmatpush1.bf16.msra.mxu0 0
        %1266 = vmatprep.subr.bf16.mxu0 0
        %1267 = vmatpush1.bf16.msra.mxu0 0
        %1268 = vmatprep.subr.bf16.mxu0 0
        %1269 = vmatpush1.bf16.msra.mxu0 0
        %1270 = vmatprep.subr.bf16.mxu0 0
        %1271 = vmatpush1.bf16.msra.mxu0 0
        %1272 = vmatprep.subr.bf16.mxu0 0
        %1273 = vmatpush1.bf16.msra.mxu0 0
        %1274 = vmatprep.subr.bf16.mxu0 0
        %1275 = vmatpush1.bf16.msra.mxu0 0
        %1276 = vmatprep.subr.bf16.mxu0 0
        %1277 = vmatpush1.bf16.msra.mxu0 0
        %1278 = vmatprep.mubr.bf16.mxu0 0
        %1279 = vmatmul.mubr.bf16.gmra.mrb[0].mxu0 %v888
        %v1280 = vpop.f32.mrb[0].mxu0
        %v1281 = vadd.f32 %v1106, %v1280
        %v1282 = vpop.f32.mrb[0].mxu0
        %v1283 = vadd.f32 %v1110, %v1282
        %v1284 = vpop.f32.mrb[0].mxu0
        %v1285 = vadd.f32 %v1106, %v1284
        %v1286 = vpop.f32.mrb[0].mxu0
        %v1287 = vadd.f32 %v1110, %v1286
        %1288 = vdwg.mxu0
        %1289 = vmatprep.subr.bf16.mxu0 0
        %1290 = vmatpush1.bf16.msra.mxu0 %v1200
        %1291 = vmatprep.subr.bf16.mxu0 0
        %1292 = vmatpush1.bf16.msra.mxu0 %v1203
        %1293 = vmatprep.subr.bf16.mxu0 0
        %1294 = vmatpush1.bf16.msra.mxu0 %v1206
        %1295 = vmatprep.subr.bf16.mxu0 0
        %1296 = vmatpush1.bf16.msra.mxu0 %v1209
        %1297 = vmatprep.subr.bf16.mxu0 0
        %1298 = vmatpush1.bf16.msra.mxu0 %v1212
        %1299 = vmatprep.subr.bf16.mxu0 0
        %1300 = vmatpush1.bf16.msra.mxu0 %v1215
        %1301 = vmatprep.subr.bf16.mxu0 0
        %1302 = vmatpush1.bf16.msra.mxu0 %v1218
        %1303 = vmatprep.subr.bf16.mxu0 0
        %1304 = vmatpush1.bf16.msra.mxu0 %v1221
        %1305 = vmatprep.subr.bf16.mxu0 0
        %1306 = vmatpush1.bf16.msra.mxu0 0
        %1307 = vmatprep.subr.bf16.mxu0 0
        %1308 = vmatpush1.bf16.msra.mxu0 0
        %1309 = vmatprep.subr.bf16.mxu0 0
        %1310 = vmatpush1.bf16.msra.mxu0 0
        %1311 = vmatprep.subr.bf16.mxu0 0
        %1312 = vmatpush1.bf16.msra.mxu0 0
        %1313 = vmatprep.subr.bf16.mxu0 0
        %1314 = vmatpush1.bf16.msra.mxu0 0
        %1315 = vmatprep.subr.bf16.mxu0 0
        %1316 = vmatpush1.bf16.msra.mxu0 0
        %1317 = vmatprep.subr.bf16.mxu0 0
        %1318 = vmatpush1.bf16.msra.mxu0 0
        %1319 = vmatprep.subr.bf16.mxu0 0
        %1320 = vmatpush1.bf16.msra.mxu0 0
        %1321 = vmatprep.mubr.bf16.mxu0 0
        %1322 = vmatmul.mubr.bf16.gmra.mrb[0].mxu0 %v888
        %v1323 = vpop.f32.mrb[0].mxu0
        %v1324 = vadd.f32 %v1114, %v1323
        %v1325 = vpop.f32.mrb[0].mxu0
        %v1326 = vpop.f32.mrb[0].mxu0
        %v1327 = vadd.f32 %v1114, %v1326
        %v1328 = vpop.f32.mrb[0].mxu0
        %1329 = vdwg.mxu0
        %v1330 = vadd.f32 %v1281, %v1053
        %v1331 = vadd.f32 %v1283, %v1055
        %v1332 = vadd.f32 %v1285, %v1057
        %v1333 = vadd.f32 %v1287, %v1059
        %v1334 = vxor.u32 %v1330, 2147483648
        %v1335 = vxor.u32 %v1331, 2147483648
        %v1336 = vxor.u32 %v1332, 2147483648
        %v1337 = vxor.u32 %v1333, 2147483648
        %v1338 = vmul.f32 %v1334, 1.442695
        %v1339 = vpow.pop %v1338
        %v1340 = vmul.f32 %v1335, 1.442695
        %v1341 = vpow.pop %v1340
        %v1342 = vmul.f32 %v1336, 1.442695
        %v1343 = vpow.pop %v1342
        %v1344 = vmul.f32 %v1337, 1.442695
        %v1345 = vpow.pop %v1344
        %v1346 = vadd.f32 %v1339, 1.0
        %v1347 = vadd.f32 %v1341, 1.0
        %v1348 = vadd.f32 %v1343, 1.0
        %v1349 = vadd.f32 %v1345, 1.0
        %v1350 = vrcp.pop %v1346
        %v1351 = vmul.f32 1.0, %v1350
        %v1352 = vrcp.pop %v1347
        %v1353 = vmul.f32 1.0, %v1352
        %v1354 = vrcp.pop %v1348
        %v1355 = vmul.f32 1.0, %v1354
        %v1356 = vrcp.pop %v1349
        %v1357 = vmul.f32 1.0, %v1356
        %v1359 = vlaneseq
        %v1360 = vshrl.u32 %v1359, 7
        %v1361 = vsub.s32 0, %v1360
        %v1362 = vrot.slane %v582, %v1361
        %v1364 = vadd.f32 %v1096, %v1362
        %v1365 = vadd.f32 %v1099, %v1362
        %v1366 = vmul.f32 %v1351, %v1364
        %v1367 = vmul.f32 %v1355, %v1365
        %v1368 = vadd.f32 %v1324, %v1366
        %v1369 = vadd.f32 %v1327, %v1367
        %v1370 = vtanh.pop %v1368
        %v1371 = vtanh.pop %v1369
        %v1372 = vsub.f32 %v587, %v1370
        %v1373 = vsub.f32 %v588, %v1371
        %v1374 = vmul.f32 %v1353, %v1372
        %v1375 = vmul.f32 %v1357, %v1373
        %v1376 = vadd.f32 %v1370, %v1374
        %v1377 = vadd.f32 %v1371, %v1375
        %v1378 = vsel %vm885, %v1376, %v587
        %v1379 = vsel %vm885, %v1377, %v588
        %v1380 = vpack.c.bf16 %v1379, %v1378
        %v1382 = vunpack.c.l.b16 %v1380
        %v1383 = vunpack.c.h.b16 %v1380
        %v1384 = vpack.c.b16 %v1382, %v1382
        %v1385 = vpack.c.b16 %v1383, %v1383
        %1388 = vst [vmem:[%s466] sm:$0xf] %v1384
        %1389 = vst [vmem:[%s466 + $0x4] sm:$0xf] %v1385
        %s1390 = scalar_lea.vmem %s406, 24 [#allocation2]
        %v1391 = vld [vmem:[%s1390] sm:$0xff]
        %v1392 = vld [vmem:[%s1390 + $0x8] sm:$0xf]
        %v1393 = vld [vmem:[%s1390 + $0xc] sm:$0xff]
        %v1394 = vld [vmem:[%s1390 + $0x14] sm:$0xf]
        %v1395 = vunpack.c.l.bf16 %v1391
        %v1396 = vunpack.c.h.bf16 %v1391
        %v1397 = vunpack.c.l.bf16 %v1392
        %v1398 = vunpack.c.l.bf16 %v1393
        %v1399 = vunpack.c.h.bf16 %v1393
        %v1400 = vunpack.c.l.bf16 %v1394
        %v1401 = vadd.f32 %v1395, %v603
        %v1402 = vadd.f32 %v1396, %v607
        %v1403 = vadd.f32 %v1397, %v611
        %v1404 = vadd.f32 %v1398, %v603
        %v1405 = vadd.f32 %v1399, %v607
        %v1406 = vadd.f32 %v1400, %v611
        %1407 = vmatprep.subr.bf16.mxu0 %v703
        %1408 = vmatpush1.bf16.msra.mxu0 %v702
        %1409 = vmatprep.subr.bf16.mxu0 %v706
        %1410 = vmatpush1.bf16.msra.mxu0 %v705
        %1411 = vmatprep.subr.bf16.mxu0 %v709
        %1412 = vmatpush1.bf16.msra.mxu0 %v708
        %1413 = vmatprep.subr.bf16.mxu0 %v712
        %1414 = vmatpush1.bf16.msra.mxu0 %v711
        %1415 = vmatprep.subr.bf16.mxu0 %v715
        %1416 = vmatpush1.bf16.msra.mxu0 %v714
        %1417 = vmatprep.subr.bf16.mxu0 %v718
        %1418 = vmatpush1.bf16.msra.mxu0 %v717
        %1419 = vmatprep.subr.bf16.mxu0 %v721
        %1420 = vmatpush1.bf16.msra.mxu0 %v720
        %1421 = vmatprep.subr.bf16.mxu0 %v724
        %1422 = vmatpush1.bf16.msra.mxu0 %v723
        %1423 = vmatprep.subr.bf16.mxu0 0
        %1424 = vmatpush1.bf16.msra.mxu0 0
        %1425 = vmatprep.subr.bf16.mxu0 0
        %1426 = vmatpush1.bf16.msra.mxu0 0
        %1427 = vmatprep.subr.bf16.mxu0 0
        %1428 = vmatpush1.bf16.msra.mxu0 0
        %1429 = vmatprep.subr.bf16.mxu0 0
        %1430 = vmatpush1.bf16.msra.mxu0 0
        %1431 = vmatprep.subr.bf16.mxu0 0
        %1432 = vmatpush1.bf16.msra.mxu0 0
        %1433 = vmatprep.subr.bf16.mxu0 0
        %1434 = vmatpush1.bf16.msra.mxu0 0
        %1435 = vmatprep.subr.bf16.mxu0 0
        %1436 = vmatpush1.bf16.msra.mxu0 0
        %1437 = vmatprep.subr.bf16.mxu0 0
        %1438 = vmatpush1.bf16.msra.mxu0 0
        %1439 = vmatprep.mubr.bf16.mxu0 0
        %1440 = vmatmul.mubr.bf16.gmra.mrb[0].mxu0 %v888
        %v1441 = vpop.f32.mrb[0].mxu0
        %v1442 = vadd.f32 0.0, %v1441
        %v1443 = vpop.f32.mrb[0].mxu0
        %v1444 = vadd.f32 0.0, %v1443
        %v1445 = vpop.f32.mrb[0].mxu0
        %v1446 = vadd.f32 0.0, %v1445
        %v1447 = vpop.f32.mrb[0].mxu0
        %v1448 = vadd.f32 0.0, %v1447
        %1449 = vdwg.mxu0
        %1450 = vmatprep.subr.bf16.mxu0 0
        %1451 = vmatpush1.bf16.msra.mxu0 %v704
        %1452 = vmatprep.subr.bf16.mxu0 0
        %1453 = vmatpush1.bf16.msra.mxu0 %v707
        %1454 = vmatprep.subr.bf16.mxu0 0
        %1455 = vmatpush1.bf16.msra.mxu0 %v710
        %1456 = vmatprep.subr.bf16.mxu0 0
        %1457 = vmatpush1.bf16.msra.mxu0 %v713
        %1458 = vmatprep.subr.bf16.mxu0 0
        %1459 = vmatpush1.bf16.msra.mxu0 %v716
        %1460 = vmatprep.subr.bf16.mxu0 0
        %1461 = vmatpush1.bf16.msra.mxu0 %v719
        %1462 = vmatprep.subr.bf16.mxu0 0
        %1463 = vmatpush1.bf16.msra.mxu0 %v722
        %1464 = vmatprep.subr.bf16.mxu0 0
        %1465 = vmatpush1.bf16.msra.mxu0 %v725
        %1466 = vmatprep.subr.bf16.mxu0 0
        %1467 = vmatpush1.bf16.msra.mxu0 0
        %1468 = vmatprep.subr.bf16.mxu0 0
        %1469 = vmatpush1.bf16.msra.mxu0 0
        %1470 = vmatprep.subr.bf16.mxu0 0
        %1471 = vmatpush1.bf16.msra.mxu0 0
        %1472 = vmatprep.subr.bf16.mxu0 0
        %1473 = vmatpush1.bf16.msra.mxu0 0
        %1474 = vmatprep.subr.bf16.mxu0 0
        %1475 = vmatpush1.bf16.msra.mxu0 0
        %1476 = vmatprep.subr.bf16.mxu0 0
        %1477 = vmatpush1.bf16.msra.mxu0 0
        %1478 = vmatprep.subr.bf16.mxu0 0
        %1479 = vmatpush1.bf16.msra.mxu0 0
        %1480 = vmatprep.subr.bf16.mxu0 0
        %1481 = vmatpush1.bf16.msra.mxu0 0
        %1482 = vmatprep.mubr.bf16.mxu0 0
        %1483 = vmatmul.mubr.bf16.gmra.mrb[0].mxu0 %v888
        %v1484 = vpop.f32.mrb[0].mxu0
        %v1485 = vadd.f32 0.0, %v1484
        %v1486 = vpop.f32.mrb[0].mxu0
        %v1487 = vpop.f32.mrb[0].mxu0
        %v1488 = vadd.f32 0.0, %v1487
        %v1489 = vpop.f32.mrb[0].mxu0
        %1490 = vdwg.mxu0
        %v1491 = vadd.f32 %v1401, %v1442
        %v1492 = vadd.f32 %v1402, %v1444
        %v1493 = vadd.f32 %v1404, %v1446
        %v1494 = vadd.f32 %v1405, %v1448
        %v1495 = vxor.u32 %v1491, 2147483648
        %v1496 = vxor.u32 %v1492, 2147483648
        %v1497 = vxor.u32 %v1493, 2147483648
        %v1498 = vxor.u32 %v1494, 2147483648
        %v1499 = vmul.f32 %v1495, 1.442695
        %v1500 = vpow.pop %v1499
        %v1501 = vmul.f32 %v1496, 1.442695
        %v1502 = vpow.pop %v1501
        %v1503 = vmul.f32 %v1497, 1.442695
        %v1504 = vpow.pop %v1503
        %v1505 = vmul.f32 %v1498, 1.442695
        %v1506 = vpow.pop %v1505
        %v1507 = vadd.f32 %v1500, 1.0
        %v1508 = vadd.f32 %v1502, 1.0
        %v1509 = vadd.f32 %v1504, 1.0
        %v1510 = vadd.f32 %v1506, 1.0
        %v1511 = vrcp.pop %v1507
        %v1512 = vmul.f32 1.0, %v1511
        %v1513 = vrcp.pop %v1508
        %v1514 = vmul.f32 1.0, %v1513
        %v1515 = vrcp.pop %v1509
        %v1516 = vmul.f32 1.0, %v1515
        %v1517 = vrcp.pop %v1510
        %v1518 = vmul.f32 1.0, %v1517
        %v1519 = vadd.f32 %v1485, %v866
        %v1520 = vadd.f32 %v1488, %v866
        %v1521 = vmul.f32 %v1512, %v1519
        %v1522 = vmul.f32 %v1516, %v1520
        %v1523 = vadd.f32 %v1403, %v1521
        %v1524 = vadd.f32 %v1406, %v1522
        %v1525 = vtanh.pop %v1523
        %v1526 = vtanh.pop %v1524
        %v1527 = vsub.f32 %v886, %v1525
        %v1528 = vsub.f32 %v887, %v1526
        %v1529 = vmul.f32 %v1514, %v1527
        %v1530 = vmul.f32 %v1518, %v1528
        %v1531 = vadd.f32 %v1525, %v1529
        %v1532 = vadd.f32 %v1526, %v1530
        %s1533 = sadd.s32 %s583, 1
        %p1534 = scmp.lt.s32.totalorder %s1533, 18
        %s1535 = scalar_select %p1534, 1, 0
        %v1536 = vstv %s1535
        %vm1537 = vcmp.eq.s32.totalorder %v1536, 1
        %v1538 = vsel %vm1537, %v1531, %v886
        %v1539 = vsel %vm1537, %v1532, %v887
        %v1540 = vpack.c.bf16 %v1539, %v1538
        %1541 = vmatprep.subr.bf16.mxu0 %v971
        %1542 = vmatpush1.bf16.msra.mxu0 %v970
        %1543 = vmatprep.subr.bf16.mxu0 %v974
        %1544 = vmatpush1.bf16.msra.mxu0 %v973
        %1545 = vmatprep.subr.bf16.mxu0 %v977
        %1546 = vmatpush1.bf16.msra.mxu0 %v976
        %1547 = vmatprep.subr.bf16.mxu0 %v980
        %1548 = vmatpush1.bf16.msra.mxu0 %v979
        %1549 = vmatprep.subr.bf16.mxu0 %v983
        %1550 = vmatpush1.bf16.msra.mxu0 %v982
        %1551 = vmatprep.subr.bf16.mxu0 %v986
        %1552 = vmatpush1.bf16.msra.mxu0 %v985
        %1553 = vmatprep.subr.bf16.mxu0 %v989
        %1554 = vmatpush1.bf16.msra.mxu0 %v988
        %1555 = vmatprep.subr.bf16.mxu0 %v992
        %1556 = vmatpush1.bf16.msra.mxu0 %v991
        %1557 = vmatprep.subr.bf16.mxu0 0
        %1558 = vmatpush1.bf16.msra.mxu0 0
        %1559 = vmatprep.subr.bf16.mxu0 0
        %1560 = vmatpush1.bf16.msra.mxu0 0
        %1561 = vmatprep.subr.bf16.mxu0 0
        %1562 = vmatpush1.bf16.msra.mxu0 0
        %1563 = vmatprep.subr.bf16.mxu0 0
        %1564 = vmatpush1.bf16.msra.mxu0 0
        %1565 = vmatprep.subr.bf16.mxu0 0
        %1566 = vmatpush1.bf16.msra.mxu0 0
        %1567 = vmatprep.subr.bf16.mxu0 0
        %1568 = vmatpush1.bf16.msra.mxu0 0
        %1569 = vmatprep.subr.bf16.mxu0 0
        %1570 = vmatpush1.bf16.msra.mxu0 0
        %1571 = vmatprep.subr.bf16.mxu0 0
        %1572 = vmatpush1.bf16.msra.mxu0 0
        %1573 = vmatprep.mubr.bf16.mxu0 0
        %1574 = vmatmul.mubr.bf16.gmra.mrb[0].mxu0 %v1380
        %v1575 = vpop.f32.mrb[0].mxu0
        %v1576 = vadd.f32 0.0, %v1575
        %v1577 = vpop.f32.mrb[0].mxu0
        %v1578 = vadd.f32 0.0, %v1577
        %v1579 = vpop.f32.mrb[0].mxu0
        %v1580 = vadd.f32 0.0, %v1579
        %v1581 = vpop.f32.mrb[0].mxu0
        %v1582 = vadd.f32 0.0, %v1581
        %1583 = vdwg.mxu0
        %1584 = vmatprep.subr.bf16.mxu0 0
        %1585 = vmatpush1.bf16.msra.mxu0 %v972
        %1586 = vmatprep.subr.bf16.mxu0 0
        %1587 = vmatpush1.bf16.msra.mxu0 %v975
        %1588 = vmatprep.subr.bf16.mxu0 0
        %1589 = vmatpush1.bf16.msra.mxu0 %v978
        %1590 = vmatprep.subr.bf16.mxu0 0
        %1591 = vmatpush1.bf16.msra.mxu0 %v981
        %1592 = vmatprep.subr.bf16.mxu0 0
        %1593 = vmatpush1.bf16.msra.mxu0 %v984
        %1594 = vmatprep.subr.bf16.mxu0 0
        %1595 = vmatpush1.bf16.msra.mxu0 %v987
        %1596 = vmatprep.subr.bf16.mxu0 0
        %1597 = vmatpush1.bf16.msra.mxu0 %v990
        %1598 = vmatprep.subr.bf16.mxu0 0
        %1599 = vmatpush1.bf16.msra.mxu0 %v993
        %1600 = vmatprep.subr.bf16.mxu0 0
        %1601 = vmatpush1.bf16.msra.mxu0 0
        %1602 = vmatprep.subr.bf16.mxu0 0
        %1603 = vmatpush1.bf16.msra.mxu0 0
        %1604 = vmatprep.subr.bf16.mxu0 0
        %1605 = vmatpush1.bf16.msra.mxu0 0
        %1606 = vmatprep.subr.bf16.mxu0 0
        %1607 = vmatpush1.bf16.msra.mxu0 0
        %1608 = vmatprep.subr.bf16.mxu0 0
        %1609 = vmatpush1.bf16.msra.mxu0 0
        %1610 = vmatprep.subr.bf16.mxu0 0
        %1611 = vmatpush1.bf16.msra.mxu0 0
        %1612 = vmatprep.subr.bf16.mxu0 0
        %1613 = vmatpush1.bf16.msra.mxu0 0
        %1614 = vmatprep.subr.bf16.mxu0 0
        %1615 = vmatpush1.bf16.msra.mxu0 0
        %1616 = vmatprep.mubr.bf16.mxu0 0
        %1617 = vmatmul.mubr.bf16.gmra.mrb[0].mxu0 %v1380
        %v1618 = vpop.f32.mrb[0].mxu0
        %v1619 = vadd.f32 0.0, %v1618
        %v1620 = vpop.f32.mrb[0].mxu0
        %v1621 = vpop.f32.mrb[0].mxu0
        %v1622 = vadd.f32 0.0, %v1621
        %v1623 = vpop.f32.mrb[0].mxu0
        %1624 = vdwg.mxu0
        %1625 = vmatprep.subr.bf16.mxu0 %v1199
        %1626 = vmatpush1.bf16.msra.mxu0 %v1198
        %1627 = vmatprep.subr.bf16.mxu0 %v1202
        %1628 = vmatpush1.bf16.msra.mxu0 %v1201
        %1629 = vmatprep.subr.bf16.mxu0 %v1205
        %1630 = vmatpush1.bf16.msra.mxu0 %v1204
        %1631 = vmatprep.subr.bf16.mxu0 %v1208
        %1632 = vmatpush1.bf16.msra.mxu0 %v1207
        %1633 = vmatprep.subr.bf16.mxu0 %v1211
        %1634 = vmatpush1.bf16.msra.mxu0 %v1210
        %1635 = vmatprep.subr.bf16.mxu0 %v1214
        %1636 = vmatpush1.bf16.msra.mxu0 %v1213
        %1637 = vmatprep.subr.bf16.mxu0 %v1217
        %1638 = vmatpush1.bf16.msra.mxu0 %v1216
        %1639 = vmatprep.subr.bf16.mxu0 %v1220
        %1640 = vmatpush1.bf16.msra.mxu0 %v1219
        %1641 = vmatprep.subr.bf16.mxu0 0
        %1642 = vmatpush1.bf16.msra.mxu0 0
        %1643 = vmatprep.subr.bf16.mxu0 0
        %1644 = vmatpush1.bf16.msra.mxu0 0
        %1645 = vmatprep.subr.bf16.mxu0 0
        %1646 = vmatpush1.bf16.msra.mxu0 0
        %1647 = vmatprep.subr.bf16.mxu0 0
        %1648 = vmatpush1.bf16.msra.mxu0 0
        %1649 = vmatprep.subr.bf16.mxu0 0
        %1650 = vmatpush1.bf16.msra.mxu0 0
        %1651 = vmatprep.subr.bf16.mxu0 0
        %1652 = vmatpush1.bf16.msra.mxu0 0
        %1653 = vmatprep.subr.bf16.mxu0 0
        %1654 = vmatpush1.bf16.msra.mxu0 0
        %1655 = vmatprep.subr.bf16.mxu0 0
        %1656 = vmatpush1.bf16.msra.mxu0 0
        %1657 = vmatprep.mubr.bf16.mxu0 0
        %1658 = vmatmul.mubr.bf16.gmra.mrb[0].mxu0 %v1540
        %v1659 = vpop.f32.mrb[0].mxu0
        %v1660 = vadd.f32 %v1106, %v1659
        %v1661 = vpop.f32.mrb[0].mxu0
        %v1662 = vadd.f32 %v1110, %v1661
        %v1663 = vpop.f32.mrb[0].mxu0
        %v1664 = vadd.f32 %v1106, %v1663
        %v1665 = vpop.f32.mrb[0].mxu0
        %v1666 = vadd.f32 %v1110, %v1665
        %1667 = vdwg.mxu0
        %1668 = vmatprep.subr.bf16.mxu0 0
        %1669 = vmatpush1.bf16.msra.mxu0 %v1200
        %1670 = vmatprep.subr.bf16.mxu0 0
        %1671 = vmatpush1.bf16.msra.mxu0 %v1203
        %1672 = vmatprep.subr.bf16.mxu0 0
        %1673 = vmatpush1.bf16.msra.mxu0 %v1206
        %1674 = vmatprep.subr.bf16.mxu0 0
        %1675 = vmatpush1.bf16.msra.mxu0 %v1209
        %1676 = vmatprep.subr.bf16.mxu0 0
        %1677 = vmatpush1.bf16.msra.mxu0 %v1212
        %1678 = vmatprep.subr.bf16.mxu0 0
        %1679 = vmatpush1.bf16.msra.mxu0 %v1215
        %1680 = vmatprep.subr.bf16.mxu0 0
        %1681 = vmatpush1.bf16.msra.mxu0 %v1218
        %1682 = vmatprep.subr.bf16.mxu0 0
        %1683 = vmatpush1.bf16.msra.mxu0 %v1221
        %1684 = vmatprep.subr.bf16.mxu0 0
        %1685 = vmatpush1.bf16.msra.mxu0 0
        %1686 = vmatprep.subr.bf16.mxu0 0
        %1687 = vmatpush1.bf16.msra.mxu0 0
        %1688 = vmatprep.subr.bf16.mxu0 0
        %1689 = vmatpush1.bf16.msra.mxu0 0
        %1690 = vmatprep.subr.bf16.mxu0 0
        %1691 = vmatpush1.bf16.msra.mxu0 0
        %1692 = vmatprep.subr.bf16.mxu0 0
        %1693 = vmatpush1.bf16.msra.mxu0 0
        %1694 = vmatprep.subr.bf16.mxu0 0
        %1695 = vmatpush1.bf16.msra.mxu0 0
        %1696 = vmatprep.subr.bf16.mxu0 0
        %1697 = vmatpush1.bf16.msra.mxu0 0
        %1698 = vmatprep.subr.bf16.mxu0 0
        %1699 = vmatpush1.bf16.msra.mxu0 0
        %1700 = vmatprep.mubr.bf16.mxu0 0
        %1701 = vmatmul.mubr.bf16.gmra.mrb[0].mxu0 %v1540
        %v1702 = vpop.f32.mrb[0].mxu0
        %v1703 = vadd.f32 %v1114, %v1702
        %v1704 = vpop.f32.mrb[0].mxu0
        %v1705 = vpop.f32.mrb[0].mxu0
        %v1706 = vadd.f32 %v1114, %v1705
        %v1707 = vpop.f32.mrb[0].mxu0
        %1708 = vdwg.mxu0
        %v1709 = vadd.f32 %v1660, %v1576
        %v1710 = vadd.f32 %v1662, %v1578
        %v1711 = vadd.f32 %v1664, %v1580
        %v1712 = vadd.f32 %v1666, %v1582
        %v1713 = vxor.u32 %v1709, 2147483648
        %v1714 = vxor.u32 %v1710, 2147483648
        %v1715 = vxor.u32 %v1711, 2147483648
        %v1716 = vxor.u32 %v1712, 2147483648
        %v1717 = vmul.f32 %v1713, 1.442695
        %v1718 = vpow.pop %v1717
        %v1719 = vmul.f32 %v1714, 1.442695
        %v1720 = vpow.pop %v1719
        %v1721 = vmul.f32 %v1715, 1.442695
        %v1722 = vpow.pop %v1721
        %v1723 = vmul.f32 %v1716, 1.442695
        %v1724 = vpow.pop %v1723
        %v1725 = vadd.f32 %v1718, 1.0
        %v1726 = vadd.f32 %v1720, 1.0
        %v1727 = vadd.f32 %v1722, 1.0
        %v1728 = vadd.f32 %v1724, 1.0
        %v1729 = vrcp.pop %v1725
        %v1730 = vmul.f32 1.0, %v1729
        %v1731 = vrcp.pop %v1726
        %v1732 = vmul.f32 1.0, %v1731
        %v1733 = vrcp.pop %v1727
        %v1734 = vmul.f32 1.0, %v1733
        %v1735 = vrcp.pop %v1728
        %v1736 = vmul.f32 1.0, %v1735
        %v1737 = vadd.f32 %v1619, %v1362
        %v1738 = vadd.f32 %v1622, %v1362
        %v1739 = vmul.f32 %v1730, %v1737
        %v1740 = vmul.f32 %v1734, %v1738
        %v1741 = vadd.f32 %v1703, %v1739
        %v1742 = vadd.f32 %v1706, %v1740
        %v1743 = vtanh.pop %v1741
        %v1744 = vtanh.pop %v1742
        %v1745 = vsub.f32 %v1378, %v1743
        %v1746 = vsub.f32 %v1379, %v1744
        %v1747 = vmul.f32 %v1732, %v1745
        %v1748 = vmul.f32 %v1736, %v1746
        %v1749 = vadd.f32 %v1743, %v1747
        %v1750 = vadd.f32 %v1744, %v1748
        %v1751 = vsel %vm1537, %v1749, %v1378
        %v1752 = vsel %vm1537, %v1750, %v1379
        %v1753 = vpack.c.bf16 %v1752, %v1751
        %v1755 = vunpack.c.l.b16 %v1753
        %v1756 = vunpack.c.h.b16 %v1753
        %v1757 = vpack.c.b16 %v1755, %v1755
        %v1758 = vpack.c.b16 %v1756, %v1756
        %s1761 = scalar_lea.vmem %s466, 8 [#allocation16]
        %1762 = vst [vmem:[%s1761] sm:$0xf] %v1757
        %1763 = vst [vmem:[%s1761 + $0x4] sm:$0xf] %v1758
        %s1764 = scalar_lea.vmem %s406, 48 [#allocation2]
        %v1765 = vld [vmem:[%s1764] sm:$0xff]
        %v1766 = vld [vmem:[%s1764 + $0x8] sm:$0xf]
        %v1767 = vld [vmem:[%s1764 + $0xc] sm:$0xff]
        %v1768 = vld [vmem:[%s1764 + $0x14] sm:$0xf]
        %v1769 = vunpack.c.l.bf16 %v1765
        %v1770 = vunpack.c.h.bf16 %v1765
        %v1771 = vunpack.c.l.bf16 %v1766
        %v1772 = vunpack.c.l.bf16 %v1767
        %v1773 = vunpack.c.h.bf16 %v1767
        %v1774 = vunpack.c.l.bf16 %v1768
        %v1775 = vadd.f32 %v1769, %v603
        %v1776 = vadd.f32 %v1770, %v607
        %v1777 = vadd.f32 %v1771, %v611
        %v1778 = vadd.f32 %v1772, %v603
        %v1779 = vadd.f32 %v1773, %v607
        %v1780 = vadd.f32 %v1774, %v611
        %1781 = vmatprep.subr.bf16.mxu0 %v703
        %1782 = vmatpush1.bf16.msra.mxu0 %v702
        %1783 = vmatprep.subr.bf16.mxu0 %v706
        %1784 = vmatpush1.bf16.msra.mxu0 %v705
        %1785 = vmatprep.subr.bf16.mxu0 %v709
        %1786 = vmatpush1.bf16.msra.mxu0 %v708
        %1787 = vmatprep.subr.bf16.mxu0 %v712
        %1788 = vmatpush1.bf16.msra.mxu0 %v711
        %1789 = vmatprep.subr.bf16.mxu0 %v715
        %1790 = vmatpush1.bf16.msra.mxu0 %v714
        %1791 = vmatprep.subr.bf16.mxu0 %v718
        %1792 = vmatpush1.bf16.msra.mxu0 %v717
        %1793 = vmatprep.subr.bf16.mxu0 %v721
        %1794 = vmatpush1.bf16.msra.mxu0 %v720
        %1795 = vmatprep.subr.bf16.mxu0 %v724
        %1796 = vmatpush1.bf16.msra.mxu0 %v723
        %1797 = vmatprep.subr.bf16.mxu0 0
        %1798 = vmatpush1.bf16.msra.mxu0 0
        %1799 = vmatprep.subr.bf16.mxu0 0
        %1800 = vmatpush1.bf16.msra.mxu0 0
        %1801 = vmatprep.subr.bf16.mxu0 0
        %1802 = vmatpush1.bf16.msra.mxu0 0
        %1803 = vmatprep.subr.bf16.mxu0 0
        %1804 = vmatpush1.bf16.msra.mxu0 0
        %1805 = vmatprep.subr.bf16.mxu0 0
        %1806 = vmatpush1.bf16.msra.mxu0 0
        %1807 = vmatprep.subr.bf16.mxu0 0
        %1808 = vmatpush1.bf16.msra.mxu0 0
        %1809 = vmatprep.subr.bf16.mxu0 0
        %1810 = vmatpush1.bf16.msra.mxu0 0
        %1811 = vmatprep.subr.bf16.mxu0 0
        %1812 = vmatpush1.bf16.msra.mxu0 0
        %1813 = vmatprep.mubr.bf16.mxu0 0
        %1814 = vmatmul.mubr.bf16.gmra.mrb[0].mxu0 %v1540
        %v1815 = vpop.f32.mrb[0].mxu0
        %v1816 = vadd.f32 0.0, %v1815
        %v1817 = vpop.f32.mrb[0].mxu0
        %v1818 = vadd.f32 0.0, %v1817
        %v1819 = vpop.f32.mrb[0].mxu0
        %v1820 = vadd.f32 0.0, %v1819
        %v1821 = vpop.f32.mrb[0].mxu0
        %v1822 = vadd.f32 0.0, %v1821
        %1823 = vdwg.mxu0
        %1824 = vmatprep.subr.bf16.mxu0 0
        %1825 = vmatpush1.bf16.msra.mxu0 %v704
        %1826 = vmatprep.subr.bf16.mxu0 0
        %1827 = vmatpush1.bf16.msra.mxu0 %v707
        %1828 = vmatprep.subr.bf16.mxu0 0
        %1829 = vmatpush1.bf16.msra.mxu0 %v710
        %1830 = vmatprep.subr.bf16.mxu0 0
        %1831 = vmatpush1.bf16.msra.mxu0 %v713
        %1832 = vmatprep.subr.bf16.mxu0 0
        %1833 = vmatpush1.bf16.msra.mxu0 %v716
        %1834 = vmatprep.subr.bf16.mxu0 0
        %1835 = vmatpush1.bf16.msra.mxu0 %v719
        %1836 = vmatprep.subr.bf16.mxu0 0
        %1837 = vmatpush1.bf16.msra.mxu0 %v722
        %1838 = vmatprep.subr.bf16.mxu0 0
        %1839 = vmatpush1.bf16.msra.mxu0 %v725
        %1840 = vmatprep.subr.bf16.mxu0 0
        %1841 = vmatpush1.bf16.msra.mxu0 0
        %1842 = vmatprep.subr.bf16.mxu0 0
        %1843 = vmatpush1.bf16.msra.mxu0 0
        %1844 = vmatprep.subr.bf16.mxu0 0
        %1845 = vmatpush1.bf16.msra.mxu0 0
        %1846 = vmatprep.subr.bf16.mxu0 0
        %1847 = vmatpush1.bf16.msra.mxu0 0
        %1848 = vmatprep.subr.bf16.mxu0 0
        %1849 = vmatpush1.bf16.msra.mxu0 0
        %1850 = vmatprep.subr.bf16.mxu0 0
        %1851 = vmatpush1.bf16.msra.mxu0 0
        %1852 = vmatprep.subr.bf16.mxu0 0
        %1853 = vmatpush1.bf16.msra.mxu0 0
        %1854 = vmatprep.subr.bf16.mxu0 0
        %1855 = vmatpush1.bf16.msra.mxu0 0
        %1856 = vmatprep.mubr.bf16.mxu0 0
        %1857 = vmatmul.mubr.bf16.gmra.mrb[0].mxu0 %v1540
        %v1858 = vpop.f32.mrb[0].mxu0
        %v1859 = vadd.f32 0.0, %v1858
        %v1860 = vpop.f32.mrb[0].mxu0
        %v1861 = vpop.f32.mrb[0].mxu0
        %v1862 = vadd.f32 0.0, %v1861
        %v1863 = vpop.f32.mrb[0].mxu0
        %1864 = vdwg.mxu0
        %v1865 = vadd.f32 %v1775, %v1816
        %v1866 = vadd.f32 %v1776, %v1818
        %v1867 = vadd.f32 %v1778, %v1820
        %v1868 = vadd.f32 %v1779, %v1822
        %v1869 = vxor.u32 %v1865, 2147483648
        %v1870 = vxor.u32 %v1866, 2147483648
        %v1871 = vxor.u32 %v1867, 2147483648
        %v1872 = vxor.u32 %v1868, 2147483648
        %v1873 = vmul.f32 %v1869, 1.442695
        %v1874 = vpow.pop %v1873
        %v1875 = vmul.f32 %v1870, 1.442695
        %v1876 = vpow.pop %v1875
        %v1877 = vmul.f32 %v1871, 1.442695
        %v1878 = vpow.pop %v1877
        %v1879 = vmul.f32 %v1872, 1.442695
        %v1880 = vpow.pop %v1879
        %v1881 = vadd.f32 %v1874, 1.0
        %v1882 = vadd.f32 %v1876, 1.0
        %v1883 = vadd.f32 %v1878, 1.0
        %v1884 = vadd.f32 %v1880, 1.0
        %v1885 = vrcp.pop %v1881
        %v1886 = vmul.f32 1.0, %v1885
        %v1887 = vrcp.pop %v1882
        %v1888 = vmul.f32 1.0, %v1887
        %v1889 = vrcp.pop %v1883
        %v1890 = vmul.f32 1.0, %v1889
        %v1891 = vrcp.pop %v1884
        %v1892 = vmul.f32 1.0, %v1891
        %v1893 = vadd.f32 %v1859, %v866
        %v1894 = vadd.f32 %v1862, %v866
        %v1895 = vmul.f32 %v1886, %v1893
        %v1896 = vmul.f32 %v1890, %v1894
        %v1897 = vadd.f32 %v1777, %v1895
        %v1898 = vadd.f32 %v1780, %v1896
        %v1899 = vtanh.pop %v1897
        %v1900 = vtanh.pop %v1898
        %v1901 = vsub.f32 %v1538, %v1899
        %v1902 = vsub.f32 %v1539, %v1900
        %v1903 = vmul.f32 %v1888, %v1901
        %v1904 = vmul.f32 %v1892, %v1902
        %v1905 = vadd.f32 %v1899, %v1903
        %v1906 = vadd.f32 %v1900, %v1904
        %s1907 = sadd.s32 %s583, 2
        %p1908 = scmp.lt.s32.totalorder %s1907, 18
        %s1909 = scalar_select %p1908, 1, 0
        %v1910 = vstv %s1909
        %vm1911 = vcmp.eq.s32.totalorder %v1910, 1
        %v1912 = vsel %vm1911, %v1905, %v1538
        %v1913 = vsel %vm1911, %v1906, %v1539
        %v1914 = vpack.c.bf16 %v1913, %v1912
        %1915 = vmatprep.subr.bf16.mxu0 %v971
        %1916 = vmatpush1.bf16.msra.mxu0 %v970
        %1917 = vmatprep.subr.bf16.mxu0 %v974
        %1918 = vmatpush1.bf16.msra.mxu0 %v973
        %1919 = vmatprep.subr.bf16.mxu0 %v977
        %1920 = vmatpush1.bf16.msra.mxu0 %v976
        %1921 = vmatprep.subr.bf16.mxu0 %v980
        %1922 = vmatpush1.bf16.msra.mxu0 %v979
        %1923 = vmatprep.subr.bf16.mxu0 %v983
        %1924 = vmatpush1.bf16.msra.mxu0 %v982
        %1925 = vmatprep.subr.bf16.mxu0 %v986
        %1926 = vmatpush1.bf16.msra.mxu0 %v985
        %1927 = vmatprep.subr.bf16.mxu0 %v989
        %1928 = vmatpush1.bf16.msra.mxu0 %v988
        %1929 = vmatprep.subr.bf16.mxu0 %v992
        %1930 = vmatpush1.bf16.msra.mxu0 %v991
        %1931 = vmatprep.subr.bf16.mxu0 0
        %1932 = vmatpush1.bf16.msra.mxu0 0
        %1933 = vmatprep.subr.bf16.mxu0 0
        %1934 = vmatpush1.bf16.msra.mxu0 0
        %1935 = vmatprep.subr.bf16.mxu0 0
        %1936 = vmatpush1.bf16.msra.mxu0 0
        %1937 = vmatprep.subr.bf16.mxu0 0
        %1938 = vmatpush1.bf16.msra.mxu0 0
        %1939 = vmatprep.subr.bf16.mxu0 0
        %1940 = vmatpush1.bf16.msra.mxu0 0
        %1941 = vmatprep.subr.bf16.mxu0 0
        %1942 = vmatpush1.bf16.msra.mxu0 0
        %1943 = vmatprep.subr.bf16.mxu0 0
        %1944 = vmatpush1.bf16.msra.mxu0 0
        %1945 = vmatprep.subr.bf16.mxu0 0
        %1946 = vmatpush1.bf16.msra.mxu0 0
        %1947 = vmatprep.mubr.bf16.mxu0 0
        %1948 = vmatmul.mubr.bf16.gmra.mrb[0].mxu0 %v1753
        %v1949 = vpop.f32.mrb[0].mxu0
        %v1950 = vadd.f32 0.0, %v1949
        %v1951 = vpop.f32.mrb[0].mxu0
        %v1952 = vadd.f32 0.0, %v1951
        %v1953 = vpop.f32.mrb[0].mxu0
        %v1954 = vadd.f32 0.0, %v1953
        %v1955 = vpop.f32.mrb[0].mxu0
        %v1956 = vadd.f32 0.0, %v1955
        %1957 = vdwg.mxu0
        %1958 = vmatprep.subr.bf16.mxu0 0
        %1959 = vmatpush1.bf16.msra.mxu0 %v972
        %1960 = vmatprep.subr.bf16.mxu0 0
        %1961 = vmatpush1.bf16.msra.mxu0 %v975
        %1962 = vmatprep.subr.bf16.mxu0 0
        %1963 = vmatpush1.bf16.msra.mxu0 %v978
        %1964 = vmatprep.subr.bf16.mxu0 0
        %1965 = vmatpush1.bf16.msra.mxu0 %v981
        %1966 = vmatprep.subr.bf16.mxu0 0
        %1967 = vmatpush1.bf16.msra.mxu0 %v984
        %1968 = vmatprep.subr.bf16.mxu0 0
        %1969 = vmatpush1.bf16.msra.mxu0 %v987
        %1970 = vmatprep.subr.bf16.mxu0 0
        %1971 = vmatpush1.bf16.msra.mxu0 %v990
        %1972 = vmatprep.subr.bf16.mxu0 0
        %1973 = vmatpush1.bf16.msra.mxu0 %v993
        %1974 = vmatprep.subr.bf16.mxu0 0
        %1975 = vmatpush1.bf16.msra.mxu0 0
        %1976 = vmatprep.subr.bf16.mxu0 0
        %1977 = vmatpush1.bf16.msra.mxu0 0
        %1978 = vmatprep.subr.bf16.mxu0 0
        %1979 = vmatpush1.bf16.msra.mxu0 0
        %1980 = vmatprep.subr.bf16.mxu0 0
        %1981 = vmatpush1.bf16.msra.mxu0 0
        %1982 = vmatprep.subr.bf16.mxu0 0
        %1983 = vmatpush1.bf16.msra.mxu0 0
        %1984 = vmatprep.subr.bf16.mxu0 0
        %1985 = vmatpush1.bf16.msra.mxu0 0
        %1986 = vmatprep.subr.bf16.mxu0 0
        %1987 = vmatpush1.bf16.msra.mxu0 0
        %1988 = vmatprep.subr.bf16.mxu0 0
        %1989 = vmatpush1.bf16.msra.mxu0 0
        %1990 = vmatprep.mubr.bf16.mxu0 0
        %1991 = vmatmul.mubr.bf16.gmra.mrb[0].mxu0 %v1753
        %v1992 = vpop.f32.mrb[0].mxu0
        %v1993 = vadd.f32 0.0, %v1992
        %v1994 = vpop.f32.mrb[0].mxu0
        %v1995 = vpop.f32.mrb[0].mxu0
        %v1996 = vadd.f32 0.0, %v1995
        %v1997 = vpop.f32.mrb[0].mxu0
        %1998 = vdwg.mxu0
        %1999 = vmatprep.subr.bf16.mxu0 %v1199
        %2000 = vmatpush1.bf16.msra.mxu0 %v1198
        %2001 = vmatprep.subr.bf16.mxu0 %v1202
        %2002 = vmatpush1.bf16.msra.mxu0 %v1201
        %2003 = vmatprep.subr.bf16.mxu0 %v1205
        %2004 = vmatpush1.bf16.msra.mxu0 %v1204
        %2005 = vmatprep.subr.bf16.mxu0 %v1208
        %2006 = vmatpush1.bf16.msra.mxu0 %v1207
        %2007 = vmatprep.subr.bf16.mxu0 %v1211
        %2008 = vmatpush1.bf16.msra.mxu0 %v1210
        %2009 = vmatprep.subr.bf16.mxu0 %v1214
        %2010 = vmatpush1.bf16.msra.mxu0 %v1213
        %2011 = vmatprep.subr.bf16.mxu0 %v1217
        %2012 = vmatpush1.bf16.msra.mxu0 %v1216
        %2013 = vmatprep.subr.bf16.mxu0 %v1220
        %2014 = vmatpush1.bf16.msra.mxu0 %v1219
        %2015 = vmatprep.subr.bf16.mxu0 0
        %2016 = vmatpush1.bf16.msra.mxu0 0
        %2017 = vmatprep.subr.bf16.mxu0 0
        %2018 = vmatpush1.bf16.msra.mxu0 0
        %2019 = vmatprep.subr.bf16.mxu0 0
        %2020 = vmatpush1.bf16.msra.mxu0 0
        %2021 = vmatprep.subr.bf16.mxu0 0
        %2022 = vmatpush1.bf16.msra.mxu0 0
        %2023 = vmatprep.subr.bf16.mxu0 0
        %2024 = vmatpush1.bf16.msra.mxu0 0
        %2025 = vmatprep.subr.bf16.mxu0 0
        %2026 = vmatpush1.bf16.msra.mxu0 0
        %2027 = vmatprep.subr.bf16.mxu0 0
        %2028 = vmatpush1.bf16.msra.mxu0 0
        %2029 = vmatprep.subr.bf16.mxu0 0
        %2030 = vmatpush1.bf16.msra.mxu0 0
        %2031 = vmatprep.mubr.bf16.mxu0 0
        %2032 = vmatmul.mubr.bf16.gmra.mrb[0].mxu0 %v1914
        %v2033 = vpop.f32.mrb[0].mxu0
        %v2034 = vadd.f32 %v1106, %v2033
        %v2035 = vpop.f32.mrb[0].mxu0
        %v2036 = vadd.f32 %v1110, %v2035
        %v2037 = vpop.f32.mrb[0].mxu0
        %v2038 = vadd.f32 %v1106, %v2037
        %v2039 = vpop.f32.mrb[0].mxu0
        %v2040 = vadd.f32 %v1110, %v2039
        %2041 = vdwg.mxu0
        %2042 = vmatprep.subr.bf16.mxu0 0
        %2043 = vmatpush1.bf16.msra.mxu0 %v1200
        %2044 = vmatprep.subr.bf16.mxu0 0
        %2045 = vmatpush1.bf16.msra.mxu0 %v1203
        %2046 = vmatprep.subr.bf16.mxu0 0
        %2047 = vmatpush1.bf16.msra.mxu0 %v1206
        %2048 = vmatprep.subr.bf16.mxu0 0
        %2049 = vmatpush1.bf16.msra.mxu0 %v1209
        %2050 = vmatprep.subr.bf16.mxu0 0
        %2051 = vmatpush1.bf16.msra.mxu0 %v1212
        %2052 = vmatprep.subr.bf16.mxu0 0
        %2053 = vmatpush1.bf16.msra.mxu0 %v1215
        %2054 = vmatprep.subr.bf16.mxu0 0
        %2055 = vmatpush1.bf16.msra.mxu0 %v1218
        %2056 = vmatprep.subr.bf16.mxu0 0
        %2057 = vmatpush1.bf16.msra.mxu0 %v1221
        %2058 = vmatprep.subr.bf16.mxu0 0
        %2059 = vmatpush1.bf16.msra.mxu0 0
        %2060 = vmatprep.subr.bf16.mxu0 0
        %2061 = vmatpush1.bf16.msra.mxu0 0
        %2062 = vmatprep.subr.bf16.mxu0 0
        %2063 = vmatpush1.bf16.msra.mxu0 0
        %2064 = vmatprep.subr.bf16.mxu0 0
        %2065 = vmatpush1.bf16.msra.mxu0 0
        %2066 = vmatprep.subr.bf16.mxu0 0
        %2067 = vmatpush1.bf16.msra.mxu0 0
        %2068 = vmatprep.subr.bf16.mxu0 0
        %2069 = vmatpush1.bf16.msra.mxu0 0
        %2070 = vmatprep.subr.bf16.mxu0 0
        %2071 = vmatpush1.bf16.msra.mxu0 0
        %2072 = vmatprep.subr.bf16.mxu0 0
        %2073 = vmatpush1.bf16.msra.mxu0 0
        %2074 = vmatprep.mubr.bf16.mxu0 0
        %2075 = vmatmul.mubr.bf16.gmra.mrb[0].mxu0 %v1914
        %v2076 = vpop.f32.mrb[0].mxu0
        %v2077 = vadd.f32 %v1114, %v2076
        %v2078 = vpop.f32.mrb[0].mxu0
        %v2079 = vpop.f32.mrb[0].mxu0
        %v2080 = vadd.f32 %v1114, %v2079
        %v2081 = vpop.f32.mrb[0].mxu0
        %2082 = vdwg.mxu0
        %v2083 = vadd.f32 %v2034, %v1950
        %v2084 = vadd.f32 %v2036, %v1952
        %v2085 = vadd.f32 %v2038, %v1954
        %v2086 = vadd.f32 %v2040, %v1956
        %v2087 = vxor.u32 %v2083, 2147483648
        %v2088 = vxor.u32 %v2084, 2147483648
        %v2089 = vxor.u32 %v2085, 2147483648
        %v2090 = vxor.u32 %v2086, 2147483648
        %v2091 = vmul.f32 %v2087, 1.442695
        %v2092 = vpow.pop %v2091
        %v2093 = vmul.f32 %v2088, 1.442695
        %v2094 = vpow.pop %v2093
        %v2095 = vmul.f32 %v2089, 1.442695
        %v2096 = vpow.pop %v2095
        %v2097 = vmul.f32 %v2090, 1.442695
        %v2098 = vpow.pop %v2097
        %v2099 = vadd.f32 %v2092, 1.0
        %v2100 = vadd.f32 %v2094, 1.0
        %v2101 = vadd.f32 %v2096, 1.0
        %v2102 = vadd.f32 %v2098, 1.0
        %v2103 = vrcp.pop %v2099
        %v2104 = vmul.f32 1.0, %v2103
        %v2105 = vrcp.pop %v2100
        %v2106 = vmul.f32 1.0, %v2105
        %v2107 = vrcp.pop %v2101
        %v2108 = vmul.f32 1.0, %v2107
        %v2109 = vrcp.pop %v2102
        %v2110 = vmul.f32 1.0, %v2109
        %v2111 = vadd.f32 %v1993, %v1362
        %v2112 = vadd.f32 %v1996, %v1362
        %v2113 = vmul.f32 %v2104, %v2111
        %v2114 = vmul.f32 %v2108, %v2112
        %v2115 = vadd.f32 %v2077, %v2113
        %v2116 = vadd.f32 %v2080, %v2114
        %v2117 = vtanh.pop %v2115
        %v2118 = vtanh.pop %v2116
        %v2119 = vsub.f32 %v1751, %v2117
        %v2120 = vsub.f32 %v1752, %v2118
        %v2121 = vmul.f32 %v2106, %v2119
        %v2122 = vmul.f32 %v2110, %v2120
        %v2123 = vadd.f32 %v2117, %v2121
        %v2124 = vadd.f32 %v2118, %v2122
        %v2125 = vsel %vm1911, %v2123, %v1751
        %v2126 = vsel %vm1911, %v2124, %v1752
        %v2127 = vpack.c.bf16 %v2126, %v2125
        %v2129 = vunpack.c.l.b16 %v2127
        %v2130 = vunpack.c.h.b16 %v2127
        %v2131 = vpack.c.b16 %v2129, %v2129
        %v2132 = vpack.c.b16 %v2130, %v2130
        %s2135 = scalar_lea.vmem %s466, 16 [#allocation16]
        %2136 = vst [vmem:[%s2135] sm:$0xf] %v2131
        %2137 = vst [vmem:[%s2135 + $0x4] sm:$0xf] %v2132
        %s2138 = scalar_lea.vmem %s406, 72 [#allocation2]
        %v2139 = vld [vmem:[%s2138] sm:$0xff]
        %v2140 = vld [vmem:[%s2138 + $0x8] sm:$0xf]
        %v2141 = vld [vmem:[%s2138 + $0xc] sm:$0xff]
        %v2142 = vld [vmem:[%s2138 + $0x14] sm:$0xf]
        %v2143 = vunpack.c.l.bf16 %v2139
        %v2144 = vunpack.c.h.bf16 %v2139
        %v2145 = vunpack.c.l.bf16 %v2140
        %v2146 = vunpack.c.l.bf16 %v2141
        %v2147 = vunpack.c.h.bf16 %v2141
        %v2148 = vunpack.c.l.bf16 %v2142
        %v2149 = vadd.f32 %v2143, %v603
        %v2150 = vadd.f32 %v2144, %v607
        %v2151 = vadd.f32 %v2145, %v611
        %v2152 = vadd.f32 %v2146, %v603
        %v2153 = vadd.f32 %v2147, %v607
        %v2154 = vadd.f32 %v2148, %v611
        %2155 = vmatprep.subr.bf16.mxu0 %v703
        %2156 = vmatpush1.bf16.msra.mxu0 %v702
        %2157 = vmatprep.subr.bf16.mxu0 %v706
        %2158 = vmatpush1.bf16.msra.mxu0 %v705
        %2159 = vmatprep.subr.bf16.mxu0 %v709
        %2160 = vmatpush1.bf16.msra.mxu0 %v708
        %2161 = vmatprep.subr.bf16.mxu0 %v712
        %2162 = vmatpush1.bf16.msra.mxu0 %v711
        %2163 = vmatprep.subr.bf16.mxu0 %v715
        %2164 = vmatpush1.bf16.msra.mxu0 %v714
        %2165 = vmatprep.subr.bf16.mxu0 %v718
        %2166 = vmatpush1.bf16.msra.mxu0 %v717
        %2167 = vmatprep.subr.bf16.mxu0 %v721
        %2168 = vmatpush1.bf16.msra.mxu0 %v720
        %2169 = vmatprep.subr.bf16.mxu0 %v724
        %2170 = vmatpush1.bf16.msra.mxu0 %v723
        %2171 = vmatprep.subr.bf16.mxu0 0
        %2172 = vmatpush1.bf16.msra.mxu0 0
        %2173 = vmatprep.subr.bf16.mxu0 0
        %2174 = vmatpush1.bf16.msra.mxu0 0
        %2175 = vmatprep.subr.bf16.mxu0 0
        %2176 = vmatpush1.bf16.msra.mxu0 0
        %2177 = vmatprep.subr.bf16.mxu0 0
        %2178 = vmatpush1.bf16.msra.mxu0 0
        %2179 = vmatprep.subr.bf16.mxu0 0
        %2180 = vmatpush1.bf16.msra.mxu0 0
        %2181 = vmatprep.subr.bf16.mxu0 0
        %2182 = vmatpush1.bf16.msra.mxu0 0
        %2183 = vmatprep.subr.bf16.mxu0 0
        %2184 = vmatpush1.bf16.msra.mxu0 0
        %2185 = vmatprep.subr.bf16.mxu0 0
        %2186 = vmatpush1.bf16.msra.mxu0 0
        %2187 = vmatprep.mubr.bf16.mxu0 0
        %2188 = vmatmul.mubr.bf16.gmra.mrb[0].mxu0 %v1914
        %v2189 = vpop.f32.mrb[0].mxu0
        %v2190 = vadd.f32 0.0, %v2189
        %v2191 = vpop.f32.mrb[0].mxu0
        %v2192 = vadd.f32 0.0, %v2191
        %v2193 = vpop.f32.mrb[0].mxu0
        %v2194 = vadd.f32 0.0, %v2193
        %v2195 = vpop.f32.mrb[0].mxu0
        %v2196 = vadd.f32 0.0, %v2195
        %2197 = vdwg.mxu0
        %2198 = vmatprep.subr.bf16.mxu0 0
        %2199 = vmatpush1.bf16.msra.mxu0 %v704
        %2200 = vmatprep.subr.bf16.mxu0 0
        %2201 = vmatpush1.bf16.msra.mxu0 %v707
        %2202 = vmatprep.subr.bf16.mxu0 0
        %2203 = vmatpush1.bf16.msra.mxu0 %v710
        %2204 = vmatprep.subr.bf16.mxu0 0
        %2205 = vmatpush1.bf16.msra.mxu0 %v713
        %2206 = vmatprep.subr.bf16.mxu0 0
        %2207 = vmatpush1.bf16.msra.mxu0 %v716
        %2208 = vmatprep.subr.bf16.mxu0 0
        %2209 = vmatpush1.bf16.msra.mxu0 %v719
        %2210 = vmatprep.subr.bf16.mxu0 0
        %2211 = vmatpush1.bf16.msra.mxu0 %v722
        %2212 = vmatprep.subr.bf16.mxu0 0
        %2213 = vmatpush1.bf16.msra.mxu0 %v725
        %2214 = vmatprep.subr.bf16.mxu0 0
        %2215 = vmatpush1.bf16.msra.mxu0 0
        %2216 = vmatprep.subr.bf16.mxu0 0
        %2217 = vmatpush1.bf16.msra.mxu0 0
        %2218 = vmatprep.subr.bf16.mxu0 0
        %2219 = vmatpush1.bf16.msra.mxu0 0
        %2220 = vmatprep.subr.bf16.mxu0 0
        %2221 = vmatpush1.bf16.msra.mxu0 0
        %2222 = vmatprep.subr.bf16.mxu0 0
        %2223 = vmatpush1.bf16.msra.mxu0 0
        %2224 = vmatprep.subr.bf16.mxu0 0
        %2225 = vmatpush1.bf16.msra.mxu0 0
        %2226 = vmatprep.subr.bf16.mxu0 0
        %2227 = vmatpush1.bf16.msra.mxu0 0
        %2228 = vmatprep.subr.bf16.mxu0 0
        %2229 = vmatpush1.bf16.msra.mxu0 0
        %2230 = vmatprep.mubr.bf16.mxu0 0
        %2231 = vmatmul.mubr.bf16.gmra.mrb[0].mxu0 %v1914
        %v2232 = vpop.f32.mrb[0].mxu0
        %v2233 = vadd.f32 0.0, %v2232
        %v2234 = vpop.f32.mrb[0].mxu0
        %v2235 = vpop.f32.mrb[0].mxu0
        %v2236 = vadd.f32 0.0, %v2235
        %v2237 = vpop.f32.mrb[0].mxu0
        %2238 = vdwg.mxu0
        %v2239 = vadd.f32 %v2149, %v2190
        %v2240 = vadd.f32 %v2150, %v2192
        %v2241 = vadd.f32 %v2152, %v2194
        %v2242 = vadd.f32 %v2153, %v2196
        %v2243 = vxor.u32 %v2239, 2147483648
        %v2244 = vxor.u32 %v2240, 2147483648
        %v2245 = vxor.u32 %v2241, 2147483648
        %v2246 = vxor.u32 %v2242, 2147483648
        %v2247 = vmul.f32 %v2243, 1.442695
        %v2248 = vpow.pop %v2247
        %v2249 = vmul.f32 %v2244, 1.442695
        %v2250 = vpow.pop %v2249
        %v2251 = vmul.f32 %v2245, 1.442695
        %v2252 = vpow.pop %v2251
        %v2253 = vmul.f32 %v2246, 1.442695
        %v2254 = vpow.pop %v2253
        %v2255 = vadd.f32 %v2248, 1.0
        %v2256 = vadd.f32 %v2250, 1.0
        %v2257 = vadd.f32 %v2252, 1.0
        %v2258 = vadd.f32 %v2254, 1.0
        %v2259 = vrcp.pop %v2255
        %v2260 = vmul.f32 1.0, %v2259
        %v2261 = vrcp.pop %v2256
        %v2262 = vmul.f32 1.0, %v2261
        %v2263 = vrcp.pop %v2257
        %v2264 = vmul.f32 1.0, %v2263
        %v2265 = vrcp.pop %v2258
        %v2266 = vmul.f32 1.0, %v2265
        %v2267 = vadd.f32 %v2233, %v866
        %v2268 = vadd.f32 %v2236, %v866
        %v2269 = vmul.f32 %v2260, %v2267
        %v2270 = vmul.f32 %v2264, %v2268
        %v2271 = vadd.f32 %v2151, %v2269
        %v2272 = vadd.f32 %v2154, %v2270
        %v2273 = vtanh.pop %v2271
        %v2274 = vtanh.pop %v2272
        %v2275 = vsub.f32 %v1912, %v2273
        %v2276 = vsub.f32 %v1913, %v2274
        %v2277 = vmul.f32 %v2262, %v2275
        %v2278 = vmul.f32 %v2266, %v2276
        %v2279 = vadd.f32 %v2273, %v2277
        %v2280 = vadd.f32 %v2274, %v2278
        %s2281 = sadd.s32 %s583, 3
        %p2282 = scmp.lt.s32.totalorder %s2281, 18
        %s2283 = scalar_select %p2282, 1, 0
        %v2284 = vstv %s2283
        %vm2285 = vcmp.eq.s32.totalorder %v2284, 1
        %v2286 = vsel %vm2285, %v2279, %v1912
        %v2287 = vsel %vm2285, %v2280, %v1913
        %v2288 = vpack.c.bf16 %v2287, %v2286
        %2289 = vmatprep.subr.bf16.mxu0 %v971
        %2290 = vmatpush1.bf16.msra.mxu0 %v970
        %2291 = vmatprep.subr.bf16.mxu0 %v974
        %2292 = vmatpush1.bf16.msra.mxu0 %v973
        %2293 = vmatprep.subr.bf16.mxu0 %v977
        %2294 = vmatpush1.bf16.msra.mxu0 %v976
        %2295 = vmatprep.subr.bf16.mxu0 %v980
        %2296 = vmatpush1.bf16.msra.mxu0 %v979
        %2297 = vmatprep.subr.bf16.mxu0 %v983
        %2298 = vmatpush1.bf16.msra.mxu0 %v982
        %2299 = vmatprep.subr.bf16.mxu0 %v986
        %2300 = vmatpush1.bf16.msra.mxu0 %v985
        %2301 = vmatprep.subr.bf16.mxu0 %v989
        %2302 = vmatpush1.bf16.msra.mxu0 %v988
        %2303 = vmatprep.subr.bf16.mxu0 %v992
        %2304 = vmatpush1.bf16.msra.mxu0 %v991
        %2305 = vmatprep.subr.bf16.mxu0 0
        %2306 = vmatpush1.bf16.msra.mxu0 0
        %2307 = vmatprep.subr.bf16.mxu0 0
        %2308 = vmatpush1.bf16.msra.mxu0 0
        %2309 = vmatprep.subr.bf16.mxu0 0
        %2310 = vmatpush1.bf16.msra.mxu0 0
        %2311 = vmatprep.subr.bf16.mxu0 0
        %2312 = vmatpush1.bf16.msra.mxu0 0
        %2313 = vmatprep.subr.bf16.mxu0 0
        %2314 = vmatpush1.bf16.msra.mxu0 0
        %2315 = vmatprep.subr.bf16.mxu0 0
        %2316 = vmatpush1.bf16.msra.mxu0 0
        %2317 = vmatprep.subr.bf16.mxu0 0
        %2318 = vmatpush1.bf16.msra.mxu0 0
        %2319 = vmatprep.subr.bf16.mxu0 0
        %2320 = vmatpush1.bf16.msra.mxu0 0
        %2321 = vmatprep.mubr.bf16.mxu0 0
        %2322 = vmatmul.mubr.bf16.gmra.mrb[0].mxu0 %v2127
        %v2323 = vpop.f32.mrb[0].mxu0
        %v2324 = vadd.f32 0.0, %v2323
        %v2325 = vpop.f32.mrb[0].mxu0
        %v2326 = vadd.f32 0.0, %v2325
        %v2327 = vpop.f32.mrb[0].mxu0
        %v2328 = vadd.f32 0.0, %v2327
        %v2329 = vpop.f32.mrb[0].mxu0
        %v2330 = vadd.f32 0.0, %v2329
        %2331 = vdwg.mxu0
        %2332 = vmatprep.subr.bf16.mxu0 0
        %2333 = vmatpush1.bf16.msra.mxu0 %v972
        %2334 = vmatprep.subr.bf16.mxu0 0
        %2335 = vmatpush1.bf16.msra.mxu0 %v975
        %2336 = vmatprep.subr.bf16.mxu0 0
        %2337 = vmatpush1.bf16.msra.mxu0 %v978
        %2338 = vmatprep.subr.bf16.mxu0 0
        %2339 = vmatpush1.bf16.msra.mxu0 %v981
        %2340 = vmatprep.subr.bf16.mxu0 0
        %2341 = vmatpush1.bf16.msra.mxu0 %v984
        %2342 = vmatprep.subr.bf16.mxu0 0
        %2343 = vmatpush1.bf16.msra.mxu0 %v987
        %2344 = vmatprep.subr.bf16.mxu0 0
        %2345 = vmatpush1.bf16.msra.mxu0 %v990
        %2346 = vmatprep.subr.bf16.mxu0 0
        %2347 = vmatpush1.bf16.msra.mxu0 %v993
        %2348 = vmatprep.subr.bf16.mxu0 0
        %2349 = vmatpush1.bf16.msra.mxu0 0
        %2350 = vmatprep.subr.bf16.mxu0 0
        %2351 = vmatpush1.bf16.msra.mxu0 0
        %2352 = vmatprep.subr.bf16.mxu0 0
        %2353 = vmatpush1.bf16.msra.mxu0 0
        %2354 = vmatprep.subr.bf16.mxu0 0
        %2355 = vmatpush1.bf16.msra.mxu0 0
        %2356 = vmatprep.subr.bf16.mxu0 0
        %2357 = vmatpush1.bf16.msra.mxu0 0
        %2358 = vmatprep.subr.bf16.mxu0 0
        %2359 = vmatpush1.bf16.msra.mxu0 0
        %2360 = vmatprep.subr.bf16.mxu0 0
        %2361 = vmatpush1.bf16.msra.mxu0 0
        %2362 = vmatprep.subr.bf16.mxu0 0
        %2363 = vmatpush1.bf16.msra.mxu0 0
        %2364 = vmatprep.mubr.bf16.mxu0 0
        %2365 = vmatmul.mubr.bf16.gmra.mrb[0].mxu0 %v2127
        %v2366 = vpop.f32.mrb[0].mxu0
        %v2367 = vadd.f32 0.0, %v2366
        %v2368 = vpop.f32.mrb[0].mxu0
        %v2369 = vpop.f32.mrb[0].mxu0
        %v2370 = vadd.f32 0.0, %v2369
        %v2371 = vpop.f32.mrb[0].mxu0
        %2372 = vdwg.mxu0
        %2373 = vmatprep.subr.bf16.mxu0 %v1199
        %2374 = vmatpush1.bf16.msra.mxu0 %v1198
        %2375 = vmatprep.subr.bf16.mxu0 %v1202
        %2376 = vmatpush1.bf16.msra.mxu0 %v1201
        %2377 = vmatprep.subr.bf16.mxu0 %v1205
        %2378 = vmatpush1.bf16.msra.mxu0 %v1204
        %2379 = vmatprep.subr.bf16.mxu0 %v1208
        %2380 = vmatpush1.bf16.msra.mxu0 %v1207
        %2381 = vmatprep.subr.bf16.mxu0 %v1211
        %2382 = vmatpush1.bf16.msra.mxu0 %v1210
        %2383 = vmatprep.subr.bf16.mxu0 %v1214
        %2384 = vmatpush1.bf16.msra.mxu0 %v1213
        %2385 = vmatprep.subr.bf16.mxu0 %v1217
        %2386 = vmatpush1.bf16.msra.mxu0 %v1216
        %2387 = vmatprep.subr.bf16.mxu0 %v1220
        %2388 = vmatpush1.bf16.msra.mxu0 %v1219
        %2389 = vmatprep.subr.bf16.mxu0 0
        %2390 = vmatpush1.bf16.msra.mxu0 0
        %2391 = vmatprep.subr.bf16.mxu0 0
        %2392 = vmatpush1.bf16.msra.mxu0 0
        %2393 = vmatprep.subr.bf16.mxu0 0
        %2394 = vmatpush1.bf16.msra.mxu0 0
        %2395 = vmatprep.subr.bf16.mxu0 0
        %2396 = vmatpush1.bf16.msra.mxu0 0
        %2397 = vmatprep.subr.bf16.mxu0 0
        %2398 = vmatpush1.bf16.msra.mxu0 0
        %2399 = vmatprep.subr.bf16.mxu0 0
        %2400 = vmatpush1.bf16.msra.mxu0 0
        %2401 = vmatprep.subr.bf16.mxu0 0
        %2402 = vmatpush1.bf16.msra.mxu0 0
        %2403 = vmatprep.subr.bf16.mxu0 0
        %2404 = vmatpush1.bf16.msra.mxu0 0
        %2405 = vmatprep.mubr.bf16.mxu0 0
        %2406 = vmatmul.mubr.bf16.gmra.mrb[0].mxu0 %v2288
        %v2407 = vpop.f32.mrb[0].mxu0
        %v2408 = vadd.f32 %v1106, %v2407
        %v2409 = vpop.f32.mrb[0].mxu0
        %v2410 = vadd.f32 %v1110, %v2409
        %v2411 = vpop.f32.mrb[0].mxu0
        %v2412 = vadd.f32 %v1106, %v2411
        %v2413 = vpop.f32.mrb[0].mxu0
        %v2414 = vadd.f32 %v1110, %v2413
        %2415 = vdwg.mxu0
        %2416 = vmatprep.subr.bf16.mxu0 0
        %2417 = vmatpush1.bf16.msra.mxu0 %v1200
        %2418 = vmatprep.subr.bf16.mxu0 0
        %2419 = vmatpush1.bf16.msra.mxu0 %v1203
        %2420 = vmatprep.subr.bf16.mxu0 0
        %2421 = vmatpush1.bf16.msra.mxu0 %v1206
        %2422 = vmatprep.subr.bf16.mxu0 0
        %2423 = vmatpush1.bf16.msra.mxu0 %v1209
        %2424 = vmatprep.subr.bf16.mxu0 0
        %2425 = vmatpush1.bf16.msra.mxu0 %v1212
        %2426 = vmatprep.subr.bf16.mxu0 0
        %2427 = vmatpush1.bf16.msra.mxu0 %v1215
        %2428 = vmatprep.subr.bf16.mxu0 0
        %2429 = vmatpush1.bf16.msra.mxu0 %v1218
        %2430 = vmatprep.subr.bf16.mxu0 0
        %2431 = vmatpush1.bf16.msra.mxu0 %v1221
        %2432 = vmatprep.subr.bf16.mxu0 0
        %2433 = vmatpush1.bf16.msra.mxu0 0
        %2434 = vmatprep.subr.bf16.mxu0 0
        %2435 = vmatpush1.bf16.msra.mxu0 0
        %2436 = vmatprep.subr.bf16.mxu0 0
        %2437 = vmatpush1.bf16.msra.mxu0 0
        %2438 = vmatprep.subr.bf16.mxu0 0
        %2439 = vmatpush1.bf16.msra.mxu0 0
        %2440 = vmatprep.subr.bf16.mxu0 0
        %2441 = vmatpush1.bf16.msra.mxu0 0
        %2442 = vmatprep.subr.bf16.mxu0 0
        %2443 = vmatpush1.bf16.msra.mxu0 0
        %2444 = vmatprep.subr.bf16.mxu0 0
        %2445 = vmatpush1.bf16.msra.mxu0 0
        %2446 = vmatprep.subr.bf16.mxu0 0
        %2447 = vmatpush1.bf16.msra.mxu0 0
        %2448 = vmatprep.mubr.bf16.mxu0 0
        %2449 = vmatmul.mubr.bf16.gmra.mrb[0].mxu0 %v2288
        %v2450 = vpop.f32.mrb[0].mxu0
        %v2451 = vadd.f32 %v1114, %v2450
        %v2452 = vpop.f32.mrb[0].mxu0
        %v2453 = vpop.f32.mrb[0].mxu0
        %v2454 = vadd.f32 %v1114, %v2453
        %v2455 = vpop.f32.mrb[0].mxu0
        %2456 = vdwg.mxu0
        %v2457 = vadd.f32 %v2408, %v2324
        %v2458 = vadd.f32 %v2410, %v2326
        %v2459 = vadd.f32 %v2412, %v2328
        %v2460 = vadd.f32 %v2414, %v2330
        %v2461 = vxor.u32 %v2457, 2147483648
        %v2462 = vxor.u32 %v2458, 2147483648
        %v2463 = vxor.u32 %v2459, 2147483648
        %v2464 = vxor.u32 %v2460, 2147483648
        %v2465 = vmul.f32 %v2461, 1.442695
        %v2466 = vpow.pop %v2465
        %v2467 = vmul.f32 %v2462, 1.442695
        %v2468 = vpow.pop %v2467
        %v2469 = vmul.f32 %v2463, 1.442695
        %v2470 = vpow.pop %v2469
        %v2471 = vmul.f32 %v2464, 1.442695
        %v2472 = vpow.pop %v2471
        %v2473 = vadd.f32 %v2466, 1.0
        %v2474 = vadd.f32 %v2468, 1.0
        %v2475 = vadd.f32 %v2470, 1.0
        %v2476 = vadd.f32 %v2472, 1.0
        %v2477 = vrcp.pop %v2473
        %v2478 = vmul.f32 1.0, %v2477
        %v2479 = vrcp.pop %v2474
        %v2480 = vmul.f32 1.0, %v2479
        %v2481 = vrcp.pop %v2475
        %v2482 = vmul.f32 1.0, %v2481
        %v2483 = vrcp.pop %v2476
        %v2484 = vmul.f32 1.0, %v2483
        %v2485 = vadd.f32 %v2367, %v1362
        %v2486 = vadd.f32 %v2370, %v1362
        %v2487 = vmul.f32 %v2478, %v2485
        %v2488 = vmul.f32 %v2482, %v2486
        %v2489 = vadd.f32 %v2451, %v2487
        %v2490 = vadd.f32 %v2454, %v2488
        %v2491 = vtanh.pop %v2489
        %v2492 = vtanh.pop %v2490
        %v2493 = vsub.f32 %v2125, %v2491
        %v2494 = vsub.f32 %v2126, %v2492
        %v2495 = vmul.f32 %v2480, %v2493
        %v2496 = vmul.f32 %v2484, %v2494
        %v2497 = vadd.f32 %v2491, %v2495
        %v2498 = vadd.f32 %v2492, %v2496
        %v2499 = vsel %vm2285, %v2497, %v2125
        %v2500 = vsel %vm2285, %v2498, %v2126
        %v2501 = vpack.c.bf16 %v2500, %v2499
        %v2503 = vunpack.c.l.b16 %v2501
        %v2504 = vunpack.c.h.b16 %v2501
        %v2505 = vpack.c.b16 %v2503, %v2503
        %v2506 = vpack.c.b16 %v2504, %v2504
        %s2509 = scalar_lea.vmem %s466, 24 [#allocation16]
        %2510 = vst [vmem:[%s2509] sm:$0xf] %v2505
        %2511 = vst [vmem:[%s2509 + $0x4] sm:$0xf] %v2506
        %s2512 = scalar_lea.vmem %s406, 96 [#allocation2]
        %v2513 = vld [vmem:[%s2512] sm:$0xff]
        %v2514 = vld [vmem:[%s2512 + $0x8] sm:$0xf]
        %v2515 = vld [vmem:[%s2512 + $0xc] sm:$0xff]
        %v2516 = vld [vmem:[%s2512 + $0x14] sm:$0xf]
        %v2517 = vunpack.c.l.bf16 %v2513
        %v2518 = vunpack.c.h.bf16 %v2513
        %v2519 = vunpack.c.l.bf16 %v2514
        %v2520 = vunpack.c.l.bf16 %v2515
        %v2521 = vunpack.c.h.bf16 %v2515
        %v2522 = vunpack.c.l.bf16 %v2516
        %v2523 = vadd.f32 %v2517, %v603
        %v2524 = vadd.f32 %v2518, %v607
        %v2525 = vadd.f32 %v2519, %v611
        %v2526 = vadd.f32 %v2520, %v603
        %v2527 = vadd.f32 %v2521, %v607
        %v2528 = vadd.f32 %v2522, %v611
        %2529 = vmatprep.subr.bf16.mxu0 %v703
        %2530 = vmatpush1.bf16.msra.mxu0 %v702
        %2531 = vmatprep.subr.bf16.mxu0 %v706
        %2532 = vmatpush1.bf16.msra.mxu0 %v705
        %2533 = vmatprep.subr.bf16.mxu0 %v709
        %2534 = vmatpush1.bf16.msra.mxu0 %v708
        %2535 = vmatprep.subr.bf16.mxu0 %v712
        %2536 = vmatpush1.bf16.msra.mxu0 %v711
        %2537 = vmatprep.subr.bf16.mxu0 %v715
        %2538 = vmatpush1.bf16.msra.mxu0 %v714
        %2539 = vmatprep.subr.bf16.mxu0 %v718
        %2540 = vmatpush1.bf16.msra.mxu0 %v717
        %2541 = vmatprep.subr.bf16.mxu0 %v721
        %2542 = vmatpush1.bf16.msra.mxu0 %v720
        %2543 = vmatprep.subr.bf16.mxu0 %v724
        %2544 = vmatpush1.bf16.msra.mxu0 %v723
        %2545 = vmatprep.subr.bf16.mxu0 0
        %2546 = vmatpush1.bf16.msra.mxu0 0
        %2547 = vmatprep.subr.bf16.mxu0 0
        %2548 = vmatpush1.bf16.msra.mxu0 0
        %2549 = vmatprep.subr.bf16.mxu0 0
        %2550 = vmatpush1.bf16.msra.mxu0 0
        %2551 = vmatprep.subr.bf16.mxu0 0
        %2552 = vmatpush1.bf16.msra.mxu0 0
        %2553 = vmatprep.subr.bf16.mxu0 0
        %2554 = vmatpush1.bf16.msra.mxu0 0
        %2555 = vmatprep.subr.bf16.mxu0 0
        %2556 = vmatpush1.bf16.msra.mxu0 0
        %2557 = vmatprep.subr.bf16.mxu0 0
        %2558 = vmatpush1.bf16.msra.mxu0 0
        %2559 = vmatprep.subr.bf16.mxu0 0
        %2560 = vmatpush1.bf16.msra.mxu0 0
        %2561 = vmatprep.mubr.bf16.mxu0 0
        %2562 = vmatmul.mubr.bf16.gmra.mrb[0].mxu0 %v2288
        %v2563 = vpop.f32.mrb[0].mxu0
        %v2564 = vadd.f32 0.0, %v2563
        %v2565 = vpop.f32.mrb[0].mxu0
        %v2566 = vadd.f32 0.0, %v2565
        %v2567 = vpop.f32.mrb[0].mxu0
        %v2568 = vadd.f32 0.0, %v2567
        %v2569 = vpop.f32.mrb[0].mxu0
        %v2570 = vadd.f32 0.0, %v2569
        %2571 = vdwg.mxu0
        %2572 = vmatprep.subr.bf16.mxu0 0
        %2573 = vmatpush1.bf16.msra.mxu0 %v704
        %2574 = vmatprep.subr.bf16.mxu0 0
        %2575 = vmatpush1.bf16.msra.mxu0 %v707
        %2576 = vmatprep.subr.bf16.mxu0 0
        %2577 = vmatpush1.bf16.msra.mxu0 %v710
        %2578 = vmatprep.subr.bf16.mxu0 0
        %2579 = vmatpush1.bf16.msra.mxu0 %v713
        %2580 = vmatprep.subr.bf16.mxu0 0
        %2581 = vmatpush1.bf16.msra.mxu0 %v716
        %2582 = vmatprep.subr.bf16.mxu0 0
        %2583 = vmatpush1.bf16.msra.mxu0 %v719
        %2584 = vmatprep.subr.bf16.mxu0 0
        %2585 = vmatpush1.bf16.msra.mxu0 %v722
        %2586 = vmatprep.subr.bf16.mxu0 0
        %2587 = vmatpush1.bf16.msra.mxu0 %v725
        %2588 = vmatprep.subr.bf16.mxu0 0
        %2589 = vmatpush1.bf16.msra.mxu0 0
        %2590 = vmatprep.subr.bf16.mxu0 0
        %2591 = vmatpush1.bf16.msra.mxu0 0
        %2592 = vmatprep.subr.bf16.mxu0 0
        %2593 = vmatpush1.bf16.msra.mxu0 0
        %2594 = vmatprep.subr.bf16.mxu0 0
        %2595 = vmatpush1.bf16.msra.mxu0 0
        %2596 = vmatprep.subr.bf16.mxu0 0
        %2597 = vmatpush1.bf16.msra.mxu0 0
        %2598 = vmatprep.subr.bf16.mxu0 0
        %2599 = vmatpush1.bf16.msra.mxu0 0
        %2600 = vmatprep.subr.bf16.mxu0 0
        %2601 = vmatpush1.bf16.msra.mxu0 0
        %2602 = vmatprep.subr.bf16.mxu0 0
        %2603 = vmatpush1.bf16.msra.mxu0 0
        %2604 = vmatprep.mubr.bf16.mxu0 0
        %2605 = vmatmul.mubr.bf16.gmra.mrb[0].mxu0 %v2288
        %v2606 = vpop.f32.mrb[0].mxu0
        %v2607 = vadd.f32 0.0, %v2606
        %v2608 = vpop.f32.mrb[0].mxu0
        %v2609 = vpop.f32.mrb[0].mxu0
        %v2610 = vadd.f32 0.0, %v2609
        %v2611 = vpop.f32.mrb[0].mxu0
        %2612 = vdwg.mxu0
        %v2613 = vadd.f32 %v2523, %v2564
        %v2614 = vadd.f32 %v2524, %v2566
        %v2615 = vadd.f32 %v2526, %v2568
        %v2616 = vadd.f32 %v2527, %v2570
        %v2617 = vxor.u32 %v2613, 2147483648
        %v2618 = vxor.u32 %v2614, 2147483648
        %v2619 = vxor.u32 %v2615, 2147483648
        %v2620 = vxor.u32 %v2616, 2147483648
        %v2621 = vmul.f32 %v2617, 1.442695
        %v2622 = vpow.pop %v2621
        %v2623 = vmul.f32 %v2618, 1.442695
        %v2624 = vpow.pop %v2623
        %v2625 = vmul.f32 %v2619, 1.442695
        %v2626 = vpow.pop %v2625
        %v2627 = vmul.f32 %v2620, 1.442695
        %v2628 = vpow.pop %v2627
        %v2629 = vadd.f32 %v2622, 1.0
        %v2630 = vadd.f32 %v2624, 1.0
        %v2631 = vadd.f32 %v2626, 1.0
        %v2632 = vadd.f32 %v2628, 1.0
        %v2633 = vrcp.pop %v2629
        %v2634 = vmul.f32 1.0, %v2633
        %v2635 = vrcp.pop %v2630
        %v2636 = vmul.f32 1.0, %v2635
        %v2637 = vrcp.pop %v2631
        %v2638 = vmul.f32 1.0, %v2637
        %v2639 = vrcp.pop %v2632
        %v2640 = vmul.f32 1.0, %v2639
        %v2641 = vadd.f32 %v2607, %v866
        %v2642 = vadd.f32 %v2610, %v866
        %v2643 = vmul.f32 %v2634, %v2641
        %v2644 = vmul.f32 %v2638, %v2642
        %v2645 = vadd.f32 %v2525, %v2643
        %v2646 = vadd.f32 %v2528, %v2644
        %v2647 = vtanh.pop %v2645
        %v2648 = vtanh.pop %v2646
        %v2649 = vsub.f32 %v2286, %v2647
        %v2650 = vsub.f32 %v2287, %v2648
        %v2651 = vmul.f32 %v2636, %v2649
        %v2652 = vmul.f32 %v2640, %v2650
        %v2653 = vadd.f32 %v2647, %v2651
        %v2654 = vadd.f32 %v2648, %v2652
        %s2655 = sadd.s32 %s583, 4
        %p2656 = scmp.lt.s32.totalorder %s2655, 18
        %s2657 = scalar_select %p2656, 1, 0
        %v2658 = vstv %s2657
        %vm2659 = vcmp.eq.s32.totalorder %v2658, 1
        %v2660 = vsel %vm2659, %v2653, %v2286
        %v2661 = vsel %vm2659, %v2654, %v2287
        %v2662 = vpack.c.bf16 %v2661, %v2660
        %2663 = vmatprep.subr.bf16.mxu0 %v971
        %2664 = vmatpush1.bf16.msra.mxu0 %v970
        %2665 = vmatprep.subr.bf16.mxu0 %v974
        %2666 = vmatpush1.bf16.msra.mxu0 %v973
        %2667 = vmatprep.subr.bf16.mxu0 %v977
        %2668 = vmatpush1.bf16.msra.mxu0 %v976
        %2669 = vmatprep.subr.bf16.mxu0 %v980
        %2670 = vmatpush1.bf16.msra.mxu0 %v979
        %2671 = vmatprep.subr.bf16.mxu0 %v983
        %2672 = vmatpush1.bf16.msra.mxu0 %v982
        %2673 = vmatprep.subr.bf16.mxu0 %v986
        %2674 = vmatpush1.bf16.msra.mxu0 %v985
        %2675 = vmatprep.subr.bf16.mxu0 %v989
        %2676 = vmatpush1.bf16.msra.mxu0 %v988
        %2677 = vmatprep.subr.bf16.mxu0 %v992
        %2678 = vmatpush1.bf16.msra.mxu0 %v991
        %2679 = vmatprep.subr.bf16.mxu0 0
        %2680 = vmatpush1.bf16.msra.mxu0 0
        %2681 = vmatprep.subr.bf16.mxu0 0
        %2682 = vmatpush1.bf16.msra.mxu0 0
        %2683 = vmatprep.subr.bf16.mxu0 0
        %2684 = vmatpush1.bf16.msra.mxu0 0
        %2685 = vmatprep.subr.bf16.mxu0 0
        %2686 = vmatpush1.bf16.msra.mxu0 0
        %2687 = vmatprep.subr.bf16.mxu0 0
        %2688 = vmatpush1.bf16.msra.mxu0 0
        %2689 = vmatprep.subr.bf16.mxu0 0
        %2690 = vmatpush1.bf16.msra.mxu0 0
        %2691 = vmatprep.subr.bf16.mxu0 0
        %2692 = vmatpush1.bf16.msra.mxu0 0
        %2693 = vmatprep.subr.bf16.mxu0 0
        %2694 = vmatpush1.bf16.msra.mxu0 0
        %2695 = vmatprep.mubr.bf16.mxu0 0
        %2696 = vmatmul.mubr.bf16.gmra.mrb[0].mxu0 %v2501
        %v2697 = vpop.f32.mrb[0].mxu0
        %v2698 = vadd.f32 0.0, %v2697
        %v2699 = vpop.f32.mrb[0].mxu0
        %v2700 = vadd.f32 0.0, %v2699
        %v2701 = vpop.f32.mrb[0].mxu0
        %v2702 = vadd.f32 0.0, %v2701
        %v2703 = vpop.f32.mrb[0].mxu0
        %v2704 = vadd.f32 0.0, %v2703
        %2705 = vdwg.mxu0
        %2706 = vmatprep.subr.bf16.mxu0 0
        %2707 = vmatpush1.bf16.msra.mxu0 %v972
        %2708 = vmatprep.subr.bf16.mxu0 0
        %2709 = vmatpush1.bf16.msra.mxu0 %v975
        %2710 = vmatprep.subr.bf16.mxu0 0
        %2711 = vmatpush1.bf16.msra.mxu0 %v978
        %2712 = vmatprep.subr.bf16.mxu0 0
        %2713 = vmatpush1.bf16.msra.mxu0 %v981
        %2714 = vmatprep.subr.bf16.mxu0 0
        %2715 = vmatpush1.bf16.msra.mxu0 %v984
        %2716 = vmatprep.subr.bf16.mxu0 0
        %2717 = vmatpush1.bf16.msra.mxu0 %v987
        %2718 = vmatprep.subr.bf16.mxu0 0
        %2719 = vmatpush1.bf16.msra.mxu0 %v990
        %2720 = vmatprep.subr.bf16.mxu0 0
        %2721 = vmatpush1.bf16.msra.mxu0 %v993
        %2722 = vmatprep.subr.bf16.mxu0 0
        %2723 = vmatpush1.bf16.msra.mxu0 0
        %2724 = vmatprep.subr.bf16.mxu0 0
        %2725 = vmatpush1.bf16.msra.mxu0 0
        %2726 = vmatprep.subr.bf16.mxu0 0
        %2727 = vmatpush1.bf16.msra.mxu0 0
        %2728 = vmatprep.subr.bf16.mxu0 0
        %2729 = vmatpush1.bf16.msra.mxu0 0
        %2730 = vmatprep.subr.bf16.mxu0 0
        %2731 = vmatpush1.bf16.msra.mxu0 0
        %2732 = vmatprep.subr.bf16.mxu0 0
        %2733 = vmatpush1.bf16.msra.mxu0 0
        %2734 = vmatprep.subr.bf16.mxu0 0
        %2735 = vmatpush1.bf16.msra.mxu0 0
        %2736 = vmatprep.subr.bf16.mxu0 0
        %2737 = vmatpush1.bf16.msra.mxu0 0
        %2738 = vmatprep.mubr.bf16.mxu0 0
        %2739 = vmatmul.mubr.bf16.gmra.mrb[0].mxu0 %v2501
        %v2740 = vpop.f32.mrb[0].mxu0
        %v2741 = vadd.f32 0.0, %v2740
        %v2742 = vpop.f32.mrb[0].mxu0
        %v2743 = vpop.f32.mrb[0].mxu0
        %v2744 = vadd.f32 0.0, %v2743
        %v2745 = vpop.f32.mrb[0].mxu0
        %2746 = vdwg.mxu0
        %2747 = vmatprep.subr.bf16.mxu0 %v1199
        %2748 = vmatpush1.bf16.msra.mxu0 %v1198
        %2749 = vmatprep.subr.bf16.mxu0 %v1202
        %2750 = vmatpush1.bf16.msra.mxu0 %v1201
        %2751 = vmatprep.subr.bf16.mxu0 %v1205
        %2752 = vmatpush1.bf16.msra.mxu0 %v1204
        %2753 = vmatprep.subr.bf16.mxu0 %v1208
        %2754 = vmatpush1.bf16.msra.mxu0 %v1207
        %2755 = vmatprep.subr.bf16.mxu0 %v1211
        %2756 = vmatpush1.bf16.msra.mxu0 %v1210
        %2757 = vmatprep.subr.bf16.mxu0 %v1214
        %2758 = vmatpush1.bf16.msra.mxu0 %v1213
        %2759 = vmatprep.subr.bf16.mxu0 %v1217
        %2760 = vmatpush1.bf16.msra.mxu0 %v1216
        %2761 = vmatprep.subr.bf16.mxu0 %v1220
        %2762 = vmatpush1.bf16.msra.mxu0 %v1219
        %2763 = vmatprep.subr.bf16.mxu0 0
        %2764 = vmatpush1.bf16.msra.mxu0 0
        %2765 = vmatprep.subr.bf16.mxu0 0
        %2766 = vmatpush1.bf16.msra.mxu0 0
        %2767 = vmatprep.subr.bf16.mxu0 0
        %2768 = vmatpush1.bf16.msra.mxu0 0
        %2769 = vmatprep.subr.bf16.mxu0 0
        %2770 = vmatpush1.bf16.msra.mxu0 0
        %2771 = vmatprep.subr.bf16.mxu0 0
        %2772 = vmatpush1.bf16.msra.mxu0 0
        %2773 = vmatprep.subr.bf16.mxu0 0
        %2774 = vmatpush1.bf16.msra.mxu0 0
        %2775 = vmatprep.subr.bf16.mxu0 0
        %2776 = vmatpush1.bf16.msra.mxu0 0
        %2777 = vmatprep.subr.bf16.mxu0 0
        %2778 = vmatpush1.bf16.msra.mxu0 0
        %2779 = vmatprep.mubr.bf16.mxu0 0
        %2780 = vmatmul.mubr.bf16.gmra.mrb[0].mxu0 %v2662
        %v2781 = vpop.f32.mrb[0].mxu0
        %v2782 = vadd.f32 %v1106, %v2781
        %v2783 = vpop.f32.mrb[0].mxu0
        %v2784 = vadd.f32 %v1110, %v2783
        %v2785 = vpop.f32.mrb[0].mxu0
        %v2786 = vadd.f32 %v1106, %v2785
        %v2787 = vpop.f32.mrb[0].mxu0
        %v2788 = vadd.f32 %v1110, %v2787
        %2789 = vdwg.mxu0
        %2790 = vmatprep.subr.bf16.mxu0 0
        %2791 = vmatpush1.bf16.msra.mxu0 %v1200
        %2792 = vmatprep.subr.bf16.mxu0 0
        %2793 = vmatpush1.bf16.msra.mxu0 %v1203
        %2794 = vmatprep.subr.bf16.mxu0 0
        %2795 = vmatpush1.bf16.msra.mxu0 %v1206
        %2796 = vmatprep.subr.bf16.mxu0 0
        %2797 = vmatpush1.bf16.msra.mxu0 %v1209
        %2798 = vmatprep.subr.bf16.mxu0 0
        %2799 = vmatpush1.bf16.msra.mxu0 %v1212
        %2800 = vmatprep.subr.bf16.mxu0 0
        %2801 = vmatpush1.bf16.msra.mxu0 %v1215
        %2802 = vmatprep.subr.bf16.mxu0 0
        %2803 = vmatpush1.bf16.msra.mxu0 %v1218
        %2804 = vmatprep.subr.bf16.mxu0 0
        %2805 = vmatpush1.bf16.msra.mxu0 %v1221
        %2806 = vmatprep.subr.bf16.mxu0 0
        %2807 = vmatpush1.bf16.msra.mxu0 0
        %2808 = vmatprep.subr.bf16.mxu0 0
        %2809 = vmatpush1.bf16.msra.mxu0 0
        %2810 = vmatprep.subr.bf16.mxu0 0
        %2811 = vmatpush1.bf16.msra.mxu0 0
        %2812 = vmatprep.subr.bf16.mxu0 0
        %2813 = vmatpush1.bf16.msra.mxu0 0
        %2814 = vmatprep.subr.bf16.mxu0 0
        %2815 = vmatpush1.bf16.msra.mxu0 0
        %2816 = vmatprep.subr.bf16.mxu0 0
        %2817 = vmatpush1.bf16.msra.mxu0 0
        %2818 = vmatprep.subr.bf16.mxu0 0
        %2819 = vmatpush1.bf16.msra.mxu0 0
        %2820 = vmatprep.subr.bf16.mxu0 0
        %2821 = vmatpush1.bf16.msra.mxu0 0
        %2822 = vmatprep.mubr.bf16.mxu0 0
        %2823 = vmatmul.mubr.bf16.gmra.mrb[0].mxu0 %v2662
        %v2824 = vpop.f32.mrb[0].mxu0
        %v2825 = vadd.f32 %v1114, %v2824
        %v2826 = vpop.f32.mrb[0].mxu0
        %v2827 = vpop.f32.mrb[0].mxu0
        %v2828 = vadd.f32 %v1114, %v2827
        %v2829 = vpop.f32.mrb[0].mxu0
        %2830 = vdwg.mxu0
        %v2831 = vadd.f32 %v2782, %v2698
        %v2832 = vadd.f32 %v2784, %v2700
        %v2833 = vadd.f32 %v2786, %v2702
        %v2834 = vadd.f32 %v2788, %v2704
        %v2835 = vxor.u32 %v2831, 2147483648
        %v2836 = vxor.u32 %v2832, 2147483648
        %v2837 = vxor.u32 %v2833, 2147483648
        %v2838 = vxor.u32 %v2834, 2147483648
        %v2839 = vmul.f32 %v2835, 1.442695
        %v2840 = vpow.pop %v2839
        %v2841 = vmul.f32 %v2836, 1.442695
        %v2842 = vpow.pop %v2841
        %v2843 = vmul.f32 %v2837, 1.442695
        %v2844 = vpow.pop %v2843
        %v2845 = vmul.f32 %v2838, 1.442695
        %v2846 = vpow.pop %v2845
        %v2847 = vadd.f32 %v2840, 1.0
        %v2848 = vadd.f32 %v2842, 1.0
        %v2849 = vadd.f32 %v2844, 1.0
        %v2850 = vadd.f32 %v2846, 1.0
        %v2851 = vrcp.pop %v2847
        %v2852 = vmul.f32 1.0, %v2851
        %v2853 = vrcp.pop %v2848
        %v2854 = vmul.f32 1.0, %v2853
        %v2855 = vrcp.pop %v2849
        %v2856 = vmul.f32 1.0, %v2855
        %v2857 = vrcp.pop %v2850
        %v2858 = vmul.f32 1.0, %v2857
        %v2859 = vadd.f32 %v2741, %v1362
        %v2860 = vadd.f32 %v2744, %v1362
        %v2861 = vmul.f32 %v2852, %v2859
        %v2862 = vmul.f32 %v2856, %v2860
        %v2863 = vadd.f32 %v2825, %v2861
        %v2864 = vadd.f32 %v2828, %v2862
        %v2865 = vtanh.pop %v2863
        %v2866 = vtanh.pop %v2864
        %v2867 = vsub.f32 %v2499, %v2865
        %v2868 = vsub.f32 %v2500, %v2866
        %v2869 = vmul.f32 %v2854, %v2867
        %v2870 = vmul.f32 %v2858, %v2868
        %v2871 = vadd.f32 %v2865, %v2869
        %v2872 = vadd.f32 %v2866, %v2870
        %v2873 = vsel %vm2659, %v2871, %v2499
        %v2874 = vsel %vm2659, %v2872, %v2500
        %v2875 = vpack.c.bf16 %v2874, %v2873
        %v2877 = vunpack.c.l.b16 %v2875
        %v2878 = vunpack.c.h.b16 %v2875
        %v2879 = vpack.c.b16 %v2877, %v2877
        %v2880 = vpack.c.b16 %v2878, %v2878
        %s2883 = scalar_lea.vmem %s466, 32 [#allocation16]
        %2884 = vst [vmem:[%s2883] sm:$0xf] %v2879
        %2885 = vst [vmem:[%s2883 + $0x4] sm:$0xf] %v2880
        %s2886 = scalar_lea.vmem %s406, 120 [#allocation2]
        %v2887 = vld [vmem:[%s2886] sm:$0xff]
        %v2888 = vld [vmem:[%s2886 + $0x8] sm:$0xf]
        %v2889 = vld [vmem:[%s2886 + $0xc] sm:$0xff]
        %v2890 = vld [vmem:[%s2886 + $0x14] sm:$0xf]
        %v2891 = vunpack.c.l.bf16 %v2887
        %v2892 = vunpack.c.h.bf16 %v2887
        %v2893 = vunpack.c.l.bf16 %v2888
        %v2894 = vunpack.c.l.bf16 %v2889
        %v2895 = vunpack.c.h.bf16 %v2889
        %v2896 = vunpack.c.l.bf16 %v2890
        %v2897 = vadd.f32 %v2891, %v603
        %v2898 = vadd.f32 %v2892, %v607
        %v2899 = vadd.f32 %v2893, %v611
        %v2900 = vadd.f32 %v2894, %v603
        %v2901 = vadd.f32 %v2895, %v607
        %v2902 = vadd.f32 %v2896, %v611
        %2903 = vmatprep.subr.bf16.mxu0 %v703
        %2904 = vmatpush1.bf16.msra.mxu0 %v702
        %2905 = vmatprep.subr.bf16.mxu0 %v706
        %2906 = vmatpush1.bf16.msra.mxu0 %v705
        %2907 = vmatprep.subr.bf16.mxu0 %v709
        %2908 = vmatpush1.bf16.msra.mxu0 %v708
        %2909 = vmatprep.subr.bf16.mxu0 %v712
        %2910 = vmatpush1.bf16.msra.mxu0 %v711
        %2911 = vmatprep.subr.bf16.mxu0 %v715
        %2912 = vmatpush1.bf16.msra.mxu0 %v714
        %2913 = vmatprep.subr.bf16.mxu0 %v718
        %2914 = vmatpush1.bf16.msra.mxu0 %v717
        %2915 = vmatprep.subr.bf16.mxu0 %v721
        %2916 = vmatpush1.bf16.msra.mxu0 %v720
        %2917 = vmatprep.subr.bf16.mxu0 %v724
        %2918 = vmatpush1.bf16.msra.mxu0 %v723
        %2919 = vmatprep.subr.bf16.mxu0 0
        %2920 = vmatpush1.bf16.msra.mxu0 0
        %2921 = vmatprep.subr.bf16.mxu0 0
        %2922 = vmatpush1.bf16.msra.mxu0 0
        %2923 = vmatprep.subr.bf16.mxu0 0
        %2924 = vmatpush1.bf16.msra.mxu0 0
        %2925 = vmatprep.subr.bf16.mxu0 0
        %2926 = vmatpush1.bf16.msra.mxu0 0
        %2927 = vmatprep.subr.bf16.mxu0 0
        %2928 = vmatpush1.bf16.msra.mxu0 0
        %2929 = vmatprep.subr.bf16.mxu0 0
        %2930 = vmatpush1.bf16.msra.mxu0 0
        %2931 = vmatprep.subr.bf16.mxu0 0
        %2932 = vmatpush1.bf16.msra.mxu0 0
        %2933 = vmatprep.subr.bf16.mxu0 0
        %2934 = vmatpush1.bf16.msra.mxu0 0
        %2935 = vmatprep.mubr.bf16.mxu0 0
        %2936 = vmatmul.mubr.bf16.gmra.mrb[0].mxu0 %v2662
        %v2937 = vpop.f32.mrb[0].mxu0
        %v2938 = vadd.f32 0.0, %v2937
        %v2939 = vpop.f32.mrb[0].mxu0
        %v2940 = vadd.f32 0.0, %v2939
        %v2941 = vpop.f32.mrb[0].mxu0
        %v2942 = vadd.f32 0.0, %v2941
        %v2943 = vpop.f32.mrb[0].mxu0
        %v2944 = vadd.f32 0.0, %v2943
        %2945 = vdwg.mxu0
        %2946 = vmatprep.subr.bf16.mxu0 0
        %2947 = vmatpush1.bf16.msra.mxu0 %v704
        %2948 = vmatprep.subr.bf16.mxu0 0
        %2949 = vmatpush1.bf16.msra.mxu0 %v707
        %2950 = vmatprep.subr.bf16.mxu0 0
        %2951 = vmatpush1.bf16.msra.mxu0 %v710
        %2952 = vmatprep.subr.bf16.mxu0 0
        %2953 = vmatpush1.bf16.msra.mxu0 %v713
        %2954 = vmatprep.subr.bf16.mxu0 0
        %2955 = vmatpush1.bf16.msra.mxu0 %v716
        %2956 = vmatprep.subr.bf16.mxu0 0
        %2957 = vmatpush1.bf16.msra.mxu0 %v719
        %2958 = vmatprep.subr.bf16.mxu0 0
        %2959 = vmatpush1.bf16.msra.mxu0 %v722
        %2960 = vmatprep.subr.bf16.mxu0 0
        %2961 = vmatpush1.bf16.msra.mxu0 %v725
        %2962 = vmatprep.subr.bf16.mxu0 0
        %2963 = vmatpush1.bf16.msra.mxu0 0
        %2964 = vmatprep.subr.bf16.mxu0 0
        %2965 = vmatpush1.bf16.msra.mxu0 0
        %2966 = vmatprep.subr.bf16.mxu0 0
        %2967 = vmatpush1.bf16.msra.mxu0 0
        %2968 = vmatprep.subr.bf16.mxu0 0
        %2969 = vmatpush1.bf16.msra.mxu0 0
        %2970 = vmatprep.subr.bf16.mxu0 0
        %2971 = vmatpush1.bf16.msra.mxu0 0
        %2972 = vmatprep.subr.bf16.mxu0 0
        %2973 = vmatpush1.bf16.msra.mxu0 0
        %2974 = vmatprep.subr.bf16.mxu0 0
        %2975 = vmatpush1.bf16.msra.mxu0 0
        %2976 = vmatprep.subr.bf16.mxu0 0
        %2977 = vmatpush1.bf16.msra.mxu0 0
        %2978 = vmatprep.mubr.bf16.mxu0 0
        %2979 = vmatmul.mubr.bf16.gmra.mrb[0].mxu0 %v2662
        %v2980 = vpop.f32.mrb[0].mxu0
        %v2981 = vadd.f32 0.0, %v2980
        %v2982 = vpop.f32.mrb[0].mxu0
        %v2983 = vpop.f32.mrb[0].mxu0
        %v2984 = vadd.f32 0.0, %v2983
        %v2985 = vpop.f32.mrb[0].mxu0
        %2986 = vdwg.mxu0
        %v2987 = vadd.f32 %v2897, %v2938
        %v2988 = vadd.f32 %v2898, %v2940
        %v2989 = vadd.f32 %v2900, %v2942
        %v2990 = vadd.f32 %v2901, %v2944
        %v2991 = vxor.u32 %v2987, 2147483648
        %v2992 = vxor.u32 %v2988, 2147483648
        %v2993 = vxor.u32 %v2989, 2147483648
        %v2994 = vxor.u32 %v2990, 2147483648
        %v2995 = vmul.f32 %v2991, 1.442695
        %v2996 = vpow.pop %v2995
        %v2997 = vmul.f32 %v2992, 1.442695
        %v2998 = vpow.pop %v2997
        %v2999 = vmul.f32 %v2993, 1.442695
        %v3000 = vpow.pop %v2999
        %v3001 = vmul.f32 %v2994, 1.442695
        %v3002 = vpow.pop %v3001
        %v3003 = vadd.f32 %v2996, 1.0
        %v3004 = vadd.f32 %v2998, 1.0
        %v3005 = vadd.f32 %v3000, 1.0
        %v3006 = vadd.f32 %v3002, 1.0
        %v3007 = vrcp.pop %v3003
        %v3008 = vmul.f32 1.0, %v3007
        %v3009 = vrcp.pop %v3004
        %v3010 = vmul.f32 1.0, %v3009
        %v3011 = vrcp.pop %v3005
        %v3012 = vmul.f32 1.0, %v3011
        %v3013 = vrcp.pop %v3006
        %v3014 = vmul.f32 1.0, %v3013
        %v3015 = vadd.f32 %v2981, %v866
        %v3016 = vadd.f32 %v2984, %v866
        %v3017 = vmul.f32 %v3008, %v3015
        %v3018 = vmul.f32 %v3012, %v3016
        %v3019 = vadd.f32 %v2899, %v3017
        %v3020 = vadd.f32 %v2902, %v3018
        %v3021 = vtanh.pop %v3019
        %v3022 = vtanh.pop %v3020
        %v3023 = vsub.f32 %v2660, %v3021
        %v3024 = vsub.f32 %v2661, %v3022
        %v3025 = vmul.f32 %v3010, %v3023
        %v3026 = vmul.f32 %v3014, %v3024
        %v3027 = vadd.f32 %v3021, %v3025
        %v3028 = vadd.f32 %v3022, %v3026
        %s3029 = sadd.s32 %s583, 5
        %p3030 = scmp.lt.s32.totalorder %s3029, 18
        %s3031 = scalar_select %p3030, 1, 0
        %v3032 = vstv %s3031
        %vm3033 = vcmp.eq.s32.totalorder %v3032, 1
        %v3034 = vsel %vm3033, %v3027, %v2660
        %v3035 = vsel %vm3033, %v3028, %v2661
        %v3036 = vpack.c.bf16 %v3035, %v3034
        %3037 = vmatprep.subr.bf16.mxu0 %v971
        %3038 = vmatpush1.bf16.msra.mxu0 %v970
        %3039 = vmatprep.subr.bf16.mxu0 %v974
        %3040 = vmatpush1.bf16.msra.mxu0 %v973
        %3041 = vmatprep.subr.bf16.mxu0 %v977
        %3042 = vmatpush1.bf16.msra.mxu0 %v976
        %3043 = vmatprep.subr.bf16.mxu0 %v980
        %3044 = vmatpush1.bf16.msra.mxu0 %v979
        %3045 = vmatprep.subr.bf16.mxu0 %v983
        %3046 = vmatpush1.bf16.msra.mxu0 %v982
        %3047 = vmatprep.subr.bf16.mxu0 %v986
        %3048 = vmatpush1.bf16.msra.mxu0 %v985
        %3049 = vmatprep.subr.bf16.mxu0 %v989
        %3050 = vmatpush1.bf16.msra.mxu0 %v988
        %3051 = vmatprep.subr.bf16.mxu0 %v992
        %3052 = vmatpush1.bf16.msra.mxu0 %v991
        %3053 = vmatprep.subr.bf16.mxu0 0
        %3054 = vmatpush1.bf16.msra.mxu0 0
        %3055 = vmatprep.subr.bf16.mxu0 0
        %3056 = vmatpush1.bf16.msra.mxu0 0
        %3057 = vmatprep.subr.bf16.mxu0 0
        %3058 = vmatpush1.bf16.msra.mxu0 0
        %3059 = vmatprep.subr.bf16.mxu0 0
        %3060 = vmatpush1.bf16.msra.mxu0 0
        %3061 = vmatprep.subr.bf16.mxu0 0
        %3062 = vmatpush1.bf16.msra.mxu0 0
        %3063 = vmatprep.subr.bf16.mxu0 0
        %3064 = vmatpush1.bf16.msra.mxu0 0
        %3065 = vmatprep.subr.bf16.mxu0 0
        %3066 = vmatpush1.bf16.msra.mxu0 0
        %3067 = vmatprep.subr.bf16.mxu0 0
        %3068 = vmatpush1.bf16.msra.mxu0 0
        %3069 = vmatprep.mubr.bf16.mxu0 0
        %3070 = vmatmul.mubr.bf16.gmra.mrb[0].mxu0 %v2875
        %v3071 = vpop.f32.mrb[0].mxu0
        %v3072 = vadd.f32 0.0, %v3071
        %v3073 = vpop.f32.mrb[0].mxu0
        %v3074 = vadd.f32 0.0, %v3073
        %v3075 = vpop.f32.mrb[0].mxu0
        %v3076 = vadd.f32 0.0, %v3075
        %v3077 = vpop.f32.mrb[0].mxu0
        %v3078 = vadd.f32 0.0, %v3077
        %3079 = vdwg.mxu0
        %3080 = vmatprep.subr.bf16.mxu0 0
        %3081 = vmatpush1.bf16.msra.mxu0 %v972
        %3082 = vmatprep.subr.bf16.mxu0 0
        %3083 = vmatpush1.bf16.msra.mxu0 %v975
        %3084 = vmatprep.subr.bf16.mxu0 0
        %3085 = vmatpush1.bf16.msra.mxu0 %v978
        %3086 = vmatprep.subr.bf16.mxu0 0
        %3087 = vmatpush1.bf16.msra.mxu0 %v981
        %3088 = vmatprep.subr.bf16.mxu0 0
        %3089 = vmatpush1.bf16.msra.mxu0 %v984
        %3090 = vmatprep.subr.bf16.mxu0 0
        %3091 = vmatpush1.bf16.msra.mxu0 %v987
        %3092 = vmatprep.subr.bf16.mxu0 0
        %3093 = vmatpush1.bf16.msra.mxu0 %v990
        %3094 = vmatprep.subr.bf16.mxu0 0
        %3095 = vmatpush1.bf16.msra.mxu0 %v993
        %3096 = vmatprep.subr.bf16.mxu0 0
        %3097 = vmatpush1.bf16.msra.mxu0 0
        %3098 = vmatprep.subr.bf16.mxu0 0
        %3099 = vmatpush1.bf16.msra.mxu0 0
        %3100 = vmatprep.subr.bf16.mxu0 0
        %3101 = vmatpush1.bf16.msra.mxu0 0
        %3102 = vmatprep.subr.bf16.mxu0 0
        %3103 = vmatpush1.bf16.msra.mxu0 0
        %3104 = vmatprep.subr.bf16.mxu0 0
        %3105 = vmatpush1.bf16.msra.mxu0 0
        %3106 = vmatprep.subr.bf16.mxu0 0
        %3107 = vmatpush1.bf16.msra.mxu0 0
        %3108 = vmatprep.subr.bf16.mxu0 0
        %3109 = vmatpush1.bf16.msra.mxu0 0
        %3110 = vmatprep.subr.bf16.mxu0 0
        %3111 = vmatpush1.bf16.msra.mxu0 0
        %3112 = vmatprep.mubr.bf16.mxu0 0
        %3113 = vmatmul.mubr.bf16.gmra.mrb[0].mxu0 %v2875
        %v3114 = vpop.f32.mrb[0].mxu0
        %v3115 = vadd.f32 0.0, %v3114
        %v3116 = vpop.f32.mrb[0].mxu0
        %v3117 = vpop.f32.mrb[0].mxu0
        %v3118 = vadd.f32 0.0, %v3117
        %v3119 = vpop.f32.mrb[0].mxu0
        %3120 = vdwg.mxu0
        %3121 = vmatprep.subr.bf16.mxu0 %v1199
        %3122 = vmatpush1.bf16.msra.mxu0 %v1198
        %3123 = vmatprep.subr.bf16.mxu0 %v1202
        %3124 = vmatpush1.bf16.msra.mxu0 %v1201
        %3125 = vmatprep.subr.bf16.mxu0 %v1205
        %3126 = vmatpush1.bf16.msra.mxu0 %v1204
        %3127 = vmatprep.subr.bf16.mxu0 %v1208
        %3128 = vmatpush1.bf16.msra.mxu0 %v1207
        %3129 = vmatprep.subr.bf16.mxu0 %v1211
        %3130 = vmatpush1.bf16.msra.mxu0 %v1210
        %3131 = vmatprep.subr.bf16.mxu0 %v1214
        %3132 = vmatpush1.bf16.msra.mxu0 %v1213
        %3133 = vmatprep.subr.bf16.mxu0 %v1217
        %3134 = vmatpush1.bf16.msra.mxu0 %v1216
        %3135 = vmatprep.subr.bf16.mxu0 %v1220
        %3136 = vmatpush1.bf16.msra.mxu0 %v1219
        %3137 = vmatprep.subr.bf16.mxu0 0
        %3138 = vmatpush1.bf16.msra.mxu0 0
        %3139 = vmatprep.subr.bf16.mxu0 0
        %3140 = vmatpush1.bf16.msra.mxu0 0
        %3141 = vmatprep.subr.bf16.mxu0 0
        %3142 = vmatpush1.bf16.msra.mxu0 0
        %3143 = vmatprep.subr.bf16.mxu0 0
        %3144 = vmatpush1.bf16.msra.mxu0 0
        %3145 = vmatprep.subr.bf16.mxu0 0
        %3146 = vmatpush1.bf16.msra.mxu0 0
        %3147 = vmatprep.subr.bf16.mxu0 0
        %3148 = vmatpush1.bf16.msra.mxu0 0
        %3149 = vmatprep.subr.bf16.mxu0 0
        %3150 = vmatpush1.bf16.msra.mxu0 0
        %3151 = vmatprep.subr.bf16.mxu0 0
        %3152 = vmatpush1.bf16.msra.mxu0 0
        %3153 = vmatprep.mubr.bf16.mxu0 0
        %3154 = vmatmul.mubr.bf16.gmra.mrb[0].mxu0 %v3036
        %v3155 = vpop.f32.mrb[0].mxu0
        %v3156 = vadd.f32 %v1106, %v3155
        %v3157 = vpop.f32.mrb[0].mxu0
        %v3158 = vadd.f32 %v1110, %v3157
        %v3159 = vpop.f32.mrb[0].mxu0
        %v3160 = vadd.f32 %v1106, %v3159
        %v3161 = vpop.f32.mrb[0].mxu0
        %v3162 = vadd.f32 %v1110, %v3161
        %3163 = vdwg.mxu0
        %3164 = vmatprep.subr.bf16.mxu0 0
        %3165 = vmatpush1.bf16.msra.mxu0 %v1200
        %3166 = vmatprep.subr.bf16.mxu0 0
        %3167 = vmatpush1.bf16.msra.mxu0 %v1203
        %3168 = vmatprep.subr.bf16.mxu0 0
        %3169 = vmatpush1.bf16.msra.mxu0 %v1206
        %3170 = vmatprep.subr.bf16.mxu0 0
        %3171 = vmatpush1.bf16.msra.mxu0 %v1209
        %3172 = vmatprep.subr.bf16.mxu0 0
        %3173 = vmatpush1.bf16.msra.mxu0 %v1212
        %3174 = vmatprep.subr.bf16.mxu0 0
        %3175 = vmatpush1.bf16.msra.mxu0 %v1215
        %3176 = vmatprep.subr.bf16.mxu0 0
        %3177 = vmatpush1.bf16.msra.mxu0 %v1218
        %3178 = vmatprep.subr.bf16.mxu0 0
        %3179 = vmatpush1.bf16.msra.mxu0 %v1221
        %3180 = vmatprep.subr.bf16.mxu0 0
        %3181 = vmatpush1.bf16.msra.mxu0 0
        %3182 = vmatprep.subr.bf16.mxu0 0
        %3183 = vmatpush1.bf16.msra.mxu0 0
        %3184 = vmatprep.subr.bf16.mxu0 0
        %3185 = vmatpush1.bf16.msra.mxu0 0
        %3186 = vmatprep.subr.bf16.mxu0 0
        %3187 = vmatpush1.bf16.msra.mxu0 0
        %3188 = vmatprep.subr.bf16.mxu0 0
        %3189 = vmatpush1.bf16.msra.mxu0 0
        %3190 = vmatprep.subr.bf16.mxu0 0
        %3191 = vmatpush1.bf16.msra.mxu0 0
        %3192 = vmatprep.subr.bf16.mxu0 0
        %3193 = vmatpush1.bf16.msra.mxu0 0
        %3194 = vmatprep.subr.bf16.mxu0 0
        %3195 = vmatpush1.bf16.msra.mxu0 0
        %3196 = vmatprep.mubr.bf16.mxu0 0
        %3197 = vmatmul.mubr.bf16.gmra.mrb[0].mxu0 %v3036
        %v3198 = vpop.f32.mrb[0].mxu0
        %v3199 = vadd.f32 %v1114, %v3198
        %v3200 = vpop.f32.mrb[0].mxu0
        %v3201 = vpop.f32.mrb[0].mxu0
        %v3202 = vadd.f32 %v1114, %v3201
        %v3203 = vpop.f32.mrb[0].mxu0
        %3204 = vdwg.mxu0
        %v3205 = vadd.f32 %v3156, %v3072
        %v3206 = vadd.f32 %v3158, %v3074
        %v3207 = vadd.f32 %v3160, %v3076
        %v3208 = vadd.f32 %v3162, %v3078
        %v3209 = vxor.u32 %v3205, 2147483648
        %v3210 = vxor.u32 %v3206, 2147483648
        %v3211 = vxor.u32 %v3207, 2147483648
        %v3212 = vxor.u32 %v3208, 2147483648
        %v3213 = vmul.f32 %v3209, 1.442695
        %v3214 = vpow.pop %v3213
        %v3215 = vmul.f32 %v3210, 1.442695
        %v3216 = vpow.pop %v3215
        %v3217 = vmul.f32 %v3211, 1.442695
        %v3218 = vpow.pop %v3217
        %v3219 = vmul.f32 %v3212, 1.442695
        %v3220 = vpow.pop %v3219
        %v3221 = vadd.f32 %v3214, 1.0
        %v3222 = vadd.f32 %v3216, 1.0
        %v3223 = vadd.f32 %v3218, 1.0
        %v3224 = vadd.f32 %v3220, 1.0
        %v3225 = vrcp.pop %v3221
        %v3226 = vmul.f32 1.0, %v3225
        %v3227 = vrcp.pop %v3222
        %v3228 = vmul.f32 1.0, %v3227
        %v3229 = vrcp.pop %v3223
        %v3230 = vmul.f32 1.0, %v3229
        %v3231 = vrcp.pop %v3224
        %v3232 = vmul.f32 1.0, %v3231
        %v3233 = vadd.f32 %v3115, %v1362
        %v3234 = vadd.f32 %v3118, %v1362
        %v3235 = vmul.f32 %v3226, %v3233
        %v3236 = vmul.f32 %v3230, %v3234
        %v3237 = vadd.f32 %v3199, %v3235
        %v3238 = vadd.f32 %v3202, %v3236
        %v3239 = vtanh.pop %v3237
        %v3240 = vtanh.pop %v3238
        %v3241 = vsub.f32 %v2873, %v3239
        %v3242 = vsub.f32 %v2874, %v3240
        %v3243 = vmul.f32 %v3228, %v3241
        %v3244 = vmul.f32 %v3232, %v3242
        %v3245 = vadd.f32 %v3239, %v3243
        %v3246 = vadd.f32 %v3240, %v3244
        %v3247 = vsel %vm3033, %v3245, %v2873
        %v3248 = vsel %vm3033, %v3246, %v2874
        %v3249 = vpack.c.bf16 %v3248, %v3247
        %v3251 = vunpack.c.l.b16 %v3249
        %v3252 = vunpack.c.h.b16 %v3249
        %v3253 = vpack.c.b16 %v3251, %v3251
        %v3254 = vpack.c.b16 %v3252, %v3252
        %s3257 = scalar_lea.vmem %s466, 40 [#allocation16]
        %3258 = vst [vmem:[%s3257] sm:$0xf] %v3253
        %3259 = vst [vmem:[%s3257 + $0x4] sm:$0xf] %v3254
        %s3260 = scalar_lea.vmem %s406, 144 [#allocation2]
        %v3261 = vld [vmem:[%s3260] sm:$0xff]
        %v3262 = vld [vmem:[%s3260 + $0x8] sm:$0xf]
        %v3263 = vld [vmem:[%s3260 + $0xc] sm:$0xff]
        %v3264 = vld [vmem:[%s3260 + $0x14] sm:$0xf]
        %v3265 = vunpack.c.l.bf16 %v3261
        %v3266 = vunpack.c.h.bf16 %v3261
        %v3267 = vunpack.c.l.bf16 %v3262
        %v3268 = vunpack.c.l.bf16 %v3263
        %v3269 = vunpack.c.h.bf16 %v3263
        %v3270 = vunpack.c.l.bf16 %v3264
        %v3271 = vadd.f32 %v3265, %v603
        %v3272 = vadd.f32 %v3266, %v607
        %v3273 = vadd.f32 %v3267, %v611
        %v3274 = vadd.f32 %v3268, %v603
        %v3275 = vadd.f32 %v3269, %v607
        %v3276 = vadd.f32 %v3270, %v611
        %3277 = vmatprep.subr.bf16.mxu0 %v703
        %3278 = vmatpush1.bf16.msra.mxu0 %v702
        %3279 = vmatprep.subr.bf16.mxu0 %v706
        %3280 = vmatpush1.bf16.msra.mxu0 %v705
        %3281 = vmatprep.subr.bf16.mxu0 %v709
        %3282 = vmatpush1.bf16.msra.mxu0 %v708
        %3283 = vmatprep.subr.bf16.mxu0 %v712
        %3284 = vmatpush1.bf16.msra.mxu0 %v711
        %3285 = vmatprep.subr.bf16.mxu0 %v715
        %3286 = vmatpush1.bf16.msra.mxu0 %v714
        %3287 = vmatprep.subr.bf16.mxu0 %v718
        %3288 = vmatpush1.bf16.msra.mxu0 %v717
        %3289 = vmatprep.subr.bf16.mxu0 %v721
        %3290 = vmatpush1.bf16.msra.mxu0 %v720
        %3291 = vmatprep.subr.bf16.mxu0 %v724
        %3292 = vmatpush1.bf16.msra.mxu0 %v723
        %3293 = vmatprep.subr.bf16.mxu0 0
        %3294 = vmatpush1.bf16.msra.mxu0 0
        %3295 = vmatprep.subr.bf16.mxu0 0
        %3296 = vmatpush1.bf16.msra.mxu0 0
        %3297 = vmatprep.subr.bf16.mxu0 0
        %3298 = vmatpush1.bf16.msra.mxu0 0
        %3299 = vmatprep.subr.bf16.mxu0 0
        %3300 = vmatpush1.bf16.msra.mxu0 0
        %3301 = vmatprep.subr.bf16.mxu0 0
        %3302 = vmatpush1.bf16.msra.mxu0 0
        %3303 = vmatprep.subr.bf16.mxu0 0
        %3304 = vmatpush1.bf16.msra.mxu0 0
        %3305 = vmatprep.subr.bf16.mxu0 0
        %3306 = vmatpush1.bf16.msra.mxu0 0
        %3307 = vmatprep.subr.bf16.mxu0 0
        %3308 = vmatpush1.bf16.msra.mxu0 0
        %3309 = vmatprep.mubr.bf16.mxu0 0
        %3310 = vmatmul.mubr.bf16.gmra.mrb[0].mxu0 %v3036
        %v3311 = vpop.f32.mrb[0].mxu0
        %v3312 = vadd.f32 0.0, %v3311
        %v3313 = vpop.f32.mrb[0].mxu0
        %v3314 = vadd.f32 0.0, %v3313
        %v3315 = vpop.f32.mrb[0].mxu0
        %v3316 = vadd.f32 0.0, %v3315
        %v3317 = vpop.f32.mrb[0].mxu0
        %v3318 = vadd.f32 0.0, %v3317
        %3319 = vdwg.mxu0
        %3320 = vmatprep.subr.bf16.mxu0 0
        %3321 = vmatpush1.bf16.msra.mxu0 %v704
        %3322 = vmatprep.subr.bf16.mxu0 0
        %3323 = vmatpush1.bf16.msra.mxu0 %v707
        %3324 = vmatprep.subr.bf16.mxu0 0
        %3325 = vmatpush1.bf16.msra.mxu0 %v710
        %3326 = vmatprep.subr.bf16.mxu0 0
        %3327 = vmatpush1.bf16.msra.mxu0 %v713
        %3328 = vmatprep.subr.bf16.mxu0 0
        %3329 = vmatpush1.bf16.msra.mxu0 %v716
        %3330 = vmatprep.subr.bf16.mxu0 0
        %3331 = vmatpush1.bf16.msra.mxu0 %v719
        %3332 = vmatprep.subr.bf16.mxu0 0
        %3333 = vmatpush1.bf16.msra.mxu0 %v722
        %3334 = vmatprep.subr.bf16.mxu0 0
        %3335 = vmatpush1.bf16.msra.mxu0 %v725
        %3336 = vmatprep.subr.bf16.mxu0 0
        %3337 = vmatpush1.bf16.msra.mxu0 0
        %3338 = vmatprep.subr.bf16.mxu0 0
        %3339 = vmatpush1.bf16.msra.mxu0 0
        %3340 = vmatprep.subr.bf16.mxu0 0
        %3341 = vmatpush1.bf16.msra.mxu0 0
        %3342 = vmatprep.subr.bf16.mxu0 0
        %3343 = vmatpush1.bf16.msra.mxu0 0
        %3344 = vmatprep.subr.bf16.mxu0 0
        %3345 = vmatpush1.bf16.msra.mxu0 0
        %3346 = vmatprep.subr.bf16.mxu0 0
        %3347 = vmatpush1.bf16.msra.mxu0 0
        %3348 = vmatprep.subr.bf16.mxu0 0
        %3349 = vmatpush1.bf16.msra.mxu0 0
        %3350 = vmatprep.subr.bf16.mxu0 0
        %3351 = vmatpush1.bf16.msra.mxu0 0
        %3352 = vmatprep.mubr.bf16.mxu0 0
        %3353 = vmatmul.mubr.bf16.gmra.mrb[0].mxu0 %v3036
        %v3354 = vpop.f32.mrb[0].mxu0
        %v3355 = vadd.f32 0.0, %v3354
        %v3356 = vpop.f32.mrb[0].mxu0
        %v3357 = vpop.f32.mrb[0].mxu0
        %v3358 = vadd.f32 0.0, %v3357
        %v3359 = vpop.f32.mrb[0].mxu0
        %3360 = vdwg.mxu0
        %v3361 = vadd.f32 %v3271, %v3312
        %v3362 = vadd.f32 %v3272, %v3314
        %v3363 = vadd.f32 %v3274, %v3316
        %v3364 = vadd.f32 %v3275, %v3318
        %v3365 = vxor.u32 %v3361, 2147483648
        %v3366 = vxor.u32 %v3362, 2147483648
        %v3367 = vxor.u32 %v3363, 2147483648
        %v3368 = vxor.u32 %v3364, 2147483648
        %v3369 = vmul.f32 %v3365, 1.442695
        %v3370 = vpow.pop %v3369
        %v3371 = vmul.f32 %v3366, 1.442695
        %v3372 = vpow.pop %v3371
        %v3373 = vmul.f32 %v3367, 1.442695
        %v3374 = vpow.pop %v3373
        %v3375 = vmul.f32 %v3368, 1.442695
        %v3376 = vpow.pop %v3375
        %v3377 = vadd.f32 %v3370, 1.0
        %v3378 = vadd.f32 %v3372, 1.0
        %v3379 = vadd.f32 %v3374, 1.0
        %v3380 = vadd.f32 %v3376, 1.0
        %v3381 = vrcp.pop %v3377
        %v3382 = vmul.f32 1.0, %v3381
        %v3383 = vrcp.pop %v3378
        %v3384 = vmul.f32 1.0, %v3383
        %v3385 = vrcp.pop %v3379
        %v3386 = vmul.f32 1.0, %v3385
        %v3387 = vrcp.pop %v3380
        %v3388 = vmul.f32 1.0, %v3387
        %v3389 = vadd.f32 %v3355, %v866
        %v3390 = vadd.f32 %v3358, %v866
        %v3391 = vmul.f32 %v3382, %v3389
        %v3392 = vmul.f32 %v3386, %v3390
        %v3393 = vadd.f32 %v3273, %v3391
        %v3394 = vadd.f32 %v3276, %v3392
        %v3395 = vtanh.pop %v3393
        %v3396 = vtanh.pop %v3394
        %v3397 = vsub.f32 %v3034, %v3395
        %v3398 = vsub.f32 %v3035, %v3396
        %v3399 = vmul.f32 %v3384, %v3397
        %v3400 = vmul.f32 %v3388, %v3398
        %v3401 = vadd.f32 %v3395, %v3399
        %v3402 = vadd.f32 %v3396, %v3400
        %s3403 = sadd.s32 %s583, 6
        %p3404 = scmp.lt.s32.totalorder %s3403, 18
        %s3405 = scalar_select %p3404, 1, 0
        %v3406 = vstv %s3405
        %vm3407 = vcmp.eq.s32.totalorder %v3406, 1
        %v3408 = vsel %vm3407, %v3401, %v3034
        %v3409 = vsel %vm3407, %v3402, %v3035
        %v3410 = vpack.c.bf16 %v3409, %v3408
        %3411 = vmatprep.subr.bf16.mxu0 %v971
        %3412 = vmatpush1.bf16.msra.mxu0 %v970
        %3413 = vmatprep.subr.bf16.mxu0 %v974
        %3414 = vmatpush1.bf16.msra.mxu0 %v973
        %3415 = vmatprep.subr.bf16.mxu0 %v977
        %3416 = vmatpush1.bf16.msra.mxu0 %v976
        %3417 = vmatprep.subr.bf16.mxu0 %v980
        %3418 = vmatpush1.bf16.msra.mxu0 %v979
        %3419 = vmatprep.subr.bf16.mxu0 %v983
        %3420 = vmatpush1.bf16.msra.mxu0 %v982
        %3421 = vmatprep.subr.bf16.mxu0 %v986
        %3422 = vmatpush1.bf16.msra.mxu0 %v985
        %3423 = vmatprep.subr.bf16.mxu0 %v989
        %3424 = vmatpush1.bf16.msra.mxu0 %v988
        %3425 = vmatprep.subr.bf16.mxu0 %v992
        %3426 = vmatpush1.bf16.msra.mxu0 %v991
        %3427 = vmatprep.subr.bf16.mxu0 0
        %3428 = vmatpush1.bf16.msra.mxu0 0
        %3429 = vmatprep.subr.bf16.mxu0 0
        %3430 = vmatpush1.bf16.msra.mxu0 0
        %3431 = vmatprep.subr.bf16.mxu0 0
        %3432 = vmatpush1.bf16.msra.mxu0 0
        %3433 = vmatprep.subr.bf16.mxu0 0
        %3434 = vmatpush1.bf16.msra.mxu0 0
        %3435 = vmatprep.subr.bf16.mxu0 0
        %3436 = vmatpush1.bf16.msra.mxu0 0
        %3437 = vmatprep.subr.bf16.mxu0 0
        %3438 = vmatpush1.bf16.msra.mxu0 0
        %3439 = vmatprep.subr.bf16.mxu0 0
        %3440 = vmatpush1.bf16.msra.mxu0 0
        %3441 = vmatprep.subr.bf16.mxu0 0
        %3442 = vmatpush1.bf16.msra.mxu0 0
        %3443 = vmatprep.mubr.bf16.mxu0 0
        %3444 = vmatmul.mubr.bf16.gmra.mrb[0].mxu0 %v3249
        %v3445 = vpop.f32.mrb[0].mxu0
        %v3446 = vadd.f32 0.0, %v3445
        %v3447 = vpop.f32.mrb[0].mxu0
        %v3448 = vadd.f32 0.0, %v3447
        %v3449 = vpop.f32.mrb[0].mxu0
        %v3450 = vadd.f32 0.0, %v3449
        %v3451 = vpop.f32.mrb[0].mxu0
        %v3452 = vadd.f32 0.0, %v3451
        %3453 = vdwg.mxu0
        %3454 = vmatprep.subr.bf16.mxu0 0
        %3455 = vmatpush1.bf16.msra.mxu0 %v972
        %3456 = vmatprep.subr.bf16.mxu0 0
        %3457 = vmatpush1.bf16.msra.mxu0 %v975
        %3458 = vmatprep.subr.bf16.mxu0 0
        %3459 = vmatpush1.bf16.msra.mxu0 %v978
        %3460 = vmatprep.subr.bf16.mxu0 0
        %3461 = vmatpush1.bf16.msra.mxu0 %v981
        %3462 = vmatprep.subr.bf16.mxu0 0
        %3463 = vmatpush1.bf16.msra.mxu0 %v984
        %3464 = vmatprep.subr.bf16.mxu0 0
        %3465 = vmatpush1.bf16.msra.mxu0 %v987
        %3466 = vmatprep.subr.bf16.mxu0 0
        %3467 = vmatpush1.bf16.msra.mxu0 %v990
        %3468 = vmatprep.subr.bf16.mxu0 0
        %3469 = vmatpush1.bf16.msra.mxu0 %v993
        %3470 = vmatprep.subr.bf16.mxu0 0
        %3471 = vmatpush1.bf16.msra.mxu0 0
        %3472 = vmatprep.subr.bf16.mxu0 0
        %3473 = vmatpush1.bf16.msra.mxu0 0
        %3474 = vmatprep.subr.bf16.mxu0 0
        %3475 = vmatpush1.bf16.msra.mxu0 0
        %3476 = vmatprep.subr.bf16.mxu0 0
        %3477 = vmatpush1.bf16.msra.mxu0 0
        %3478 = vmatprep.subr.bf16.mxu0 0
        %3479 = vmatpush1.bf16.msra.mxu0 0
        %3480 = vmatprep.subr.bf16.mxu0 0
        %3481 = vmatpush1.bf16.msra.mxu0 0
        %3482 = vmatprep.subr.bf16.mxu0 0
        %3483 = vmatpush1.bf16.msra.mxu0 0
        %3484 = vmatprep.subr.bf16.mxu0 0
        %3485 = vmatpush1.bf16.msra.mxu0 0
        %3486 = vmatprep.mubr.bf16.mxu0 0
        %3487 = vmatmul.mubr.bf16.gmra.mrb[0].mxu0 %v3249
        %v3488 = vpop.f32.mrb[0].mxu0
        %v3489 = vadd.f32 0.0, %v3488
        %v3490 = vpop.f32.mrb[0].mxu0
        %v3491 = vpop.f32.mrb[0].mxu0
        %v3492 = vadd.f32 0.0, %v3491
        %v3493 = vpop.f32.mrb[0].mxu0
        %3494 = vdwg.mxu0
        %3495 = vmatprep.subr.bf16.mxu0 %v1199
        %3496 = vmatpush1.bf16.msra.mxu0 %v1198
        %3497 = vmatprep.subr.bf16.mxu0 %v1202
        %3498 = vmatpush1.bf16.msra.mxu0 %v1201
        %3499 = vmatprep.subr.bf16.mxu0 %v1205
        %3500 = vmatpush1.bf16.msra.mxu0 %v1204
        %3501 = vmatprep.subr.bf16.mxu0 %v1208
        %3502 = vmatpush1.bf16.msra.mxu0 %v1207
        %3503 = vmatprep.subr.bf16.mxu0 %v1211
        %3504 = vmatpush1.bf16.msra.mxu0 %v1210
        %3505 = vmatprep.subr.bf16.mxu0 %v1214
        %3506 = vmatpush1.bf16.msra.mxu0 %v1213
        %3507 = vmatprep.subr.bf16.mxu0 %v1217
        %3508 = vmatpush1.bf16.msra.mxu0 %v1216
        %3509 = vmatprep.subr.bf16.mxu0 %v1220
        %3510 = vmatpush1.bf16.msra.mxu0 %v1219
        %3511 = vmatprep.subr.bf16.mxu0 0
        %3512 = vmatpush1.bf16.msra.mxu0 0
        %3513 = vmatprep.subr.bf16.mxu0 0
        %3514 = vmatpush1.bf16.msra.mxu0 0
        %3515 = vmatprep.subr.bf16.mxu0 0
        %3516 = vmatpush1.bf16.msra.mxu0 0
        %3517 = vmatprep.subr.bf16.mxu0 0
        %3518 = vmatpush1.bf16.msra.mxu0 0
        %3519 = vmatprep.subr.bf16.mxu0 0
        %3520 = vmatpush1.bf16.msra.mxu0 0
        %3521 = vmatprep.subr.bf16.mxu0 0
        %3522 = vmatpush1.bf16.msra.mxu0 0
        %3523 = vmatprep.subr.bf16.mxu0 0
        %3524 = vmatpush1.bf16.msra.mxu0 0
        %3525 = vmatprep.subr.bf16.mxu0 0
        %3526 = vmatpush1.bf16.msra.mxu0 0
        %3527 = vmatprep.mubr.bf16.mxu0 0
        %3528 = vmatmul.mubr.bf16.gmra.mrb[0].mxu0 %v3410
        %v3529 = vpop.f32.mrb[0].mxu0
        %v3530 = vadd.f32 %v1106, %v3529
        %v3531 = vpop.f32.mrb[0].mxu0
        %v3532 = vadd.f32 %v1110, %v3531
        %v3533 = vpop.f32.mrb[0].mxu0
        %v3534 = vadd.f32 %v1106, %v3533
        %v3535 = vpop.f32.mrb[0].mxu0
        %v3536 = vadd.f32 %v1110, %v3535
        %3537 = vdwg.mxu0
        %3538 = vmatprep.subr.bf16.mxu0 0
        %3539 = vmatpush1.bf16.msra.mxu0 %v1200
        %3540 = vmatprep.subr.bf16.mxu0 0
        %3541 = vmatpush1.bf16.msra.mxu0 %v1203
        %3542 = vmatprep.subr.bf16.mxu0 0
        %3543 = vmatpush1.bf16.msra.mxu0 %v1206
        %3544 = vmatprep.subr.bf16.mxu0 0
        %3545 = vmatpush1.bf16.msra.mxu0 %v1209
        %3546 = vmatprep.subr.bf16.mxu0 0
        %3547 = vmatpush1.bf16.msra.mxu0 %v1212
        %3548 = vmatprep.subr.bf16.mxu0 0
        %3549 = vmatpush1.bf16.msra.mxu0 %v1215
        %3550 = vmatprep.subr.bf16.mxu0 0
        %3551 = vmatpush1.bf16.msra.mxu0 %v1218
        %3552 = vmatprep.subr.bf16.mxu0 0
        %3553 = vmatpush1.bf16.msra.mxu0 %v1221
        %3554 = vmatprep.subr.bf16.mxu0 0
        %3555 = vmatpush1.bf16.msra.mxu0 0
        %3556 = vmatprep.subr.bf16.mxu0 0
        %3557 = vmatpush1.bf16.msra.mxu0 0
        %3558 = vmatprep.subr.bf16.mxu0 0
        %3559 = vmatpush1.bf16.msra.mxu0 0
        %3560 = vmatprep.subr.bf16.mxu0 0
        %3561 = vmatpush1.bf16.msra.mxu0 0
        %3562 = vmatprep.subr.bf16.mxu0 0
        %3563 = vmatpush1.bf16.msra.mxu0 0
        %3564 = vmatprep.subr.bf16.mxu0 0
        %3565 = vmatpush1.bf16.msra.mxu0 0
        %3566 = vmatprep.subr.bf16.mxu0 0
        %3567 = vmatpush1.bf16.msra.mxu0 0
        %3568 = vmatprep.subr.bf16.mxu0 0
        %3569 = vmatpush1.bf16.msra.mxu0 0
        %3570 = vmatprep.mubr.bf16.mxu0 0
        %3571 = vmatmul.mubr.bf16.gmra.mrb[0].mxu0 %v3410
        %v3572 = vpop.f32.mrb[0].mxu0
        %v3573 = vadd.f32 %v1114, %v3572
        %v3574 = vpop.f32.mrb[0].mxu0
        %v3575 = vpop.f32.mrb[0].mxu0
        %v3576 = vadd.f32 %v1114, %v3575
        %v3577 = vpop.f32.mrb[0].mxu0
        %3578 = vdwg.mxu0
        %v3579 = vadd.f32 %v3530, %v3446
        %v3580 = vadd.f32 %v3532, %v3448
        %v3581 = vadd.f32 %v3534, %v3450
        %v3582 = vadd.f32 %v3536, %v3452
        %v3583 = vxor.u32 %v3579, 2147483648
        %v3584 = vxor.u32 %v3580, 2147483648
        %v3585 = vxor.u32 %v3581, 2147483648
        %v3586 = vxor.u32 %v3582, 2147483648
        %v3587 = vmul.f32 %v3583, 1.442695
        %v3588 = vpow.pop %v3587
        %v3589 = vmul.f32 %v3584, 1.442695
        %v3590 = vpow.pop %v3589
        %v3591 = vmul.f32 %v3585, 1.442695
        %v3592 = vpow.pop %v3591
        %v3593 = vmul.f32 %v3586, 1.442695
        %v3594 = vpow.pop %v3593
        %v3595 = vadd.f32 %v3588, 1.0
        %v3596 = vadd.f32 %v3590, 1.0
        %v3597 = vadd.f32 %v3592, 1.0
        %v3598 = vadd.f32 %v3594, 1.0
        %v3599 = vrcp.pop %v3595
        %v3600 = vmul.f32 1.0, %v3599
        %v3601 = vrcp.pop %v3596
        %v3602 = vmul.f32 1.0, %v3601
        %v3603 = vrcp.pop %v3597
        %v3604 = vmul.f32 1.0, %v3603
        %v3605 = vrcp.pop %v3598
        %v3606 = vmul.f32 1.0, %v3605
        %v3607 = vadd.f32 %v3489, %v1362
        %v3608 = vadd.f32 %v3492, %v1362
        %v3609 = vmul.f32 %v3600, %v3607
        %v3610 = vmul.f32 %v3604, %v3608
        %v3611 = vadd.f32 %v3573, %v3609
        %v3612 = vadd.f32 %v3576, %v3610
        %v3613 = vtanh.pop %v3611
        %v3614 = vtanh.pop %v3612
        %v3615 = vsub.f32 %v3247, %v3613
        %v3616 = vsub.f32 %v3248, %v3614
        %v3617 = vmul.f32 %v3602, %v3615
        %v3618 = vmul.f32 %v3606, %v3616
        %v3619 = vadd.f32 %v3613, %v3617
        %v3620 = vadd.f32 %v3614, %v3618
        %v3621 = vsel %vm3407, %v3619, %v3247
        %v3622 = vsel %vm3407, %v3620, %v3248
        %v3623 = vpack.c.bf16 %v3622, %v3621
        %v3625 = vunpack.c.l.b16 %v3623
        %v3626 = vunpack.c.h.b16 %v3623
        %v3627 = vpack.c.b16 %v3625, %v3625
        %v3628 = vpack.c.b16 %v3626, %v3626
        %s3631 = scalar_lea.vmem %s466, 48 [#allocation16]
        %3632 = vst [vmem:[%s3631] sm:$0xf] %v3627
        %3633 = vst [vmem:[%s3631 + $0x4] sm:$0xf] %v3628
        %s3634 = scalar_lea.vmem %s406, 168 [#allocation2]
        %v3635 = vld [vmem:[%s3634] sm:$0xff]
        %v3636 = vld [vmem:[%s3634 + $0x8] sm:$0xf]
        %v3637 = vld [vmem:[%s3634 + $0xc] sm:$0xff]
        %v3638 = vld [vmem:[%s3634 + $0x14] sm:$0xf]
        %v3639 = vunpack.c.l.bf16 %v3635
        %v3640 = vunpack.c.h.bf16 %v3635
        %v3641 = vunpack.c.l.bf16 %v3636
        %v3642 = vunpack.c.l.bf16 %v3637
        %v3643 = vunpack.c.h.bf16 %v3637
        %v3644 = vunpack.c.l.bf16 %v3638
        %v3645 = vadd.f32 %v3639, %v603
        %v3646 = vadd.f32 %v3640, %v607
        %v3647 = vadd.f32 %v3641, %v611
        %v3648 = vadd.f32 %v3642, %v603
        %v3649 = vadd.f32 %v3643, %v607
        %v3650 = vadd.f32 %v3644, %v611
        %3651 = vmatprep.subr.bf16.mxu0 %v703
        %3652 = vmatpush1.bf16.msra.mxu0 %v702
        %3653 = vmatprep.subr.bf16.mxu0 %v706
        %3654 = vmatpush1.bf16.msra.mxu0 %v705
        %3655 = vmatprep.subr.bf16.mxu0 %v709
        %3656 = vmatpush1.bf16.msra.mxu0 %v708
        %3657 = vmatprep.subr.bf16.mxu0 %v712
        %3658 = vmatpush1.bf16.msra.mxu0 %v711
        %3659 = vmatprep.subr.bf16.mxu0 %v715
        %3660 = vmatpush1.bf16.msra.mxu0 %v714
        %3661 = vmatprep.subr.bf16.mxu0 %v718
        %3662 = vmatpush1.bf16.msra.mxu0 %v717
        %3663 = vmatprep.subr.bf16.mxu0 %v721
        %3664 = vmatpush1.bf16.msra.mxu0 %v720
        %3665 = vmatprep.subr.bf16.mxu0 %v724
        %3666 = vmatpush1.bf16.msra.mxu0 %v723
        %3667 = vmatprep.subr.bf16.mxu0 0
        %3668 = vmatpush1.bf16.msra.mxu0 0
        %3669 = vmatprep.subr.bf16.mxu0 0
        %3670 = vmatpush1.bf16.msra.mxu0 0
        %3671 = vmatprep.subr.bf16.mxu0 0
        %3672 = vmatpush1.bf16.msra.mxu0 0
        %3673 = vmatprep.subr.bf16.mxu0 0
        %3674 = vmatpush1.bf16.msra.mxu0 0
        %3675 = vmatprep.subr.bf16.mxu0 0
        %3676 = vmatpush1.bf16.msra.mxu0 0
        %3677 = vmatprep.subr.bf16.mxu0 0
        %3678 = vmatpush1.bf16.msra.mxu0 0
        %3679 = vmatprep.subr.bf16.mxu0 0
        %3680 = vmatpush1.bf16.msra.mxu0 0
        %3681 = vmatprep.subr.bf16.mxu0 0
        %3682 = vmatpush1.bf16.msra.mxu0 0
        %3683 = vmatprep.mubr.bf16.mxu0 0
        %3684 = vmatmul.mubr.bf16.gmra.mrb[0].mxu0 %v3410
        %v3685 = vpop.f32.mrb[0].mxu0
        %v3686 = vadd.f32 0.0, %v3685
        %v3687 = vpop.f32.mrb[0].mxu0
        %v3688 = vadd.f32 0.0, %v3687
        %v3689 = vpop.f32.mrb[0].mxu0
        %v3690 = vadd.f32 0.0, %v3689
        %v3691 = vpop.f32.mrb[0].mxu0
        %v3692 = vadd.f32 0.0, %v3691
        %3693 = vdwg.mxu0
        %3694 = vmatprep.subr.bf16.mxu0 0
        %3695 = vmatpush1.bf16.msra.mxu0 %v704
        %3696 = vmatprep.subr.bf16.mxu0 0
        %3697 = vmatpush1.bf16.msra.mxu0 %v707
        %3698 = vmatprep.subr.bf16.mxu0 0
        %3699 = vmatpush1.bf16.msra.mxu0 %v710
        %3700 = vmatprep.subr.bf16.mxu0 0
        %3701 = vmatpush1.bf16.msra.mxu0 %v713
        %3702 = vmatprep.subr.bf16.mxu0 0
        %3703 = vmatpush1.bf16.msra.mxu0 %v716
        %3704 = vmatprep.subr.bf16.mxu0 0
        %3705 = vmatpush1.bf16.msra.mxu0 %v719
        %3706 = vmatprep.subr.bf16.mxu0 0
        %3707 = vmatpush1.bf16.msra.mxu0 %v722
        %3708 = vmatprep.subr.bf16.mxu0 0
        %3709 = vmatpush1.bf16.msra.mxu0 %v725
        %3710 = vmatprep.subr.bf16.mxu0 0
        %3711 = vmatpush1.bf16.msra.mxu0 0
        %3712 = vmatprep.subr.bf16.mxu0 0
        %3713 = vmatpush1.bf16.msra.mxu0 0
        %3714 = vmatprep.subr.bf16.mxu0 0
        %3715 = vmatpush1.bf16.msra.mxu0 0
        %3716 = vmatprep.subr.bf16.mxu0 0
        %3717 = vmatpush1.bf16.msra.mxu0 0
        %3718 = vmatprep.subr.bf16.mxu0 0
        %3719 = vmatpush1.bf16.msra.mxu0 0
        %3720 = vmatprep.subr.bf16.mxu0 0
        %3721 = vmatpush1.bf16.msra.mxu0 0
        %3722 = vmatprep.subr.bf16.mxu0 0
        %3723 = vmatpush1.bf16.msra.mxu0 0
        %3724 = vmatprep.subr.bf16.mxu0 0
        %3725 = vmatpush1.bf16.msra.mxu0 0
        %3726 = vmatprep.mubr.bf16.mxu0 0
        %3727 = vmatmul.mubr.bf16.gmra.mrb[0].mxu0 %v3410
        %v3728 = vpop.f32.mrb[0].mxu0
        %v3729 = vadd.f32 0.0, %v3728
        %v3730 = vpop.f32.mrb[0].mxu0
        %v3731 = vpop.f32.mrb[0].mxu0
        %v3732 = vadd.f32 0.0, %v3731
        %v3733 = vpop.f32.mrb[0].mxu0
        %3734 = vdwg.mxu0
        %v3735 = vadd.f32 %v3645, %v3686
        %v3736 = vadd.f32 %v3646, %v3688
        %v3737 = vadd.f32 %v3648, %v3690
        %v3738 = vadd.f32 %v3649, %v3692
        %v3739 = vxor.u32 %v3735, 2147483648
        %v3740 = vxor.u32 %v3736, 2147483648
        %v3741 = vxor.u32 %v3737, 2147483648
        %v3742 = vxor.u32 %v3738, 2147483648
        %v3743 = vmul.f32 %v3739, 1.442695
        %v3744 = vpow.pop %v3743
        %v3745 = vmul.f32 %v3740, 1.442695
        %v3746 = vpow.pop %v3745
        %v3747 = vmul.f32 %v3741, 1.442695
        %v3748 = vpow.pop %v3747
        %v3749 = vmul.f32 %v3742, 1.442695
        %v3750 = vpow.pop %v3749
        %v3751 = vadd.f32 %v3744, 1.0
        %v3752 = vadd.f32 %v3746, 1.0
        %v3753 = vadd.f32 %v3748, 1.0
        %v3754 = vadd.f32 %v3750, 1.0
        %v3755 = vrcp.pop %v3751
        %v3756 = vmul.f32 1.0, %v3755
        %v3757 = vrcp.pop %v3752
        %v3758 = vmul.f32 1.0, %v3757
        %v3759 = vrcp.pop %v3753
        %v3760 = vmul.f32 1.0, %v3759
        %v3761 = vrcp.pop %v3754
        %v3762 = vmul.f32 1.0, %v3761
        %v3763 = vadd.f32 %v3729, %v866
        %v3764 = vadd.f32 %v3732, %v866
        %v3765 = vmul.f32 %v3756, %v3763
        %v3766 = vmul.f32 %v3760, %v3764
        %v3767 = vadd.f32 %v3647, %v3765
        %v3768 = vadd.f32 %v3650, %v3766
        %v3769 = vtanh.pop %v3767
        %v3770 = vtanh.pop %v3768
        %v3771 = vsub.f32 %v3408, %v3769
        %v3772 = vsub.f32 %v3409, %v3770
        %v3773 = vmul.f32 %v3758, %v3771
        %v3774 = vmul.f32 %v3762, %v3772
        %v3775 = vadd.f32 %v3769, %v3773
        %v3776 = vadd.f32 %v3770, %v3774
        %s3777 = sadd.s32 %s583, 7
        %p3778 = scmp.lt.s32.totalorder %s3777, 18
        %s3779 = scalar_select %p3778, 1, 0
        %v3780 = vstv %s3779
        %vm3781 = vcmp.eq.s32.totalorder %v3780, 1
        %v3782 = vsel %vm3781, %v3775, %v3408
        %v3783 = vsel %vm3781, %v3776, %v3409
        %v3784 = vpack.c.bf16 %v3783, %v3782
        %3785 = vmatprep.subr.bf16.mxu0 %v971
        %3786 = vmatpush1.bf16.msra.mxu0 %v970
        %3787 = vmatprep.subr.bf16.mxu0 %v974
        %3788 = vmatpush1.bf16.msra.mxu0 %v973
        %3789 = vmatprep.subr.bf16.mxu0 %v977
        %3790 = vmatpush1.bf16.msra.mxu0 %v976
        %3791 = vmatprep.subr.bf16.mxu0 %v980
        %3792 = vmatpush1.bf16.msra.mxu0 %v979
        %3793 = vmatprep.subr.bf16.mxu0 %v983
        %3794 = vmatpush1.bf16.msra.mxu0 %v982
        %3795 = vmatprep.subr.bf16.mxu0 %v986
        %3796 = vmatpush1.bf16.msra.mxu0 %v985
        %3797 = vmatprep.subr.bf16.mxu0 %v989
        %3798 = vmatpush1.bf16.msra.mxu0 %v988
        %3799 = vmatprep.subr.bf16.mxu0 %v992
        %3800 = vmatpush1.bf16.msra.mxu0 %v991
        %3801 = vmatprep.subr.bf16.mxu0 0
        %3802 = vmatpush1.bf16.msra.mxu0 0
        %3803 = vmatprep.subr.bf16.mxu0 0
        %3804 = vmatpush1.bf16.msra.mxu0 0
        %3805 = vmatprep.subr.bf16.mxu0 0
        %3806 = vmatpush1.bf16.msra.mxu0 0
        %3807 = vmatprep.subr.bf16.mxu0 0
        %3808 = vmatpush1.bf16.msra.mxu0 0
        %3809 = vmatprep.subr.bf16.mxu0 0
        %3810 = vmatpush1.bf16.msra.mxu0 0
        %3811 = vmatprep.subr.bf16.mxu0 0
        %3812 = vmatpush1.bf16.msra.mxu0 0
        %3813 = vmatprep.subr.bf16.mxu0 0
        %3814 = vmatpush1.bf16.msra.mxu0 0
        %3815 = vmatprep.subr.bf16.mxu0 0
        %3816 = vmatpush1.bf16.msra.mxu0 0
        %3817 = vmatprep.mubr.bf16.mxu0 0
        %3818 = vmatmul.mubr.bf16.gmra.mrb[0].mxu0 %v3623
        %v3819 = vpop.f32.mrb[0].mxu0
        %v3820 = vadd.f32 0.0, %v3819
        %v3821 = vpop.f32.mrb[0].mxu0
        %v3822 = vadd.f32 0.0, %v3821
        %v3823 = vpop.f32.mrb[0].mxu0
        %v3824 = vadd.f32 0.0, %v3823
        %v3825 = vpop.f32.mrb[0].mxu0
        %v3826 = vadd.f32 0.0, %v3825
        %3827 = vdwg.mxu0
        %3828 = vmatprep.subr.bf16.mxu0 0
        %3829 = vmatpush1.bf16.msra.mxu0 %v972
        %3830 = vmatprep.subr.bf16.mxu0 0
        %3831 = vmatpush1.bf16.msra.mxu0 %v975
        %3832 = vmatprep.subr.bf16.mxu0 0
        %3833 = vmatpush1.bf16.msra.mxu0 %v978
        %3834 = vmatprep.subr.bf16.mxu0 0
        %3835 = vmatpush1.bf16.msra.mxu0 %v981
        %3836 = vmatprep.subr.bf16.mxu0 0
        %3837 = vmatpush1.bf16.msra.mxu0 %v984
        %3838 = vmatprep.subr.bf16.mxu0 0
        %3839 = vmatpush1.bf16.msra.mxu0 %v987
        %3840 = vmatprep.subr.bf16.mxu0 0
        %3841 = vmatpush1.bf16.msra.mxu0 %v990
        %3842 = vmatprep.subr.bf16.mxu0 0
        %3843 = vmatpush1.bf16.msra.mxu0 %v993
        %3844 = vmatprep.subr.bf16.mxu0 0
        %3845 = vmatpush1.bf16.msra.mxu0 0
        %3846 = vmatprep.subr.bf16.mxu0 0
        %3847 = vmatpush1.bf16.msra.mxu0 0
        %3848 = vmatprep.subr.bf16.mxu0 0
        %3849 = vmatpush1.bf16.msra.mxu0 0
        %3850 = vmatprep.subr.bf16.mxu0 0
        %3851 = vmatpush1.bf16.msra.mxu0 0
        %3852 = vmatprep.subr.bf16.mxu0 0
        %3853 = vmatpush1.bf16.msra.mxu0 0
        %3854 = vmatprep.subr.bf16.mxu0 0
        %3855 = vmatpush1.bf16.msra.mxu0 0
        %3856 = vmatprep.subr.bf16.mxu0 0
        %3857 = vmatpush1.bf16.msra.mxu0 0
        %3858 = vmatprep.subr.bf16.mxu0 0
        %3859 = vmatpush1.bf16.msra.mxu0 0
        %3860 = vmatprep.mubr.bf16.mxu0 0
        %3861 = vmatmul.mubr.bf16.gmra.mrb[0].mxu0 %v3623
        %v3862 = vpop.f32.mrb[0].mxu0
        %v3863 = vadd.f32 0.0, %v3862
        %v3864 = vpop.f32.mrb[0].mxu0
        %v3865 = vpop.f32.mrb[0].mxu0
        %v3866 = vadd.f32 0.0, %v3865
        %v3867 = vpop.f32.mrb[0].mxu0
        %3868 = vdwg.mxu0
        %3869 = vmatprep.subr.bf16.mxu0 %v1199
        %3870 = vmatpush1.bf16.msra.mxu0 %v1198
        %3871 = vmatprep.subr.bf16.mxu0 %v1202
        %3872 = vmatpush1.bf16.msra.mxu0 %v1201
        %3873 = vmatprep.subr.bf16.mxu0 %v1205
        %3874 = vmatpush1.bf16.msra.mxu0 %v1204
        %3875 = vmatprep.subr.bf16.mxu0 %v1208
        %3876 = vmatpush1.bf16.msra.mxu0 %v1207
        %3877 = vmatprep.subr.bf16.mxu0 %v1211
        %3878 = vmatpush1.bf16.msra.mxu0 %v1210
        %3879 = vmatprep.subr.bf16.mxu0 %v1214
        %3880 = vmatpush1.bf16.msra.mxu0 %v1213
        %3881 = vmatprep.subr.bf16.mxu0 %v1217
        %3882 = vmatpush1.bf16.msra.mxu0 %v1216
        %3883 = vmatprep.subr.bf16.mxu0 %v1220
        %3884 = vmatpush1.bf16.msra.mxu0 %v1219
        %3885 = vmatprep.subr.bf16.mxu0 0
        %3886 = vmatpush1.bf16.msra.mxu0 0
        %3887 = vmatprep.subr.bf16.mxu0 0
        %3888 = vmatpush1.bf16.msra.mxu0 0
        %3889 = vmatprep.subr.bf16.mxu0 0
        %3890 = vmatpush1.bf16.msra.mxu0 0
        %3891 = vmatprep.subr.bf16.mxu0 0
        %3892 = vmatpush1.bf16.msra.mxu0 0
        %3893 = vmatprep.subr.bf16.mxu0 0
        %3894 = vmatpush1.bf16.msra.mxu0 0
        %3895 = vmatprep.subr.bf16.mxu0 0
        %3896 = vmatpush1.bf16.msra.mxu0 0
        %3897 = vmatprep.subr.bf16.mxu0 0
        %3898 = vmatpush1.bf16.msra.mxu0 0
        %3899 = vmatprep.subr.bf16.mxu0 0
        %3900 = vmatpush1.bf16.msra.mxu0 0
        %3901 = vmatprep.mubr.bf16.mxu0 0
        %3902 = vmatmul.mubr.bf16.gmra.mrb[0].mxu0 %v3784
        %v3903 = vpop.f32.mrb[0].mxu0
        %v3904 = vadd.f32 %v1106, %v3903
        %v3905 = vpop.f32.mrb[0].mxu0
        %v3906 = vadd.f32 %v1110, %v3905
        %v3907 = vpop.f32.mrb[0].mxu0
        %v3908 = vadd.f32 %v1106, %v3907
        %v3909 = vpop.f32.mrb[0].mxu0
        %v3910 = vadd.f32 %v1110, %v3909
        %3911 = vdwg.mxu0
        %3912 = vmatprep.subr.bf16.mxu0 0
        %3913 = vmatpush1.bf16.msra.mxu0 %v1200
        %3914 = vmatprep.subr.bf16.mxu0 0
        %3915 = vmatpush1.bf16.msra.mxu0 %v1203
        %3916 = vmatprep.subr.bf16.mxu0 0
        %3917 = vmatpush1.bf16.msra.mxu0 %v1206
        %3918 = vmatprep.subr.bf16.mxu0 0
        %3919 = vmatpush1.bf16.msra.mxu0 %v1209
        %3920 = vmatprep.subr.bf16.mxu0 0
        %3921 = vmatpush1.bf16.msra.mxu0 %v1212
        %3922 = vmatprep.subr.bf16.mxu0 0
        %3923 = vmatpush1.bf16.msra.mxu0 %v1215
        %3924 = vmatprep.subr.bf16.mxu0 0
        %3925 = vmatpush1.bf16.msra.mxu0 %v1218
        %3926 = vmatprep.subr.bf16.mxu0 0
        %3927 = vmatpush1.bf16.msra.mxu0 %v1221
        %3928 = vmatprep.subr.bf16.mxu0 0
        %3929 = vmatpush1.bf16.msra.mxu0 0
        %3930 = vmatprep.subr.bf16.mxu0 0
        %3931 = vmatpush1.bf16.msra.mxu0 0
        %3932 = vmatprep.subr.bf16.mxu0 0
        %3933 = vmatpush1.bf16.msra.mxu0 0
        %3934 = vmatprep.subr.bf16.mxu0 0
        %3935 = vmatpush1.bf16.msra.mxu0 0
        %3936 = vmatprep.subr.bf16.mxu0 0
        %3937 = vmatpush1.bf16.msra.mxu0 0
        %3938 = vmatprep.subr.bf16.mxu0 0
        %3939 = vmatpush1.bf16.msra.mxu0 0
        %3940 = vmatprep.subr.bf16.mxu0 0
        %3941 = vmatpush1.bf16.msra.mxu0 0
        %3942 = vmatprep.subr.bf16.mxu0 0
        %3943 = vmatpush1.bf16.msra.mxu0 0
        %3944 = vmatprep.mubr.bf16.mxu0 0
        %3945 = vmatmul.mubr.bf16.gmra.mrb[0].mxu0 %v3784
        %v3946 = vpop.f32.mrb[0].mxu0
        %v3947 = vadd.f32 %v1114, %v3946
        %v3948 = vpop.f32.mrb[0].mxu0
        %v3949 = vpop.f32.mrb[0].mxu0
        %v3950 = vadd.f32 %v1114, %v3949
        %v3951 = vpop.f32.mrb[0].mxu0
        %3952 = vdwg.mxu0
        %v3953 = vadd.f32 %v3904, %v3820
        %v3954 = vadd.f32 %v3906, %v3822
        %v3955 = vadd.f32 %v3908, %v3824
        %v3956 = vadd.f32 %v3910, %v3826
        %v3957 = vxor.u32 %v3953, 2147483648
        %v3958 = vxor.u32 %v3954, 2147483648
        %v3959 = vxor.u32 %v3955, 2147483648
        %v3960 = vxor.u32 %v3956, 2147483648
        %v3961 = vmul.f32 %v3957, 1.442695
        %v3962 = vpow.pop %v3961
        %v3963 = vmul.f32 %v3958, 1.442695
        %v3964 = vpow.pop %v3963
        %v3965 = vmul.f32 %v3959, 1.442695
        %v3966 = vpow.pop %v3965
        %v3967 = vmul.f32 %v3960, 1.442695
        %v3968 = vpow.pop %v3967
        %v3969 = vadd.f32 %v3962, 1.0
        %v3970 = vadd.f32 %v3964, 1.0
        %v3971 = vadd.f32 %v3966, 1.0
        %v3972 = vadd.f32 %v3968, 1.0
        %v3973 = vrcp.pop %v3969
        %v3974 = vmul.f32 1.0, %v3973
        %v3975 = vrcp.pop %v3970
        %v3976 = vmul.f32 1.0, %v3975
        %v3977 = vrcp.pop %v3971
        %v3978 = vmul.f32 1.0, %v3977
        %v3979 = vrcp.pop %v3972
        %v3980 = vmul.f32 1.0, %v3979
        %v3981 = vadd.f32 %v3863, %v1362
        %v3982 = vadd.f32 %v3866, %v1362
        %v3983 = vmul.f32 %v3974, %v3981
        %v3984 = vmul.f32 %v3978, %v3982
        %v3985 = vadd.f32 %v3947, %v3983
        %v3986 = vadd.f32 %v3950, %v3984
        %v3987 = vtanh.pop %v3985
        %v3988 = vtanh.pop %v3986
        %v3989 = vsub.f32 %v3621, %v3987
        %v3990 = vsub.f32 %v3622, %v3988
        %v3991 = vmul.f32 %v3976, %v3989
        %v3992 = vmul.f32 %v3980, %v3990
        %v3993 = vadd.f32 %v3987, %v3991
        %v3994 = vadd.f32 %v3988, %v3992
        %v3995 = vsel %vm3781, %v3993, %v3621
        %v3996 = vsel %vm3781, %v3994, %v3622
        %v3997 = vpack.c.bf16 %v3996, %v3995
        %v3999 = vunpack.c.l.b16 %v3997
        %v4000 = vunpack.c.h.b16 %v3997
        %v4001 = vpack.c.b16 %v3999, %v3999
        %v4002 = vpack.c.b16 %v4000, %v4000
        %s4005 = scalar_lea.vmem %s466, 56 [#allocation16]
        %4006 = vst [vmem:[%s4005] sm:$0xf] %v4001
        %4007 = vst [vmem:[%s4005 + $0x4] sm:$0xf] %v4002
        %4008 = vst [vmem:[#allocation17] sm:$0xff] %v3782
        %4009 = vst [vmem:[#allocation17 + $0x8] sm:$0xff] %v3783
        %4010 = vst [vmem:[%s586] sm:$0xff] %v3995
        %4011 = vst [vmem:[%s586 + $0x8] sm:$0xff] %v3996
        %s4012 = sand.u32 %s229, 1
        %s4013 = scalar_lea.sflag [#allocation4], %s4012
        %s4014 = sand.u32 %s229, 1
        %s4015 = smul.addr %s4014, 64
        %s4016 = scalar_lea.vmem [#allocation16], %s4015
        // Predicated region
        $region89: #{language_model_forward.2} parent=51 // pred_check
          %p4017 = pneg %p239
        $region90: #{language_model_forward.2} parent=51 // pred_check_branch
          %4019 = sbr.rel (%p4017) target = $region92
        $region91: #{language_model_forward.2} parent=51 // pred_region
          %s4020 = smul.u32 8, %s37
          %s4021 = smul.u32 2, %s36
          %s4023 = ssub.s32 1024, 1024
          %4024 = vsyncadd %s4013, %s4023
          %s4025 = smul.addr %s4020, 2
          %s4026 = sadd.s32 %s4021, %s4025
          %s4027 = smul.addr %s4026, 64
          %s4028 = scalar_lea.hbm %s8, %s4027
          %s4029 = sshll.u32 %s4016, 4
          %s4030 = int_to_ptr.vmem [resolvable:$true] %s4029
          %4035 = dma.vmem_to_hbm [thread:$0]  %s4030, 1024, %s4028, %s4013, 64, 64, 4
        $region92: #{language_model_forward.2} parent=51 // pred_fallthru
          _
        // Predicated region
        $region93: #{language_model_forward.2} parent=51 // pred_check
          %p4036 = pneg %p265
        $region94: #{language_model_forward.2} parent=51 // pred_check_branch
          %4038 = sbr.rel (%p4036) target = $region96
        $region95: #{language_model_forward.2} parent=51 // pred_region
          %s4039 = smul.u32 2, %s36
          %s4041 = ssub.s32 512, 512
          %4042 = vsyncadd [#allocation18], %s4041
          %s4043 = smul.addr %s4039, 128
          %s4044 = scalar_lea.hbm %s9, %s4043
          %s4045 = sshll.u32 [#allocation17], 4
          %s4046 = int_to_ptr.vmem [resolvable:$true] %s4045
          %4051 = dma.vmem_to_hbm [thread:$0]  %s4046, 512, %s4044, [#allocation18], 128, 128, 8
        $region96: #{language_model_forward.2} parent=51 // pred_fallthru
          _
        // Predicated region
        $region97: #{language_model_forward.2} parent=51 // pred_check
          %p4052 = pneg %p265
        $region98: #{language_model_forward.2} parent=51 // pred_check_branch
          %4054 = sbr.rel (%p4052) target = $region100
        $region99: #{language_model_forward.2} parent=51 // pred_region
          %4055 = dma.done [#allocation18], 512
        $region100: #{language_model_forward.2} parent=51 // pred_fallthru
          _
      $region52: #{language_model_forward.2} parent=5 // pred_fallthru
        _
      %p4056 = scmp.le.s32.totalorder 2, %s27
      // Predicated region
      $region101: #{language_model_forward.2} parent=5 // pred_check
        %p4057 = pneg %p4056
      $region102: #{language_model_forward.2} parent=5 // pred_check_branch
        %4059 = sbr.rel (%p4057) target = $region104
      $region103: #{language_model_forward.2} parent=5 // pred_region
        %s4060 = ssub.s32 %s27, 2
        // Predicated region
        $region105: #{language_model_forward.2} parent=103 // pred_check
          %p4061 = pneg %p245
        $region106: #{language_model_forward.2} parent=103 // pred_check_branch
          %4063 = sbr.rel (%p4061) target = $region108
        $region107: #{language_model_forward.2} parent=103 // pred_region
          %s4064 = sand.u32 %s230, 1
          %s4065 = scalar_lea.sflag [#allocation4], %s4064
          %s4066 = sand.u32 %s230, 1
          %s4067 = smul.addr %s4066, 64
          %s4068 = scalar_lea.vmem [#allocation16], %s4067
          %4069 = dma.done %s4065, 1024
        $region108: #{language_model_forward.2} parent=103 // pred_fallthru
          _
      $region104: #{language_model_forward.2} parent=5 // pred_fallthru
        _
    $region6: #{language_model_forward.2} parent=1 // loop_footer
      %s31 = sadd.s32 1, %s27
    $region7: #{language_model_forward.2} parent=1 // loop_footer_branch
      %26 = sbr.rel target = $region3
    $region8: #{language_model_forward.2} parent=1 // loop_exit
      _
    %4070 = vsyncpa [#allocation3], 1
    %s4071 = scalar_lea.sflag [#allocation3], 1
    %4072 = vsyncpa %s4071, 1
    %4073 = vsyncpa [#allocation6], 1
    %4074 = vsyncpa [#allocation9], 1
    %4075 = vsyncpa [#allocation12], 1
    %4076 = vsyncpa [#allocation15], 1
    %4077 = vsyncpa [#allocation4], 1
    %s4078 = scalar_lea.sflag [#allocation4], 1
    %4079 = vsyncpa %s4078, 1
    %4080 = vsyncpa [#allocation18], 1

</llo_original>
